<compile_context>
chip_gen: v7x
topology: tpu7x:2x2x1
jax: 0.10.0
libtpu: 0.0.40
codegen_flags: <defaults>
</compile_context>

<pallas_src>
import math

import jax
import jax.numpy as jnp
from jax.experimental import pallas as pl
from jax.experimental.pallas import tpu as pltpu

# ---------------- config (small, deterministic) ----------------
NUM_CLASSES = 5
NUM_QUERIES = 8
D_MODEL = 32
NHEADS = 4
DIM_FFN = 64
BACKBONE_DIM = 48
PATCH = 8              # backbone stem: kernel = stride = 8
NUM_ENC_LAYERS = 2     # DETR uses 6; reduced for this synthetic kernel
NUM_DEC_LAYERS = 2

IMG_SHAPE = (2, 3, 32, 32)   # (B, C, H, W)


# ---------------- BlockSpec helpers ----------------
def _rep_spec(shape):
    """Full-array block, replicated across the (1-D) grid."""
    n = len(shape)

    def imap(b):
        return (0,) * n

    return pl.BlockSpec(shape, imap)


def _batch_spec(rows, cols):
    """Per-grid-step slice of a (B, rows, cols) array; batch dim squeezed."""
    return pl.BlockSpec((None, rows, cols), lambda b: (b, 0, 0))


# ---------------- in-kernel math helpers ----------------
def _layer_norm(x, g, b, eps=1e-5):
    mu = jnp.mean(x, axis=-1, keepdims=True)
    var = jnp.mean(jnp.square(x - mu), axis=-1, keepdims=True)
    return (x - mu) * jax.lax.rsqrt(var + eps) * g + b


def _mha_fused(q_in, k_in, v_in, wq, bq, wk, bk, wv, bv, wo, bo):
    """Multi-head attention, fully in-register.
    q_in:(Sq,D) k_in/v_in:(Sk,D) f32.
    wq/wk/wv: refs (H, D, Dh) bf16; bq/bk/bv: refs (H, 1, Dh) f32;
    wo: ref (H, Dh, D) bf16; bo: ref (1, D) f32.  Returns (Sq, D) f32."""
    H = NHEADS
    Dh = D_MODEL // NHEADS
    scale = 1.0 / math.sqrt(Dh)
    qb = q_in.astype(jnp.bfloat16)
    kb = k_in.astype(jnp.bfloat16)
    vb = v_in.astype(jnp.bfloat16)
    acc = None
    for h in range(H):  # static unroll (H=4); per-head weights read directly
        qh = jnp.dot(qb, wq[h], preferred_element_type=jnp.float32) + bq[h]
        kh = jnp.dot(kb, wk[h], preferred_element_type=jnp.float32) + bk[h]
        vh = jnp.dot(vb, wv[h], preferred_element_type=jnp.float32) + bv[h]
        s = jnp.einsum("qd,kd->qk",
                       qh.astype(jnp.bfloat16), kh.astype(jnp.bfloat16),
                       preferred_element_type=jnp.float32) * scale
        s = s - jnp.max(s, axis=-1, keepdims=True)          # f32 softmax
        p = jnp.exp(s)
        p = p / jnp.sum(p, axis=-1, keepdims=True)
        oh = jnp.dot(p.astype(jnp.bfloat16), vh.astype(jnp.bfloat16),
                     preferred_element_type=jnp.float32)     # (Sq, Dh)
        c = jnp.dot(oh.astype(jnp.bfloat16), wo[h],
                    preferred_element_type=jnp.float32)      # (Sq, D)
        acc = c if acc is None else acc + c
    return acc + bo[...]


def _ffn(x, w1, b1, w2, b2):
    h = jnp.dot(x.astype(jnp.bfloat16), w1[...],
                preferred_element_type=jnp.float32) + b1[...]
    h = jnp.maximum(h, 0.0)
    return jnp.dot(h.astype(jnp.bfloat16), w2[...],
                   preferred_element_type=jnp.float32) + b2[...]


# ---------------- fused Pallas kernels ----------------
def _stem_kernel(x_ref, sw_ref, sb_ref, pw_ref, pb_ref, out_ref):
    """backbone conv stem (im2col matmul) + ReLU + 1x1 input_proj."""
    x = x_ref[...]
    f = jnp.dot(x.astype(jnp.bfloat16), sw_ref[...],
                preferred_element_type=jnp.float32) + sb_ref[...]
    f = jnp.maximum(f, 0.0)
    y = jnp.dot(f.astype(jnp.bfloat16), pw_ref[...],
                preferred_element_type=jnp.float32) + pb_ref[...]
    out_ref[...] = y.astype(out_ref.dtype)


def _enc_layer_kernel(src_ref, pos_ref,
                      wq, bq, wk, bk, wv, bv, wo, bo,
                      ln1g, ln1b,
                      w1, b1, w2, b2,
                      ln2g, ln2b,
                      out_ref):
    """One full DETR encoder layer (post-norm) for one image."""
    src = src_ref[...]                 # (S, D)
    pos = pos_ref[...]
    qk = src + pos                     # DETR: pos added to q,k only
    attn = _mha_fused(qk, qk, src, wq, bq, wk, bk, wv, bv, wo, bo)
    x = _layer_norm(src + attn, ln1g[...], ln1b[...])
    y = _ffn(x, w1, b1, w2, b2)
    out_ref[...] = _layer_norm(x + y, ln2g[...], ln2b[...]).astype(out_ref.dtype)


def _dec_layer_kernel(tgt_ref, qpos_ref, mem_ref, pos_ref,
                      swq, sbq, swk, sbk, swv, sbv, swo, sbo,
                      ln1g, ln1b,
                      cwq, cbq, cwk, cbk, cwv, cbv, cwo, cbo,
                      ln2g, ln2b,
                      w1, b1, w2, b2,
                      ln3g, ln3b,
                      out_ref):
    """One full DETR decoder layer (self-attn + cross-attn + FFN) per image."""
    tgt = tgt_ref[...]                 # (Q, D)
    qpos = qpos_ref[...]               # (Q, D)
    mem = mem_ref[...]                 # (S, D)
    pos = pos_ref[...]                 # (S, D)

    qk = tgt + qpos
    a = _mha_fused(qk, qk, tgt, swq, sbq, swk, sbk, swv, sbv, swo, sbo)
    x = _layer_norm(tgt + a, ln1g[...], ln1b[...])

    a = _mha_fused(x + qpos, mem + pos, mem,
                   cwq, cbq, cwk, cbk, cwv, cbv, cwo, cbo)
    x = _layer_norm(x + a, ln2g[...], ln2b[...])

    y = _ffn(x, w1, b1, w2, b2)
    out_ref[...] = _layer_norm(x + y, ln3g[...], ln3b[...]).astype(out_ref.dtype)


def _head_kernel(hs_ref, ng, nb, cw, cb,
                 bw1, bb1, bw2, bb2, bw3, bb3,
                 logits_ref, boxes_ref):
    """Final decoder LayerNorm + class head + 3-layer bbox MLP + sigmoid."""
    x = _layer_norm(hs_ref[...], ng[...], nb[...])
    xb = x.astype(jnp.bfloat16)
    logits_ref[...] = (jnp.dot(xb, cw[...],
                               preferred_element_type=jnp.float32)
                       + cb[...]).astype(logits_ref.dtype)
    h = jnp.maximum(jnp.dot(xb, bw1[...],
                            preferred_element_type=jnp.float32) + bb1[...], 0.0)
    h = jnp.maximum(jnp.dot(h.astype(jnp.bfloat16), bw2[...],
                            preferred_element_type=jnp.float32) + bb2[...], 0.0)
    b = jnp.dot(h.astype(jnp.bfloat16), bw3[...],
                preferred_element_type=jnp.float32) + bb3[...]
    boxes_ref[...] = jax.nn.sigmoid(b).astype(boxes_ref.dtype)


# ---------------- pallas_call wrappers ----------------
def _prep_attn(p):
    """Reshape attention weights to per-head layout and cast to bf16."""
    H, Dh = NHEADS, D_MODEL // NHEADS
    wq = p["wq"].reshape(D_MODEL, H, Dh).transpose(1, 0, 2).astype(jnp.bfloat16)
    wk = p["wk"].reshape(D_MODEL, H, Dh).transpose(1, 0, 2).astype(jnp.bfloat16)
    wv = p["wv"].reshape(D_MODEL, H, Dh).transpose(1, 0, 2).astype(jnp.bfloat16)
    bq = p["bq"].reshape(H, 1, Dh)
    bk = p["bk"].reshape(H, 1, Dh)
    bv = p["bv"].reshape(H, 1, Dh)
    wo = p["wo"].reshape(H, Dh, D_MODEL).astype(jnp.bfloat16)
    bo = p["bo"].reshape(1, D_MODEL)
    return wq, bq, wk, bk, wv, bv, wo, bo


def stem_proj(x2d, params):
    M = x2d.shape[0]
    sw = params["stem_w"].astype(jnp.bfloat16)
    sb = params["stem_b"].reshape(1, -1)
    pw = params["proj_w"].astype(jnp.bfloat16)
    pb = params["proj_b"].reshape(1, -1)
    ins = (x2d, sw, sb, pw, pb)
    return pl.pallas_call(
        _stem_kernel,
        out_shape=jax.ShapeDtypeStruct((M, D_MODEL), jnp.float32),
        grid=(1,),
        in_specs=[_rep_spec(a.shape) for a in ins],
        out_specs=_rep_spec((M, D_MODEL)),
    )(*ins)


def encoder_layer(src, pos, lp):
    B, S, D = src.shape
    aw = _prep_attn(lp["self_attn"])
    ln1g = lp["ln1"]["g"].reshape(1, D)
    ln1b = lp["ln1"]["b"].reshape(1, D)
    ln2g = lp["ln2"]["g"].reshape(1, D)
    ln2b = lp["ln2"]["b"].reshape(1, D)
    w1 = lp["ffn"]["w1"].astype(jnp.bfloat16)
    b1 = lp["ffn"]["b1"].reshape(1, -1)
    w2 = lp["ffn"]["w2"].astype(jnp.bfloat16)
    b2 = lp["ffn"]["b2"].reshape(1, -1)
    weights = (*aw, ln1g, ln1b, w1, b1, w2, b2, ln2g, ln2b)
    in_specs = ([_batch_spec(S, D), _rep_spec((S, D))]
                + [_rep_spec(a.shape) for a in weights])
    return pl.pallas_call(
        _enc_layer_kernel,
        out_shape=jax.ShapeDtypeStruct((B, S, D), jnp.float32),
        grid=(B,),
        in_specs=in_specs,
        out_specs=_batch_spec(S, D),
        compiler_params=pltpu.CompilerParams(dimension_semantics=("parallel",)),
    )(src, pos, *weights)


def decoder_layer(tgt, qpos, memory, pos, lp):
    B, Q, D = tgt.shape
    S = memory.shape[1]
    sa = _prep_attn(lp["self_attn"])
    ca = _prep_attn(lp["cross_attn"])
    ln1g = lp["ln1"]["g"].reshape(1, D)
    ln1b = lp["ln1"]["b"].reshape(1, D)
    ln2g = lp["ln2"]["g"].reshape(1, D)
    ln2b = lp["ln2"]["b"].reshape(1, D)
    ln3g = lp["ln3"]["g"].reshape(1, D)
    ln3b = lp["ln3"]["b"].reshape(1, D)
    w1 = lp["ffn"]["w1"].astype(jnp.bfloat16)
    b1 = lp["ffn"]["b1"].reshape(1, -1)
    w2 = lp["ffn"]["w2"].astype(jnp.bfloat16)
    b2 = lp["ffn"]["b2"].reshape(1, -1)
    weights = (*sa, ln1g, ln1b, *ca, ln2g, ln2b, w1, b1, w2, b2, ln3g, ln3b)
    in_specs = ([_batch_spec(Q, D), _rep_spec((Q, D)),
                 _batch_spec(S, D), _rep_spec((S, D))]
                + [_rep_spec(a.shape) for a in weights])
    return pl.pallas_call(
        _dec_layer_kernel,
        out_shape=jax.ShapeDtypeStruct((B, Q, D), jnp.float32),
        grid=(B,),
        in_specs=in_specs,
        out_specs=_batch_spec(Q, D),
        compiler_params=pltpu.CompilerParams(dimension_semantics=("parallel",)),
    )(tgt, qpos, memory, pos, *weights)


def heads(hs2d, params):
    M = hs2d.shape[0]
    ng = params["dec_norm"]["g"].reshape(1, D_MODEL)
    nb = params["dec_norm"]["b"].reshape(1, D_MODEL)
    cw = params["cls_w"].astype(jnp.bfloat16)
    cb = params["cls_b"].reshape(1, -1)
    bw1 = params["bbox_w1"].astype(jnp.bfloat16)
    bb1 = params["bbox_b1"].reshape(1, -1)
    bw2 = params["bbox_w2"].astype(jnp.bfloat16)
    bb2 = params["bbox_b2"].reshape(1, -1)
    bw3 = params["bbox_w3"].astype(jnp.bfloat16)
    bb3 = params["bbox_b3"].reshape(1, -1)
    ins = (hs2d, ng, nb, cw, cb, bw1, bb1, bw2, bb2, bw3, bb3)
    return pl.pallas_call(
        _head_kernel,
        out_shape=(jax.ShapeDtypeStruct((M, NUM_CLASSES), jnp.float32),
                   jax.ShapeDtypeStruct((M, 4), jnp.float32)),
        grid=(1,),
        in_specs=[_rep_spec(a.shape) for a in ins],
        out_specs=(_rep_spec((M, NUM_CLASSES)), _rep_spec((M, 4))),
    )(*ins)


# ---------------- positional encoding (constant, folded by XLA under jit) ----
def sine_pos_embed(Hf, Wf, D):
    """DETR PositionEmbeddingSine (no padding mask) -> (Hf*Wf, D)."""
    num_pos_feats = D // 2
    temperature = 10000.0
    eps = 1e-6
    y_embed = jnp.arange(1, Hf + 1, dtype=jnp.float32)[:, None] * jnp.ones((1, Wf))
    x_embed = jnp.arange(1, Wf + 1, dtype=jnp.float32)[None, :] * jnp.ones((Hf, 1))
    y_embed = y_embed / (y_embed[-1:, :] + eps) * (2 * math.pi)
    x_embed = x_embed / (x_embed[:, -1:] + eps) * (2 * math.pi)
    dim_t = jnp.arange(num_pos_feats, dtype=jnp.float32)
    dim_t = temperature ** (2.0 * jnp.floor(dim_t / 2.0) / num_pos_feats)
    pos_x = x_embed[:, :, None] / dim_t
    pos_y = y_embed[:, :, None] / dim_t
    pos_x = jnp.stack([jnp.sin(pos_x[:, :, 0::2]),
                       jnp.cos(pos_x[:, :, 1::2])], axis=3).reshape(Hf, Wf, -1)
    pos_y = jnp.stack([jnp.sin(pos_y[:, :, 0::2]),
                       jnp.cos(pos_y[:, :, 1::2])], axis=3).reshape(Hf, Wf, -1)
    pos = jnp.concatenate([pos_y, pos_x], axis=-1)
    return pos.reshape(Hf * Wf, D)


# ---------------- parameter init (deterministic, in-script) ----------------
class KeyGen:
    def __init__(self, key):
        self._key = key

    def __call__(self):
        self._key, sub = jax.random.split(self._key)
        return sub


def linear_params(kg, fan_in, fan_out):
    bound = 1.0 / math.sqrt(fan_in)
    w = jax.random.uniform(kg(), (fan_in, fan_out), jnp.float32, -bound, bound)
    b = jax.random.uniform(kg(), (fan_out,), jnp.float32, -bound, bound)
    return w, b


def ln_params(D):
    return {"g": jnp.ones((D,), jnp.float32), "b": jnp.zeros((D,), jnp.float32)}


def attn_params(kg, D):
    p = {}
    for name in ("q", "k", "v", "o"):
        w, b = linear_params(kg, D, D)
        p["w" + name], p["b" + name] = w, b
    return p


def init_params(seed=0):
    kg = KeyGen(jax.random.PRNGKey(seed))
    C = IMG_SHAPE[1]
    params = {}
    params["stem_w"], params["stem_b"] = linear_params(kg, C * PATCH * PATCH, BACKBONE_DIM)
    params["proj_w"], params["proj_b"] = linear_params(kg, BACKBONE_DIM, D_MODEL)
    params["query_embed"] = 0.02 * jax.random.normal(kg(), (NUM_QUERIES, D_MODEL), jnp.float32)

    params["enc_layers"] = []
    for _ in range(NUM_ENC_LAYERS):
        w1, b1 = linear_params(kg, D_MODEL, DIM_FFN)
        w2, b2 = linear_params(kg, DIM_FFN, D_MODEL)
        params["enc_layers"].append({
            "self_attn": attn_params(kg, D_MODEL),
            "ln1": ln_params(D_MODEL),
            "ffn": {"w1": w1, "b1": b1, "w2": w2, "b2": b2},
            "ln2": ln_params(D_MODEL),
        })

    params["dec_layers"] = []
    for _ in range(NUM_DEC_LAYERS):
        w1, b1 = linear_params(kg, D_MODEL, DIM_FFN)
        w2, b2 = linear_params(kg, DIM_FFN, D_MODEL)
        params["dec_layers"].append({
            "self_attn": attn_params(kg, D_MODEL),
            "ln1": ln_params(D_MODEL),
            "cross_attn": attn_params(kg, D_MODEL),
            "ln2": ln_params(D_MODEL),
            "ffn": {"w1": w1, "b1": b1, "w2": w2, "b2": b2},
            "ln3": ln_params(D_MODEL),
        })

    params["dec_norm"] = ln_params(D_MODEL)
    # class_embed is the replaced head: Linear(in_features, num_classes)
    params["cls_w"], params["cls_b"] = linear_params(kg, D_MODEL, NUM_CLASSES)
    # bbox_embed: 3-layer MLP -> 4
    params["bbox_w1"], params["bbox_b1"] = linear_params(kg, D_MODEL, D_MODEL)
    params["bbox_w2"], params["bbox_b2"] = linear_params(kg, D_MODEL, D_MODEL)
    params["bbox_w3"], params["bbox_b3"] = linear_params(kg, D_MODEL, 4)
    return params


# ---------------- DETR forward (jitted) ----------------
@jax.jit
def vision_detr_forward(params, images):
    B, C, H, W = images.shape
    Hf, Wf = H // PATCH, W // PATCH
    S = Hf * Wf

    # backbone conv stem (kernel=stride=PATCH) via im2col (fused by XLA under
    # jit) + fused Pallas stem/input_proj kernel  (NCHW input)
    x = images.reshape(B, C, Hf, PATCH, Wf, PATCH)
    x = x.transpose(0, 2, 4, 1, 3, 5).reshape(B * S, C * PATCH * PATCH)
    src = stem_proj(x, params).reshape(B, S, D_MODEL)

    pos = sine_pos_embed(Hf, Wf, D_MODEL)        # (S, D), shared across batch

    # ----- transformer encoder (post-norm, DETR: pos on q,k only) -----
    for lp in params["enc_layers"]:
        src = encoder_layer(src, pos, lp)
    memory = src

    # ----- transformer decoder -----
    query_pos = params["query_embed"]            # (Q, D), shared across batch
    tgt = jnp.zeros((B, NUM_QUERIES, D_MODEL), jnp.float32)
    for lp in params["dec_layers"]:
        tgt = decoder_layer(tgt, query_pos, memory, pos, lp)

    # final decoder LayerNorm + prediction heads (one fused kernel)
    logits, boxes = heads(tgt.reshape(B * NUM_QUERIES, D_MODEL), params)
    return {"pred_logits": logits.reshape(B, NUM_QUERIES, NUM_CLASSES),
            "pred_boxes": boxes.reshape(B, NUM_QUERIES, 4)}


# ---------------- main ----------------
if __name__ == "__main__":
    key = jax.random.PRNGKey(0)
    k_img, k_param = jax.random.split(key)
    images = jax.random.normal(k_img, IMG_SHAPE, jnp.float32)
    params = init_params(seed=0)

    out = vision_detr_forward(params, images)
    jax.block_until_ready(out["pred_logits"])
    jax.block_until_ready(out["pred_boxes"])

    assert out["pred_logits"].shape == (IMG_SHAPE[0], NUM_QUERIES, NUM_CLASSES)
    assert out["pred_boxes"].shape == (IMG_SHAPE[0], NUM_QUERIES, 4)
    assert out["pred_logits"].dtype == jnp.float32
    assert out["pred_boxes"].dtype == jnp.float32
    assert bool(jnp.all(jnp.isfinite(out["pred_logits"])))
    assert bool(jnp.all(jnp.isfinite(out["pred_boxes"])))
    print("KERNEL_OK")
</pallas_src>

<mosaic_0001>
module attributes {stable_mosaic.version = 11 : i64} {
  func.func @_stem_kernel(%arg0: i32, %arg1: memref<32x192xf32, #tpu.memory_space<vmem>>, %arg2: memref<192x48xbf16, #tpu.memory_space<vmem>>, %arg3: memref<1x48xf32, #tpu.memory_space<vmem>>, %arg4: memref<48x32xbf16, #tpu.memory_space<vmem>>, %arg5: memref<1x32xf32, #tpu.memory_space<vmem>>, %arg6: memref<32x32xf32, #tpu.memory_space<vmem>>) attributes {dimension_semantics = [#tpu.dimension_semantics<arbitrary>], iteration_bounds = array<i64: 1>, scalar_prefetch = 0 : i64, scratch_operands = 0 : i64, tpu.core_type = #tpu.core_type<tc>, window_params = [{pipeline_mode = #tpu.pipeline_mode<synchronous>, transform_indices = @transform_0, window_bounds = array<i64: 32, 192>}, {pipeline_mode = #tpu.pipeline_mode<synchronous>, transform_indices = @transform_1, window_bounds = array<i64: 192, 48>}, {pipeline_mode = #tpu.pipeline_mode<synchronous>, transform_indices = @transform_2, window_bounds = array<i64: 1, 48>}, {pipeline_mode = #tpu.pipeline_mode<synchronous>, transform_indices = @transform_3, window_bounds = array<i64: 48, 32>}, {pipeline_mode = #tpu.pipeline_mode<synchronous>, transform_indices = @transform_4, window_bounds = array<i64: 1, 32>}, {pipeline_mode = #tpu.pipeline_mode<synchronous>, transform_indices = @transform_5, window_bounds = array<i64: 32, 32>}]} {
    %c0 = arith.constant 0 : index
    %c0_0 = arith.constant 0 : index
    %0 = vector.load %arg1[%c0, %c0_0] : memref<32x192xf32, #tpu.memory_space<vmem>>, vector<32x192xf32>
    %1 = arith.truncf %0 : vector<32x192xf32> to vector<32x192xbf16>
    %c0_1 = arith.constant 0 : index
    %c0_2 = arith.constant 0 : index
    %2 = vector.load %arg2[%c0_1, %c0_2] : memref<192x48xbf16, #tpu.memory_space<vmem>>, vector<192x48xbf16>
    %cst = arith.constant dense<0.000000e+00> : vector<32x48xf32>
    %3 = tpu.matmul %1, %2, %cst {dimension_numbers = #tpu.dot_dimension_numbers<[1], [0], [0], [1], [0, 0, 1, 1], [], []>} : vector<32x192xbf16>, vector<192x48xbf16>, vector<32x48xf32> -> vector<32x48xf32>
    %c0_3 = arith.constant 0 : index
    %c0_4 = arith.constant 0 : index
    %4 = vector.load %arg3[%c0_3, %c0_4] : memref<1x48xf32, #tpu.memory_space<vmem>>, vector<1x48xf32>
    %5 = vector.broadcast %4 : vector<1x48xf32> to vector<32x48xf32>
    %6 = arith.addf %3, %5 : vector<32x48xf32>
    %cst_5 = arith.constant 0.000000e+00 : f32
    %7 = vector.broadcast %cst_5 : f32 to vector<32x48xf32>
    %8 = arith.maximumf %6, %7 : vector<32x48xf32>
    %9 = arith.truncf %8 : vector<32x48xf32> to vector<32x48xbf16>
    %c0_6 = arith.constant 0 : index
    %c0_7 = arith.constant 0 : index
    %10 = vector.load %arg4[%c0_6, %c0_7] : memref<48x32xbf16, #tpu.memory_space<vmem>>, vector<48x32xbf16>
    %cst_8 = arith.constant dense<0.000000e+00> : vector<32x32xf32>
    %11 = tpu.matmul %9, %10, %cst_8 {dimension_numbers = #tpu.dot_dimension_numbers<[1], [0], [0], [1], [0, 0, 1, 1], [], []>} : vector<32x48xbf16>, vector<48x32xbf16>, vector<32x32xf32> -> vector<32x32xf32>
    %c0_9 = arith.constant 0 : index
    %c0_10 = arith.constant 0 : index
    %12 = vector.load %arg5[%c0_9, %c0_10] : memref<1x32xf32, #tpu.memory_space<vmem>>, vector<1x32xf32>
    %13 = vector.broadcast %12 : vector<1x32xf32> to vector<32x32xf32>
    %14 = arith.addf %11, %13 : vector<32x32xf32>
    %c0_11 = arith.constant 0 : index
    %c0_12 = arith.constant 0 : index
    %15 = vector.load %arg6[%c0_11, %c0_12] : memref<32x32xf32, #tpu.memory_space<vmem>>, vector<32x32xf32>
    tpu.vector_store %arg6[%c0_11, %c0_12], %14 {strides = array<i32>} : memref<32x32xf32, #tpu.memory_space<vmem>>, vector<32x32xf32>,
    return
  }
  func.func @transform_0(%arg0: i32) -> (i32, i32) {
    %c0_i32 = arith.constant 0 : i32
    %c0_i32_0 = arith.constant 0 : i32
    %c0_i32_1 = arith.constant 0 : i32
    return %c0_i32, %c0_i32_0 : i32, i32
  }
  func.func @transform_1(%arg0: i32) -> (i32, i32) {
    %c0_i32 = arith.constant 0 : i32
    %c0_i32_0 = arith.constant 0 : i32
    %c0_i32_1 = arith.constant 0 : i32
    return %c0_i32, %c0_i32_0 : i32, i32
  }
  func.func @transform_2(%arg0: i32) -> (i32, i32) {
    %c0_i32 = arith.constant 0 : i32
    %c0_i32_0 = arith.constant 0 : i32
    %c0_i32_1 = arith.constant 0 : i32
    return %c0_i32, %c0_i32_0 : i32, i32
  }
  func.func @transform_3(%arg0: i32) -> (i32, i32) {
    %c0_i32 = arith.constant 0 : i32
    %c0_i32_0 = arith.constant 0 : i32
    %c0_i32_1 = arith.constant 0 : i32
    return %c0_i32, %c0_i32_0 : i32, i32
  }
  func.func @transform_4(%arg0: i32) -> (i32, i32) {
    %c0_i32 = arith.constant 0 : i32
    %c0_i32_0 = arith.constant 0 : i32
    %c0_i32_1 = arith.constant 0 : i32
    return %c0_i32, %c0_i32_0 : i32, i32
  }
  func.func @transform_5(%arg0: i32) -> (i32, i32) {
    %c0_i32 = arith.constant 0 : i32
    %c0_i32_0 = arith.constant 0 : i32
    %c0_i32_1 = arith.constant 0 : i32
    return %c0_i32, %c0_i32_0 : i32, i32
  }
}

module attributes {stable_mosaic.version = 11 : i64} {
  func.func @_enc_layer_kernel(%arg0: i32, %arg1: memref<1x16x32xf32, #tpu.memory_space<vmem>>, %arg2: memref<16x32xf32, #tpu.memory_space<vmem>>, %arg3: memref<4x32x8xbf16, #tpu.memory_space<vmem>>, %arg4: memref<4x1x8xf32, #tpu.memory_space<vmem>>, %arg5: memref<4x32x8xbf16, #tpu.memory_space<vmem>>, %arg6: memref<4x1x8xf32, #tpu.memory_space<vmem>>, %arg7: memref<4x32x8xbf16, #tpu.memory_space<vmem>>, %arg8: memref<4x1x8xf32, #tpu.memory_space<vmem>>, %arg9: memref<4x8x32xbf16, #tpu.memory_space<vmem>>, %arg10: memref<1x32xf32, #tpu.memory_space<vmem>>, %arg11: memref<1x32xf32, #tpu.memory_space<vmem>>, %arg12: memref<1x32xf32, #tpu.memory_space<vmem>>, %arg13: memref<32x64xbf16, #tpu.memory_space<vmem>>, %arg14: memref<1x64xf32, #tpu.memory_space<vmem>>, %arg15: memref<64x32xbf16, #tpu.memory_space<vmem>>, %arg16: memref<1x32xf32, #tpu.memory_space<vmem>>, %arg17: memref<1x32xf32, #tpu.memory_space<vmem>>, %arg18: memref<1x32xf32, #tpu.memory_space<vmem>>, %arg19: memref<1x16x32xf32, #tpu.memory_space<vmem>>) attributes {dimension_semantics = [#tpu.dimension_semantics<parallel>], iteration_bounds = array<i64: 2>, scalar_prefetch = 0 : i64, scratch_operands = 0 : i64, tpu.core_type = #tpu.core_type<tc>, window_params = [{transform_indices = @transform_0, window_bounds = array<i64: 1, 16, 32>}, {pipeline_mode = #tpu.pipeline_mode<synchronous>, transform_indices = @transform_1, window_bounds = array<i64: 16, 32>}, {pipeline_mode = #tpu.pipeline_mode<synchronous>, transform_indices = @transform_2, window_bounds = array<i64: 4, 32, 8>}, {pipeline_mode = #tpu.pipeline_mode<synchronous>, transform_indices = @transform_3, window_bounds = array<i64: 4, 1, 8>}, {pipeline_mode = #tpu.pipeline_mode<synchronous>, transform_indices = @transform_4, window_bounds = array<i64: 4, 32, 8>}, {pipeline_mode = #tpu.pipeline_mode<synchronous>, transform_indices = @transform_5, window_bounds = array<i64: 4, 1, 8>}, {pipeline_mode = #tpu.pipeline_mode<synchronous>, transform_indices = @transform_6, window_bounds = array<i64: 4, 32, 8>}, {pipeline_mode = #tpu.pipeline_mode<synchronous>, transform_indices = @transform_7, window_bounds = array<i64: 4, 1, 8>}, {pipeline_mode = #tpu.pipeline_mode<synchronous>, transform_indices = @transform_8, window_bounds = array<i64: 4, 8, 32>}, {pipeline_mode = #tpu.pipeline_mode<synchronous>, transform_indices = @transform_9, window_bounds = array<i64: 1, 32>}, {pipeline_mode = #tpu.pipeline_mode<synchronous>, transform_indices = @transform_10, window_bounds = array<i64: 1, 32>}, {pipeline_mode = #tpu.pipeline_mode<synchronous>, transform_indices = @transform_11, window_bounds = array<i64: 1, 32>}, {pipeline_mode = #tpu.pipeline_mode<synchronous>, transform_indices = @transform_12, window_bounds = array<i64: 32, 64>}, {pipeline_mode = #tpu.pipeline_mode<synchronous>, transform_indices = @transform_13, window_bounds = array<i64: 1, 64>}, {pipeline_mode = #tpu.pipeline_mode<synchronous>, transform_indices = @transform_14, window_bounds = array<i64: 64, 32>}, {pipeline_mode = #tpu.pipeline_mode<synchronous>, transform_indices = @transform_15, window_bounds = array<i64: 1, 32>}, {pipeline_mode = #tpu.pipeline_mode<synchronous>, transform_indices = @transform_16, window_bounds = array<i64: 1, 32>}, {pipeline_mode = #tpu.pipeline_mode<synchronous>, transform_indices = @transform_17, window_bounds = array<i64: 1, 32>}, {transform_indices = @transform_18, window_bounds = array<i64: 1, 16, 32>}]} {
    %c0 = arith.constant 0 : index
    %c0_0 = arith.constant 0 : index
    %c0_1 = arith.constant 0 : index
    %0 = vector.load %arg1[%c0, %c0_0, %c0_1] : memref<1x16x32xf32, #tpu.memory_space<vmem>>, vector<1x16x32xf32>
    %1 = vector.shape_cast %0 : vector<1x16x32xf32> to vector<16x32xf32>
    %c0_2 = arith.constant 0 : index
    %c0_3 = arith.constant 0 : index
    %2 = vector.load %arg2[%c0_2, %c0_3] : memref<16x32xf32, #tpu.memory_space<vmem>>, vector<16x32xf32>
    %3 = arith.addf %1, %2 : vector<16x32xf32>
    %4 = arith.truncf %3 : vector<16x32xf32> to vector<16x32xbf16>
    %5 = arith.truncf %3 : vector<16x32xf32> to vector<16x32xbf16>
    %6 = arith.truncf %1 : vector<16x32xf32> to vector<16x32xbf16>
    %c0_4 = arith.constant 0 : index
    %c0_5 = arith.constant 0 : index
    %c0_6 = arith.constant 0 : index
    %7 = vector.load %arg3[%c0_4, %c0_5, %c0_6] : memref<4x32x8xbf16, #tpu.memory_space<vmem>>, vector<1x32x8xbf16>
    %8 = vector.shape_cast %7 : vector<1x32x8xbf16> to vector<32x8xbf16>
    %cst = arith.constant dense<0.000000e+00> : vector<16x8xf32>
    %9 = tpu.matmul %4, %8, %cst {dimension_numbers = #tpu.dot_dimension_numbers<[1], [0], [0], [1], [0, 0, 1, 1], [], []>} : vector<16x32xbf16>, vector<32x8xbf16>, vector<16x8xf32> -> vector<16x8xf32>
    %c0_7 = arith.constant 0 : index
    %c0_8 = arith.constant 0 : index
    %c0_9 = arith.constant 0 : index
    %10 = vector.load %arg4[%c0_7, %c0_8, %c0_9] : memref<4x1x8xf32, #tpu.memory_space<vmem>>, vector<1x1x8xf32>
    %11 = vector.shape_cast %10 : vector<1x1x8xf32> to vector<1x8xf32>
    %12 = vector.broadcast %11 : vector<1x8xf32> to vector<16x8xf32>
    %13 = arith.addf %9, %12 : vector<16x8xf32>
    %c0_10 = arith.constant 0 : index
    %c0_11 = arith.constant 0 : index
    %c0_12 = arith.constant 0 : index
    %14 = vector.load %arg5[%c0_10, %c0_11, %c0_12] : memref<4x32x8xbf16, #tpu.memory_space<vmem>>, vector<1x32x8xbf16>
    %15 = vector.shape_cast %14 : vector<1x32x8xbf16> to vector<32x8xbf16>
    %cst_13 = arith.constant dense<0.000000e+00> : vector<16x8xf32>
    %16 = tpu.matmul %5, %15, %cst_13 {dimension_numbers = #tpu.dot_dimension_numbers<[1], [0], [0], [1], [0, 0, 1, 1], [], []>} : vector<16x32xbf16>, vector<32x8xbf16>, vector<16x8xf32> -> vector<16x8xf32>
    %c0_14 = arith.constant 0 : index
    %c0_15 = arith.constant 0 : index
    %c0_16 = arith.constant 0 : index
    %17 = vector.load %arg6[%c0_14, %c0_15, %c0_16] : memref<4x1x8xf32, #tpu.memory_space<vmem>>, vector<1x1x8xf32>
    %18 = vector.shape_cast %17 : vector<1x1x8xf32> to vector<1x8xf32>
    %19 = vector.broadcast %18 : vector<1x8xf32> to vector<16x8xf32>
    %20 = arith.addf %16, %19 : vector<16x8xf32>
    %c0_17 = arith.constant 0 : index
    %c0_18 = arith.constant 0 : index
    %c0_19 = arith.constant 0 : index
    %21 = vector.load %arg7[%c0_17, %c0_18, %c0_19] : memref<4x32x8xbf16, #tpu.memory_space<vmem>>, vector<1x32x8xbf16>
    %22 = vector.shape_cast %21 : vector<1x32x8xbf16> to vector<32x8xbf16>
    %cst_20 = arith.constant dense<0.000000e+00> : vector<16x8xf32>
    %23 = tpu.matmul %6, %22, %cst_20 {dimension_numbers = #tpu.dot_dimension_numbers<[1], [0], [0], [1], [0, 0, 1, 1], [], []>} : vector<16x32xbf16>, vector<32x8xbf16>, vector<16x8xf32> -> vector<16x8xf32>
    %c0_21 = arith.constant 0 : index
    %c0_22 = arith.constant 0 : index
    %c0_23 = arith.constant 0 : index
    %24 = vector.load %arg8[%c0_21, %c0_22, %c0_23] : memref<4x1x8xf32, #tpu.memory_space<vmem>>, vector<1x1x8xf32>
    %25 = vector.shape_cast %24 : vector<1x1x8xf32> to vector<1x8xf32>
    %26 = vector.broadcast %25 : vector<1x8xf32> to vector<16x8xf32>
    %27 = arith.addf %23, %26 : vector<16x8xf32>
    %28 = arith.truncf %13 : vector<16x8xf32> to vector<16x8xbf16>
    %29 = arith.truncf %20 : vector<16x8xf32> to vector<16x8xbf16>
    "tpu.trace_start"() <{level = 10 : i32, message = "qd,kd->qk"}> : () -> ()
    %cst_24 = arith.constant dense<0.000000e+00> : vector<16x16xf32>
    %30 = tpu.matmul %28, %29, %cst_24 {dimension_numbers = #tpu.dot_dimension_numbers<[1], [1], [0], [0], [0, 0, 1, 0], [], []>} : vector<16x8xbf16>, vector<16x8xbf16>, vector<16x16xf32> -> vector<16x16xf32>
    "tpu.trace_stop"() : () -> ()
    %cst_25 = arith.constant 0.353553385 : f32
    %31 = vector.broadcast %cst_25 : f32 to vector<16x16xf32>
    %32 = arith.mulf %30, %31 : vector<16x16xf32>
    %cst_26 = arith.constant dense<0xFF800000> : vector<16xf32>
    %33 = vector.multi_reduction <maximumf>, %32, %cst_26 [1] : vector<16x16xf32> to vector<16xf32>
    %34 = vector.shape_cast %33 : vector<16xf32> to vector<16x1xf32>
    %35 = vector.broadcast %34 : vector<16x1xf32> to vector<16x16xf32>
    %36 = arith.subf %32, %35 : vector<16x16xf32>
    %37 = math.exp %36 : vector<16x16xf32>
    %cst_27 = arith.constant dense<0.000000e+00> : vector<16xf32>
    %38 = vector.multi_reduction <add>, %37, %cst_27 [1] : vector<16x16xf32> to vector<16xf32>
    %39 = vector.shape_cast %38 : vector<16xf32> to vector<16x1xf32>
    %40 = vector.broadcast %39 : vector<16x1xf32> to vector<16x16xf32>
    %41 = arith.divf %37, %40 : vector<16x16xf32>
    %42 = arith.truncf %41 : vector<16x16xf32> to vector<16x16xbf16>
    %43 = arith.truncf %27 : vector<16x8xf32> to vector<16x8xbf16>
    %cst_28 = arith.constant dense<0.000000e+00> : vector<16x8xf32>
    %44 = tpu.matmul %42, %43, %cst_28 {dimension_numbers = #tpu.dot_dimension_numbers<[1], [0], [0], [1], [0, 0, 1, 1], [], []>} : vector<16x16xbf16>, vector<16x8xbf16>, vector<16x8xf32> -> vector<16x8xf32>
    %45 = arith.truncf %44 : vector<16x8xf32> to vector<16x8xbf16>
    %c0_29 = arith.constant 0 : index
    %c0_30 = arith.constant 0 : index
    %c0_31 = arith.constant 0 : index
    %46 = vector.load %arg9[%c0_29, %c0_30, %c0_31] : memref<4x8x32xbf16, #tpu.memory_space<vmem>>, vector<1x8x32xbf16>
    %47 = vector.shape_cast %46 : vector<1x8x32xbf16> to vector<8x32xbf16>
    %cst_32 = arith.constant dense<0.000000e+00> : vector<16x32xf32>
    %48 = tpu.matmul %45, %47, %cst_32 {dimension_numbers = #tpu.dot_dimension_numbers<[1], [0], [0], [1], [0, 0, 1, 1], [], []>} : vector<16x8xbf16>, vector<8x32xbf16>, vector<16x32xf32> -> vector<16x32xf32>
    %c1 = arith.constant 1 : index
    %c0_33 = arith.constant 0 : index
    %c0_34 = arith.constant 0 : index
    %49 = vector.load %arg3[%c1, %c0_33, %c0_34] : memref<4x32x8xbf16, #tpu.memory_space<vmem>>, vector<1x32x8xbf16>
    %50 = vector.shape_cast %49 : vector<1x32x8xbf16> to vector<32x8xbf16>
    %cst_35 = arith.constant dense<0.000000e+00> : vector<16x8xf32>
    %51 = tpu.matmul %4, %50, %cst_35 {dimension_numbers = #tpu.dot_dimension_numbers<[1], [0], [0], [1], [0, 0, 1, 1], [], []>} : vector<16x32xbf16>, vector<32x8xbf16>, vector<16x8xf32> -> vector<16x8xf32>
    %c1_36 = arith.constant 1 : index
    %c0_37 = arith.constant 0 : index
    %c0_38 = arith.constant 0 : index
    %52 = vector.load %arg4[%c1_36, %c0_37, %c0_38] : memref<4x1x8xf32, #tpu.memory_space<vmem>>, vector<1x1x8xf32>
    %53 = vector.shape_cast %52 : vector<1x1x8xf32> to vector<1x8xf32>
    %54 = vector.broadcast %53 : vector<1x8xf32> to vector<16x8xf32>
    %55 = arith.addf %51, %54 : vector<16x8xf32>
    %c1_39 = arith.constant 1 : index
    %c0_40 = arith.constant 0 : index
    %c0_41 = arith.constant 0 : index
    %56 = vector.load %arg5[%c1_39, %c0_40, %c0_41] : memref<4x32x8xbf16, #tpu.memory_space<vmem>>, vector<1x32x8xbf16>
    %57 = vector.shape_cast %56 : vector<1x32x8xbf16> to vector<32x8xbf16>
    %cst_42 = arith.constant dense<0.000000e+00> : vector<16x8xf32>
    %58 = tpu.matmul %5, %57, %cst_42 {dimension_numbers = #tpu.dot_dimension_numbers<[1], [0], [0], [1], [0, 0, 1, 1], [], []>} : vector<16x32xbf16>, vector<32x8xbf16>, vector<16x8xf32> -> vector<16x8xf32>
    %c1_43 = arith.constant 1 : index
    %c0_44 = arith.constant 0 : index
    %c0_45 = arith.constant 0 : index
    %59 = vector.load %arg6[%c1_43, %c0_44, %c0_45] : memref<4x1x8xf32, #tpu.memory_space<vmem>>, vector<1x1x8xf32>
    %60 = vector.shape_cast %59 : vector<1x1x8xf32> to vector<1x8xf32>
    %61 = vector.broadcast %60 : vector<1x8xf32> to vector<16x8xf32>
    %62 = arith.addf %58, %61 : vector<16x8xf32>
    %c1_46 = arith.constant 1 : index
    %c0_47 = arith.constant 0 : index
    %c0_48 = arith.constant 0 : index
    %63 = vector.load %arg7[%c1_46, %c0_47, %c0_48] : memref<4x32x8xbf16, #tpu.memory_space<vmem>>, vector<1x32x8xbf16>
    %64 = vector.shape_cast %63 : vector<1x32x8xbf16> to vector<32x8xbf16>
    %cst_49 = arith.constant dense<0.000000e+00> : vector<16x8xf32>
    %65 = tpu.matmul %6, %64, %cst_49 {dimension_numbers = #tpu.dot_dimension_numbers<[1], [0], [0], [1], [0, 0, 1, 1], [], []>} : vector<16x32xbf16>, vector<32x8xbf16>, vector<16x8xf32> -> vector<16x8xf32>
    %c1_50 = arith.constant 1 : index
    %c0_51 = arith.constant 0 : index
    %c0_52 = arith.constant 0 : index
    %66 = vector.load %arg8[%c1_50, %c0_51, %c0_52] : memref<4x1x8xf32, #tpu.memory_space<vmem>>, vector<1x1x8xf32>
    %67 = vector.shape_cast %66 : vector<1x1x8xf32> to vector<1x8xf32>
    %68 = vector.broadcast %67 : vector<1x8xf32> to vector<16x8xf32>
    %69 = arith.addf %65, %68 : vector<16x8xf32>
    %70 = arith.truncf %55 : vector<16x8xf32> to vector<16x8xbf16>
    %71 = arith.truncf %62 : vector<16x8xf32> to vector<16x8xbf16>
    "tpu.trace_start"() <{level = 10 : i32, message = "qd,kd->qk"}> : () -> ()
    %cst_53 = arith.constant dense<0.000000e+00> : vector<16x16xf32>
    %72 = tpu.matmul %70, %71, %cst_53 {dimension_numbers = #tpu.dot_dimension_numbers<[1], [1], [0], [0], [0, 0, 1, 0], [], []>} : vector<16x8xbf16>, vector<16x8xbf16>, vector<16x16xf32> -> vector<16x16xf32>
    "tpu.trace_stop"() : () -> ()
    %cst_54 = arith.constant 0.353553385 : f32
    %73 = vector.broadcast %cst_54 : f32 to vector<16x16xf32>
    %74 = arith.mulf %72, %73 : vector<16x16xf32>
    %cst_55 = arith.constant dense<0xFF800000> : vector<16xf32>
    %75 = vector.multi_reduction <maximumf>, %74, %cst_55 [1] : vector<16x16xf32> to vector<16xf32>
    %76 = vector.shape_cast %75 : vector<16xf32> to vector<16x1xf32>
    %77 = vector.broadcast %76 : vector<16x1xf32> to vector<16x16xf32>
    %78 = arith.subf %74, %77 : vector<16x16xf32>
    %79 = math.exp %78 : vector<16x16xf32>
    %cst_56 = arith.constant dense<0.000000e+00> : vector<16xf32>
    %80 = vector.multi_reduction <add>, %79, %cst_56 [1] : vector<16x16xf32> to vector<16xf32>
    %81 = vector.shape_cast %80 : vector<16xf32> to vector<16x1xf32>
    %82 = vector.broadcast %81 : vector<16x1xf32> to vector<16x16xf32>
    %83 = arith.divf %79, %82 : vector<16x16xf32>
    %84 = arith.truncf %83 : vector<16x16xf32> to vector<16x16xbf16>
    %85 = arith.truncf %69 : vector<16x8xf32> to vector<16x8xbf16>
    %cst_57 = arith.constant dense<0.000000e+00> : vector<16x8xf32>
    %86 = tpu.matmul %84, %85, %cst_57 {dimension_numbers = #tpu.dot_dimension_numbers<[1], [0], [0], [1], [0, 0, 1, 1], [], []>} : vector<16x16xbf16>, vector<16x8xbf16>, vector<16x8xf32> -> vector<16x8xf32>
    %87 = arith.truncf %86 : vector<16x8xf32> to vector<16x8xbf16>
    %c1_58 = arith.constant 1 : index
    %c0_59 = arith.constant 0 : index
    %c0_60 = arith.constant 0 : index
    %88 = vector.load %arg9[%c1_58, %c0_59, %c0_60] : memref<4x8x32xbf16, #tpu.memory_space<vmem>>, vector<1x8x32xbf16>
    %89 = vector.shape_cast %88 : vector<1x8x32xbf16> to vector<8x32xbf16>
    %cst_61 = arith.constant dense<0.000000e+00> : vector<16x32xf32>
    %90 = tpu.matmul %87, %89, %cst_61 {dimension_numbers = #tpu.dot_dimension_numbers<[1], [0], [0], [1], [0, 0, 1, 1], [], []>} : vector<16x8xbf16>, vector<8x32xbf16>, vector<16x32xf32> -> vector<16x32xf32>
    %91 = arith.addf %48, %90 : vector<16x32xf32>
    %c2 = arith.constant 2 : index
    %c0_62 = arith.constant 0 : index
    %c0_63 = arith.constant 0 : index
    %92 = vector.load %arg3[%c2, %c0_62, %c0_63] : memref<4x32x8xbf16, #tpu.memory_space<vmem>>, vector<1x32x8xbf16>
    %93 = vector.shape_cast %92 : vector<1x32x8xbf16> to vector<32x8xbf16>
    %cst_64 = arith.constant dense<0.000000e+00> : vector<16x8xf32>
    %94 = tpu.matmul %4, %93, %cst_64 {dimension_numbers = #tpu.dot_dimension_numbers<[1], [0], [0], [1], [0, 0, 1, 1], [], []>} : vector<16x32xbf16>, vector<32x8xbf16>, vector<16x8xf32> -> vector<16x8xf32>
    %c2_65 = arith.constant 2 : index
    %c0_66 = arith.constant 0 : index
    %c0_67 = arith.constant 0 : index
    %95 = vector.load %arg4[%c2_65, %c0_66, %c0_67] : memref<4x1x8xf32, #tpu.memory_space<vmem>>, vector<1x1x8xf32>
    %96 = vector.shape_cast %95 : vector<1x1x8xf32> to vector<1x8xf32>
    %97 = vector.broadcast %96 : vector<1x8xf32> to vector<16x8xf32>
    %98 = arith.addf %94, %97 : vector<16x8xf32>
    %c2_68 = arith.constant 2 : index
    %c0_69 = arith.constant 0 : index
    %c0_70 = arith.constant 0 : index
    %99 = vector.load %arg5[%c2_68, %c0_69, %c0_70] : memref<4x32x8xbf16, #tpu.memory_space<vmem>>, vector<1x32x8xbf16>
    %100 = vector.shape_cast %99 : vector<1x32x8xbf16> to vector<32x8xbf16>
    %cst_71 = arith.constant dense<0.000000e+00> : vector<16x8xf32>
    %101 = tpu.matmul %5, %100, %cst_71 {dimension_numbers = #tpu.dot_dimension_numbers<[1], [0], [0], [1], [0, 0, 1, 1], [], []>} : vector<16x32xbf16>, vector<32x8xbf16>, vector<16x8xf32> -> vector<16x8xf32>
    %c2_72 = arith.constant 2 : index
    %c0_73 = arith.constant 0 : index
    %c0_74 = arith.constant 0 : index
    %102 = vector.load %arg6[%c2_72, %c0_73, %c0_74] : memref<4x1x8xf32, #tpu.memory_space<vmem>>, vector<1x1x8xf32>
    %103 = vector.shape_cast %102 : vector<1x1x8xf32> to vector<1x8xf32>
    %104 = vector.broadcast %103 : vector<1x8xf32> to vector<16x8xf32>
    %105 = arith.addf %101, %104 : vector<16x8xf32>
    %c2_75 = arith.constant 2 : index
    %c0_76 = arith.constant 0 : index
    %c0_77 = arith.constant 0 : index
    %106 = vector.load %arg7[%c2_75, %c0_76, %c0_77] : memref<4x32x8xbf16, #tpu.memory_space<vmem>>, vector<1x32x8xbf16>
    %107 = vector.shape_cast %106 : vector<1x32x8xbf16> to vector<32x8xbf16>
    %cst_78 = arith.constant dense<0.000000e+00> : vector<16x8xf32>
    %108 = tpu.matmul %6, %107, %cst_78 {dimension_numbers = #tpu.dot_dimension_numbers<[1], [0], [0], [1], [0, 0, 1, 1], [], []>} : vector<16x32xbf16>, vector<32x8xbf16>, vector<16x8xf32> -> vector<16x8xf32>
    %c2_79 = arith.constant 2 : index
    %c0_80 = arith.constant 0 : index
    %c0_81 = arith.constant 0 : index
    %109 = vector.load %arg8[%c2_79, %c0_80, %c0_81] : memref<4x1x8xf32, #tpu.memory_space<vmem>>, vector<1x1x8xf32>
    %110 = vector.shape_cast %109 : vector<1x1x8xf32> to vector<1x8xf32>
    %111 = vector.broadcast %110 : vector<1x8xf32> to vector<16x8xf32>
    %112 = arith.addf %108, %111 : vector<16x8xf32>
    %113 = arith.truncf %98 : vector<16x8xf32> to vector<16x8xbf16>
    %114 = arith.truncf %105 : vector<16x8xf32> to vector<16x8xbf16>
    "tpu.trace_start"() <{level = 10 : i32, message = "qd,kd->qk"}> : () -> ()
    %cst_82 = arith.constant dense<0.000000e+00> : vector<16x16xf32>
    %115 = tpu.matmul %113, %114, %cst_82 {dimension_numbers = #tpu.dot_dimension_numbers<[1], [1], [0], [0], [0, 0, 1, 0], [], []>} : vector<16x8xbf16>, vector<16x8xbf16>, vector<16x16xf32> -> vector<16x16xf32>
    "tpu.trace_stop"() : () -> ()
    %cst_83 = arith.constant 0.353553385 : f32
    %116 = vector.broadcast %cst_83 : f32 to vector<16x16xf32>
    %117 = arith.mulf %115, %116 : vector<16x16xf32>
    %cst_84 = arith.constant dense<0xFF800000> : vector<16xf32>
    %118 = vector.multi_reduction <maximumf>, %117, %cst_84 [1] : vector<16x16xf32> to vector<16xf32>
    %119 = vector.shape_cast %118 : vector<16xf32> to vector<16x1xf32>
    %120 = vector.broadcast %119 : vector<16x1xf32> to vector<16x16xf32>
    %121 = arith.subf %117, %120 : vector<16x16xf32>
    %122 = math.exp %121 : vector<16x16xf32>
    %cst_85 = arith.constant dense<0.000000e+00> : vector<16xf32>
    %123 = vector.multi_reduction <add>, %122, %cst_85 [1] : vector<16x16xf32> to vector<16xf32>
    %124 = vector.shape_cast %123 : vector<16xf32> to vector<16x1xf32>
    %125 = vector.broadcast %124 : vector<16x1xf32> to vector<16x16xf32>
    %126 = arith.divf %122, %125 : vector<16x16xf32>
    %127 = arith.truncf %126 : vector<16x16xf32> to vector<16x16xbf16>
    %128 = arith.truncf %112 : vector<16x8xf32> to vector<16x8xbf16>
    %cst_86 = arith.constant dense<0.000000e+00> : vector<16x8xf32>
    %129 = tpu.matmul %127, %128, %cst_86 {dimension_numbers = #tpu.dot_dimension_numbers<[1], [0], [0], [1], [0, 0, 1, 1], [], []>} : vector<16x16xbf16>, vector<16x8xbf16>, vector<16x8xf32> -> vector<16x8xf32>
    %130 = arith.truncf %129 : vector<16x8xf32> to vector<16x8xbf16>
    %c2_87 = arith.constant 2 : index
    %c0_88 = arith.constant 0 : index
    %c0_89 = arith.constant 0 : index
    %131 = vector.load %arg9[%c2_87, %c0_88, %c0_89] : memref<4x8x32xbf16, #tpu.memory_space<vmem>>, vector<1x8x32xbf16>
    %132 = vector.shape_cast %131 : vector<1x8x32xbf16> to vector<8x32xbf16>
    %cst_90 = arith.constant dense<0.000000e+00> : vector<16x32xf32>
    %133 = tpu.matmul %130, %132, %cst_90 {dimension_numbers = #tpu.dot_dimension_numbers<[1], [0], [0], [1], [0, 0, 1, 1], [], []>} : vector<16x8xbf16>, vector<8x32xbf16>, vector<16x32xf32> -> vector<16x32xf32>
    %134 = arith.addf %91, %133 : vector<16x32xf32>
    %c3 = arith.constant 3 : index
    %c0_91 = arith.constant 0 : index
    %c0_92 = arith.constant 0 : index
    %135 = vector.load %arg3[%c3, %c0_91, %c0_92] : memref<4x32x8xbf16, #tpu.memory_space<vmem>>, vector<1x32x8xbf16>
    %136 = vector.shape_cast %135 : vector<1x32x8xbf16> to vector<32x8xbf16>
    %cst_93 = arith.constant dense<0.000000e+00> : vector<16x8xf32>
    %137 = tpu.matmul %4, %136, %cst_93 {dimension_numbers = #tpu.dot_dimension_numbers<[1], [0], [0], [1], [0, 0, 1, 1], [], []>} : vector<16x32xbf16>, vector<32x8xbf16>, vector<16x8xf32> -> vector<16x8xf32>
    %c3_94 = arith.constant 3 : index
    %c0_95 = arith.constant 0 : index
    %c0_96 = arith.constant 0 : index
    %138 = vector.load %arg4[%c3_94, %c0_95, %c0_96] : memref<4x1x8xf32, #tpu.memory_space<vmem>>, vector<1x1x8xf32>
    %139 = vector.shape_cast %138 : vector<1x1x8xf32> to vector<1x8xf32>
    %140 = vector.broadcast %139 : vector<1x8xf32> to vector<16x8xf32>
    %141 = arith.addf %137, %140 : vector<16x8xf32>
    %c3_97 = arith.constant 3 : index
    %c0_98 = arith.constant 0 : index
    %c0_99 = arith.constant 0 : index
    %142 = vector.load %arg5[%c3_97, %c0_98, %c0_99] : memref<4x32x8xbf16, #tpu.memory_space<vmem>>, vector<1x32x8xbf16>
    %143 = vector.shape_cast %142 : vector<1x32x8xbf16> to vector<32x8xbf16>
    %cst_100 = arith.constant dense<0.000000e+00> : vector<16x8xf32>
    %144 = tpu.matmul %5, %143, %cst_100 {dimension_numbers = #tpu.dot_dimension_numbers<[1], [0], [0], [1], [0, 0, 1, 1], [], []>} : vector<16x32xbf16>, vector<32x8xbf16>, vector<16x8xf32> -> vector<16x8xf32>
    %c3_101 = arith.constant 3 : index
    %c0_102 = arith.constant 0 : index
    %c0_103 = arith.constant 0 : index
    %145 = vector.load %arg6[%c3_101, %c0_102, %c0_103] : memref<4x1x8xf32, #tpu.memory_space<vmem>>, vector<1x1x8xf32>
    %146 = vector.shape_cast %145 : vector<1x1x8xf32> to vector<1x8xf32>
    %147 = vector.broadcast %146 : vector<1x8xf32> to vector<16x8xf32>
    %148 = arith.addf %144, %147 : vector<16x8xf32>
    %c3_104 = arith.constant 3 : index
    %c0_105 = arith.constant 0 : index
    %c0_106 = arith.constant 0 : index
    %149 = vector.load %arg7[%c3_104, %c0_105, %c0_106] : memref<4x32x8xbf16, #tpu.memory_space<vmem>>, vector<1x32x8xbf16>
    %150 = vector.shape_cast %149 : vector<1x32x8xbf16> to vector<32x8xbf16>
    %cst_107 = arith.constant dense<0.000000e+00> : vector<16x8xf32>
    %151 = tpu.matmul %6, %150, %cst_107 {dimension_numbers = #tpu.dot_dimension_numbers<[1], [0], [0], [1], [0, 0, 1, 1], [], []>} : vector<16x32xbf16>, vector<32x8xbf16>, vector<16x8xf32> -> vector<16x8xf32>
    %c3_108 = arith.constant 3 : index
    %c0_109 = arith.constant 0 : index
    %c0_110 = arith.constant 0 : index
    %152 = vector.load %arg8[%c3_108, %c0_109, %c0_110] : memref<4x1x8xf32, #tpu.memory_space<vmem>>, vector<1x1x8xf32>
    %153 = vector.shape_cast %152 : vector<1x1x8xf32> to vector<1x8xf32>
    %154 = vector.broadcast %153 : vector<1x8xf32> to vector<16x8xf32>
    %155 = arith.addf %151, %154 : vector<16x8xf32>
    %156 = arith.truncf %141 : vector<16x8xf32> to vector<16x8xbf16>
    %157 = arith.truncf %148 : vector<16x8xf32> to vector<16x8xbf16>
    "tpu.trace_start"() <{level = 10 : i32, message = "qd,kd->qk"}> : () -> ()
    %cst_111 = arith.constant dense<0.000000e+00> : vector<16x16xf32>
    %158 = tpu.matmul %156, %157, %cst_111 {dimension_numbers = #tpu.dot_dimension_numbers<[1], [1], [0], [0], [0, 0, 1, 0], [], []>} : vector<16x8xbf16>, vector<16x8xbf16>, vector<16x16xf32> -> vector<16x16xf32>
    "tpu.trace_stop"() : () -> ()
    %cst_112 = arith.constant 0.353553385 : f32
    %159 = vector.broadcast %cst_112 : f32 to vector<16x16xf32>
    %160 = arith.mulf %158, %159 : vector<16x16xf32>
    %cst_113 = arith.constant dense<0xFF800000> : vector<16xf32>
    %161 = vector.multi_reduction <maximumf>, %160, %cst_113 [1] : vector<16x16xf32> to vector<16xf32>
    %162 = vector.shape_cast %161 : vector<16xf32> to vector<16x1xf32>
    %163 = vector.broadcast %162 : vector<16x1xf32> to vector<16x16xf32>
    %164 = arith.subf %160, %163 : vector<16x16xf32>
    %165 = math.exp %164 : vector<16x16xf32>
    %cst_114 = arith.constant dense<0.000000e+00> : vector<16xf32>
    %166 = vector.multi_reduction <add>, %165, %cst_114 [1] : vector<16x16xf32> to vector<16xf32>
    %167 = vector.shape_cast %166 : vector<16xf32> to vector<16x1xf32>
    %168 = vector.broadcast %167 : vector<16x1xf32> to vector<16x16xf32>
    %169 = arith.divf %165, %168 : vector<16x16xf32>
    %170 = arith.truncf %169 : vector<16x16xf32> to vector<16x16xbf16>
    %171 = arith.truncf %155 : vector<16x8xf32> to vector<16x8xbf16>
    %cst_115 = arith.constant dense<0.000000e+00> : vector<16x8xf32>
    %172 = tpu.matmul %170, %171, %cst_115 {dimension_numbers = #tpu.dot_dimension_numbers<[1], [0], [0], [1], [0, 0, 1, 1], [], []>} : vector<16x16xbf16>, vector<16x8xbf16>, vector<16x8xf32> -> vector<16x8xf32>
    %173 = arith.truncf %172 : vector<16x8xf32> to vector<16x8xbf16>
    %c3_116 = arith.constant 3 : index
    %c0_117 = arith.constant 0 : index
    %c0_118 = arith.constant 0 : index
    %174 = vector.load %arg9[%c3_116, %c0_117, %c0_118] : memref<4x8x32xbf16, #tpu.memory_space<vmem>>, vector<1x8x32xbf16>
    %175 = vector.shape_cast %174 : vector<1x8x32xbf16> to vector<8x32xbf16>
    %cst_119 = arith.constant dense<0.000000e+00> : vector<16x32xf32>
    %176 = tpu.matmul %173, %175, %cst_119 {dimension_numbers = #tpu.dot_dimension_numbers<[1], [0], [0], [1], [0, 0, 1, 1], [], []>} : vector<16x8xbf16>, vector<8x32xbf16>, vector<16x32xf32> -> vector<16x32xf32>
    %177 = arith.addf %134, %176 : vector<16x32xf32>
    %c0_120 = arith.constant 0 : index
    %c0_121 = arith.constant 0 : index
    %178 = vector.load %arg10[%c0_120, %c0_121] : memref<1x32xf32, #tpu.memory_space<vmem>>, vector<1x32xf32>
    %179 = vector.broadcast %178 : vector<1x32xf32> to vector<16x32xf32>
    %180 = arith.addf %177, %179 : vector<16x32xf32>
    %181 = arith.addf %1, %180 : vector<16x32xf32>
    %c0_122 = arith.constant 0 : index
    %c0_123 = arith.constant 0 : index
    %182 = vector.load %arg11[%c0_122, %c0_123] : memref<1x32xf32, #tpu.memory_space<vmem>>, vector<1x32xf32>
    %c0_124 = arith.constant 0 : index
    %c0_125 = arith.constant 0 : index
    %183 = vector.load %arg12[%c0_124, %c0_125] : memref<1x32xf32, #tpu.memory_space<vmem>>, vector<1x32xf32>
    %cst_126 = arith.constant dense<0.000000e+00> : vector<16xf32>
    %184 = vector.multi_reduction <add>, %181, %cst_126 [1] : vector<16x32xf32> to vector<16xf32>
    %185 = vector.shape_cast %184 : vector<16xf32> to vector<16x1xf32>
    %cst_127 = arith.constant 3.200000e+01 : f32
    %186 = vector.broadcast %cst_127 : f32 to vector<16x1xf32>
    %187 = arith.divf %185, %186 : vector<16x1xf32>
    %188 = vector.broadcast %187 : vector<16x1xf32> to vector<16x32xf32>
    %189 = arith.subf %181, %188 : vector<16x32xf32>
    %190 = arith.mulf %189, %189 : vector<16x32xf32>
    %cst_128 = arith.constant dense<0.000000e+00> : vector<16xf32>
    %191 = vector.multi_reduction <add>, %190, %cst_128 [1] : vector<16x32xf32> to vector<16xf32>
    %192 = vector.shape_cast %191 : vector<16xf32> to vector<16x1xf32>
    %cst_129 = arith.constant 3.200000e+01 : f32
    %193 = vector.broadcast %cst_129 : f32 to vector<16x1xf32>
    %194 = arith.divf %192, %193 : vector<16x1xf32>
    %195 = vector.broadcast %187 : vector<16x1xf32> to vector<16x32xf32>
    %196 = arith.subf %181, %195 : vector<16x32xf32>
    %cst_130 = arith.constant 9.99999974E-6 : f32
    %197 = vector.broadcast %cst_130 : f32 to vector<16x1xf32>
    %198 = arith.addf %194, %197 : vector<16x1xf32>
    %199 = math.rsqrt %198 : vector<16x1xf32>
    %200 = vector.broadcast %199 : vector<16x1xf32> to vector<16x32xf32>
    %201 = arith.mulf %196, %200 : vector<16x32xf32>
    %202 = vector.broadcast %182 : vector<1x32xf32> to vector<16x32xf32>
    %203 = arith.mulf %201, %202 : vector<16x32xf32>
    %204 = vector.broadcast %183 : vector<1x32xf32> to vector<16x32xf32>
    %205 = arith.addf %203, %204 : vector<16x32xf32>
    %206 = arith.truncf %205 : vector<16x32xf32> to vector<16x32xbf16>
    %c0_131 = arith.constant 0 : index
    %c0_132 = arith.constant 0 : index
    %207 = vector.load %arg13[%c0_131, %c0_132] : memref<32x64xbf16, #tpu.memory_space<vmem>>, vector<32x64xbf16>
    %cst_133 = arith.constant dense<0.000000e+00> : vector<16x64xf32>
    %208 = tpu.matmul %206, %207, %cst_133 {dimension_numbers = #tpu.dot_dimension_numbers<[1], [0], [0], [1], [0, 0, 1, 1], [], []>} : vector<16x32xbf16>, vector<32x64xbf16>, vector<16x64xf32> -> vector<16x64xf32>
    %c0_134 = arith.constant 0 : index
    %c0_135 = arith.constant 0 : index
    %209 = vector.load %arg14[%c0_134, %c0_135] : memref<1x64xf32, #tpu.memory_space<vmem>>, vector<1x64xf32>
    %210 = vector.broadcast %209 : vector<1x64xf32> to vector<16x64xf32>
    %211 = arith.addf %208, %210 : vector<16x64xf32>
    %cst_136 = arith.constant 0.000000e+00 : f32
    %212 = vector.broadcast %cst_136 : f32 to vector<16x64xf32>
    %213 = arith.maximumf %211, %212 : vector<16x64xf32>
    %214 = arith.truncf %213 : vector<16x64xf32> to vector<16x64xbf16>
    %c0_137 = arith.constant 0 : index
    %c0_138 = arith.constant 0 : index
    %215 = vector.load %arg15[%c0_137, %c0_138] : memref<64x32xbf16, #tpu.memory_space<vmem>>, vector<64x32xbf16>
    %cst_139 = arith.constant dense<0.000000e+00> : vector<16x32xf32>
    %216 = tpu.matmul %214, %215, %cst_139 {dimension_numbers = #tpu.dot_dimension_numbers<[1], [0], [0], [1], [0, 0, 1, 1], [], []>} : vector<16x64xbf16>, vector<64x32xbf16>, vector<16x32xf32> -> vector<16x32xf32>
    %c0_140 = arith.constant 0 : index
    %c0_141 = arith.constant 0 : index
    %217 = vector.load %arg16[%c0_140, %c0_141] : memref<1x32xf32, #tpu.memory_space<vmem>>, vector<1x32xf32>
    %218 = vector.broadcast %217 : vector<1x32xf32> to vector<16x32xf32>
    %219 = arith.addf %216, %218 : vector<16x32xf32>
    %220 = arith.addf %205, %219 : vector<16x32xf32>
    %c0_142 = arith.constant 0 : index
    %c0_143 = arith.constant 0 : index
    %221 = vector.load %arg17[%c0_142, %c0_143] : memref<1x32xf32, #tpu.memory_space<vmem>>, vector<1x32xf32>
    %c0_144 = arith.constant 0 : index
    %c0_145 = arith.constant 0 : index
    %222 = vector.load %arg18[%c0_144, %c0_145] : memref<1x32xf32, #tpu.memory_space<vmem>>, vector<1x32xf32>
    %cst_146 = arith.constant dense<0.000000e+00> : vector<16xf32>
    %223 = vector.multi_reduction <add>, %220, %cst_146 [1] : vector<16x32xf32> to vector<16xf32>
    %224 = vector.shape_cast %223 : vector<16xf32> to vector<16x1xf32>
    %cst_147 = arith.constant 3.200000e+01 : f32
    %225 = vector.broadcast %cst_147 : f32 to vector<16x1xf32>
    %226 = arith.divf %224, %225 : vector<16x1xf32>
    %227 = vector.broadcast %226 : vector<16x1xf32> to vector<16x32xf32>
    %228 = arith.subf %220, %227 : vector<16x32xf32>
    %229 = arith.mulf %228, %228 : vector<16x32xf32>
    %cst_148 = arith.constant dense<0.000000e+00> : vector<16xf32>
    %230 = vector.multi_reduction <add>, %229, %cst_148 [1] : vector<16x32xf32> to vector<16xf32>
    %231 = vector.shape_cast %230 : vector<16xf32> to vector<16x1xf32>
    %cst_149 = arith.constant 3.200000e+01 : f32
    %232 = vector.broadcast %cst_149 : f32 to vector<16x1xf32>
    %233 = arith.divf %231, %232 : vector<16x1xf32>
    %234 = vector.broadcast %226 : vector<16x1xf32> to vector<16x32xf32>
    %235 = arith.subf %220, %234 : vector<16x32xf32>
    %cst_150 = arith.constant 9.99999974E-6 : f32
    %236 = vector.broadcast %cst_150 : f32 to vector<16x1xf32>
    %237 = arith.addf %233, %236 : vector<16x1xf32>
    %238 = math.rsqrt %237 : vector<16x1xf32>
    %239 = vector.broadcast %238 : vector<16x1xf32> to vector<16x32xf32>
    %240 = arith.mulf %235, %239 : vector<16x32xf32>
    %241 = vector.broadcast %221 : vector<1x32xf32> to vector<16x32xf32>
    %242 = arith.mulf %240, %241 : vector<16x32xf32>
    %243 = vector.broadcast %222 : vector<1x32xf32> to vector<16x32xf32>
    %244 = arith.addf %242, %243 : vector<16x32xf32>
    %c0_151 = arith.constant 0 : index
    %c0_152 = arith.constant 0 : index
    %c0_153 = arith.constant 0 : index
    %245 = vector.load %arg19[%c0_151, %c0_152, %c0_153] : memref<1x16x32xf32, #tpu.memory_space<vmem>>, vector<1x16x32xf32>
    %246 = vector.shape_cast %245 : vector<1x16x32xf32> to vector<16x32xf32>
    %247 = vector.shape_cast %244 : vector<16x32xf32> to vector<1x16x32xf32>
    tpu.vector_store %arg19[%c0_151, %c0_152, %c0_153], %247 {strides = array<i32>} : memref<1x16x32xf32, #tpu.memory_space<vmem>>, vector<1x16x32xf32>,
    return
  }
  func.func @transform_0(%arg0: i32) -> (i32, i32, i32) {
    %c0_i32 = arith.constant 0 : i32
    %c0_i32_0 = arith.constant 0 : i32
    %c0_i32_1 = arith.constant 0 : i32
    return %arg0, %c0_i32, %c0_i32_0 : i32, i32, i32
  }
  func.func @transform_1(%arg0: i32) -> (i32, i32) {
    %c0_i32 = arith.constant 0 : i32
    %c0_i32_0 = arith.constant 0 : i32
    %c0_i32_1 = arith.constant 0 : i32
    return %c0_i32, %c0_i32_0 : i32, i32
  }
  func.func @transform_2(%arg0: i32) -> (i32, i32, i32) {
    %c0_i32 = arith.constant 0 : i32
    %c0_i32_0 = arith.constant 0 : i32
    %c0_i32_1 = arith.constant 0 : i32
    %c0_i32_2 = arith.constant 0 : i32
    return %c0_i32, %c0_i32_0, %c0_i32_1 : i32, i32, i32
  }
  func.func @transform_3(%arg0: i32) -> (i32, i32, i32) {
    %c0_i32 = arith.constant 0 : i32
    %c0_i32_0 = arith.constant 0 : i32
    %c0_i32_1 = arith.constant 0 : i32
    %c0_i32_2 = arith.constant 0 : i32
    return %c0_i32, %c0_i32_0, %c0_i32_1 : i32, i32, i32
  }
  func.func @transform_4(%arg0: i32) -> (i32, i32, i32) {
    %c0_i32 = arith.constant 0 : i32
    %c0_i32_0 = arith.constant 0 : i32
    %c0_i32_1 = arith.constant 0 : i32
    %c0_i32_2 = arith.constant 0 : i32
    return %c0_i32, %c0_i32_0, %c0_i32_1 : i32, i32, i32
  }
  func.func @transform_5(%arg0: i32) -> (i32, i32, i32) {
    %c0_i32 = arith.constant 0 : i32
    %c0_i32_0 = arith.constant 0 : i32
    %c0_i32_1 = arith.constant 0 : i32
    %c0_i32_2 = arith.constant 0 : i32
    return %c0_i32, %c0_i32_0, %c0_i32_1 : i32, i32, i32
  }
  func.func @transform_6(%arg0: i32) -> (i32, i32, i32) {
    %c0_i32 = arith.constant 0 : i32
    %c0_i32_0 = arith.constant 0 : i32
    %c0_i32_1 = arith.constant 0 : i32
    %c0_i32_2 = arith.constant 0 : i32
    return %c0_i32, %c0_i32_0, %c0_i32_1 : i32, i32, i32
  }
  func.func @transform_7(%arg0: i32) -> (i32, i32, i32) {
    %c0_i32 = arith.constant 0 : i32
    %c0_i32_0 = arith.constant 0 : i32
    %c0_i32_1 = arith.constant 0 : i32
    %c0_i32_2 = arith.constant 0 : i32
    return %c0_i32, %c0_i32_0, %c0_i32_1 : i32, i32, i32
  }
  func.func @transform_8(%arg0: i32) -> (i32, i32, i32) {
    %c0_i32 = arith.constant 0 : i32
    %c0_i32_0 = arith.constant 0 : i32
    %c0_i32_1 = arith.constant 0 : i32
    %c0_i32_2 = arith.constant 0 : i32
    return %c0_i32, %c0_i32_0, %c0_i32_1 : i32, i32, i32
  }
  func.func @transform_9(%arg0: i32) -> (i32, i32) {
    %c0_i32 = arith.constant 0 : i32
    %c0_i32_0 = arith.constant 0 : i32
    %c0_i32_1 = arith.constant 0 : i32
    return %c0_i32, %c0_i32_0 : i32, i32
  }
  func.func @transform_10(%arg0: i32) -> (i32, i32) {
    %c0_i32 = arith.constant 0 : i32
    %c0_i32_0 = arith.constant 0 : i32
    %c0_i32_1 = arith.constant 0 : i32
    return %c0_i32, %c0_i32_0 : i32, i32
  }
  func.func @transform_11(%arg0: i32) -> (i32, i32) {
    %c0_i32 = arith.constant 0 : i32
    %c0_i32_0 = arith.constant 0 : i32
    %c0_i32_1 = arith.constant 0 : i32
    return %c0_i32, %c0_i32_0 : i32, i32
  }
  func.func @transform_12(%arg0: i32) -> (i32, i32) {
    %c0_i32 = arith.constant 0 : i32
    %c0_i32_0 = arith.constant 0 : i32
    %c0_i32_1 = arith.constant 0 : i32
    return %c0_i32, %c0_i32_0 : i32, i32
  }
  func.func @transform_13(%arg0: i32) -> (i32, i32) {
    %c0_i32 = arith.constant 0 : i32
    %c0_i32_0 = arith.constant 0 : i32
    %c0_i32_1 = arith.constant 0 : i32
    return %c0_i32, %c0_i32_0 : i32, i32
  }
  func.func @transform_14(%arg0: i32) -> (i32, i32) {
    %c0_i32 = arith.constant 0 : i32
    %c0_i32_0 = arith.constant 0 : i32
    %c0_i32_1 = arith.constant 0 : i32
    return %c0_i32, %c0_i32_0 : i32, i32
  }
  func.func @transform_15(%arg0: i32) -> (i32, i32) {
    %c0_i32 = arith.constant 0 : i32
    %c0_i32_0 = arith.constant 0 : i32
    %c0_i32_1 = arith.constant 0 : i32
    return %c0_i32, %c0_i32_0 : i32, i32
  }
  func.func @transform_16(%arg0: i32) -> (i32, i32) {
    %c0_i32 = arith.constant 0 : i32
    %c0_i32_0 = arith.constant 0 : i32
    %c0_i32_1 = arith.constant 0 : i32
    return %c0_i32, %c0_i32_0 : i32, i32
  }
  func.func @transform_17(%arg0: i32) -> (i32, i32) {
    %c0_i32 = arith.constant 0 : i32
    %c0_i32_0 = arith.constant 0 : i32
    %c0_i32_1 = arith.constant 0 : i32
    return %c0_i32, %c0_i32_0 : i32, i32
  }
  func.func @transform_18(%arg0: i32) -> (i32, i32, i32) {
    %c0_i32 = arith.constant 0 : i32
    %c0_i32_0 = arith.constant 0 : i32
    %c0_i32_1 = arith.constant 0 : i32
    return %arg0, %c0_i32, %c0_i32_0 : i32, i32, i32
  }
}

module attributes {stable_mosaic.version = 11 : i64} {
  func.func @_dec_layer_kernel(%arg0: i32, %arg1: memref<1x8x32xf32, #tpu.memory_space<vmem>>, %arg2: memref<8x32xf32, #tpu.memory_space<vmem>>, %arg3: memref<1x16x32xf32, #tpu.memory_space<vmem>>, %arg4: memref<16x32xf32, #tpu.memory_space<vmem>>, %arg5: memref<4x32x8xbf16, #tpu.memory_space<vmem>>, %arg6: memref<4x1x8xf32, #tpu.memory_space<vmem>>, %arg7: memref<4x32x8xbf16, #tpu.memory_space<vmem>>, %arg8: memref<4x1x8xf32, #tpu.memory_space<vmem>>, %arg9: memref<4x32x8xbf16, #tpu.memory_space<vmem>>, %arg10: memref<4x1x8xf32, #tpu.memory_space<vmem>>, %arg11: memref<4x8x32xbf16, #tpu.memory_space<vmem>>, %arg12: memref<1x32xf32, #tpu.memory_space<vmem>>, %arg13: memref<1x32xf32, #tpu.memory_space<vmem>>, %arg14: memref<1x32xf32, #tpu.memory_space<vmem>>, %arg15: memref<4x32x8xbf16, #tpu.memory_space<vmem>>, %arg16: memref<4x1x8xf32, #tpu.memory_space<vmem>>, %arg17: memref<4x32x8xbf16, #tpu.memory_space<vmem>>, %arg18: memref<4x1x8xf32, #tpu.memory_space<vmem>>, %arg19: memref<4x32x8xbf16, #tpu.memory_space<vmem>>, %arg20: memref<4x1x8xf32, #tpu.memory_space<vmem>>, %arg21: memref<4x8x32xbf16, #tpu.memory_space<vmem>>, %arg22: memref<1x32xf32, #tpu.memory_space<vmem>>, %arg23: memref<1x32xf32, #tpu.memory_space<vmem>>, %arg24: memref<1x32xf32, #tpu.memory_space<vmem>>, %arg25: memref<32x64xbf16, #tpu.memory_space<vmem>>, %arg26: memref<1x64xf32, #tpu.memory_space<vmem>>, %arg27: memref<64x32xbf16, #tpu.memory_space<vmem>>, %arg28: memref<1x32xf32, #tpu.memory_space<vmem>>, %arg29: memref<1x32xf32, #tpu.memory_space<vmem>>, %arg30: memref<1x32xf32, #tpu.memory_space<vmem>>, %arg31: memref<1x8x32xf32, #tpu.memory_space<vmem>>) attributes {dimension_semantics = [#tpu.dimension_semantics<parallel>], iteration_bounds = array<i64: 2>, scalar_prefetch = 0 : i64, scratch_operands = 0 : i64, tpu.core_type = #tpu.core_type<tc>, window_params = [{transform_indices = @transform_0, window_bounds = array<i64: 1, 8, 32>}, {pipeline_mode = #tpu.pipeline_mode<synchronous>, transform_indices = @transform_1, window_bounds = array<i64: 8, 32>}, {transform_indices = @transform_2, window_bounds = array<i64: 1, 16, 32>}, {pipeline_mode = #tpu.pipeline_mode<synchronous>, transform_indices = @transform_3, window_bounds = array<i64: 16, 32>}, {pipeline_mode = #tpu.pipeline_mode<synchronous>, transform_indices = @transform_4, window_bounds = array<i64: 4, 32, 8>}, {pipeline_mode = #tpu.pipeline_mode<synchronous>, transform_indices = @transform_5, window_bounds = array<i64: 4, 1, 8>}, {pipeline_mode = #tpu.pipeline_mode<synchronous>, transform_indices = @transform_6, window_bounds = array<i64: 4, 32, 8>}, {pipeline_mode = #tpu.pipeline_mode<synchronous>, transform_indices = @transform_7, window_bounds = array<i64: 4, 1, 8>}, {pipeline_mode = #tpu.pipeline_mode<synchronous>, transform_indices = @transform_8, window_bounds = array<i64: 4, 32, 8>}, {pipeline_mode = #tpu.pipeline_mode<synchronous>, transform_indices = @transform_9, window_bounds = array<i64: 4, 1, 8>}, {pipeline_mode = #tpu.pipeline_mode<synchronous>, transform_indices = @transform_10, window_bounds = array<i64: 4, 8, 32>}, {pipeline_mode = #tpu.pipeline_mode<synchronous>, transform_indices = @transform_11, window_bounds = array<i64: 1, 32>}, {pipeline_mode = #tpu.pipeline_mode<synchronous>, transform_indices = @transform_12, window_bounds = array<i64: 1, 32>}, {pipeline_mode = #tpu.pipeline_mode<synchronous>, transform_indices = @transform_13, window_bounds = array<i64: 1, 32>}, {pipeline_mode = #tpu.pipeline_mode<synchronous>, transform_indices = @transform_14, window_bounds = array<i64: 4, 32, 8>}, {pipeline_mode = #tpu.pipeline_mode<synchronous>, transform_indices = @transform_15, window_bounds = array<i64: 4, 1, 8>}, {pipeline_mode = #tpu.pipeline_mode<synchronous>, transform_indices = @transform_16, window_bounds = array<i64: 4, 32, 8>}, {pipeline_mode = #tpu.pipeline_mode<synchronous>, transform_indices = @transform_17, window_bounds = array<i64: 4, 1, 8>}, {pipeline_mode = #tpu.pipeline_mode<synchronous>, transform_indices = @transform_18, window_bounds = array<i64: 4, 32, 8>}, {pipeline_mode = #tpu.pipeline_mode<synchronous>, transform_indices = @transform_19, window_bounds = array<i64: 4, 1, 8>}, {pipeline_mode = #tpu.pipeline_mode<synchronous>, transform_indices = @transform_20, window_bounds = array<i64: 4, 8, 32>}, {pipeline_mode = #tpu.pipeline_mode<synchronous>, transform_indices = @transform_21, window_bounds = array<i64: 1, 32>}, {pipeline_mode = #tpu.pipeline_mode<synchronous>, transform_indices = @transform_22, window_bounds = array<i64: 1, 32>}, {pipeline_mode = #tpu.pipeline_mode<synchronous>, transform_indices = @transform_23, window_bounds = array<i64: 1, 32>}, {pipeline_mode = #tpu.pipeline_mode<synchronous>, transform_indices = @transform_24, window_bounds = array<i64: 32, 64>}, {pipeline_mode = #tpu.pipeline_mode<synchronous>, transform_indices = @transform_25, window_bounds = array<i64: 1, 64>}, {pipeline_mode = #tpu.pipeline_mode<synchronous>, transform_indices = @transform_26, window_bounds = array<i64: 64, 32>}, {pipeline_mode = #tpu.pipeline_mode<synchronous>, transform_indices = @transform_27, window_bounds = array<i64: 1, 32>}, {pipeline_mode = #tpu.pipeline_mode<synchronous>, transform_indices = @transform_28, window_bounds = array<i64: 1, 32>}, {pipeline_mode = #tpu.pipeline_mode<synchronous>, transform_indices = @transform_29, window_bounds = array<i64: 1, 32>}, {transform_indices = @transform_30, window_bounds = array<i64: 1, 8, 32>}]} {
    %c0 = arith.constant 0 : index
    %c0_0 = arith.constant 0 : index
    %c0_1 = arith.constant 0 : index
    %0 = vector.load %arg1[%c0, %c0_0, %c0_1] : memref<1x8x32xf32, #tpu.memory_space<vmem>>, vector<1x8x32xf32>
    %1 = vector.shape_cast %0 : vector<1x8x32xf32> to vector<8x32xf32>
    %c0_2 = arith.constant 0 : index
    %c0_3 = arith.constant 0 : index
    %2 = vector.load %arg2[%c0_2, %c0_3] : memref<8x32xf32, #tpu.memory_space<vmem>>, vector<8x32xf32>
    %c0_4 = arith.constant 0 : index
    %c0_5 = arith.constant 0 : index
    %c0_6 = arith.constant 0 : index
    %3 = vector.load %arg3[%c0_4, %c0_5, %c0_6] : memref<1x16x32xf32, #tpu.memory_space<vmem>>, vector<1x16x32xf32>
    %4 = vector.shape_cast %3 : vector<1x16x32xf32> to vector<16x32xf32>
    %c0_7 = arith.constant 0 : index
    %c0_8 = arith.constant 0 : index
    %5 = vector.load %arg4[%c0_7, %c0_8] : memref<16x32xf32, #tpu.memory_space<vmem>>, vector<16x32xf32>
    %6 = arith.addf %1, %2 : vector<8x32xf32>
    %7 = arith.truncf %6 : vector<8x32xf32> to vector<8x32xbf16>
    %8 = arith.truncf %6 : vector<8x32xf32> to vector<8x32xbf16>
    %9 = arith.truncf %1 : vector<8x32xf32> to vector<8x32xbf16>
    %c0_9 = arith.constant 0 : index
    %c0_10 = arith.constant 0 : index
    %c0_11 = arith.constant 0 : index
    %10 = vector.load %arg5[%c0_9, %c0_10, %c0_11] : memref<4x32x8xbf16, #tpu.memory_space<vmem>>, vector<1x32x8xbf16>
    %11 = vector.shape_cast %10 : vector<1x32x8xbf16> to vector<32x8xbf16>
    %cst = arith.constant dense<0.000000e+00> : vector<8x8xf32>
    %12 = tpu.matmul %7, %11, %cst {dimension_numbers = #tpu.dot_dimension_numbers<[1], [0], [0], [1], [0, 0, 1, 1], [], []>} : vector<8x32xbf16>, vector<32x8xbf16>, vector<8x8xf32> -> vector<8x8xf32>
    %c0_12 = arith.constant 0 : index
    %c0_13 = arith.constant 0 : index
    %c0_14 = arith.constant 0 : index
    %13 = vector.load %arg6[%c0_12, %c0_13, %c0_14] : memref<4x1x8xf32, #tpu.memory_space<vmem>>, vector<1x1x8xf32>
    %14 = vector.shape_cast %13 : vector<1x1x8xf32> to vector<1x8xf32>
    %15 = vector.broadcast %14 : vector<1x8xf32> to vector<8x8xf32>
    %16 = arith.addf %12, %15 : vector<8x8xf32>
    %c0_15 = arith.constant 0 : index
    %c0_16 = arith.constant 0 : index
    %c0_17 = arith.constant 0 : index
    %17 = vector.load %arg7[%c0_15, %c0_16, %c0_17] : memref<4x32x8xbf16, #tpu.memory_space<vmem>>, vector<1x32x8xbf16>
    %18 = vector.shape_cast %17 : vector<1x32x8xbf16> to vector<32x8xbf16>
    %cst_18 = arith.constant dense<0.000000e+00> : vector<8x8xf32>
    %19 = tpu.matmul %8, %18, %cst_18 {dimension_numbers = #tpu.dot_dimension_numbers<[1], [0], [0], [1], [0, 0, 1, 1], [], []>} : vector<8x32xbf16>, vector<32x8xbf16>, vector<8x8xf32> -> vector<8x8xf32>
    %c0_19 = arith.constant 0 : index
    %c0_20 = arith.constant 0 : index
    %c0_21 = arith.constant 0 : index
    %20 = vector.load %arg8[%c0_19, %c0_20, %c0_21] : memref<4x1x8xf32, #tpu.memory_space<vmem>>, vector<1x1x8xf32>
    %21 = vector.shape_cast %20 : vector<1x1x8xf32> to vector<1x8xf32>
    %22 = vector.broadcast %21 : vector<1x8xf32> to vector<8x8xf32>
    %23 = arith.addf %19, %22 : vector<8x8xf32>
    %c0_22 = arith.constant 0 : index
    %c0_23 = arith.constant 0 : index
    %c0_24 = arith.constant 0 : index
    %24 = vector.load %arg9[%c0_22, %c0_23, %c0_24] : memref<4x32x8xbf16, #tpu.memory_space<vmem>>, vector<1x32x8xbf16>
    %25 = vector.shape_cast %24 : vector<1x32x8xbf16> to vector<32x8xbf16>
    %cst_25 = arith.constant dense<0.000000e+00> : vector<8x8xf32>
    %26 = tpu.matmul %9, %25, %cst_25 {dimension_numbers = #tpu.dot_dimension_numbers<[1], [0], [0], [1], [0, 0, 1, 1], [], []>} : vector<8x32xbf16>, vector<32x8xbf16>, vector<8x8xf32> -> vector<8x8xf32>
    %c0_26 = arith.constant 0 : index
    %c0_27 = arith.constant 0 : index
    %c0_28 = arith.constant 0 : index
    %27 = vector.load %arg10[%c0_26, %c0_27, %c0_28] : memref<4x1x8xf32, #tpu.memory_space<vmem>>, vector<1x1x8xf32>
    %28 = vector.shape_cast %27 : vector<1x1x8xf32> to vector<1x8xf32>
    %29 = vector.broadcast %28 : vector<1x8xf32> to vector<8x8xf32>
    %30 = arith.addf %26, %29 : vector<8x8xf32>
    %31 = arith.truncf %16 : vector<8x8xf32> to vector<8x8xbf16>
    %32 = arith.truncf %23 : vector<8x8xf32> to vector<8x8xbf16>
    "tpu.trace_start"() <{level = 10 : i32, message = "qd,kd->qk"}> : () -> ()
    %cst_29 = arith.constant dense<0.000000e+00> : vector<8x8xf32>
    %33 = tpu.matmul %31, %32, %cst_29 {dimension_numbers = #tpu.dot_dimension_numbers<[1], [1], [0], [0], [0, 0, 1, 0], [], []>} : vector<8x8xbf16>, vector<8x8xbf16>, vector<8x8xf32> -> vector<8x8xf32>
    "tpu.trace_stop"() : () -> ()
    %cst_30 = arith.constant 0.353553385 : f32
    %34 = vector.broadcast %cst_30 : f32 to vector<8x8xf32>
    %35 = arith.mulf %33, %34 : vector<8x8xf32>
    %cst_31 = arith.constant dense<0xFF800000> : vector<8xf32>
    %36 = vector.multi_reduction <maximumf>, %35, %cst_31 [1] : vector<8x8xf32> to vector<8xf32>
    %37 = vector.shape_cast %36 : vector<8xf32> to vector<8x1xf32>
    %38 = vector.broadcast %37 : vector<8x1xf32> to vector<8x8xf32>
    %39 = arith.subf %35, %38 : vector<8x8xf32>
    %40 = math.exp %39 : vector<8x8xf32>
    %cst_32 = arith.constant dense<0.000000e+00> : vector<8xf32>
    %41 = vector.multi_reduction <add>, %40, %cst_32 [1] : vector<8x8xf32> to vector<8xf32>
    %42 = vector.shape_cast %41 : vector<8xf32> to vector<8x1xf32>
    %43 = vector.broadcast %42 : vector<8x1xf32> to vector<8x8xf32>
    %44 = arith.divf %40, %43 : vector<8x8xf32>
    %45 = arith.truncf %44 : vector<8x8xf32> to vector<8x8xbf16>
    %46 = arith.truncf %30 : vector<8x8xf32> to vector<8x8xbf16>
    %cst_33 = arith.constant dense<0.000000e+00> : vector<8x8xf32>
    %47 = tpu.matmul %45, %46, %cst_33 {dimension_numbers = #tpu.dot_dimension_numbers<[1], [0], [0], [1], [0, 0, 1, 1], [], []>} : vector<8x8xbf16>, vector<8x8xbf16>, vector<8x8xf32> -> vector<8x8xf32>
    %48 = arith.truncf %47 : vector<8x8xf32> to vector<8x8xbf16>
    %c0_34 = arith.constant 0 : index
    %c0_35 = arith.constant 0 : index
    %c0_36 = arith.constant 0 : index
    %49 = vector.load %arg11[%c0_34, %c0_35, %c0_36] : memref<4x8x32xbf16, #tpu.memory_space<vmem>>, vector<1x8x32xbf16>
    %50 = vector.shape_cast %49 : vector<1x8x32xbf16> to vector<8x32xbf16>
    %cst_37 = arith.constant dense<0.000000e+00> : vector<8x32xf32>
    %51 = tpu.matmul %48, %50, %cst_37 {dimension_numbers = #tpu.dot_dimension_numbers<[1], [0], [0], [1], [0, 0, 1, 1], [], []>} : vector<8x8xbf16>, vector<8x32xbf16>, vector<8x32xf32> -> vector<8x32xf32>
    %c1 = arith.constant 1 : index
    %c0_38 = arith.constant 0 : index
    %c0_39 = arith.constant 0 : index
    %52 = vector.load %arg5[%c1, %c0_38, %c0_39] : memref<4x32x8xbf16, #tpu.memory_space<vmem>>, vector<1x32x8xbf16>
    %53 = vector.shape_cast %52 : vector<1x32x8xbf16> to vector<32x8xbf16>
    %cst_40 = arith.constant dense<0.000000e+00> : vector<8x8xf32>
    %54 = tpu.matmul %7, %53, %cst_40 {dimension_numbers = #tpu.dot_dimension_numbers<[1], [0], [0], [1], [0, 0, 1, 1], [], []>} : vector<8x32xbf16>, vector<32x8xbf16>, vector<8x8xf32> -> vector<8x8xf32>
    %c1_41 = arith.constant 1 : index
    %c0_42 = arith.constant 0 : index
    %c0_43 = arith.constant 0 : index
    %55 = vector.load %arg6[%c1_41, %c0_42, %c0_43] : memref<4x1x8xf32, #tpu.memory_space<vmem>>, vector<1x1x8xf32>
    %56 = vector.shape_cast %55 : vector<1x1x8xf32> to vector<1x8xf32>
    %57 = vector.broadcast %56 : vector<1x8xf32> to vector<8x8xf32>
    %58 = arith.addf %54, %57 : vector<8x8xf32>
    %c1_44 = arith.constant 1 : index
    %c0_45 = arith.constant 0 : index
    %c0_46 = arith.constant 0 : index
    %59 = vector.load %arg7[%c1_44, %c0_45, %c0_46] : memref<4x32x8xbf16, #tpu.memory_space<vmem>>, vector<1x32x8xbf16>
    %60 = vector.shape_cast %59 : vector<1x32x8xbf16> to vector<32x8xbf16>
    %cst_47 = arith.constant dense<0.000000e+00> : vector<8x8xf32>
    %61 = tpu.matmul %8, %60, %cst_47 {dimension_numbers = #tpu.dot_dimension_numbers<[1], [0], [0], [1], [0, 0, 1, 1], [], []>} : vector<8x32xbf16>, vector<32x8xbf16>, vector<8x8xf32> -> vector<8x8xf32>
    %c1_48 = arith.constant 1 : index
    %c0_49 = arith.constant 0 : index
    %c0_50 = arith.constant 0 : index
    %62 = vector.load %arg8[%c1_48, %c0_49, %c0_50] : memref<4x1x8xf32, #tpu.memory_space<vmem>>, vector<1x1x8xf32>
    %63 = vector.shape_cast %62 : vector<1x1x8xf32> to vector<1x8xf32>
    %64 = vector.broadcast %63 : vector<1x8xf32> to vector<8x8xf32>
    %65 = arith.addf %61, %64 : vector<8x8xf32>
    %c1_51 = arith.constant 1 : index
    %c0_52 = arith.constant 0 : index
    %c0_53 = arith.constant 0 : index
    %66 = vector.load %arg9[%c1_51, %c0_52, %c0_53] : memref<4x32x8xbf16, #tpu.memory_space<vmem>>, vector<1x32x8xbf16>
    %67 = vector.shape_cast %66 : vector<1x32x8xbf16> to vector<32x8xbf16>
    %cst_54 = arith.constant dense<0.000000e+00> : vector<8x8xf32>
    %68 = tpu.matmul %9, %67, %cst_54 {dimension_numbers = #tpu.dot_dimension_numbers<[1], [0], [0], [1], [0, 0, 1, 1], [], []>} : vector<8x32xbf16>, vector<32x8xbf16>, vector<8x8xf32> -> vector<8x8xf32>
    %c1_55 = arith.constant 1 : index
    %c0_56 = arith.constant 0 : index
    %c0_57 = arith.constant 0 : index
    %69 = vector.load %arg10[%c1_55, %c0_56, %c0_57] : memref<4x1x8xf32, #tpu.memory_space<vmem>>, vector<1x1x8xf32>
    %70 = vector.shape_cast %69 : vector<1x1x8xf32> to vector<1x8xf32>
    %71 = vector.broadcast %70 : vector<1x8xf32> to vector<8x8xf32>
    %72 = arith.addf %68, %71 : vector<8x8xf32>
    %73 = arith.truncf %58 : vector<8x8xf32> to vector<8x8xbf16>
    %74 = arith.truncf %65 : vector<8x8xf32> to vector<8x8xbf16>
    "tpu.trace_start"() <{level = 10 : i32, message = "qd,kd->qk"}> : () -> ()
    %cst_58 = arith.constant dense<0.000000e+00> : vector<8x8xf32>
    %75 = tpu.matmul %73, %74, %cst_58 {dimension_numbers = #tpu.dot_dimension_numbers<[1], [1], [0], [0], [0, 0, 1, 0], [], []>} : vector<8x8xbf16>, vector<8x8xbf16>, vector<8x8xf32> -> vector<8x8xf32>
    "tpu.trace_stop"() : () -> ()
    %cst_59 = arith.constant 0.353553385 : f32
    %76 = vector.broadcast %cst_59 : f32 to vector<8x8xf32>
    %77 = arith.mulf %75, %76 : vector<8x8xf32>
    %cst_60 = arith.constant dense<0xFF800000> : vector<8xf32>
    %78 = vector.multi_reduction <maximumf>, %77, %cst_60 [1] : vector<8x8xf32> to vector<8xf32>
    %79 = vector.shape_cast %78 : vector<8xf32> to vector<8x1xf32>
    %80 = vector.broadcast %79 : vector<8x1xf32> to vector<8x8xf32>
    %81 = arith.subf %77, %80 : vector<8x8xf32>
    %82 = math.exp %81 : vector<8x8xf32>
    %cst_61 = arith.constant dense<0.000000e+00> : vector<8xf32>
    %83 = vector.multi_reduction <add>, %82, %cst_61 [1] : vector<8x8xf32> to vector<8xf32>
    %84 = vector.shape_cast %83 : vector<8xf32> to vector<8x1xf32>
    %85 = vector.broadcast %84 : vector<8x1xf32> to vector<8x8xf32>
    %86 = arith.divf %82, %85 : vector<8x8xf32>
    %87 = arith.truncf %86 : vector<8x8xf32> to vector<8x8xbf16>
    %88 = arith.truncf %72 : vector<8x8xf32> to vector<8x8xbf16>
    %cst_62 = arith.constant dense<0.000000e+00> : vector<8x8xf32>
    %89 = tpu.matmul %87, %88, %cst_62 {dimension_numbers = #tpu.dot_dimension_numbers<[1], [0], [0], [1], [0, 0, 1, 1], [], []>} : vector<8x8xbf16>, vector<8x8xbf16>, vector<8x8xf32> -> vector<8x8xf32>
    %90 = arith.truncf %89 : vector<8x8xf32> to vector<8x8xbf16>
    %c1_63 = arith.constant 1 : index
    %c0_64 = arith.constant 0 : index
    %c0_65 = arith.constant 0 : index
    %91 = vector.load %arg11[%c1_63, %c0_64, %c0_65] : memref<4x8x32xbf16, #tpu.memory_space<vmem>>, vector<1x8x32xbf16>
    %92 = vector.shape_cast %91 : vector<1x8x32xbf16> to vector<8x32xbf16>
    %cst_66 = arith.constant dense<0.000000e+00> : vector<8x32xf32>
    %93 = tpu.matmul %90, %92, %cst_66 {dimension_numbers = #tpu.dot_dimension_numbers<[1], [0], [0], [1], [0, 0, 1, 1], [], []>} : vector<8x8xbf16>, vector<8x32xbf16>, vector<8x32xf32> -> vector<8x32xf32>
    %94 = arith.addf %51, %93 : vector<8x32xf32>
    %c2 = arith.constant 2 : index
    %c0_67 = arith.constant 0 : index
    %c0_68 = arith.constant 0 : index
    %95 = vector.load %arg5[%c2, %c0_67, %c0_68] : memref<4x32x8xbf16, #tpu.memory_space<vmem>>, vector<1x32x8xbf16>
    %96 = vector.shape_cast %95 : vector<1x32x8xbf16> to vector<32x8xbf16>
    %cst_69 = arith.constant dense<0.000000e+00> : vector<8x8xf32>
    %97 = tpu.matmul %7, %96, %cst_69 {dimension_numbers = #tpu.dot_dimension_numbers<[1], [0], [0], [1], [0, 0, 1, 1], [], []>} : vector<8x32xbf16>, vector<32x8xbf16>, vector<8x8xf32> -> vector<8x8xf32>
    %c2_70 = arith.constant 2 : index
    %c0_71 = arith.constant 0 : index
    %c0_72 = arith.constant 0 : index
    %98 = vector.load %arg6[%c2_70, %c0_71, %c0_72] : memref<4x1x8xf32, #tpu.memory_space<vmem>>, vector<1x1x8xf32>
    %99 = vector.shape_cast %98 : vector<1x1x8xf32> to vector<1x8xf32>
    %100 = vector.broadcast %99 : vector<1x8xf32> to vector<8x8xf32>
    %101 = arith.addf %97, %100 : vector<8x8xf32>
    %c2_73 = arith.constant 2 : index
    %c0_74 = arith.constant 0 : index
    %c0_75 = arith.constant 0 : index
    %102 = vector.load %arg7[%c2_73, %c0_74, %c0_75] : memref<4x32x8xbf16, #tpu.memory_space<vmem>>, vector<1x32x8xbf16>
    %103 = vector.shape_cast %102 : vector<1x32x8xbf16> to vector<32x8xbf16>
    %cst_76 = arith.constant dense<0.000000e+00> : vector<8x8xf32>
    %104 = tpu.matmul %8, %103, %cst_76 {dimension_numbers = #tpu.dot_dimension_numbers<[1], [0], [0], [1], [0, 0, 1, 1], [], []>} : vector<8x32xbf16>, vector<32x8xbf16>, vector<8x8xf32> -> vector<8x8xf32>
    %c2_77 = arith.constant 2 : index
    %c0_78 = arith.constant 0 : index
    %c0_79 = arith.constant 0 : index
    %105 = vector.load %arg8[%c2_77, %c0_78, %c0_79] : memref<4x1x8xf32, #tpu.memory_space<vmem>>, vector<1x1x8xf32>
    %106 = vector.shape_cast %105 : vector<1x1x8xf32> to vector<1x8xf32>
    %107 = vector.broadcast %106 : vector<1x8xf32> to vector<8x8xf32>
    %108 = arith.addf %104, %107 : vector<8x8xf32>
    %c2_80 = arith.constant 2 : index
    %c0_81 = arith.constant 0 : index
    %c0_82 = arith.constant 0 : index
    %109 = vector.load %arg9[%c2_80, %c0_81, %c0_82] : memref<4x32x8xbf16, #tpu.memory_space<vmem>>, vector<1x32x8xbf16>
    %110 = vector.shape_cast %109 : vector<1x32x8xbf16> to vector<32x8xbf16>
    %cst_83 = arith.constant dense<0.000000e+00> : vector<8x8xf32>
    %111 = tpu.matmul %9, %110, %cst_83 {dimension_numbers = #tpu.dot_dimension_numbers<[1], [0], [0], [1], [0, 0, 1, 1], [], []>} : vector<8x32xbf16>, vector<32x8xbf16>, vector<8x8xf32> -> vector<8x8xf32>
    %c2_84 = arith.constant 2 : index
    %c0_85 = arith.constant 0 : index
    %c0_86 = arith.constant 0 : index
    %112 = vector.load %arg10[%c2_84, %c0_85, %c0_86] : memref<4x1x8xf32, #tpu.memory_space<vmem>>, vector<1x1x8xf32>
    %113 = vector.shape_cast %112 : vector<1x1x8xf32> to vector<1x8xf32>
    %114 = vector.broadcast %113 : vector<1x8xf32> to vector<8x8xf32>
    %115 = arith.addf %111, %114 : vector<8x8xf32>
    %116 = arith.truncf %101 : vector<8x8xf32> to vector<8x8xbf16>
    %117 = arith.truncf %108 : vector<8x8xf32> to vector<8x8xbf16>
    "tpu.trace_start"() <{level = 10 : i32, message = "qd,kd->qk"}> : () -> ()
    %cst_87 = arith.constant dense<0.000000e+00> : vector<8x8xf32>
    %118 = tpu.matmul %116, %117, %cst_87 {dimension_numbers = #tpu.dot_dimension_numbers<[1], [1], [0], [0], [0, 0, 1, 0], [], []>} : vector<8x8xbf16>, vector<8x8xbf16>, vector<8x8xf32> -> vector<8x8xf32>
    "tpu.trace_stop"() : () -> ()
    %cst_88 = arith.constant 0.353553385 : f32
    %119 = vector.broadcast %cst_88 : f32 to vector<8x8xf32>
    %120 = arith.mulf %118, %119 : vector<8x8xf32>
    %cst_89 = arith.constant dense<0xFF800000> : vector<8xf32>
    %121 = vector.multi_reduction <maximumf>, %120, %cst_89 [1] : vector<8x8xf32> to vector<8xf32>
    %122 = vector.shape_cast %121 : vector<8xf32> to vector<8x1xf32>
    %123 = vector.broadcast %122 : vector<8x1xf32> to vector<8x8xf32>
    %124 = arith.subf %120, %123 : vector<8x8xf32>
    %125 = math.exp %124 : vector<8x8xf32>
    %cst_90 = arith.constant dense<0.000000e+00> : vector<8xf32>
    %126 = vector.multi_reduction <add>, %125, %cst_90 [1] : vector<8x8xf32> to vector<8xf32>
    %127 = vector.shape_cast %126 : vector<8xf32> to vector<8x1xf32>
    %128 = vector.broadcast %127 : vector<8x1xf32> to vector<8x8xf32>
    %129 = arith.divf %125, %128 : vector<8x8xf32>
    %130 = arith.truncf %129 : vector<8x8xf32> to vector<8x8xbf16>
    %131 = arith.truncf %115 : vector<8x8xf32> to vector<8x8xbf16>
    %cst_91 = arith.constant dense<0.000000e+00> : vector<8x8xf32>
    %132 = tpu.matmul %130, %131, %cst_91 {dimension_numbers = #tpu.dot_dimension_numbers<[1], [0], [0], [1], [0, 0, 1, 1], [], []>} : vector<8x8xbf16>, vector<8x8xbf16>, vector<8x8xf32> -> vector<8x8xf32>
    %133 = arith.truncf %132 : vector<8x8xf32> to vector<8x8xbf16>
    %c2_92 = arith.constant 2 : index
    %c0_93 = arith.constant 0 : index
    %c0_94 = arith.constant 0 : index
    %134 = vector.load %arg11[%c2_92, %c0_93, %c0_94] : memref<4x8x32xbf16, #tpu.memory_space<vmem>>, vector<1x8x32xbf16>
    %135 = vector.shape_cast %134 : vector<1x8x32xbf16> to vector<8x32xbf16>
    %cst_95 = arith.constant dense<0.000000e+00> : vector<8x32xf32>
    %136 = tpu.matmul %133, %135, %cst_95 {dimension_numbers = #tpu.dot_dimension_numbers<[1], [0], [0], [1], [0, 0, 1, 1], [], []>} : vector<8x8xbf16>, vector<8x32xbf16>, vector<8x32xf32> -> vector<8x32xf32>
    %137 = arith.addf %94, %136 : vector<8x32xf32>
    %c3 = arith.constant 3 : index
    %c0_96 = arith.constant 0 : index
    %c0_97 = arith.constant 0 : index
    %138 = vector.load %arg5[%c3, %c0_96, %c0_97] : memref<4x32x8xbf16, #tpu.memory_space<vmem>>, vector<1x32x8xbf16>
    %139 = vector.shape_cast %138 : vector<1x32x8xbf16> to vector<32x8xbf16>
    %cst_98 = arith.constant dense<0.000000e+00> : vector<8x8xf32>
    %140 = tpu.matmul %7, %139, %cst_98 {dimension_numbers = #tpu.dot_dimension_numbers<[1], [0], [0], [1], [0, 0, 1, 1], [], []>} : vector<8x32xbf16>, vector<32x8xbf16>, vector<8x8xf32> -> vector<8x8xf32>
    %c3_99 = arith.constant 3 : index
    %c0_100 = arith.constant 0 : index
    %c0_101 = arith.constant 0 : index
    %141 = vector.load %arg6[%c3_99, %c0_100, %c0_101] : memref<4x1x8xf32, #tpu.memory_space<vmem>>, vector<1x1x8xf32>
    %142 = vector.shape_cast %141 : vector<1x1x8xf32> to vector<1x8xf32>
    %143 = vector.broadcast %142 : vector<1x8xf32> to vector<8x8xf32>
    %144 = arith.addf %140, %143 : vector<8x8xf32>
    %c3_102 = arith.constant 3 : index
    %c0_103 = arith.constant 0 : index
    %c0_104 = arith.constant 0 : index
    %145 = vector.load %arg7[%c3_102, %c0_103, %c0_104] : memref<4x32x8xbf16, #tpu.memory_space<vmem>>, vector<1x32x8xbf16>
    %146 = vector.shape_cast %145 : vector<1x32x8xbf16> to vector<32x8xbf16>
    %cst_105 = arith.constant dense<0.000000e+00> : vector<8x8xf32>
    %147 = tpu.matmul %8, %146, %cst_105 {dimension_numbers = #tpu.dot_dimension_numbers<[1], [0], [0], [1], [0, 0, 1, 1], [], []>} : vector<8x32xbf16>, vector<32x8xbf16>, vector<8x8xf32> -> vector<8x8xf32>
    %c3_106 = arith.constant 3 : index
    %c0_107 = arith.constant 0 : index
    %c0_108 = arith.constant 0 : index
    %148 = vector.load %arg8[%c3_106, %c0_107, %c0_108] : memref<4x1x8xf32, #tpu.memory_space<vmem>>, vector<1x1x8xf32>
    %149 = vector.shape_cast %148 : vector<1x1x8xf32> to vector<1x8xf32>
    %150 = vector.broadcast %149 : vector<1x8xf32> to vector<8x8xf32>
    %151 = arith.addf %147, %150 : vector<8x8xf32>
    %c3_109 = arith.constant 3 : index
    %c0_110 = arith.constant 0 : index
    %c0_111 = arith.constant 0 : index
    %152 = vector.load %arg9[%c3_109, %c0_110, %c0_111] : memref<4x32x8xbf16, #tpu.memory_space<vmem>>, vector<1x32x8xbf16>
    %153 = vector.shape_cast %152 : vector<1x32x8xbf16> to vector<32x8xbf16>
    %cst_112 = arith.constant dense<0.000000e+00> : vector<8x8xf32>
    %154 = tpu.matmul %9, %153, %cst_112 {dimension_numbers = #tpu.dot_dimension_numbers<[1], [0], [0], [1], [0, 0, 1, 1], [], []>} : vector<8x32xbf16>, vector<32x8xbf16>, vector<8x8xf32> -> vector<8x8xf32>
    %c3_113 = arith.constant 3 : index
    %c0_114 = arith.constant 0 : index
    %c0_115 = arith.constant 0 : index
    %155 = vector.load %arg10[%c3_113, %c0_114, %c0_115] : memref<4x1x8xf32, #tpu.memory_space<vmem>>, vector<1x1x8xf32>
    %156 = vector.shape_cast %155 : vector<1x1x8xf32> to vector<1x8xf32>
    %157 = vector.broadcast %156 : vector<1x8xf32> to vector<8x8xf32>
    %158 = arith.addf %154, %157 : vector<8x8xf32>
    %159 = arith.truncf %144 : vector<8x8xf32> to vector<8x8xbf16>
    %160 = arith.truncf %151 : vector<8x8xf32> to vector<8x8xbf16>
    "tpu.trace_start"() <{level = 10 : i32, message = "qd,kd->qk"}> : () -> ()
    %cst_116 = arith.constant dense<0.000000e+00> : vector<8x8xf32>
    %161 = tpu.matmul %159, %160, %cst_116 {dimension_numbers = #tpu.dot_dimension_numbers<[1], [1], [0], [0], [0, 0, 1, 0], [], []>} : vector<8x8xbf16>, vector<8x8xbf16>, vector<8x8xf32> -> vector<8x8xf32>
    "tpu.trace_stop"() : () -> ()
    %cst_117 = arith.constant 0.353553385 : f32
    %162 = vector.broadcast %cst_117 : f32 to vector<8x8xf32>
    %163 = arith.mulf %161, %162 : vector<8x8xf32>
    %cst_118 = arith.constant dense<0xFF800000> : vector<8xf32>
    %164 = vector.multi_reduction <maximumf>, %163, %cst_118 [1] : vector<8x8xf32> to vector<8xf32>
    %165 = vector.shape_cast %164 : vector<8xf32> to vector<8x1xf32>
    %166 = vector.broadcast %165 : vector<8x1xf32> to vector<8x8xf32>
    %167 = arith.subf %163, %166 : vector<8x8xf32>
    %168 = math.exp %167 : vector<8x8xf32>
    %cst_119 = arith.constant dense<0.000000e+00> : vector<8xf32>
    %169 = vector.multi_reduction <add>, %168, %cst_119 [1] : vector<8x8xf32> to vector<8xf32>
    %170 = vector.shape_cast %169 : vector<8xf32> to vector<8x1xf32>
    %171 = vector.broadcast %170 : vector<8x1xf32> to vector<8x8xf32>
    %172 = arith.divf %168, %171 : vector<8x8xf32>
    %173 = arith.truncf %172 : vector<8x8xf32> to vector<8x8xbf16>
    %174 = arith.truncf %158 : vector<8x8xf32> to vector<8x8xbf16>
    %cst_120 = arith.constant dense<0.000000e+00> : vector<8x8xf32>
    %175 = tpu.matmul %173, %174, %cst_120 {dimension_numbers = #tpu.dot_dimension_numbers<[1], [0], [0], [1], [0, 0, 1, 1], [], []>} : vector<8x8xbf16>, vector<8x8xbf16>, vector<8x8xf32> -> vector<8x8xf32>
    %176 = arith.truncf %175 : vector<8x8xf32> to vector<8x8xbf16>
    %c3_121 = arith.constant 3 : index
    %c0_122 = arith.constant 0 : index
    %c0_123 = arith.constant 0 : index
    %177 = vector.load %arg11[%c3_121, %c0_122, %c0_123] : memref<4x8x32xbf16, #tpu.memory_space<vmem>>, vector<1x8x32xbf16>
    %178 = vector.shape_cast %177 : vector<1x8x32xbf16> to vector<8x32xbf16>
    %cst_124 = arith.constant dense<0.000000e+00> : vector<8x32xf32>
    %179 = tpu.matmul %176, %178, %cst_124 {dimension_numbers = #tpu.dot_dimension_numbers<[1], [0], [0], [1], [0, 0, 1, 1], [], []>} : vector<8x8xbf16>, vector<8x32xbf16>, vector<8x32xf32> -> vector<8x32xf32>
    %180 = arith.addf %137, %179 : vector<8x32xf32>
    %c0_125 = arith.constant 0 : index
    %c0_126 = arith.constant 0 : index
    %181 = vector.load %arg12[%c0_125, %c0_126] : memref<1x32xf32, #tpu.memory_space<vmem>>, vector<1x32xf32>
    %182 = vector.broadcast %181 : vector<1x32xf32> to vector<8x32xf32>
    %183 = arith.addf %180, %182 : vector<8x32xf32>
    %184 = arith.addf %1, %183 : vector<8x32xf32>
    %c0_127 = arith.constant 0 : index
    %c0_128 = arith.constant 0 : index
    %185 = vector.load %arg13[%c0_127, %c0_128] : memref<1x32xf32, #tpu.memory_space<vmem>>, vector<1x32xf32>
    %c0_129 = arith.constant 0 : index
    %c0_130 = arith.constant 0 : index
    %186 = vector.load %arg14[%c0_129, %c0_130] : memref<1x32xf32, #tpu.memory_space<vmem>>, vector<1x32xf32>
    %cst_131 = arith.constant dense<0.000000e+00> : vector<8xf32>
    %187 = vector.multi_reduction <add>, %184, %cst_131 [1] : vector<8x32xf32> to vector<8xf32>
    %188 = vector.shape_cast %187 : vector<8xf32> to vector<8x1xf32>
    %cst_132 = arith.constant 3.200000e+01 : f32
    %189 = vector.broadcast %cst_132 : f32 to vector<8x1xf32>
    %190 = arith.divf %188, %189 : vector<8x1xf32>
    %191 = vector.broadcast %190 : vector<8x1xf32> to vector<8x32xf32>
    %192 = arith.subf %184, %191 : vector<8x32xf32>
    %193 = arith.mulf %192, %192 : vector<8x32xf32>
    %cst_133 = arith.constant dense<0.000000e+00> : vector<8xf32>
    %194 = vector.multi_reduction <add>, %193, %cst_133 [1] : vector<8x32xf32> to vector<8xf32>
    %195 = vector.shape_cast %194 : vector<8xf32> to vector<8x1xf32>
    %cst_134 = arith.constant 3.200000e+01 : f32
    %196 = vector.broadcast %cst_134 : f32 to vector<8x1xf32>
    %197 = arith.divf %195, %196 : vector<8x1xf32>
    %198 = vector.broadcast %190 : vector<8x1xf32> to vector<8x32xf32>
    %199 = arith.subf %184, %198 : vector<8x32xf32>
    %cst_135 = arith.constant 9.99999974E-6 : f32
    %200 = vector.broadcast %cst_135 : f32 to vector<8x1xf32>
    %201 = arith.addf %197, %200 : vector<8x1xf32>
    %202 = math.rsqrt %201 : vector<8x1xf32>
    %203 = vector.broadcast %202 : vector<8x1xf32> to vector<8x32xf32>
    %204 = arith.mulf %199, %203 : vector<8x32xf32>
    %205 = vector.broadcast %185 : vector<1x32xf32> to vector<8x32xf32>
    %206 = arith.mulf %204, %205 : vector<8x32xf32>
    %207 = vector.broadcast %186 : vector<1x32xf32> to vector<8x32xf32>
    %208 = arith.addf %206, %207 : vector<8x32xf32>
    %209 = arith.addf %208, %2 : vector<8x32xf32>
    %210 = arith.addf %4, %5 : vector<16x32xf32>
    %211 = arith.truncf %209 : vector<8x32xf32> to vector<8x32xbf16>
    %212 = arith.truncf %210 : vector<16x32xf32> to vector<16x32xbf16>
    %213 = arith.truncf %4 : vector<16x32xf32> to vector<16x32xbf16>
    %c0_136 = arith.constant 0 : index
    %c0_137 = arith.constant 0 : index
    %c0_138 = arith.constant 0 : index
    %214 = vector.load %arg15[%c0_136, %c0_137, %c0_138] : memref<4x32x8xbf16, #tpu.memory_space<vmem>>, vector<1x32x8xbf16>
    %215 = vector.shape_cast %214 : vector<1x32x8xbf16> to vector<32x8xbf16>
    %cst_139 = arith.constant dense<0.000000e+00> : vector<8x8xf32>
    %216 = tpu.matmul %211, %215, %cst_139 {dimension_numbers = #tpu.dot_dimension_numbers<[1], [0], [0], [1], [0, 0, 1, 1], [], []>} : vector<8x32xbf16>, vector<32x8xbf16>, vector<8x8xf32> -> vector<8x8xf32>
    %c0_140 = arith.constant 0 : index
    %c0_141 = arith.constant 0 : index
    %c0_142 = arith.constant 0 : index
    %217 = vector.load %arg16[%c0_140, %c0_141, %c0_142] : memref<4x1x8xf32, #tpu.memory_space<vmem>>, vector<1x1x8xf32>
    %218 = vector.shape_cast %217 : vector<1x1x8xf32> to vector<1x8xf32>
    %219 = vector.broadcast %218 : vector<1x8xf32> to vector<8x8xf32>
    %220 = arith.addf %216, %219 : vector<8x8xf32>
    %c0_143 = arith.constant 0 : index
    %c0_144 = arith.constant 0 : index
    %c0_145 = arith.constant 0 : index
    %221 = vector.load %arg17[%c0_143, %c0_144, %c0_145] : memref<4x32x8xbf16, #tpu.memory_space<vmem>>, vector<1x32x8xbf16>
    %222 = vector.shape_cast %221 : vector<1x32x8xbf16> to vector<32x8xbf16>
    %cst_146 = arith.constant dense<0.000000e+00> : vector<16x8xf32>
    %223 = tpu.matmul %212, %222, %cst_146 {dimension_numbers = #tpu.dot_dimension_numbers<[1], [0], [0], [1], [0, 0, 1, 1], [], []>} : vector<16x32xbf16>, vector<32x8xbf16>, vector<16x8xf32> -> vector<16x8xf32>
    %c0_147 = arith.constant 0 : index
    %c0_148 = arith.constant 0 : index
    %c0_149 = arith.constant 0 : index
    %224 = vector.load %arg18[%c0_147, %c0_148, %c0_149] : memref<4x1x8xf32, #tpu.memory_space<vmem>>, vector<1x1x8xf32>
    %225 = vector.shape_cast %224 : vector<1x1x8xf32> to vector<1x8xf32>
    %226 = vector.broadcast %225 : vector<1x8xf32> to vector<16x8xf32>
    %227 = arith.addf %223, %226 : vector<16x8xf32>
    %c0_150 = arith.constant 0 : index
    %c0_151 = arith.constant 0 : index
    %c0_152 = arith.constant 0 : index
    %228 = vector.load %arg19[%c0_150, %c0_151, %c0_152] : memref<4x32x8xbf16, #tpu.memory_space<vmem>>, vector<1x32x8xbf16>
    %229 = vector.shape_cast %228 : vector<1x32x8xbf16> to vector<32x8xbf16>
    %cst_153 = arith.constant dense<0.000000e+00> : vector<16x8xf32>
    %230 = tpu.matmul %213, %229, %cst_153 {dimension_numbers = #tpu.dot_dimension_numbers<[1], [0], [0], [1], [0, 0, 1, 1], [], []>} : vector<16x32xbf16>, vector<32x8xbf16>, vector<16x8xf32> -> vector<16x8xf32>
    %c0_154 = arith.constant 0 : index
    %c0_155 = arith.constant 0 : index
    %c0_156 = arith.constant 0 : index
    %231 = vector.load %arg20[%c0_154, %c0_155, %c0_156] : memref<4x1x8xf32, #tpu.memory_space<vmem>>, vector<1x1x8xf32>
    %232 = vector.shape_cast %231 : vector<1x1x8xf32> to vector<1x8xf32>
    %233 = vector.broadcast %232 : vector<1x8xf32> to vector<16x8xf32>
    %234 = arith.addf %230, %233 : vector<16x8xf32>
    %235 = arith.truncf %220 : vector<8x8xf32> to vector<8x8xbf16>
    %236 = arith.truncf %227 : vector<16x8xf32> to vector<16x8xbf16>
    "tpu.trace_start"() <{level = 10 : i32, message = "qd,kd->qk"}> : () -> ()
    %cst_157 = arith.constant dense<0.000000e+00> : vector<8x16xf32>
    %237 = tpu.matmul %235, %236, %cst_157 {dimension_numbers = #tpu.dot_dimension_numbers<[1], [1], [0], [0], [0, 0, 1, 0], [], []>} : vector<8x8xbf16>, vector<16x8xbf16>, vector<8x16xf32> -> vector<8x16xf32>
    "tpu.trace_stop"() : () -> ()
    %cst_158 = arith.constant 0.353553385 : f32
    %238 = vector.broadcast %cst_158 : f32 to vector<8x16xf32>
    %239 = arith.mulf %237, %238 : vector<8x16xf32>
    %cst_159 = arith.constant dense<0xFF800000> : vector<8xf32>
    %240 = vector.multi_reduction <maximumf>, %239, %cst_159 [1] : vector<8x16xf32> to vector<8xf32>
    %241 = vector.shape_cast %240 : vector<8xf32> to vector<8x1xf32>
    %242 = vector.broadcast %241 : vector<8x1xf32> to vector<8x16xf32>
    %243 = arith.subf %239, %242 : vector<8x16xf32>
    %244 = math.exp %243 : vector<8x16xf32>
    %cst_160 = arith.constant dense<0.000000e+00> : vector<8xf32>
    %245 = vector.multi_reduction <add>, %244, %cst_160 [1] : vector<8x16xf32> to vector<8xf32>
    %246 = vector.shape_cast %245 : vector<8xf32> to vector<8x1xf32>
    %247 = vector.broadcast %246 : vector<8x1xf32> to vector<8x16xf32>
    %248 = arith.divf %244, %247 : vector<8x16xf32>
    %249 = arith.truncf %248 : vector<8x16xf32> to vector<8x16xbf16>
    %250 = arith.truncf %234 : vector<16x8xf32> to vector<16x8xbf16>
    %cst_161 = arith.constant dense<0.000000e+00> : vector<8x8xf32>
    %251 = tpu.matmul %249, %250, %cst_161 {dimension_numbers = #tpu.dot_dimension_numbers<[1], [0], [0], [1], [0, 0, 1, 1], [], []>} : vector<8x16xbf16>, vector<16x8xbf16>, vector<8x8xf32> -> vector<8x8xf32>
    %252 = arith.truncf %251 : vector<8x8xf32> to vector<8x8xbf16>
    %c0_162 = arith.constant 0 : index
    %c0_163 = arith.constant 0 : index
    %c0_164 = arith.constant 0 : index
    %253 = vector.load %arg21[%c0_162, %c0_163, %c0_164] : memref<4x8x32xbf16, #tpu.memory_space<vmem>>, vector<1x8x32xbf16>
    %254 = vector.shape_cast %253 : vector<1x8x32xbf16> to vector<8x32xbf16>
    %cst_165 = arith.constant dense<0.000000e+00> : vector<8x32xf32>
    %255 = tpu.matmul %252, %254, %cst_165 {dimension_numbers = #tpu.dot_dimension_numbers<[1], [0], [0], [1], [0, 0, 1, 1], [], []>} : vector<8x8xbf16>, vector<8x32xbf16>, vector<8x32xf32> -> vector<8x32xf32>
    %c1_166 = arith.constant 1 : index
    %c0_167 = arith.constant 0 : index
    %c0_168 = arith.constant 0 : index
    %256 = vector.load %arg15[%c1_166, %c0_167, %c0_168] : memref<4x32x8xbf16, #tpu.memory_space<vmem>>, vector<1x32x8xbf16>
    %257 = vector.shape_cast %256 : vector<1x32x8xbf16> to vector<32x8xbf16>
    %cst_169 = arith.constant dense<0.000000e+00> : vector<8x8xf32>
    %258 = tpu.matmul %211, %257, %cst_169 {dimension_numbers = #tpu.dot_dimension_numbers<[1], [0], [0], [1], [0, 0, 1, 1], [], []>} : vector<8x32xbf16>, vector<32x8xbf16>, vector<8x8xf32> -> vector<8x8xf32>
    %c1_170 = arith.constant 1 : index
    %c0_171 = arith.constant 0 : index
    %c0_172 = arith.constant 0 : index
    %259 = vector.load %arg16[%c1_170, %c0_171, %c0_172] : memref<4x1x8xf32, #tpu.memory_space<vmem>>, vector<1x1x8xf32>
    %260 = vector.shape_cast %259 : vector<1x1x8xf32> to vector<1x8xf32>
    %261 = vector.broadcast %260 : vector<1x8xf32> to vector<8x8xf32>
    %262 = arith.addf %258, %261 : vector<8x8xf32>
    %c1_173 = arith.constant 1 : index
    %c0_174 = arith.constant 0 : index
    %c0_175 = arith.constant 0 : index
    %263 = vector.load %arg17[%c1_173, %c0_174, %c0_175] : memref<4x32x8xbf16, #tpu.memory_space<vmem>>, vector<1x32x8xbf16>
    %264 = vector.shape_cast %263 : vector<1x32x8xbf16> to vector<32x8xbf16>
    %cst_176 = arith.constant dense<0.000000e+00> : vector<16x8xf32>
    %265 = tpu.matmul %212, %264, %cst_176 {dimension_numbers = #tpu.dot_dimension_numbers<[1], [0], [0], [1], [0, 0, 1, 1], [], []>} : vector<16x32xbf16>, vector<32x8xbf16>, vector<16x8xf32> -> vector<16x8xf32>
    %c1_177 = arith.constant 1 : index
    %c0_178 = arith.constant 0 : index
    %c0_179 = arith.constant 0 : index
    %266 = vector.load %arg18[%c1_177, %c0_178, %c0_179] : memref<4x1x8xf32, #tpu.memory_space<vmem>>, vector<1x1x8xf32>
    %267 = vector.shape_cast %266 : vector<1x1x8xf32> to vector<1x8xf32>
    %268 = vector.broadcast %267 : vector<1x8xf32> to vector<16x8xf32>
    %269 = arith.addf %265, %268 : vector<16x8xf32>
    %c1_180 = arith.constant 1 : index
    %c0_181 = arith.constant 0 : index
    %c0_182 = arith.constant 0 : index
    %270 = vector.load %arg19[%c1_180, %c0_181, %c0_182] : memref<4x32x8xbf16, #tpu.memory_space<vmem>>, vector<1x32x8xbf16>
    %271 = vector.shape_cast %270 : vector<1x32x8xbf16> to vector<32x8xbf16>
    %cst_183 = arith.constant dense<0.000000e+00> : vector<16x8xf32>
    %272 = tpu.matmul %213, %271, %cst_183 {dimension_numbers = #tpu.dot_dimension_numbers<[1], [0], [0], [1], [0, 0, 1, 1], [], []>} : vector<16x32xbf16>, vector<32x8xbf16>, vector<16x8xf32> -> vector<16x8xf32>
    %c1_184 = arith.constant 1 : index
    %c0_185 = arith.constant 0 : index
    %c0_186 = arith.constant 0 : index
    %273 = vector.load %arg20[%c1_184, %c0_185, %c0_186] : memref<4x1x8xf32, #tpu.memory_space<vmem>>, vector<1x1x8xf32>
    %274 = vector.shape_cast %273 : vector<1x1x8xf32> to vector<1x8xf32>
    %275 = vector.broadcast %274 : vector<1x8xf32> to vector<16x8xf32>
    %276 = arith.addf %272, %275 : vector<16x8xf32>
    %277 = arith.truncf %262 : vector<8x8xf32> to vector<8x8xbf16>
    %278 = arith.truncf %269 : vector<16x8xf32> to vector<16x8xbf16>
    "tpu.trace_start"() <{level = 10 : i32, message = "qd,kd->qk"}> : () -> ()
    %cst_187 = arith.constant dense<0.000000e+00> : vector<8x16xf32>
    %279 = tpu.matmul %277, %278, %cst_187 {dimension_numbers = #tpu.dot_dimension_numbers<[1], [1], [0], [0], [0, 0, 1, 0], [], []>} : vector<8x8xbf16>, vector<16x8xbf16>, vector<8x16xf32> -> vector<8x16xf32>
    "tpu.trace_stop"() : () -> ()
    %cst_188 = arith.constant 0.353553385 : f32
    %280 = vector.broadcast %cst_188 : f32 to vector<8x16xf32>
    %281 = arith.mulf %279, %280 : vector<8x16xf32>
    %cst_189 = arith.constant dense<0xFF800000> : vector<8xf32>
    %282 = vector.multi_reduction <maximumf>, %281, %cst_189 [1] : vector<8x16xf32> to vector<8xf32>
    %283 = vector.shape_cast %282 : vector<8xf32> to vector<8x1xf32>
    %284 = vector.broadcast %283 : vector<8x1xf32> to vector<8x16xf32>
    %285 = arith.subf %281, %284 : vector<8x16xf32>
    %286 = math.exp %285 : vector<8x16xf32>
    %cst_190 = arith.constant dense<0.000000e+00> : vector<8xf32>
    %287 = vector.multi_reduction <add>, %286, %cst_190 [1] : vector<8x16xf32> to vector<8xf32>
    %288 = vector.shape_cast %287 : vector<8xf32> to vector<8x1xf32>
    %289 = vector.broadcast %288 : vector<8x1xf32> to vector<8x16xf32>
    %290 = arith.divf %286, %289 : vector<8x16xf32>
    %291 = arith.truncf %290 : vector<8x16xf32> to vector<8x16xbf16>
    %292 = arith.truncf %276 : vector<16x8xf32> to vector<16x8xbf16>
    %cst_191 = arith.constant dense<0.000000e+00> : vector<8x8xf32>
    %293 = tpu.matmul %291, %292, %cst_191 {dimension_numbers = #tpu.dot_dimension_numbers<[1], [0], [0], [1], [0, 0, 1, 1], [], []>} : vector<8x16xbf16>, vector<16x8xbf16>, vector<8x8xf32> -> vector<8x8xf32>
    %294 = arith.truncf %293 : vector<8x8xf32> to vector<8x8xbf16>
    %c1_192 = arith.constant 1 : index
    %c0_193 = arith.constant 0 : index
    %c0_194 = arith.constant 0 : index
    %295 = vector.load %arg21[%c1_192, %c0_193, %c0_194] : memref<4x8x32xbf16, #tpu.memory_space<vmem>>, vector<1x8x32xbf16>
    %296 = vector.shape_cast %295 : vector<1x8x32xbf16> to vector<8x32xbf16>
    %cst_195 = arith.constant dense<0.000000e+00> : vector<8x32xf32>
    %297 = tpu.matmul %294, %296, %cst_195 {dimension_numbers = #tpu.dot_dimension_numbers<[1], [0], [0], [1], [0, 0, 1, 1], [], []>} : vector<8x8xbf16>, vector<8x32xbf16>, vector<8x32xf32> -> vector<8x32xf32>
    %298 = arith.addf %255, %297 : vector<8x32xf32>
    %c2_196 = arith.constant 2 : index
    %c0_197 = arith.constant 0 : index
    %c0_198 = arith.constant 0 : index
    %299 = vector.load %arg15[%c2_196, %c0_197, %c0_198] : memref<4x32x8xbf16, #tpu.memory_space<vmem>>, vector<1x32x8xbf16>
    %300 = vector.shape_cast %299 : vector<1x32x8xbf16> to vector<32x8xbf16>
    %cst_199 = arith.constant dense<0.000000e+00> : vector<8x8xf32>
    %301 = tpu.matmul %211, %300, %cst_199 {dimension_numbers = #tpu.dot_dimension_numbers<[1], [0], [0], [1], [0, 0, 1, 1], [], []>} : vector<8x32xbf16>, vector<32x8xbf16>, vector<8x8xf32> -> vector<8x8xf32>
    %c2_200 = arith.constant 2 : index
    %c0_201 = arith.constant 0 : index
    %c0_202 = arith.constant 0 : index
    %302 = vector.load %arg16[%c2_200, %c0_201, %c0_202] : memref<4x1x8xf32, #tpu.memory_space<vmem>>, vector<1x1x8xf32>
    %303 = vector.shape_cast %302 : vector<1x1x8xf32> to vector<1x8xf32>
    %304 = vector.broadcast %303 : vector<1x8xf32> to vector<8x8xf32>
    %305 = arith.addf %301, %304 : vector<8x8xf32>
    %c2_203 = arith.constant 2 : index
    %c0_204 = arith.constant 0 : index
    %c0_205 = arith.constant 0 : index
    %306 = vector.load %arg17[%c2_203, %c0_204, %c0_205] : memref<4x32x8xbf16, #tpu.memory_space<vmem>>, vector<1x32x8xbf16>
    %307 = vector.shape_cast %306 : vector<1x32x8xbf16> to vector<32x8xbf16>
    %cst_206 = arith.constant dense<0.000000e+00> : vector<16x8xf32>
    %308 = tpu.matmul %212, %307, %cst_206 {dimension_numbers = #tpu.dot_dimension_numbers<[1], [0], [0], [1], [0, 0, 1, 1], [], []>} : vector<16x32xbf16>, vector<32x8xbf16>, vector<16x8xf32> -> vector<16x8xf32>
    %c2_207 = arith.constant 2 : index
    %c0_208 = arith.constant 0 : index
    %c0_209 = arith.constant 0 : index
    %309 = vector.load %arg18[%c2_207, %c0_208, %c0_209] : memref<4x1x8xf32, #tpu.memory_space<vmem>>, vector<1x1x8xf32>
    %310 = vector.shape_cast %309 : vector<1x1x8xf32> to vector<1x8xf32>
    %311 = vector.broadcast %310 : vector<1x8xf32> to vector<16x8xf32>
    %312 = arith.addf %308, %311 : vector<16x8xf32>
    %c2_210 = arith.constant 2 : index
    %c0_211 = arith.constant 0 : index
    %c0_212 = arith.constant 0 : index
    %313 = vector.load %arg19[%c2_210, %c0_211, %c0_212] : memref<4x32x8xbf16, #tpu.memory_space<vmem>>, vector<1x32x8xbf16>
    %314 = vector.shape_cast %313 : vector<1x32x8xbf16> to vector<32x8xbf16>
    %cst_213 = arith.constant dense<0.000000e+00> : vector<16x8xf32>
    %315 = tpu.matmul %213, %314, %cst_213 {dimension_numbers = #tpu.dot_dimension_numbers<[1], [0], [0], [1], [0, 0, 1, 1], [], []>} : vector<16x32xbf16>, vector<32x8xbf16>, vector<16x8xf32> -> vector<16x8xf32>
    %c2_214 = arith.constant 2 : index
    %c0_215 = arith.constant 0 : index
    %c0_216 = arith.constant 0 : index
    %316 = vector.load %arg20[%c2_214, %c0_215, %c0_216] : memref<4x1x8xf32, #tpu.memory_space<vmem>>, vector<1x1x8xf32>
    %317 = vector.shape_cast %316 : vector<1x1x8xf32> to vector<1x8xf32>
    %318 = vector.broadcast %317 : vector<1x8xf32> to vector<16x8xf32>
    %319 = arith.addf %315, %318 : vector<16x8xf32>
    %320 = arith.truncf %305 : vector<8x8xf32> to vector<8x8xbf16>
    %321 = arith.truncf %312 : vector<16x8xf32> to vector<16x8xbf16>
    "tpu.trace_start"() <{level = 10 : i32, message = "qd,kd->qk"}> : () -> ()
    %cst_217 = arith.constant dense<0.000000e+00> : vector<8x16xf32>
    %322 = tpu.matmul %320, %321, %cst_217 {dimension_numbers = #tpu.dot_dimension_numbers<[1], [1], [0], [0], [0, 0, 1, 0], [], []>} : vector<8x8xbf16>, vector<16x8xbf16>, vector<8x16xf32> -> vector<8x16xf32>
    "tpu.trace_stop"() : () -> ()
    %cst_218 = arith.constant 0.353553385 : f32
    %323 = vector.broadcast %cst_218 : f32 to vector<8x16xf32>
    %324 = arith.mulf %322, %323 : vector<8x16xf32>
    %cst_219 = arith.constant dense<0xFF800000> : vector<8xf32>
    %325 = vector.multi_reduction <maximumf>, %324, %cst_219 [1] : vector<8x16xf32> to vector<8xf32>
    %326 = vector.shape_cast %325 : vector<8xf32> to vector<8x1xf32>
    %327 = vector.broadcast %326 : vector<8x1xf32> to vector<8x16xf32>
    %328 = arith.subf %324, %327 : vector<8x16xf32>
    %329 = math.exp %328 : vector<8x16xf32>
    %cst_220 = arith.constant dense<0.000000e+00> : vector<8xf32>
    %330 = vector.multi_reduction <add>, %329, %cst_220 [1] : vector<8x16xf32> to vector<8xf32>
    %331 = vector.shape_cast %330 : vector<8xf32> to vector<8x1xf32>
    %332 = vector.broadcast %331 : vector<8x1xf32> to vector<8x16xf32>
    %333 = arith.divf %329, %332 : vector<8x16xf32>
    %334 = arith.truncf %333 : vector<8x16xf32> to vector<8x16xbf16>
    %335 = arith.truncf %319 : vector<16x8xf32> to vector<16x8xbf16>
    %cst_221 = arith.constant dense<0.000000e+00> : vector<8x8xf32>
    %336 = tpu.matmul %334, %335, %cst_221 {dimension_numbers = #tpu.dot_dimension_numbers<[1], [0], [0], [1], [0, 0, 1, 1], [], []>} : vector<8x16xbf16>, vector<16x8xbf16>, vector<8x8xf32> -> vector<8x8xf32>
    %337 = arith.truncf %336 : vector<8x8xf32> to vector<8x8xbf16>
    %c2_222 = arith.constant 2 : index
    %c0_223 = arith.constant 0 : index
    %c0_224 = arith.constant 0 : index
    %338 = vector.load %arg21[%c2_222, %c0_223, %c0_224] : memref<4x8x32xbf16, #tpu.memory_space<vmem>>, vector<1x8x32xbf16>
    %339 = vector.shape_cast %338 : vector<1x8x32xbf16> to vector<8x32xbf16>
    %cst_225 = arith.constant dense<0.000000e+00> : vector<8x32xf32>
    %340 = tpu.matmul %337, %339, %cst_225 {dimension_numbers = #tpu.dot_dimension_numbers<[1], [0], [0], [1], [0, 0, 1, 1], [], []>} : vector<8x8xbf16>, vector<8x32xbf16>, vector<8x32xf32> -> vector<8x32xf32>
    %341 = arith.addf %298, %340 : vector<8x32xf32>
    %c3_226 = arith.constant 3 : index
    %c0_227 = arith.constant 0 : index
    %c0_228 = arith.constant 0 : index
    %342 = vector.load %arg15[%c3_226, %c0_227, %c0_228] : memref<4x32x8xbf16, #tpu.memory_space<vmem>>, vector<1x32x8xbf16>
    %343 = vector.shape_cast %342 : vector<1x32x8xbf16> to vector<32x8xbf16>
    %cst_229 = arith.constant dense<0.000000e+00> : vector<8x8xf32>
    %344 = tpu.matmul %211, %343, %cst_229 {dimension_numbers = #tpu.dot_dimension_numbers<[1], [0], [0], [1], [0, 0, 1, 1], [], []>} : vector<8x32xbf16>, vector<32x8xbf16>, vector<8x8xf32> -> vector<8x8xf32>
    %c3_230 = arith.constant 3 : index
    %c0_231 = arith.constant 0 : index
    %c0_232 = arith.constant 0 : index
    %345 = vector.load %arg16[%c3_230, %c0_231, %c0_232] : memref<4x1x8xf32, #tpu.memory_space<vmem>>, vector<1x1x8xf32>
    %346 = vector.shape_cast %345 : vector<1x1x8xf32> to vector<1x8xf32>
    %347 = vector.broadcast %346 : vector<1x8xf32> to vector<8x8xf32>
    %348 = arith.addf %344, %347 : vector<8x8xf32>
    %c3_233 = arith.constant 3 : index
    %c0_234 = arith.constant 0 : index
    %c0_235 = arith.constant 0 : index
    %349 = vector.load %arg17[%c3_233, %c0_234, %c0_235] : memref<4x32x8xbf16, #tpu.memory_space<vmem>>, vector<1x32x8xbf16>
    %350 = vector.shape_cast %349 : vector<1x32x8xbf16> to vector<32x8xbf16>
    %cst_236 = arith.constant dense<0.000000e+00> : vector<16x8xf32>
    %351 = tpu.matmul %212, %350, %cst_236 {dimension_numbers = #tpu.dot_dimension_numbers<[1], [0], [0], [1], [0, 0, 1, 1], [], []>} : vector<16x32xbf16>, vector<32x8xbf16>, vector<16x8xf32> -> vector<16x8xf32>
    %c3_237 = arith.constant 3 : index
    %c0_238 = arith.constant 0 : index
    %c0_239 = arith.constant 0 : index
    %352 = vector.load %arg18[%c3_237, %c0_238, %c0_239] : memref<4x1x8xf32, #tpu.memory_space<vmem>>, vector<1x1x8xf32>
    %353 = vector.shape_cast %352 : vector<1x1x8xf32> to vector<1x8xf32>
    %354 = vector.broadcast %353 : vector<1x8xf32> to vector<16x8xf32>
    %355 = arith.addf %351, %354 : vector<16x8xf32>
    %c3_240 = arith.constant 3 : index
    %c0_241 = arith.constant 0 : index
    %c0_242 = arith.constant 0 : index
    %356 = vector.load %arg19[%c3_240, %c0_241, %c0_242] : memref<4x32x8xbf16, #tpu.memory_space<vmem>>, vector<1x32x8xbf16>
    %357 = vector.shape_cast %356 : vector<1x32x8xbf16> to vector<32x8xbf16>
    %cst_243 = arith.constant dense<0.000000e+00> : vector<16x8xf32>
    %358 = tpu.matmul %213, %357, %cst_243 {dimension_numbers = #tpu.dot_dimension_numbers<[1], [0], [0], [1], [0, 0, 1, 1], [], []>} : vector<16x32xbf16>, vector<32x8xbf16>, vector<16x8xf32> -> vector<16x8xf32>
    %c3_244 = arith.constant 3 : index
    %c0_245 = arith.constant 0 : index
    %c0_246 = arith.constant 0 : index
    %359 = vector.load %arg20[%c3_244, %c0_245, %c0_246] : memref<4x1x8xf32, #tpu.memory_space<vmem>>, vector<1x1x8xf32>
    %360 = vector.shape_cast %359 : vector<1x1x8xf32> to vector<1x8xf32>
    %361 = vector.broadcast %360 : vector<1x8xf32> to vector<16x8xf32>
    %362 = arith.addf %358, %361 : vector<16x8xf32>
    %363 = arith.truncf %348 : vector<8x8xf32> to vector<8x8xbf16>
    %364 = arith.truncf %355 : vector<16x8xf32> to vector<16x8xbf16>
    "tpu.trace_start"() <{level = 10 : i32, message = "qd,kd->qk"}> : () -> ()
    %cst_247 = arith.constant dense<0.000000e+00> : vector<8x16xf32>
    %365 = tpu.matmul %363, %364, %cst_247 {dimension_numbers = #tpu.dot_dimension_numbers<[1], [1], [0], [0], [0, 0, 1, 0], [], []>} : vector<8x8xbf16>, vector<16x8xbf16>, vector<8x16xf32> -> vector<8x16xf32>
    "tpu.trace_stop"() : () -> ()
    %cst_248 = arith.constant 0.353553385 : f32
    %366 = vector.broadcast %cst_248 : f32 to vector<8x16xf32>
    %367 = arith.mulf %365, %366 : vector<8x16xf32>
    %cst_249 = arith.constant dense<0xFF800000> : vector<8xf32>
    %368 = vector.multi_reduction <maximumf>, %367, %cst_249 [1] : vector<8x16xf32> to vector<8xf32>
    %369 = vector.shape_cast %368 : vector<8xf32> to vector<8x1xf32>
    %370 = vector.broadcast %369 : vector<8x1xf32> to vector<8x16xf32>
    %371 = arith.subf %367, %370 : vector<8x16xf32>
    %372 = math.exp %371 : vector<8x16xf32>
    %cst_250 = arith.constant dense<0.000000e+00> : vector<8xf32>
    %373 = vector.multi_reduction <add>, %372, %cst_250 [1] : vector<8x16xf32> to vector<8xf32>
    %374 = vector.shape_cast %373 : vector<8xf32> to vector<8x1xf32>
    %375 = vector.broadcast %374 : vector<8x1xf32> to vector<8x16xf32>
    %376 = arith.divf %372, %375 : vector<8x16xf32>
    %377 = arith.truncf %376 : vector<8x16xf32> to vector<8x16xbf16>
    %378 = arith.truncf %362 : vector<16x8xf32> to vector<16x8xbf16>
    %cst_251 = arith.constant dense<0.000000e+00> : vector<8x8xf32>
    %379 = tpu.matmul %377, %378, %cst_251 {dimension_numbers = #tpu.dot_dimension_numbers<[1], [0], [0], [1], [0, 0, 1, 1], [], []>} : vector<8x16xbf16>, vector<16x8xbf16>, vector<8x8xf32> -> vector<8x8xf32>
    %380 = arith.truncf %379 : vector<8x8xf32> to vector<8x8xbf16>
    %c3_252 = arith.constant 3 : index
    %c0_253 = arith.constant 0 : index
    %c0_254 = arith.constant 0 : index
    %381 = vector.load %arg21[%c3_252, %c0_253, %c0_254] : memref<4x8x32xbf16, #tpu.memory_space<vmem>>, vector<1x8x32xbf16>
    %382 = vector.shape_cast %381 : vector<1x8x32xbf16> to vector<8x32xbf16>
    %cst_255 = arith.constant dense<0.000000e+00> : vector<8x32xf32>
    %383 = tpu.matmul %380, %382, %cst_255 {dimension_numbers = #tpu.dot_dimension_numbers<[1], [0], [0], [1], [0, 0, 1, 1], [], []>} : vector<8x8xbf16>, vector<8x32xbf16>, vector<8x32xf32> -> vector<8x32xf32>
    %384 = arith.addf %341, %383 : vector<8x32xf32>
    %c0_256 = arith.constant 0 : index
    %c0_257 = arith.constant 0 : index
    %385 = vector.load %arg22[%c0_256, %c0_257] : memref<1x32xf32, #tpu.memory_space<vmem>>, vector<1x32xf32>
    %386 = vector.broadcast %385 : vector<1x32xf32> to vector<8x32xf32>
    %387 = arith.addf %384, %386 : vector<8x32xf32>
    %388 = arith.addf %208, %387 : vector<8x32xf32>
    %c0_258 = arith.constant 0 : index
    %c0_259 = arith.constant 0 : index
    %389 = vector.load %arg23[%c0_258, %c0_259] : memref<1x32xf32, #tpu.memory_space<vmem>>, vector<1x32xf32>
    %c0_260 = arith.constant 0 : index
    %c0_261 = arith.constant 0 : index
    %390 = vector.load %arg24[%c0_260, %c0_261] : memref<1x32xf32, #tpu.memory_space<vmem>>, vector<1x32xf32>
    %cst_262 = arith.constant dense<0.000000e+00> : vector<8xf32>
    %391 = vector.multi_reduction <add>, %388, %cst_262 [1] : vector<8x32xf32> to vector<8xf32>
    %392 = vector.shape_cast %391 : vector<8xf32> to vector<8x1xf32>
    %cst_263 = arith.constant 3.200000e+01 : f32
    %393 = vector.broadcast %cst_263 : f32 to vector<8x1xf32>
    %394 = arith.divf %392, %393 : vector<8x1xf32>
    %395 = vector.broadcast %394 : vector<8x1xf32> to vector<8x32xf32>
    %396 = arith.subf %388, %395 : vector<8x32xf32>
    %397 = arith.mulf %396, %396 : vector<8x32xf32>
    %cst_264 = arith.constant dense<0.000000e+00> : vector<8xf32>
    %398 = vector.multi_reduction <add>, %397, %cst_264 [1] : vector<8x32xf32> to vector<8xf32>
    %399 = vector.shape_cast %398 : vector<8xf32> to vector<8x1xf32>
    %cst_265 = arith.constant 3.200000e+01 : f32
    %400 = vector.broadcast %cst_265 : f32 to vector<8x1xf32>
    %401 = arith.divf %399, %400 : vector<8x1xf32>
    %402 = vector.broadcast %394 : vector<8x1xf32> to vector<8x32xf32>
    %403 = arith.subf %388, %402 : vector<8x32xf32>
    %cst_266 = arith.constant 9.99999974E-6 : f32
    %404 = vector.broadcast %cst_266 : f32 to vector<8x1xf32>
    %405 = arith.addf %401, %404 : vector<8x1xf32>
    %406 = math.rsqrt %405 : vector<8x1xf32>
    %407 = vector.broadcast %406 : vector<8x1xf32> to vector<8x32xf32>
    %408 = arith.mulf %403, %407 : vector<8x32xf32>
    %409 = vector.broadcast %389 : vector<1x32xf32> to vector<8x32xf32>
    %410 = arith.mulf %408, %409 : vector<8x32xf32>
    %411 = vector.broadcast %390 : vector<1x32xf32> to vector<8x32xf32>
    %412 = arith.addf %410, %411 : vector<8x32xf32>
    %413 = arith.truncf %412 : vector<8x32xf32> to vector<8x32xbf16>
    %c0_267 = arith.constant 0 : index
    %c0_268 = arith.constant 0 : index
    %414 = vector.load %arg25[%c0_267, %c0_268] : memref<32x64xbf16, #tpu.memory_space<vmem>>, vector<32x64xbf16>
    %cst_269 = arith.constant dense<0.000000e+00> : vector<8x64xf32>
    %415 = tpu.matmul %413, %414, %cst_269 {dimension_numbers = #tpu.dot_dimension_numbers<[1], [0], [0], [1], [0, 0, 1, 1], [], []>} : vector<8x32xbf16>, vector<32x64xbf16>, vector<8x64xf32> -> vector<8x64xf32>
    %c0_270 = arith.constant 0 : index
    %c0_271 = arith.constant 0 : index
    %416 = vector.load %arg26[%c0_270, %c0_271] : memref<1x64xf32, #tpu.memory_space<vmem>>, vector<1x64xf32>
    %417 = vector.broadcast %416 : vector<1x64xf32> to vector<8x64xf32>
    %418 = arith.addf %415, %417 : vector<8x64xf32>
    %cst_272 = arith.constant 0.000000e+00 : f32
    %419 = vector.broadcast %cst_272 : f32 to vector<8x64xf32>
    %420 = arith.maximumf %418, %419 : vector<8x64xf32>
    %421 = arith.truncf %420 : vector<8x64xf32> to vector<8x64xbf16>
    %c0_273 = arith.constant 0 : index
    %c0_274 = arith.constant 0 : index
    %422 = vector.load %arg27[%c0_273, %c0_274] : memref<64x32xbf16, #tpu.memory_space<vmem>>, vector<64x32xbf16>
    %cst_275 = arith.constant dense<0.000000e+00> : vector<8x32xf32>
    %423 = tpu.matmul %421, %422, %cst_275 {dimension_numbers = #tpu.dot_dimension_numbers<[1], [0], [0], [1], [0, 0, 1, 1], [], []>} : vector<8x64xbf16>, vector<64x32xbf16>, vector<8x32xf32> -> vector<8x32xf32>
    %c0_276 = arith.constant 0 : index
    %c0_277 = arith.constant 0 : index
    %424 = vector.load %arg28[%c0_276, %c0_277] : memref<1x32xf32, #tpu.memory_space<vmem>>, vector<1x32xf32>
    %425 = vector.broadcast %424 : vector<1x32xf32> to vector<8x32xf32>
    %426 = arith.addf %423, %425 : vector<8x32xf32>
    %427 = arith.addf %412, %426 : vector<8x32xf32>
    %c0_278 = arith.constant 0 : index
    %c0_279 = arith.constant 0 : index
    %428 = vector.load %arg29[%c0_278, %c0_279] : memref<1x32xf32, #tpu.memory_space<vmem>>, vector<1x32xf32>
    %c0_280 = arith.constant 0 : index
    %c0_281 = arith.constant 0 : index
    %429 = vector.load %arg30[%c0_280, %c0_281] : memref<1x32xf32, #tpu.memory_space<vmem>>, vector<1x32xf32>
    %cst_282 = arith.constant dense<0.000000e+00> : vector<8xf32>
    %430 = vector.multi_reduction <add>, %427, %cst_282 [1] : vector<8x32xf32> to vector<8xf32>
    %431 = vector.shape_cast %430 : vector<8xf32> to vector<8x1xf32>
    %cst_283 = arith.constant 3.200000e+01 : f32
    %432 = vector.broadcast %cst_283 : f32 to vector<8x1xf32>
    %433 = arith.divf %431, %432 : vector<8x1xf32>
    %434 = vector.broadcast %433 : vector<8x1xf32> to vector<8x32xf32>
    %435 = arith.subf %427, %434 : vector<8x32xf32>
    %436 = arith.mulf %435, %435 : vector<8x32xf32>
    %cst_284 = arith.constant dense<0.000000e+00> : vector<8xf32>
    %437 = vector.multi_reduction <add>, %436, %cst_284 [1] : vector<8x32xf32> to vector<8xf32>
    %438 = vector.shape_cast %437 : vector<8xf32> to vector<8x1xf32>
    %cst_285 = arith.constant 3.200000e+01 : f32
    %439 = vector.broadcast %cst_285 : f32 to vector<8x1xf32>
    %440 = arith.divf %438, %439 : vector<8x1xf32>
    %441 = vector.broadcast %433 : vector<8x1xf32> to vector<8x32xf32>
    %442 = arith.subf %427, %441 : vector<8x32xf32>
    %cst_286 = arith.constant 9.99999974E-6 : f32
    %443 = vector.broadcast %cst_286 : f32 to vector<8x1xf32>
    %444 = arith.addf %440, %443 : vector<8x1xf32>
    %445 = math.rsqrt %444 : vector<8x1xf32>
    %446 = vector.broadcast %445 : vector<8x1xf32> to vector<8x32xf32>
    %447 = arith.mulf %442, %446 : vector<8x32xf32>
    %448 = vector.broadcast %428 : vector<1x32xf32> to vector<8x32xf32>
    %449 = arith.mulf %447, %448 : vector<8x32xf32>
    %450 = vector.broadcast %429 : vector<1x32xf32> to vector<8x32xf32>
    %451 = arith.addf %449, %450 : vector<8x32xf32>
    %c0_287 = arith.constant 0 : index
    %c0_288 = arith.constant 0 : index
    %c0_289 = arith.constant 0 : index
    %452 = vector.load %arg31[%c0_287, %c0_288, %c0_289] : memref<1x8x32xf32, #tpu.memory_space<vmem>>, vector<1x8x32xf32>
    %453 = vector.shape_cast %452 : vector<1x8x32xf32> to vector<8x32xf32>
    %454 = vector.shape_cast %451 : vector<8x32xf32> to vector<1x8x32xf32>
    tpu.vector_store %arg31[%c0_287, %c0_288, %c0_289], %454 {strides = array<i32>} : memref<1x8x32xf32, #tpu.memory_space<vmem>>, vector<1x8x32xf32>,
    return
  }
  func.func @transform_0(%arg0: i32) -> (i32, i32, i32) {
    %c0_i32 = arith.constant 0 : i32
    %c0_i32_0 = arith.constant 0 : i32
    %c0_i32_1 = arith.constant 0 : i32
    return %arg0, %c0_i32, %c0_i32_0 : i32, i32, i32
  }
  func.func @transform_1(%arg0: i32) -> (i32, i32) {
    %c0_i32 = arith.constant 0 : i32
    %c0_i32_0 = arith.constant 0 : i32
    %c0_i32_1 = arith.constant 0 : i32
    return %c0_i32, %c0_i32_0 : i32, i32
  }
  func.func @transform_2(%arg0: i32) -> (i32, i32, i32) {
    %c0_i32 = arith.constant 0 : i32
    %c0_i32_0 = arith.constant 0 : i32
    %c0_i32_1 = arith.constant 0 : i32
    return %arg0, %c0_i32, %c0_i32_0 : i32, i32, i32
  }
  func.func @transform_3(%arg0: i32) -> (i32, i32) {
    %c0_i32 = arith.constant 0 : i32
    %c0_i32_0 = arith.constant 0 : i32
    %c0_i32_1 = arith.constant 0 : i32
    return %c0_i32, %c0_i32_0 : i32, i32
  }
  func.func @transform_4(%arg0: i32) -> (i32, i32, i32) {
    %c0_i32 = arith.constant 0 : i32
    %c0_i32_0 = arith.constant 0 : i32
    %c0_i32_1 = arith.constant 0 : i32
    %c0_i32_2 = arith.constant 0 : i32
    return %c0_i32, %c0_i32_0, %c0_i32_1 : i32, i32, i32
  }
  func.func @transform_5(%arg0: i32) -> (i32, i32, i32) {
    %c0_i32 = arith.constant 0 : i32
    %c0_i32_0 = arith.constant 0 : i32
    %c0_i32_1 = arith.constant 0 : i32
    %c0_i32_2 = arith.constant 0 : i32
    return %c0_i32, %c0_i32_0, %c0_i32_1 : i32, i32, i32
  }
  func.func @transform_6(%arg0: i32) -> (i32, i32, i32) {
    %c0_i32 = arith.constant 0 : i32
    %c0_i32_0 = arith.constant 0 : i32
    %c0_i32_1 = arith.constant 0 : i32
    %c0_i32_2 = arith.constant 0 : i32
    return %c0_i32, %c0_i32_0, %c0_i32_1 : i32, i32, i32
  }
  func.func @transform_7(%arg0: i32) -> (i32, i32, i32) {
    %c0_i32 = arith.constant 0 : i32
    %c0_i32_0 = arith.constant 0 : i32
    %c0_i32_1 = arith.constant 0 : i32
    %c0_i32_2 = arith.constant 0 : i32
    return %c0_i32, %c0_i32_0, %c0_i32_1 : i32, i32, i32
  }
  func.func @transform_8(%arg0: i32) -> (i32, i32, i32) {
    %c0_i32 = arith.constant 0 : i32
    %c0_i32_0 = arith.constant 0 : i32
    %c0_i32_1 = arith.constant 0 : i32
    %c0_i32_2 = arith.constant 0 : i32
    return %c0_i32, %c0_i32_0, %c0_i32_1 : i32, i32, i32
  }
  func.func @transform_9(%arg0: i32) -> (i32, i32, i32) {
    %c0_i32 = arith.constant 0 : i32
    %c0_i32_0 = arith.constant 0 : i32
    %c0_i32_1 = arith.constant 0 : i32
    %c0_i32_2 = arith.constant 0 : i32
    return %c0_i32, %c0_i32_0, %c0_i32_1 : i32, i32, i32
  }
  func.func @transform_10(%arg0: i32) -> (i32, i32, i32) {
    %c0_i32 = arith.constant 0 : i32
    %c0_i32_0 = arith.constant 0 : i32
    %c0_i32_1 = arith.constant 0 : i32
    %c0_i32_2 = arith.constant 0 : i32
    return %c0_i32, %c0_i32_0, %c0_i32_1 : i32, i32, i32
  }
  func.func @transform_11(%arg0: i32) -> (i32, i32) {
    %c0_i32 = arith.constant 0 : i32
    %c0_i32_0 = arith.constant 0 : i32
    %c0_i32_1 = arith.constant 0 : i32
    return %c0_i32, %c0_i32_0 : i32, i32
  }
  func.func @transform_12(%arg0: i32) -> (i32, i32) {
    %c0_i32 = arith.constant 0 : i32
    %c0_i32_0 = arith.constant 0 : i32
    %c0_i32_1 = arith.constant 0 : i32
    return %c0_i32, %c0_i32_0 : i32, i32
  }
  func.func @transform_13(%arg0: i32) -> (i32, i32) {
    %c0_i32 = arith.constant 0 : i32
    %c0_i32_0 = arith.constant 0 : i32
    %c0_i32_1 = arith.constant 0 : i32
    return %c0_i32, %c0_i32_0 : i32, i32
  }
  func.func @transform_14(%arg0: i32) -> (i32, i32, i32) {
    %c0_i32 = arith.constant 0 : i32
    %c0_i32_0 = arith.constant 0 : i32
    %c0_i32_1 = arith.constant 0 : i32
    %c0_i32_2 = arith.constant 0 : i32
    return %c0_i32, %c0_i32_0, %c0_i32_1 : i32, i32, i32
  }
  func.func @transform_15(%arg0: i32) -> (i32, i32, i32) {
    %c0_i32 = arith.constant 0 : i32
    %c0_i32_0 = arith.constant 0 : i32
    %c0_i32_1 = arith.constant 0 : i32
    %c0_i32_2 = arith.constant 0 : i32
    return %c0_i32, %c0_i32_0, %c0_i32_1 : i32, i32, i32
  }
  func.func @transform_16(%arg0: i32) -> (i32, i32, i32) {
    %c0_i32 = arith.constant 0 : i32
    %c0_i32_0 = arith.constant 0 : i32
    %c0_i32_1 = arith.constant 0 : i32
    %c0_i32_2 = arith.constant 0 : i32
    return %c0_i32, %c0_i32_0, %c0_i32_1 : i32, i32, i32
  }
  func.func @transform_17(%arg0: i32) -> (i32, i32, i32) {
    %c0_i32 = arith.constant 0 : i32
    %c0_i32_0 = arith.constant 0 : i32
    %c0_i32_1 = arith.constant 0 : i32
    %c0_i32_2 = arith.constant 0 : i32
    return %c0_i32, %c0_i32_0, %c0_i32_1 : i32, i32, i32
  }
  func.func @transform_18(%arg0: i32) -> (i32, i32, i32) {
    %c0_i32 = arith.constant 0 : i32
    %c0_i32_0 = arith.constant 0 : i32
    %c0_i32_1 = arith.constant 0 : i32
    %c0_i32_2 = arith.constant 0 : i32
    return %c0_i32, %c0_i32_0, %c0_i32_1 : i32, i32, i32
  }
  func.func @transform_19(%arg0: i32) -> (i32, i32, i32) {
    %c0_i32 = arith.constant 0 : i32
    %c0_i32_0 = arith.constant 0 : i32
    %c0_i32_1 = arith.constant 0 : i32
    %c0_i32_2 = arith.constant 0 : i32
    return %c0_i32, %c0_i32_0, %c0_i32_1 : i32, i32, i32
  }
  func.func @transform_20(%arg0: i32) -> (i32, i32, i32) {
    %c0_i32 = arith.constant 0 : i32
    %c0_i32_0 = arith.constant 0 : i32
    %c0_i32_1 = arith.constant 0 : i32
    %c0_i32_2 = arith.constant 0 : i32
    return %c0_i32, %c0_i32_0, %c0_i32_1 : i32, i32, i32
  }
  func.func @transform_21(%arg0: i32) -> (i32, i32) {
    %c0_i32 = arith.constant 0 : i32
    %c0_i32_0 = arith.constant 0 : i32
    %c0_i32_1 = arith.constant 0 : i32
    return %c0_i32, %c0_i32_0 : i32, i32
  }
  func.func @transform_22(%arg0: i32) -> (i32, i32) {
    %c0_i32 = arith.constant 0 : i32
    %c0_i32_0 = arith.constant 0 : i32
    %c0_i32_1 = arith.constant 0 : i32
    return %c0_i32, %c0_i32_0 : i32, i32
  }
  func.func @transform_23(%arg0: i32) -> (i32, i32) {
    %c0_i32 = arith.constant 0 : i32
    %c0_i32_0 = arith.constant 0 : i32
    %c0_i32_1 = arith.constant 0 : i32
    return %c0_i32, %c0_i32_0 : i32, i32
  }
  func.func @transform_24(%arg0: i32) -> (i32, i32) {
    %c0_i32 = arith.constant 0 : i32
    %c0_i32_0 = arith.constant 0 : i32
    %c0_i32_1 = arith.constant 0 : i32
    return %c0_i32, %c0_i32_0 : i32, i32
  }
  func.func @transform_25(%arg0: i32) -> (i32, i32) {
    %c0_i32 = arith.constant 0 : i32
    %c0_i32_0 = arith.constant 0 : i32
    %c0_i32_1 = arith.constant 0 : i32
    return %c0_i32, %c0_i32_0 : i32, i32
  }
  func.func @transform_26(%arg0: i32) -> (i32, i32) {
    %c0_i32 = arith.constant 0 : i32
    %c0_i32_0 = arith.constant 0 : i32
    %c0_i32_1 = arith.constant 0 : i32
    return %c0_i32, %c0_i32_0 : i32, i32
  }
  func.func @transform_27(%arg0: i32) -> (i32, i32) {
    %c0_i32 = arith.constant 0 : i32
    %c0_i32_0 = arith.constant 0 : i32
    %c0_i32_1 = arith.constant 0 : i32
    return %c0_i32, %c0_i32_0 : i32, i32
  }
  func.func @transform_28(%arg0: i32) -> (i32, i32) {
    %c0_i32 = arith.constant 0 : i32
    %c0_i32_0 = arith.constant 0 : i32
    %c0_i32_1 = arith.constant 0 : i32
    return %c0_i32, %c0_i32_0 : i32, i32
  }
  func.func @transform_29(%arg0: i32) -> (i32, i32) {
    %c0_i32 = arith.constant 0 : i32
    %c0_i32_0 = arith.constant 0 : i32
    %c0_i32_1 = arith.constant 0 : i32
    return %c0_i32, %c0_i32_0 : i32, i32
  }
  func.func @transform_30(%arg0: i32) -> (i32, i32, i32) {
    %c0_i32 = arith.constant 0 : i32
    %c0_i32_0 = arith.constant 0 : i32
    %c0_i32_1 = arith.constant 0 : i32
    return %arg0, %c0_i32, %c0_i32_0 : i32, i32, i32
  }
}

module attributes {stable_mosaic.version = 11 : i64} {
  func.func @_head_kernel(%arg0: i32, %arg1: memref<16x32xf32, #tpu.memory_space<vmem>>, %arg2: memref<1x32xf32, #tpu.memory_space<vmem>>, %arg3: memref<1x32xf32, #tpu.memory_space<vmem>>, %arg4: memref<32x5xbf16, #tpu.memory_space<vmem>>, %arg5: memref<1x5xf32, #tpu.memory_space<vmem>>, %arg6: memref<32x32xbf16, #tpu.memory_space<vmem>>, %arg7: memref<1x32xf32, #tpu.memory_space<vmem>>, %arg8: memref<32x32xbf16, #tpu.memory_space<vmem>>, %arg9: memref<1x32xf32, #tpu.memory_space<vmem>>, %arg10: memref<32x4xbf16, #tpu.memory_space<vmem>>, %arg11: memref<1x4xf32, #tpu.memory_space<vmem>>, %arg12: memref<16x5xf32, #tpu.memory_space<vmem>>, %arg13: memref<16x4xf32, #tpu.memory_space<vmem>>) attributes {dimension_semantics = [#tpu.dimension_semantics<arbitrary>], iteration_bounds = array<i64: 1>, scalar_prefetch = 0 : i64, scratch_operands = 0 : i64, tpu.core_type = #tpu.core_type<tc>, window_params = [{pipeline_mode = #tpu.pipeline_mode<synchronous>, transform_indices = @transform_0, window_bounds = array<i64: 16, 32>}, {pipeline_mode = #tpu.pipeline_mode<synchronous>, transform_indices = @transform_1, window_bounds = array<i64: 1, 32>}, {pipeline_mode = #tpu.pipeline_mode<synchronous>, transform_indices = @transform_2, window_bounds = array<i64: 1, 32>}, {pipeline_mode = #tpu.pipeline_mode<synchronous>, transform_indices = @transform_3, window_bounds = array<i64: 32, 5>}, {pipeline_mode = #tpu.pipeline_mode<synchronous>, transform_indices = @transform_4, window_bounds = array<i64: 1, 5>}, {pipeline_mode = #tpu.pipeline_mode<synchronous>, transform_indices = @transform_5, window_bounds = array<i64: 32, 32>}, {pipeline_mode = #tpu.pipeline_mode<synchronous>, transform_indices = @transform_6, window_bounds = array<i64: 1, 32>}, {pipeline_mode = #tpu.pipeline_mode<synchronous>, transform_indices = @transform_7, window_bounds = array<i64: 32, 32>}, {pipeline_mode = #tpu.pipeline_mode<synchronous>, transform_indices = @transform_8, window_bounds = array<i64: 1, 32>}, {pipeline_mode = #tpu.pipeline_mode<synchronous>, transform_indices = @transform_9, window_bounds = array<i64: 32, 4>}, {pipeline_mode = #tpu.pipeline_mode<synchronous>, transform_indices = @transform_10, window_bounds = array<i64: 1, 4>}, {pipeline_mode = #tpu.pipeline_mode<synchronous>, transform_indices = @transform_11, window_bounds = array<i64: 16, 5>}, {pipeline_mode = #tpu.pipeline_mode<synchronous>, transform_indices = @transform_12, window_bounds = array<i64: 16, 4>}]} {
    %c0 = arith.constant 0 : index
    %c0_0 = arith.constant 0 : index
    %0 = vector.load %arg1[%c0, %c0_0] : memref<16x32xf32, #tpu.memory_space<vmem>>, vector<16x32xf32>
    %c0_1 = arith.constant 0 : index
    %c0_2 = arith.constant 0 : index
    %1 = vector.load %arg2[%c0_1, %c0_2] : memref<1x32xf32, #tpu.memory_space<vmem>>, vector<1x32xf32>
    %c0_3 = arith.constant 0 : index
    %c0_4 = arith.constant 0 : index
    %2 = vector.load %arg3[%c0_3, %c0_4] : memref<1x32xf32, #tpu.memory_space<vmem>>, vector<1x32xf32>
    %cst = arith.constant dense<0.000000e+00> : vector<16xf32>
    %3 = vector.multi_reduction <add>, %0, %cst [1] : vector<16x32xf32> to vector<16xf32>
    %4 = vector.shape_cast %3 : vector<16xf32> to vector<16x1xf32>
    %cst_5 = arith.constant 3.200000e+01 : f32
    %5 = vector.broadcast %cst_5 : f32 to vector<16x1xf32>
    %6 = arith.divf %4, %5 : vector<16x1xf32>
    %7 = vector.broadcast %6 : vector<16x1xf32> to vector<16x32xf32>
    %8 = arith.subf %0, %7 : vector<16x32xf32>
    %9 = arith.mulf %8, %8 : vector<16x32xf32>
    %cst_6 = arith.constant dense<0.000000e+00> : vector<16xf32>
    %10 = vector.multi_reduction <add>, %9, %cst_6 [1] : vector<16x32xf32> to vector<16xf32>
    %11 = vector.shape_cast %10 : vector<16xf32> to vector<16x1xf32>
    %cst_7 = arith.constant 3.200000e+01 : f32
    %12 = vector.broadcast %cst_7 : f32 to vector<16x1xf32>
    %13 = arith.divf %11, %12 : vector<16x1xf32>
    %14 = vector.broadcast %6 : vector<16x1xf32> to vector<16x32xf32>
    %15 = arith.subf %0, %14 : vector<16x32xf32>
    %cst_8 = arith.constant 9.99999974E-6 : f32
    %16 = vector.broadcast %cst_8 : f32 to vector<16x1xf32>
    %17 = arith.addf %13, %16 : vector<16x1xf32>
    %18 = math.rsqrt %17 : vector<16x1xf32>
    %19 = vector.broadcast %18 : vector<16x1xf32> to vector<16x32xf32>
    %20 = arith.mulf %15, %19 : vector<16x32xf32>
    %21 = vector.broadcast %1 : vector<1x32xf32> to vector<16x32xf32>
    %22 = arith.mulf %20, %21 : vector<16x32xf32>
    %23 = vector.broadcast %2 : vector<1x32xf32> to vector<16x32xf32>
    %24 = arith.addf %22, %23 : vector<16x32xf32>
    %25 = arith.truncf %24 : vector<16x32xf32> to vector<16x32xbf16>
    %c0_9 = arith.constant 0 : index
    %c0_10 = arith.constant 0 : index
    %26 = vector.load %arg4[%c0_9, %c0_10] : memref<32x5xbf16, #tpu.memory_space<vmem>>, vector<32x5xbf16>
    %cst_11 = arith.constant dense<0.000000e+00> : vector<16x5xf32>
    %27 = tpu.matmul %25, %26, %cst_11 {dimension_numbers = #tpu.dot_dimension_numbers<[1], [0], [0], [1], [0, 0, 1, 1], [], []>} : vector<16x32xbf16>, vector<32x5xbf16>, vector<16x5xf32> -> vector<16x5xf32>
    %c0_12 = arith.constant 0 : index
    %c0_13 = arith.constant 0 : index
    %28 = vector.load %arg5[%c0_12, %c0_13] : memref<1x5xf32, #tpu.memory_space<vmem>>, vector<1x5xf32>
    %29 = vector.broadcast %28 : vector<1x5xf32> to vector<16x5xf32>
    %30 = arith.addf %27, %29 : vector<16x5xf32>
    %c0_14 = arith.constant 0 : index
    %c0_15 = arith.constant 0 : index
    %31 = vector.load %arg12[%c0_14, %c0_15] : memref<16x5xf32, #tpu.memory_space<vmem>>, vector<16x5xf32>
    tpu.vector_store %arg12[%c0_14, %c0_15], %30 {strides = array<i32>} : memref<16x5xf32, #tpu.memory_space<vmem>>, vector<16x5xf32>,
    %c0_16 = arith.constant 0 : index
    %c0_17 = arith.constant 0 : index
    %32 = vector.load %arg6[%c0_16, %c0_17] : memref<32x32xbf16, #tpu.memory_space<vmem>>, vector<32x32xbf16>
    %cst_18 = arith.constant dense<0.000000e+00> : vector<16x32xf32>
    %33 = tpu.matmul %25, %32, %cst_18 {dimension_numbers = #tpu.dot_dimension_numbers<[1], [0], [0], [1], [0, 0, 1, 1], [], []>} : vector<16x32xbf16>, vector<32x32xbf16>, vector<16x32xf32> -> vector<16x32xf32>
    %c0_19 = arith.constant 0 : index
    %c0_20 = arith.constant 0 : index
    %34 = vector.load %arg7[%c0_19, %c0_20] : memref<1x32xf32, #tpu.memory_space<vmem>>, vector<1x32xf32>
    %35 = vector.broadcast %34 : vector<1x32xf32> to vector<16x32xf32>
    %36 = arith.addf %33, %35 : vector<16x32xf32>
    %cst_21 = arith.constant 0.000000e+00 : f32
    %37 = vector.broadcast %cst_21 : f32 to vector<16x32xf32>
    %38 = arith.maximumf %36, %37 : vector<16x32xf32>
    %39 = arith.truncf %38 : vector<16x32xf32> to vector<16x32xbf16>
    %c0_22 = arith.constant 0 : index
    %c0_23 = arith.constant 0 : index
    %40 = vector.load %arg8[%c0_22, %c0_23] : memref<32x32xbf16, #tpu.memory_space<vmem>>, vector<32x32xbf16>
    %cst_24 = arith.constant dense<0.000000e+00> : vector<16x32xf32>
    %41 = tpu.matmul %39, %40, %cst_24 {dimension_numbers = #tpu.dot_dimension_numbers<[1], [0], [0], [1], [0, 0, 1, 1], [], []>} : vector<16x32xbf16>, vector<32x32xbf16>, vector<16x32xf32> -> vector<16x32xf32>
    %c0_25 = arith.constant 0 : index
    %c0_26 = arith.constant 0 : index
    %42 = vector.load %arg9[%c0_25, %c0_26] : memref<1x32xf32, #tpu.memory_space<vmem>>, vector<1x32xf32>
    %43 = vector.broadcast %42 : vector<1x32xf32> to vector<16x32xf32>
    %44 = arith.addf %41, %43 : vector<16x32xf32>
    %cst_27 = arith.constant 0.000000e+00 : f32
    %45 = vector.broadcast %cst_27 : f32 to vector<16x32xf32>
    %46 = arith.maximumf %44, %45 : vector<16x32xf32>
    %47 = arith.truncf %46 : vector<16x32xf32> to vector<16x32xbf16>
    %c0_28 = arith.constant 0 : index
    %c0_29 = arith.constant 0 : index
    %48 = vector.load %arg10[%c0_28, %c0_29] : memref<32x4xbf16, #tpu.memory_space<vmem>>, vector<32x4xbf16>
    %cst_30 = arith.constant dense<0.000000e+00> : vector<16x4xf32>
    %49 = tpu.matmul %47, %48, %cst_30 {dimension_numbers = #tpu.dot_dimension_numbers<[1], [0], [0], [1], [0, 0, 1, 1], [], []>} : vector<16x32xbf16>, vector<32x4xbf16>, vector<16x4xf32> -> vector<16x4xf32>
    %c0_31 = arith.constant 0 : index
    %c0_32 = arith.constant 0 : index
    %50 = vector.load %arg11[%c0_31, %c0_32] : memref<1x4xf32, #tpu.memory_space<vmem>>, vector<1x4xf32>
    %51 = vector.broadcast %50 : vector<1x4xf32> to vector<16x4xf32>
    %52 = arith.addf %49, %51 : vector<16x4xf32>
    %53 = arith.negf %52 : vector<16x4xf32>
    %54 = math.exp %53 : vector<16x4xf32>
    %cst_33 = arith.constant 1.000000e+00 : f32
    %55 = vector.broadcast %cst_33 : f32 to vector<16x4xf32>
    %56 = arith.addf %55, %54 : vector<16x4xf32>
    %57 = arith.divf %55, %56 : vector<16x4xf32>
    %c0_34 = arith.constant 0 : index
    %c0_35 = arith.constant 0 : index
    %58 = vector.load %arg13[%c0_34, %c0_35] : memref<16x4xf32, #tpu.memory_space<vmem>>, vector<16x4xf32>
    tpu.vector_store %arg13[%c0_34, %c0_35], %57 {strides = array<i32>} : memref<16x4xf32, #tpu.memory_space<vmem>>, vector<16x4xf32>,
    return
  }
  func.func @transform_0(%arg0: i32) -> (i32, i32) {
    %c0_i32 = arith.constant 0 : i32
    %c0_i32_0 = arith.constant 0 : i32
    %c0_i32_1 = arith.constant 0 : i32
    return %c0_i32, %c0_i32_0 : i32, i32
  }
  func.func @transform_1(%arg0: i32) -> (i32, i32) {
    %c0_i32 = arith.constant 0 : i32
    %c0_i32_0 = arith.constant 0 : i32
    %c0_i32_1 = arith.constant 0 : i32
    return %c0_i32, %c0_i32_0 : i32, i32
  }
  func.func @transform_2(%arg0: i32) -> (i32, i32) {
    %c0_i32 = arith.constant 0 : i32
    %c0_i32_0 = arith.constant 0 : i32
    %c0_i32_1 = arith.constant 0 : i32
    return %c0_i32, %c0_i32_0 : i32, i32
  }
  func.func @transform_3(%arg0: i32) -> (i32, i32) {
    %c0_i32 = arith.constant 0 : i32
    %c0_i32_0 = arith.constant 0 : i32
    %c0_i32_1 = arith.constant 0 : i32
    return %c0_i32, %c0_i32_0 : i32, i32
  }
  func.func @transform_4(%arg0: i32) -> (i32, i32) {
    %c0_i32 = arith.constant 0 : i32
    %c0_i32_0 = arith.constant 0 : i32
    %c0_i32_1 = arith.constant 0 : i32
    return %c0_i32, %c0_i32_0 : i32, i32
  }
  func.func @transform_5(%arg0: i32) -> (i32, i32) {
    %c0_i32 = arith.constant 0 : i32
    %c0_i32_0 = arith.constant 0 : i32
    %c0_i32_1 = arith.constant 0 : i32
    return %c0_i32, %c0_i32_0 : i32, i32
  }
  func.func @transform_6(%arg0: i32) -> (i32, i32) {
    %c0_i32 = arith.constant 0 : i32
    %c0_i32_0 = arith.constant 0 : i32
    %c0_i32_1 = arith.constant 0 : i32
    return %c0_i32, %c0_i32_0 : i32, i32
  }
  func.func @transform_7(%arg0: i32) -> (i32, i32) {
    %c0_i32 = arith.constant 0 : i32
    %c0_i32_0 = arith.constant 0 : i32
    %c0_i32_1 = arith.constant 0 : i32
    return %c0_i32, %c0_i32_0 : i32, i32
  }
  func.func @transform_8(%arg0: i32) -> (i32, i32) {
    %c0_i32 = arith.constant 0 : i32
    %c0_i32_0 = arith.constant 0 : i32
    %c0_i32_1 = arith.constant 0 : i32
    return %c0_i32, %c0_i32_0 : i32, i32
  }
  func.func @transform_9(%arg0: i32) -> (i32, i32) {
    %c0_i32 = arith.constant 0 : i32
    %c0_i32_0 = arith.constant 0 : i32
    %c0_i32_1 = arith.constant 0 : i32
    return %c0_i32, %c0_i32_0 : i32, i32
  }
  func.func @transform_10(%arg0: i32) -> (i32, i32) {
    %c0_i32 = arith.constant 0 : i32
    %c0_i32_0 = arith.constant 0 : i32
    %c0_i32_1 = arith.constant 0 : i32
    return %c0_i32, %c0_i32_0 : i32, i32
  }
  func.func @transform_11(%arg0: i32) -> (i32, i32) {
    %c0_i32 = arith.constant 0 : i32
    %c0_i32_0 = arith.constant 0 : i32
    %c0_i32_1 = arith.constant 0 : i32
    return %c0_i32, %c0_i32_0 : i32, i32
  }
  func.func @transform_12(%arg0: i32) -> (i32, i32) {
    %c0_i32 = arith.constant 0 : i32
    %c0_i32_0 = arith.constant 0 : i32
    %c0_i32_1 = arith.constant 0 : i32
    return %c0_i32, %c0_i32_0 : i32, i32
  }
}

</mosaic_0001>

<llo_original>
// kernel: vision_detr_forward.6
$region0: #{vision_detr_forward.6}
  #allocation0 [shape = 'u32[]', space=smem, size = 0x4, offset = 0x4, fixed_abs, tag = 'smem constant byte address 0x4 - core index']
  #allocation1 [shape = 'u32[144,128]{1,0:T(1,128)}', space=vmem, size = 0x12000, scoped, tag = 'internal scratch']
  %s0 = inlined_call_operand.vmem [shape: f32[32,192], index: 0, kind: input, shape index: {}]
  %s1 = inlined_call_operand.vmem [shape: bf16[192,48], index: 1, kind: input, shape index: {}]
  %s2 = inlined_call_operand.vmem [shape: f32[1,48], index: 2, kind: input, shape index: {}]
  %s3 = inlined_call_operand.vmem [shape: bf16[48,32], index: 3, kind: input, shape index: {}]
  %s4 = inlined_call_operand.vmem [shape: f32[1,32], index: 4, kind: input, shape index: {}]
  %s5 = inlined_call_operand.vmem [shape: f32[32,32], index: 5, kind: output, shape index: {}]
  %s6 = sld [smem:[#allocation0]]
  $region30: #{vision_detr_forward.6} parent=0
    _
  %s8 = ssub.s32 1, %s6
  %s9 = scalar_select 0, %s8, %s6
  // Predicated region
  $region2: #{vision_detr_forward.6} parent=0 // pred_check
    _
  $region3: #{vision_detr_forward.6} parent=0 // pred_check_branch
    %11 = sbr.rel (0) target = $region5
  $region4: #{vision_detr_forward.6} parent=0 // pred_region
    _
  $region5: #{vision_detr_forward.6} parent=0 // pred_fallthru
    _
  // Predicated region
  $region6: #{vision_detr_forward.6} parent=0 // pred_check
    _
  $region7: #{vision_detr_forward.6} parent=0 // pred_check_branch
    %13 = sbr.rel (0) target = $region9
  $region8: #{vision_detr_forward.6} parent=0 // pred_region
    _
  $region9: #{vision_detr_forward.6} parent=0 // pred_fallthru
    _
  // Predicated region
  $region10: #{vision_detr_forward.6} parent=0 // pred_check
    _
  $region11: #{vision_detr_forward.6} parent=0 // pred_check_branch
    %15 = sbr.rel (0) target = $region13
  $region12: #{vision_detr_forward.6} parent=0 // pred_region
    _
  $region13: #{vision_detr_forward.6} parent=0 // pred_fallthru
    _
  // Predicated region
  $region14: #{vision_detr_forward.6} parent=0 // pred_check
    _
  $region15: #{vision_detr_forward.6} parent=0 // pred_check_branch
    %17 = sbr.rel (0) target = $region17
  $region16: #{vision_detr_forward.6} parent=0 // pred_region
    _
  $region17: #{vision_detr_forward.6} parent=0 // pred_fallthru
    _
  // Predicated region
  $region18: #{vision_detr_forward.6} parent=0 // pred_check
    _
  $region19: #{vision_detr_forward.6} parent=0 // pred_check_branch
    %19 = sbr.rel (0) target = $region21
  $region20: #{vision_detr_forward.6} parent=0 // pred_region
    _
  $region21: #{vision_detr_forward.6} parent=0 // pred_fallthru
    _
  %v21 = vld [vmem:[%s0] sm:$0xff]
  %v22 = vld [vmem:[%s0 + $0x8] sm:$0xff]
  %v23 = vld [vmem:[%s0 + $0x10] sm:$0xff]
  %v24 = vld [vmem:[%s0 + $0x18] sm:$0xff]
  %v25 = vld [vmem:[%s0 + $0x20] sm:$0xff]
  %v26 = vld [vmem:[%s0 + $0x28] sm:$0xff]
  %v27 = vld [vmem:[%s0 + $0x30] sm:$0xff]
  %v28 = vld [vmem:[%s0 + $0x38] sm:$0xff]
  %v29 = vpack.c.bf16 %v23, %v21
  %v30 = vpack.c.bf16 %v24, %v22
  %v31 = vpack.c.bf16 %v27, %v25
  %v32 = vpack.c.bf16 %v28, %v26
  %v33 = vld [vmem:[%s1] sm:$0xf]
  %v34 = vld [vmem:[%s1 + $0x4] sm:$0xf]
  %v35 = vld [vmem:[%s1 + $0x8] sm:$0xf]
  %v36 = vld [vmem:[%s1 + $0xc] sm:$0xf]
  %v37 = vld [vmem:[%s1 + $0x10] sm:$0xf]
  %v38 = vld [vmem:[%s1 + $0x14] sm:$0xf]
  %v39 = vld [vmem:[%s1 + $0x18] sm:$0xf]
  %v40 = vld [vmem:[%s1 + $0x1c] sm:$0xf]
  %v41 = vld [vmem:[%s1 + $0x20] sm:$0xf]
  %v42 = vld [vmem:[%s1 + $0x24] sm:$0xf]
  %v43 = vld [vmem:[%s1 + $0x28] sm:$0xf]
  %v44 = vld [vmem:[%s1 + $0x2c] sm:$0xf]
  %v45 = vld [vmem:[%s1 + $0x30] sm:$0xf]
  %v46 = vld [vmem:[%s1 + $0x34] sm:$0xf]
  %v47 = vld [vmem:[%s1 + $0x38] sm:$0xf]
  %v48 = vld [vmem:[%s1 + $0x3c] sm:$0xf]
  %v49 = vld [vmem:[%s1 + $0x40] sm:$0xf]
  %v50 = vld [vmem:[%s1 + $0x44] sm:$0xf]
  %v51 = vld [vmem:[%s1 + $0x48] sm:$0xf]
  %v52 = vld [vmem:[%s1 + $0x4c] sm:$0xf]
  %v53 = vld [vmem:[%s1 + $0x50] sm:$0xf]
  %v54 = vld [vmem:[%s1 + $0x54] sm:$0xf]
  %v55 = vld [vmem:[%s1 + $0x58] sm:$0xf]
  %v56 = vld [vmem:[%s1 + $0x5c] sm:$0xf]
  %v57 = vld [vmem:[%s2] sm:$0x1]
  %v59 = vlaneseq
  %v60 = vshrl.u32 %v59, 7
  %v61 = vsub.s32 0, %v60
  %v62 = vrot.slane %v57, %v61
  %v88 = vunpack.c.l.b16 %v33
  %v89 = vunpack.c.l.b16 %v34
  %v90 = vunpack.c.l.b16 %v35
  %v91 = vunpack.c.l.b16 %v36
  %v92 = vunpack.c.l.b16 %v37
  %v93 = vunpack.c.l.b16 %v38
  %v94 = vunpack.c.l.b16 %v39
  %v95 = vunpack.c.l.b16 %v40
  %v96 = vunpack.c.l.b16 %v41
  %v97 = vunpack.c.l.b16 %v42
  %v98 = vunpack.c.l.b16 %v43
  %v99 = vunpack.c.l.b16 %v44
  %v100 = vunpack.c.l.b16 %v45
  %v101 = vunpack.c.l.b16 %v46
  %v102 = vunpack.c.l.b16 %v47
  %v103 = vunpack.c.l.b16 %v48
  %v104 = vunpack.c.l.b16 %v49
  %v105 = vunpack.c.l.b16 %v50
  %v106 = vunpack.c.l.b16 %v51
  %v107 = vunpack.c.l.b16 %v52
  %v108 = vunpack.c.l.b16 %v53
  %v109 = vunpack.c.l.b16 %v54
  %v110 = vunpack.c.l.b16 %v55
  %v111 = vunpack.c.l.b16 %v56
  %v112 = vpack.c.b16 %v89, %v88
  %v113 = vpack.c.b16 %v91, %v90
  %v114 = vpack.c.b16 %v93, %v92
  %v115 = vpack.c.b16 %v95, %v94
  %v116 = vpack.c.b16 %v97, %v96
  %v117 = vpack.c.b16 %v99, %v98
  %v118 = vpack.c.b16 %v101, %v100
  %v119 = vpack.c.b16 %v103, %v102
  %v120 = vpack.c.b16 %v105, %v104
  %v121 = vpack.c.b16 %v107, %v106
  %v122 = vpack.c.b16 %v109, %v108
  %v123 = vpack.c.b16 %v111, %v110
  %vm136 = vcmask 523264
  %v138 = vsel %vm136, %v30, 0
  %v141 = vsel %vm136, %v32, 0
  %143 = vmatprep.subr.bf16.mxu0 0
  %144 = vmatpush1.bf16.msra.mxu0 %v112
  %145 = vmatprep.subr.bf16.mxu0 0
  %146 = vmatpush1.bf16.msra.mxu0 %v113
  %147 = vmatprep.subr.bf16.mxu0 0
  %148 = vmatpush1.bf16.msra.mxu0 %v114
  %149 = vmatprep.subr.bf16.mxu0 0
  %150 = vmatpush1.bf16.msra.mxu0 %v115
  %151 = vmatprep.subr.bf16.mxu0 0
  %152 = vmatpush1.bf16.msra.mxu0 %v116
  %153 = vmatprep.subr.bf16.mxu0 0
  %154 = vmatpush1.bf16.msra.mxu0 %v117
  %155 = vmatprep.subr.bf16.mxu0 0
  %156 = vmatpush1.bf16.msra.mxu0 %v118
  %157 = vmatprep.subr.bf16.mxu0 0
  %158 = vmatpush1.bf16.msra.mxu0 %v119
  %159 = vmatprep.subr.bf16.mxu0 0
  %160 = vmatpush1.bf16.msra.mxu0 %v120
  %161 = vmatprep.subr.bf16.mxu0 0
  %162 = vmatpush1.bf16.msra.mxu0 %v121
  %163 = vmatprep.subr.bf16.mxu0 0
  %164 = vmatpush1.bf16.msra.mxu0 %v122
  %165 = vmatprep.subr.bf16.mxu0 0
  %166 = vmatpush1.bf16.msra.mxu0 %v123
  %167 = vmatprep.subr.bf16.mxu0 0
  %168 = vmatpush1.bf16.msra.mxu0 0
  %169 = vmatprep.subr.bf16.mxu0 0
  %170 = vmatpush1.bf16.msra.mxu0 0
  %171 = vmatprep.subr.bf16.mxu0 0
  %172 = vmatpush1.bf16.msra.mxu0 0
  %173 = vmatprep.subr.bf16.mxu0 0
  %174 = vmatpush1.bf16.msra.mxu0 0
  %175 = vmatprep.mubr.bf16.mxu0 %v138
  %176 = vmatmul.mubr.bf16.gmra.mrb[0].mxu0 %v29
  %v177 = vpop.f32.mrb[0].mxu0
  %v178 = vadd.f32 %v62, %v177
  %v179 = vpop.f32.mrb[0].mxu0
  %v180 = vpop.f32.mrb[0].mxu0
  %v181 = vadd.f32 %v62, %v180
  %v182 = vpop.f32.mrb[0].mxu0
  %183 = vmatprep.mubr.bf16.mxu0 %v141
  %184 = vmatmul.mubr.bf16.gmra.mrb[0].mxu0 %v31
  %v185 = vpop.f32.mrb[0].mxu0
  %v186 = vadd.f32 %v62, %v185
  %v187 = vpop.f32.mrb[0].mxu0
  %v188 = vpop.f32.mrb[0].mxu0
  %v189 = vadd.f32 %v62, %v188
  %v190 = vpop.f32.mrb[0].mxu0
  %191 = vdwg.mxu0
  %v192 = vmax.f32 %v178, 0.0
  %v193 = vmax.f32 %v181, 0.0
  %v194 = vmax.f32 %v186, 0.0
  %v195 = vmax.f32 %v189, 0.0
  %v196 = vpack.c.bf16 %v193, %v192
  %v197 = vpack.c.bf16 %v195, %v194
  %v198 = vld [vmem:[%s3] sm:$0xf]
  %v199 = vld [vmem:[%s3 + $0x4] sm:$0xf]
  %v200 = vld [vmem:[%s3 + $0x8] sm:$0xf]
  %v201 = vld [vmem:[%s3 + $0xc] sm:$0xf]
  %v202 = vld [vmem:[%s3 + $0x10] sm:$0xf]
  %v203 = vld [vmem:[%s3 + $0x14] sm:$0xf]
  %v204 = vld [vmem:[%s4] sm:$0x1]
  %v206 = vlaneseq
  %v207 = vshrl.u32 %v206, 7
  %v208 = vsub.s32 0, %v207
  %v209 = vrot.slane %v204, %v208
  %v217 = vunpack.c.l.b16 %v198
  %v218 = vunpack.c.l.b16 %v199
  %v219 = vunpack.c.l.b16 %v200
  %v220 = vunpack.c.l.b16 %v201
  %v221 = vunpack.c.l.b16 %v202
  %v222 = vunpack.c.l.b16 %v203
  %v223 = vpack.c.b16 %v218, %v217
  %v224 = vpack.c.b16 %v220, %v219
  %v225 = vpack.c.b16 %v222, %v221
  %vm229 = vcmask 392192
  %v231 = vsel %vm229, %v196, 0
  %v234 = vsel %vm229, %v197, 0
  %236 = vmatprep.subr.bf16.mxu0 0
  %237 = vmatpush1.bf16.msra.mxu0 %v223
  %238 = vmatprep.subr.bf16.mxu0 0
  %239 = vmatpush1.bf16.msra.mxu0 %v224
  %240 = vmatprep.subr.bf16.mxu0 0
  %241 = vmatpush1.bf16.msra.mxu0 %v225
  %242 = vmatprep.subr.bf16.mxu0 0
  %243 = vmatpush1.bf16.msra.mxu0 0
  %244 = vmatprep.subr.bf16.mxu0 0
  %245 = vmatpush1.bf16.msra.mxu0 0
  %246 = vmatprep.subr.bf16.mxu0 0
  %247 = vmatpush1.bf16.msra.mxu0 0
  %248 = vmatprep.subr.bf16.mxu0 0
  %249 = vmatpush1.bf16.msra.mxu0 0
  %250 = vmatprep.subr.bf16.mxu0 0
  %251 = vmatpush1.bf16.msra.mxu0 0
  %252 = vmatprep.subr.bf16.mxu0 0
  %253 = vmatpush1.bf16.msra.mxu0 0
  %254 = vmatprep.subr.bf16.mxu0 0
  %255 = vmatpush1.bf16.msra.mxu0 0
  %256 = vmatprep.subr.bf16.mxu0 0
  %257 = vmatpush1.bf16.msra.mxu0 0
  %258 = vmatprep.subr.bf16.mxu0 0
  %259 = vmatpush1.bf16.msra.mxu0 0
  %260 = vmatprep.subr.bf16.mxu0 0
  %261 = vmatpush1.bf16.msra.mxu0 0
  %262 = vmatprep.subr.bf16.mxu0 0
  %263 = vmatpush1.bf16.msra.mxu0 0
  %264 = vmatprep.subr.bf16.mxu0 0
  %265 = vmatpush1.bf16.msra.mxu0 0
  %266 = vmatprep.subr.bf16.mxu0 0
  %267 = vmatpush1.bf16.msra.mxu0 0
  %268 = vmatprep.mubr.bf16.mxu0 0
  %269 = vmatmul.mubr.bf16.gmra.mrb[0].mxu0 %v231
  %v270 = vpop.f32.mrb[0].mxu0
  %v271 = vadd.f32 %v209, %v270
  %v272 = vpop.f32.mrb[0].mxu0
  %v273 = vpop.f32.mrb[0].mxu0
  %v274 = vadd.f32 %v209, %v273
  %v275 = vpop.f32.mrb[0].mxu0
  %276 = vmatprep.mubr.bf16.mxu0 0
  %277 = vmatmul.mubr.bf16.gmra.mrb[0].mxu0 %v234
  %v278 = vpop.f32.mrb[0].mxu0
  %v279 = vadd.f32 %v209, %v278
  %v280 = vpop.f32.mrb[0].mxu0
  %v281 = vpop.f32.mrb[0].mxu0
  %v282 = vadd.f32 %v209, %v281
  %v283 = vpop.f32.mrb[0].mxu0
  %284 = vdwg.mxu0
  %vm285 = vcmask 261120
  %286 = vst.msk [vmem:[%s5] sm:$0xff] %vm285, %v271
  %287 = vst.msk [vmem:[%s5 + $0x8] sm:$0xff] %vm285, %v274
  %288 = vst.msk [vmem:[%s5 + $0x10] sm:$0xff] %vm285, %v279
  %289 = vst.msk [vmem:[%s5 + $0x18] sm:$0xff] %vm285, %v282
  // Predicated region
  $region22: #{vision_detr_forward.6} parent=0 // pred_check
    _
  $region23: #{vision_detr_forward.6} parent=0 // pred_check_branch
    %291 = sbr.rel (0) target = $region25
  $region24: #{vision_detr_forward.6} parent=0 // pred_region
    _
  $region25: #{vision_detr_forward.6} parent=0 // pred_fallthru
    _
  // Predicated region
  $region26: #{vision_detr_forward.6} parent=0 // pred_check
    _
  $region27: #{vision_detr_forward.6} parent=0 // pred_check_branch
    %293 = sbr.rel (0) target = $region29
  $region28: #{vision_detr_forward.6} parent=0 // pred_region
    _
  $region29: #{vision_detr_forward.6} parent=0 // pred_fallthru
    _

// kernel: vision_detr_forward.11
$region0: #{vision_detr_forward.11}
  #allocation0 [shape = 'u32[]', space=smem, size = 0x4, offset = 0x4, fixed_abs, tag = 'smem constant byte address 0x4 - core index']
  #allocation1 [shape = 'u32[144,128]{1,0:T(1,128)}', space=vmem, size = 0x12000, scoped, tag = 'internal scratch']
  %s0 = inlined_call_operand.vmem [shape: f32[16,32], index: 0, kind: input, shape index: {}]
  %s1 = inlined_call_operand.vmem [shape: f32[1,32], index: 1, kind: input, shape index: {}]
  %s2 = inlined_call_operand.vmem [shape: f32[1,32], index: 2, kind: input, shape index: {}]
  %s3 = inlined_call_operand.vmem [shape: bf16[32,5], index: 3, kind: input, shape index: {}]
  %s4 = inlined_call_operand.vmem [shape: f32[1,5], index: 4, kind: input, shape index: {}]
  %s5 = inlined_call_operand.vmem [shape: bf16[32,32], index: 5, kind: input, shape index: {}]
  %s6 = inlined_call_operand.vmem [shape: f32[1,32], index: 6, kind: input, shape index: {}]
  %s7 = inlined_call_operand.vmem [shape: bf16[32,32], index: 7, kind: input, shape index: {}]
  %s8 = inlined_call_operand.vmem [shape: f32[1,32], index: 8, kind: input, shape index: {}]
  %s9 = inlined_call_operand.vmem [shape: bf16[32,4], index: 9, kind: input, shape index: {}]
  %s10 = inlined_call_operand.vmem [shape: f32[1,4], index: 10, kind: input, shape index: {}]
  %s11 = inlined_call_operand.vmem [shape: f32[16,5], index: 11, kind: output, shape index: {0}]
  %s12 = inlined_call_operand.vmem [shape: f32[16,4], index: 12, kind: output, shape index: {1}]
  %13 = xla_tuple %s11, %s12
  %s14 = sld [smem:[#allocation0]]
  $region62: #{vision_detr_forward.11} parent=0
    _
  %s16 = ssub.s32 1, %s14
  %s17 = scalar_select 0, %s16, %s14
  // Predicated region
  $region2: #{vision_detr_forward.11} parent=0 // pred_check
    _
  $region3: #{vision_detr_forward.11} parent=0 // pred_check_branch
    %19 = sbr.rel (0) target = $region5
  $region4: #{vision_detr_forward.11} parent=0 // pred_region
    _
  $region5: #{vision_detr_forward.11} parent=0 // pred_fallthru
    _
  // Predicated region
  $region6: #{vision_detr_forward.11} parent=0 // pred_check
    _
  $region7: #{vision_detr_forward.11} parent=0 // pred_check_branch
    %21 = sbr.rel (0) target = $region9
  $region8: #{vision_detr_forward.11} parent=0 // pred_region
    _
  $region9: #{vision_detr_forward.11} parent=0 // pred_fallthru
    _
  // Predicated region
  $region10: #{vision_detr_forward.11} parent=0 // pred_check
    _
  $region11: #{vision_detr_forward.11} parent=0 // pred_check_branch
    %23 = sbr.rel (0) target = $region13
  $region12: #{vision_detr_forward.11} parent=0 // pred_region
    _
  $region13: #{vision_detr_forward.11} parent=0 // pred_fallthru
    _
  // Predicated region
  $region14: #{vision_detr_forward.11} parent=0 // pred_check
    _
  $region15: #{vision_detr_forward.11} parent=0 // pred_check_branch
    %25 = sbr.rel (0) target = $region17
  $region16: #{vision_detr_forward.11} parent=0 // pred_region
    _
  $region17: #{vision_detr_forward.11} parent=0 // pred_fallthru
    _
  // Predicated region
  $region18: #{vision_detr_forward.11} parent=0 // pred_check
    _
  $region19: #{vision_detr_forward.11} parent=0 // pred_check_branch
    %27 = sbr.rel (0) target = $region21
  $region20: #{vision_detr_forward.11} parent=0 // pred_region
    _
  $region21: #{vision_detr_forward.11} parent=0 // pred_fallthru
    _
  // Predicated region
  $region22: #{vision_detr_forward.11} parent=0 // pred_check
    _
  $region23: #{vision_detr_forward.11} parent=0 // pred_check_branch
    %29 = sbr.rel (0) target = $region25
  $region24: #{vision_detr_forward.11} parent=0 // pred_region
    _
  $region25: #{vision_detr_forward.11} parent=0 // pred_fallthru
    _
  // Predicated region
  $region26: #{vision_detr_forward.11} parent=0 // pred_check
    _
  $region27: #{vision_detr_forward.11} parent=0 // pred_check_branch
    %31 = sbr.rel (0) target = $region29
  $region28: #{vision_detr_forward.11} parent=0 // pred_region
    _
  $region29: #{vision_detr_forward.11} parent=0 // pred_fallthru
    _
  // Predicated region
  $region30: #{vision_detr_forward.11} parent=0 // pred_check
    _
  $region31: #{vision_detr_forward.11} parent=0 // pred_check_branch
    %33 = sbr.rel (0) target = $region33
  $region32: #{vision_detr_forward.11} parent=0 // pred_region
    _
  $region33: #{vision_detr_forward.11} parent=0 // pred_fallthru
    _
  // Predicated region
  $region34: #{vision_detr_forward.11} parent=0 // pred_check
    _
  $region35: #{vision_detr_forward.11} parent=0 // pred_check_branch
    %35 = sbr.rel (0) target = $region37
  $region36: #{vision_detr_forward.11} parent=0 // pred_region
    _
  $region37: #{vision_detr_forward.11} parent=0 // pred_fallthru
    _
  // Predicated region
  $region38: #{vision_detr_forward.11} parent=0 // pred_check
    _
  $region39: #{vision_detr_forward.11} parent=0 // pred_check_branch
    %37 = sbr.rel (0) target = $region41
  $region40: #{vision_detr_forward.11} parent=0 // pred_region
    _
  $region41: #{vision_detr_forward.11} parent=0 // pred_fallthru
    _
  // Predicated region
  $region42: #{vision_detr_forward.11} parent=0 // pred_check
    _
  $region43: #{vision_detr_forward.11} parent=0 // pred_check_branch
    %39 = sbr.rel (0) target = $region45
  $region44: #{vision_detr_forward.11} parent=0 // pred_region
    _
  $region45: #{vision_detr_forward.11} parent=0 // pred_fallthru
    _
  %v41 = vld [vmem:[%s0] sm:$0xff]
  %v42 = vld [vmem:[%s0 + $0x8] sm:$0xff]
  %v43 = vld [vmem:[%s1] sm:$0x1]
  %v44 = vld [vmem:[%s2] sm:$0x1]
  %vm45 = vcmask 261120
  %v46 = vsel %vm45, %v41, 0.0
  %47 = vadd.xlane.f32.xlu0 %v46
  %v48 = vpop.xlane.xlu0 %47
  %v49 = vsel %vm45, %v42, 0.0
  %50 = vadd.xlane.f32.xlu0 %v49
  %v51 = vpop.xlane.xlu0 %50
  %v52 = vrcp.pop 32.0
  %v53 = vmul.f32 %v48, %v52
  %v54 = vmul.f32 %v51, %v52
  %v55 = vsub.f32 %v41, %v53
  %v56 = vsub.f32 %v42, %v54
  %v57 = vmul.f32 %v55, %v55
  %v58 = vmul.f32 %v56, %v56
  %v59 = vsel %vm45, %v57, 0.0
  %60 = vadd.xlane.f32.xlu0 %v59
  %v61 = vpop.xlane.xlu0 %60
  %v62 = vsel %vm45, %v58, 0.0
  %63 = vadd.xlane.f32.xlu0 %v62
  %v64 = vpop.xlane.xlu0 %63
  %v65 = vmul.f32 %v61, %v52
  %v66 = vmul.f32 %v64, %v52
  %v67 = vadd.f32 %v65, 1e-05
  %v68 = vadd.f32 %v66, 1e-05
  %v69 = vrsqrt.pop %v67
  %v70 = vrsqrt.pop %v68
  %v71 = vmul.f32 %v55, %v69
  %v72 = vmul.f32 %v56, %v70
  %v74 = vlaneseq
  %v75 = vshrl.u32 %v74, 7
  %v76 = vsub.s32 0, %v75
  %v77 = vrot.slane %v43, %v76
  %v79 = vmul.f32 %v71, %v77
  %v80 = vmul.f32 %v72, %v77
  %v82 = vlaneseq
  %v83 = vshrl.u32 %v82, 7
  %v84 = vsub.s32 0, %v83
  %v85 = vrot.slane %v44, %v84
  %v87 = vadd.f32 %v79, %v85
  %v88 = vadd.f32 %v80, %v85
  %v89 = vpack.c.bf16 %v88, %v87
  %v90 = vld [vmem:[%s3] sm:$0xf]
  %v91 = vld [vmem:[%s3 + $0x4] sm:$0xf]
  %v92 = vld [vmem:[%s3 + $0x8] sm:$0xf]
  %v93 = vld [vmem:[%s3 + $0xc] sm:$0xf]
  %v94 = vld [vmem:[%s4] sm:$0x1]
  %v96 = vlaneseq
  %v97 = vshrl.u32 %v96, 7
  %v98 = vsub.s32 0, %v97
  %v99 = vrot.slane %v94, %v98
  %v105 = vunpack.c.l.b16 %v90
  %v106 = vunpack.c.l.b16 %v91
  %v107 = vunpack.c.l.b16 %v92
  %v108 = vunpack.c.l.b16 %v93
  %v109 = vpack.c.b16 %v106, %v105
  %v110 = vpack.c.b16 %v108, %v107
  %v114 = vsel %vm45, %v89, 0
  %116 = vmatprep.subr.bf16.mxu0 0
  %117 = vmatpush1.bf16.msra.mxu0 %v109
  %118 = vmatprep.subr.bf16.mxu0 0
  %119 = vmatpush1.bf16.msra.mxu0 %v110
  %120 = vmatprep.subr.bf16.mxu0 0
  %121 = vmatpush1.bf16.msra.mxu0 0
  %122 = vmatprep.subr.bf16.mxu0 0
  %123 = vmatpush1.bf16.msra.mxu0 0
  %124 = vmatprep.subr.bf16.mxu0 0
  %125 = vmatpush1.bf16.msra.mxu0 0
  %126 = vmatprep.subr.bf16.mxu0 0
  %127 = vmatpush1.bf16.msra.mxu0 0
  %128 = vmatprep.subr.bf16.mxu0 0
  %129 = vmatpush1.bf16.msra.mxu0 0
  %130 = vmatprep.subr.bf16.mxu0 0
  %131 = vmatpush1.bf16.msra.mxu0 0
  %132 = vmatprep.subr.bf16.mxu0 0
  %133 = vmatpush1.bf16.msra.mxu0 0
  %134 = vmatprep.subr.bf16.mxu0 0
  %135 = vmatpush1.bf16.msra.mxu0 0
  %136 = vmatprep.subr.bf16.mxu0 0
  %137 = vmatpush1.bf16.msra.mxu0 0
  %138 = vmatprep.subr.bf16.mxu0 0
  %139 = vmatpush1.bf16.msra.mxu0 0
  %140 = vmatprep.subr.bf16.mxu0 0
  %141 = vmatpush1.bf16.msra.mxu0 0
  %142 = vmatprep.subr.bf16.mxu0 0
  %143 = vmatpush1.bf16.msra.mxu0 0
  %144 = vmatprep.subr.bf16.mxu0 0
  %145 = vmatpush1.bf16.msra.mxu0 0
  %146 = vmatprep.subr.bf16.mxu0 0
  %147 = vmatpush1.bf16.msra.mxu0 0
  %148 = vmatprep.mubr.bf16.mxu0 0
  %149 = vmatmul.mubr.bf16.gmra.mrb[0].mxu0 %v114
  %v150 = vpop.f32.mrb[0].mxu0
  %v151 = vadd.f32 %v99, %v150
  %v152 = vpop.f32.mrb[0].mxu0
  %v153 = vpop.f32.mrb[0].mxu0
  %v154 = vadd.f32 %v99, %v153
  %v155 = vpop.f32.mrb[0].mxu0
  %156 = vdwg.mxu0
  %vm157 = vcmask 39936
  %158 = vst.msk [vmem:[%s11] sm:$0xff] %vm157, %v151
  %159 = vst.msk [vmem:[%s11 + $0x8] sm:$0xff] %vm157, %v154
  %v160 = vld [vmem:[%s5] sm:$0xf]
  %v161 = vld [vmem:[%s5 + $0x4] sm:$0xf]
  %v162 = vld [vmem:[%s5 + $0x8] sm:$0xf]
  %v163 = vld [vmem:[%s5 + $0xc] sm:$0xf]
  %v164 = vld [vmem:[%s6] sm:$0x1]
  %v166 = vlaneseq
  %v167 = vshrl.u32 %v166, 7
  %v168 = vsub.s32 0, %v167
  %v169 = vrot.slane %v164, %v168
  %v175 = vunpack.c.l.b16 %v160
  %v176 = vunpack.c.l.b16 %v161
  %v177 = vunpack.c.l.b16 %v162
  %v178 = vunpack.c.l.b16 %v163
  %v179 = vpack.c.b16 %v176, %v175
  %v180 = vpack.c.b16 %v178, %v177
  %183 = vmatprep.subr.bf16.mxu0 0
  %184 = vmatpush1.bf16.msra.mxu0 %v179
  %185 = vmatprep.subr.bf16.mxu0 0
  %186 = vmatpush1.bf16.msra.mxu0 %v180
  %187 = vmatprep.subr.bf16.mxu0 0
  %188 = vmatpush1.bf16.msra.mxu0 0
  %189 = vmatprep.subr.bf16.mxu0 0
  %190 = vmatpush1.bf16.msra.mxu0 0
  %191 = vmatprep.subr.bf16.mxu0 0
  %192 = vmatpush1.bf16.msra.mxu0 0
  %193 = vmatprep.subr.bf16.mxu0 0
  %194 = vmatpush1.bf16.msra.mxu0 0
  %195 = vmatprep.subr.bf16.mxu0 0
  %196 = vmatpush1.bf16.msra.mxu0 0
  %197 = vmatprep.subr.bf16.mxu0 0
  %198 = vmatpush1.bf16.msra.mxu0 0
  %199 = vmatprep.subr.bf16.mxu0 0
  %200 = vmatpush1.bf16.msra.mxu0 0
  %201 = vmatprep.subr.bf16.mxu0 0
  %202 = vmatpush1.bf16.msra.mxu0 0
  %203 = vmatprep.subr.bf16.mxu0 0
  %204 = vmatpush1.bf16.msra.mxu0 0
  %205 = vmatprep.subr.bf16.mxu0 0
  %206 = vmatpush1.bf16.msra.mxu0 0
  %207 = vmatprep.subr.bf16.mxu0 0
  %208 = vmatpush1.bf16.msra.mxu0 0
  %209 = vmatprep.subr.bf16.mxu0 0
  %210 = vmatpush1.bf16.msra.mxu0 0
  %211 = vmatprep.subr.bf16.mxu0 0
  %212 = vmatpush1.bf16.msra.mxu0 0
  %213 = vmatprep.subr.bf16.mxu0 0
  %214 = vmatpush1.bf16.msra.mxu0 0
  %215 = vmatprep.mubr.bf16.mxu0 0
  %216 = vmatmul.mubr.bf16.gmra.mrb[0].mxu0 %v114
  %v217 = vpop.f32.mrb[0].mxu0
  %v218 = vadd.f32 %v169, %v217
  %v219 = vpop.f32.mrb[0].mxu0
  %v220 = vpop.f32.mrb[0].mxu0
  %v221 = vadd.f32 %v169, %v220
  %v222 = vpop.f32.mrb[0].mxu0
  %223 = vdwg.mxu0
  %v224 = vmax.f32 %v218, 0.0
  %v225 = vmax.f32 %v221, 0.0
  %v226 = vpack.c.bf16 %v225, %v224
  %v227 = vld [vmem:[%s7] sm:$0xf]
  %v228 = vld [vmem:[%s7 + $0x4] sm:$0xf]
  %v229 = vld [vmem:[%s7 + $0x8] sm:$0xf]
  %v230 = vld [vmem:[%s7 + $0xc] sm:$0xf]
  %v231 = vld [vmem:[%s8] sm:$0x1]
  %v233 = vlaneseq
  %v234 = vshrl.u32 %v233, 7
  %v235 = vsub.s32 0, %v234
  %v236 = vrot.slane %v231, %v235
  %v242 = vunpack.c.l.b16 %v227
  %v243 = vunpack.c.l.b16 %v228
  %v244 = vunpack.c.l.b16 %v229
  %v245 = vunpack.c.l.b16 %v230
  %v246 = vpack.c.b16 %v243, %v242
  %v247 = vpack.c.b16 %v245, %v244
  %v251 = vsel %vm45, %v226, 0
  %253 = vmatprep.subr.bf16.mxu0 0
  %254 = vmatpush1.bf16.msra.mxu0 %v246
  %255 = vmatprep.subr.bf16.mxu0 0
  %256 = vmatpush1.bf16.msra.mxu0 %v247
  %257 = vmatprep.subr.bf16.mxu0 0
  %258 = vmatpush1.bf16.msra.mxu0 0
  %259 = vmatprep.subr.bf16.mxu0 0
  %260 = vmatpush1.bf16.msra.mxu0 0
  %261 = vmatprep.subr.bf16.mxu0 0
  %262 = vmatpush1.bf16.msra.mxu0 0
  %263 = vmatprep.subr.bf16.mxu0 0
  %264 = vmatpush1.bf16.msra.mxu0 0
  %265 = vmatprep.subr.bf16.mxu0 0
  %266 = vmatpush1.bf16.msra.mxu0 0
  %267 = vmatprep.subr.bf16.mxu0 0
  %268 = vmatpush1.bf16.msra.mxu0 0
  %269 = vmatprep.subr.bf16.mxu0 0
  %270 = vmatpush1.bf16.msra.mxu0 0
  %271 = vmatprep.subr.bf16.mxu0 0
  %272 = vmatpush1.bf16.msra.mxu0 0
  %273 = vmatprep.subr.bf16.mxu0 0
  %274 = vmatpush1.bf16.msra.mxu0 0
  %275 = vmatprep.subr.bf16.mxu0 0
  %276 = vmatpush1.bf16.msra.mxu0 0
  %277 = vmatprep.subr.bf16.mxu0 0
  %278 = vmatpush1.bf16.msra.mxu0 0
  %279 = vmatprep.subr.bf16.mxu0 0
  %280 = vmatpush1.bf16.msra.mxu0 0
  %281 = vmatprep.subr.bf16.mxu0 0
  %282 = vmatpush1.bf16.msra.mxu0 0
  %283 = vmatprep.subr.bf16.mxu0 0
  %284 = vmatpush1.bf16.msra.mxu0 0
  %285 = vmatprep.mubr.bf16.mxu0 0
  %286 = vmatmul.mubr.bf16.gmra.mrb[0].mxu0 %v251
  %v287 = vpop.f32.mrb[0].mxu0
  %v288 = vadd.f32 %v236, %v287
  %v289 = vpop.f32.mrb[0].mxu0
  %v290 = vpop.f32.mrb[0].mxu0
  %v291 = vadd.f32 %v236, %v290
  %v292 = vpop.f32.mrb[0].mxu0
  %293 = vdwg.mxu0
  %v294 = vmax.f32 %v288, 0.0
  %v295 = vmax.f32 %v291, 0.0
  %v296 = vpack.c.bf16 %v295, %v294
  %v297 = vld [vmem:[%s9] sm:$0xf]
  %v298 = vld [vmem:[%s9 + $0x4] sm:$0xf]
  %v299 = vld [vmem:[%s9 + $0x8] sm:$0xf]
  %v300 = vld [vmem:[%s9 + $0xc] sm:$0xf]
  %v301 = vld [vmem:[%s10] sm:$0x1]
  %v303 = vlaneseq
  %v304 = vshrl.u32 %v303, 7
  %v305 = vsub.s32 0, %v304
  %v306 = vrot.slane %v301, %v305
  %v312 = vunpack.c.l.b16 %v297
  %v313 = vunpack.c.l.b16 %v298
  %v314 = vunpack.c.l.b16 %v299
  %v315 = vunpack.c.l.b16 %v300
  %v316 = vpack.c.b16 %v313, %v312
  %v317 = vpack.c.b16 %v315, %v314
  %v321 = vsel %vm45, %v296, 0
  %323 = vmatprep.subr.bf16.mxu0 0
  %324 = vmatpush1.bf16.msra.mxu0 %v316
  %325 = vmatprep.subr.bf16.mxu0 0
  %326 = vmatpush1.bf16.msra.mxu0 %v317
  %327 = vmatprep.subr.bf16.mxu0 0
  %328 = vmatpush1.bf16.msra.mxu0 0
  %329 = vmatprep.subr.bf16.mxu0 0
  %330 = vmatpush1.bf16.msra.mxu0 0
  %331 = vmatprep.subr.bf16.mxu0 0
  %332 = vmatpush1.bf16.msra.mxu0 0
  %333 = vmatprep.subr.bf16.mxu0 0
  %334 = vmatpush1.bf16.msra.mxu0 0
  %335 = vmatprep.subr.bf16.mxu0 0
  %336 = vmatpush1.bf16.msra.mxu0 0
  %337 = vmatprep.subr.bf16.mxu0 0
  %338 = vmatpush1.bf16.msra.mxu0 0
  %339 = vmatprep.subr.bf16.mxu0 0
  %340 = vmatpush1.bf16.msra.mxu0 0
  %341 = vmatprep.subr.bf16.mxu0 0
  %342 = vmatpush1.bf16.msra.mxu0 0
  %343 = vmatprep.subr.bf16.mxu0 0
  %344 = vmatpush1.bf16.msra.mxu0 0
  %345 = vmatprep.subr.bf16.mxu0 0
  %346 = vmatpush1.bf16.msra.mxu0 0
  %347 = vmatprep.subr.bf16.mxu0 0
  %348 = vmatpush1.bf16.msra.mxu0 0
  %349 = vmatprep.subr.bf16.mxu0 0
  %350 = vmatpush1.bf16.msra.mxu0 0
  %351 = vmatprep.subr.bf16.mxu0 0
  %352 = vmatpush1.bf16.msra.mxu0 0
  %353 = vmatprep.subr.bf16.mxu0 0
  %354 = vmatpush1.bf16.msra.mxu0 0
  %355 = vmatprep.mubr.bf16.mxu0 0
  %356 = vmatmul.mubr.bf16.gmra.mrb[0].mxu0 %v321
  %v357 = vpop.f32.mrb[0].mxu0
  %v358 = vadd.f32 %v306, %v357
  %v359 = vpop.f32.mrb[0].mxu0
  %v360 = vpop.f32.mrb[0].mxu0
  %v361 = vadd.f32 %v306, %v360
  %v362 = vpop.f32.mrb[0].mxu0
  %363 = vdwg.mxu0
  %v364 = vxor.u32 %v358, 2147483648
  %v365 = vxor.u32 %v361, 2147483648
  %v366 = vmul.f32 %v364, 1.442695
  %v367 = vpow.pop %v366
  %v368 = vmul.f32 %v365, 1.442695
  %v369 = vpow.pop %v368
  %v370 = vadd.f32 %v367, 1.0
  %v371 = vadd.f32 %v369, 1.0
  %v372 = vrcp.pop %v370
  %v373 = vmul.f32 1.0, %v372
  %v374 = vrcp.pop %v371
  %v375 = vmul.f32 1.0, %v374
  %vm376 = vcmask 31744
  %377 = vst.msk [vmem:[%s12] sm:$0xff] %vm376, %v373
  %378 = vst.msk [vmem:[%s12 + $0x8] sm:$0xff] %vm376, %v375
  // Predicated region
  $region46: #{vision_detr_forward.11} parent=0 // pred_check
    _
  $region47: #{vision_detr_forward.11} parent=0 // pred_check_branch
    %380 = sbr.rel (0) target = $region49
  $region48: #{vision_detr_forward.11} parent=0 // pred_region
    _
  $region49: #{vision_detr_forward.11} parent=0 // pred_fallthru
    _
  // Predicated region
  $region50: #{vision_detr_forward.11} parent=0 // pred_check
    _
  $region51: #{vision_detr_forward.11} parent=0 // pred_check_branch
    %382 = sbr.rel (0) target = $region53
  $region52: #{vision_detr_forward.11} parent=0 // pred_region
    _
  $region53: #{vision_detr_forward.11} parent=0 // pred_fallthru
    _
  // Predicated region
  $region54: #{vision_detr_forward.11} parent=0 // pred_check
    _
  $region55: #{vision_detr_forward.11} parent=0 // pred_check_branch
    %384 = sbr.rel (0) target = $region57
  $region56: #{vision_detr_forward.11} parent=0 // pred_region
    _
  $region57: #{vision_detr_forward.11} parent=0 // pred_fallthru
    _
  // Predicated region
  $region58: #{vision_detr_forward.11} parent=0 // pred_check
    _
  $region59: #{vision_detr_forward.11} parent=0 // pred_check_branch
    %386 = sbr.rel (0) target = $region61
  $region60: #{vision_detr_forward.11} parent=0 // pred_region
    _
  $region61: #{vision_detr_forward.11} parent=0 // pred_fallthru
    _

// kernel: vision_detr_forward.7
$region0: #{vision_detr_forward.7}
  #allocation0 [shape = 'u32[]', space=smem, size = 0x4, offset = 0x4, fixed_abs, tag = 'smem constant byte address 0x4 - core index']
  #allocation1 [shape = 'u32[144,128]{1,0:T(1,128)}', space=vmem, size = 0x12000, scoped, tag = 'internal scratch']
  %s0 = inlined_call_operand.vmem [shape: f32[2,16,32], index: 0, kind: input, shape index: {}]
  %s1 = inlined_call_operand.vmem [shape: f32[16,32], index: 1, kind: input, shape index: {}]
  %s2 = inlined_call_operand.vmem [shape: bf16[4,32,8], index: 2, kind: input, shape index: {}]
  %s3 = inlined_call_operand.vmem [shape: f32[4,1,8], index: 3, kind: input, shape index: {}]
  %s4 = inlined_call_operand.vmem [shape: bf16[4,32,8], index: 4, kind: input, shape index: {}]
  %s5 = inlined_call_operand.vmem [shape: f32[4,1,8], index: 5, kind: input, shape index: {}]
  %s6 = inlined_call_operand.vmem [shape: bf16[4,32,8], index: 6, kind: input, shape index: {}]
  %s7 = inlined_call_operand.vmem [shape: f32[4,1,8], index: 7, kind: input, shape index: {}]
  %s8 = inlined_call_operand.vmem [shape: bf16[4,8,32], index: 8, kind: input, shape index: {}]
  %s9 = inlined_call_operand.vmem [shape: f32[1,32], index: 9, kind: input, shape index: {}]
  %s10 = inlined_call_operand.vmem [shape: f32[1,32], index: 10, kind: input, shape index: {}]
  %s11 = inlined_call_operand.vmem [shape: f32[1,32], index: 11, kind: input, shape index: {}]
  %s12 = inlined_call_operand.vmem [shape: bf16[32,64], index: 12, kind: input, shape index: {}]
  %s13 = inlined_call_operand.vmem [shape: f32[1,64], index: 13, kind: input, shape index: {}]
  %s14 = inlined_call_operand.vmem [shape: bf16[64,32], index: 14, kind: input, shape index: {}]
  %s15 = inlined_call_operand.vmem [shape: f32[1,32], index: 15, kind: input, shape index: {}]
  %s16 = inlined_call_operand.vmem [shape: f32[1,32], index: 16, kind: input, shape index: {}]
  %s17 = inlined_call_operand.vmem [shape: f32[1,32], index: 17, kind: input, shape index: {}]
  %s18 = inlined_call_operand.vmem [shape: f32[2,16,32], index: 18, kind: output, shape index: {}]
  %s19 = sld [smem:[#allocation0]]
  $region105: #{vision_detr_forward.7} parent=0
    _
  %s21 = ssub.s32 1, %s19
  %s22 = scalar_select 0, %s21, %s19
  loop: start=0, step=1, limit=4
  $region2: #{vision_detr_forward.7} parent=0 // loop_pre_header
    _
  $region3: #{vision_detr_forward.7} parent=0 // loop_header
    %s24 = sphi 0, %s28
    %p25 = scmp.ge.s32.totalorder %s24, 4
    %s34 = sphi 0, %s36
    %s37 = sphi 0, %s34
    %s38 = sphi 0, %s37
    %s54 = sphi 0, %s38
    %s58 = sphi 0, %s58
    %s60 = sphi 0, %s58
    %s61 = sphi 0, %s60
    %s75 = sphi 0, %s61
    %s79 = sphi 0, %s79
    %s81 = sphi 0, %s79
    %s82 = sphi 0, %s81
    %s96 = sphi 0, %s82
    %s100 = sphi 0, %s100
    %s102 = sphi 0, %s100
    %s103 = sphi 0, %s102
    %s117 = sphi 0, %s103
    %s121 = sphi 0, %s121
    %s123 = sphi 0, %s121
    %s124 = sphi 0, %s123
    %s138 = sphi 0, %s124
    %s142 = sphi 0, %s142
    %s144 = sphi 0, %s142
    %s145 = sphi 0, %s144
    %s159 = sphi 0, %s145
    %s163 = sphi 0, %s163
    %s165 = sphi 0, %s163
    %s166 = sphi 0, %s165
    %s180 = sphi 0, %s166
    %s184 = sphi 0, %s184
    %s186 = sphi 0, %s184
    %s187 = sphi 0, %s186
    %s201 = sphi 0, %s187
    %s205 = sphi 0, %s205
    %s207 = sphi 0, %s205
    %s208 = sphi 0, %s207
    %s222 = sphi 0, %s208
    %s226 = sphi 0, %s226
    %s228 = sphi 0, %s226
    %s229 = sphi 0, %s228
    %s243 = sphi 0, %s229
    %s247 = sphi 0, %s247
    %s249 = sphi 0, %s247
    %s250 = sphi 0, %s249
    %s264 = sphi 0, %s250
    %s268 = sphi 0, %s268
    %s270 = sphi 0, %s268
    %s271 = sphi 0, %s270
    %s285 = sphi 0, %s271
    %s289 = sphi 0, %s289
    %s291 = sphi 0, %s289
    %s292 = sphi 0, %s291
    %s306 = sphi 0, %s292
    %s310 = sphi 0, %s310
    %s312 = sphi 0, %s310
    %s313 = sphi 0, %s312
    %s327 = sphi 0, %s313
    %s331 = sphi 0, %s331
    %s333 = sphi 0, %s331
    %s334 = sphi 0, %s333
    %s348 = sphi 0, %s334
    %s352 = sphi 0, %s352
    %s354 = sphi 0, %s352
    %s355 = sphi 0, %s354
    %s369 = sphi 0, %s355
    %s373 = sphi 0, %s373
    %s375 = sphi 0, %s373
    %s376 = sphi 0, %s375
    %s390 = sphi 0, %s376
    %s394 = sphi 0, %s394
    %s396 = sphi 0, %s394
    %s397 = sphi 0, %s396
    %s411 = sphi 0, %s397
    %s417 = sphi 0, %s419
    %s420 = sphi 0, %s417
    %s421 = sphi 0, %s420
    %s437 = sphi 0, %s421
  $region4: #{vision_detr_forward.7} parent=0 // loop_header_branch
    %27 = sbr.rel (%p25) target = $region8
  $region5: #{vision_detr_forward.7} parent=0 // loop_body
    %s29 = ssub.s32 %s24, 1
    %s30 = ssub.s32 %s24, 2
    %s31 = sadd.s32 %s24, 1
    %s32 = ssub.s32 %s24, %s31
    %p33 = scmp.eq.s32.totalorder %s32, 0
    %s35 = sadd.s32 %s34, 1
    %s36 = scalar_select %p33, %s34, %s35
    %p39 = pneg %p33
    %p40 = scmp.eq.s32.totalorder %s24, 1
    %p41 = por %p39, %p40
    %p42 = scmp.ne.s32.totalorder %s34, %s37
    %p43 = scmp.eq.s32.totalorder %s24, 0
    %p44 = por %p42, %p43
    %p45 = scmp.ne.s32.totalorder %s34, %s37
    %p46 = scmp.eq.s32.totalorder %s29, 1
    %p47 = por %p45, %p46
    %p48 = scmp.ne.s32.totalorder %s37, %s38
    %p49 = scmp.eq.s32.totalorder %s29, 0
    %p50 = por %p48, %p49
    %p51 = scmp.ne.s32.totalorder %s37, %s38
    %p52 = scmp.eq.s32.totalorder %s30, 1
    %p53 = por %p51, %p52
    %p55 = scmp.ne.s32.totalorder %s38, %s54
    %p56 = scmp.eq.s32.totalorder %s30, 0
    %p57 = por %p55, %p56
    %s59 = sadd.s32 %s58, 1
    %p62 = scmp.eq.s32.totalorder %s24, 1
    %p63 = scmp.ne.s32.totalorder %s58, %s60
    %p64 = scmp.eq.s32.totalorder %s24, 0
    %p65 = por %p63, %p64
    %p66 = scmp.ne.s32.totalorder %s58, %s60
    %p67 = scmp.eq.s32.totalorder %s29, 1
    %p68 = por %p66, %p67
    %p69 = scmp.ne.s32.totalorder %s60, %s61
    %p70 = scmp.eq.s32.totalorder %s29, 0
    %p71 = por %p69, %p70
    %p72 = scmp.ne.s32.totalorder %s60, %s61
    %p73 = scmp.eq.s32.totalorder %s30, 1
    %p74 = por %p72, %p73
    %p76 = scmp.ne.s32.totalorder %s61, %s75
    %p77 = scmp.eq.s32.totalorder %s30, 0
    %p78 = por %p76, %p77
    %s80 = sadd.s32 %s79, 1
    %p83 = scmp.eq.s32.totalorder %s24, 1
    %p84 = scmp.ne.s32.totalorder %s79, %s81
    %p85 = scmp.eq.s32.totalorder %s24, 0
    %p86 = por %p84, %p85
    %p87 = scmp.ne.s32.totalorder %s79, %s81
    %p88 = scmp.eq.s32.totalorder %s29, 1
    %p89 = por %p87, %p88
    %p90 = scmp.ne.s32.totalorder %s81, %s82
    %p91 = scmp.eq.s32.totalorder %s29, 0
    %p92 = por %p90, %p91
    %p93 = scmp.ne.s32.totalorder %s81, %s82
    %p94 = scmp.eq.s32.totalorder %s30, 1
    %p95 = por %p93, %p94
    %p97 = scmp.ne.s32.totalorder %s82, %s96
    %p98 = scmp.eq.s32.totalorder %s30, 0
    %p99 = por %p97, %p98
    %s101 = sadd.s32 %s100, 1
    %p104 = scmp.eq.s32.totalorder %s24, 1
    %p105 = scmp.ne.s32.totalorder %s100, %s102
    %p106 = scmp.eq.s32.totalorder %s24, 0
    %p107 = por %p105, %p106
    %p108 = scmp.ne.s32.totalorder %s100, %s102
    %p109 = scmp.eq.s32.totalorder %s29, 1
    %p110 = por %p108, %p109
    %p111 = scmp.ne.s32.totalorder %s102, %s103
    %p112 = scmp.eq.s32.totalorder %s29, 0
    %p113 = por %p111, %p112
    %p114 = scmp.ne.s32.totalorder %s102, %s103
    %p115 = scmp.eq.s32.totalorder %s30, 1
    %p116 = por %p114, %p115
    %p118 = scmp.ne.s32.totalorder %s103, %s117
    %p119 = scmp.eq.s32.totalorder %s30, 0
    %p120 = por %p118, %p119
    %s122 = sadd.s32 %s121, 1
    %p125 = scmp.eq.s32.totalorder %s24, 1
    %p126 = scmp.ne.s32.totalorder %s121, %s123
    %p127 = scmp.eq.s32.totalorder %s24, 0
    %p128 = por %p126, %p127
    %p129 = scmp.ne.s32.totalorder %s121, %s123
    %p130 = scmp.eq.s32.totalorder %s29, 1
    %p131 = por %p129, %p130
    %p132 = scmp.ne.s32.totalorder %s123, %s124
    %p133 = scmp.eq.s32.totalorder %s29, 0
    %p134 = por %p132, %p133
    %p135 = scmp.ne.s32.totalorder %s123, %s124
    %p136 = scmp.eq.s32.totalorder %s30, 1
    %p137 = por %p135, %p136
    %p139 = scmp.ne.s32.totalorder %s124, %s138
    %p140 = scmp.eq.s32.totalorder %s30, 0
    %p141 = por %p139, %p140
    %s143 = sadd.s32 %s142, 1
    %p146 = scmp.eq.s32.totalorder %s24, 1
    %p147 = scmp.ne.s32.totalorder %s142, %s144
    %p148 = scmp.eq.s32.totalorder %s24, 0
    %p149 = por %p147, %p148
    %p150 = scmp.ne.s32.totalorder %s142, %s144
    %p151 = scmp.eq.s32.totalorder %s29, 1
    %p152 = por %p150, %p151
    %p153 = scmp.ne.s32.totalorder %s144, %s145
    %p154 = scmp.eq.s32.totalorder %s29, 0
    %p155 = por %p153, %p154
    %p156 = scmp.ne.s32.totalorder %s144, %s145
    %p157 = scmp.eq.s32.totalorder %s30, 1
    %p158 = por %p156, %p157
    %p160 = scmp.ne.s32.totalorder %s145, %s159
    %p161 = scmp.eq.s32.totalorder %s30, 0
    %p162 = por %p160, %p161
    %s164 = sadd.s32 %s163, 1
    %p167 = scmp.eq.s32.totalorder %s24, 1
    %p168 = scmp.ne.s32.totalorder %s163, %s165
    %p169 = scmp.eq.s32.totalorder %s24, 0
    %p170 = por %p168, %p169
    %p171 = scmp.ne.s32.totalorder %s163, %s165
    %p172 = scmp.eq.s32.totalorder %s29, 1
    %p173 = por %p171, %p172
    %p174 = scmp.ne.s32.totalorder %s165, %s166
    %p175 = scmp.eq.s32.totalorder %s29, 0
    %p176 = por %p174, %p175
    %p177 = scmp.ne.s32.totalorder %s165, %s166
    %p178 = scmp.eq.s32.totalorder %s30, 1
    %p179 = por %p177, %p178
    %p181 = scmp.ne.s32.totalorder %s166, %s180
    %p182 = scmp.eq.s32.totalorder %s30, 0
    %p183 = por %p181, %p182
    %s185 = sadd.s32 %s184, 1
    %p188 = scmp.eq.s32.totalorder %s24, 1
    %p189 = scmp.ne.s32.totalorder %s184, %s186
    %p190 = scmp.eq.s32.totalorder %s24, 0
    %p191 = por %p189, %p190
    %p192 = scmp.ne.s32.totalorder %s184, %s186
    %p193 = scmp.eq.s32.totalorder %s29, 1
    %p194 = por %p192, %p193
    %p195 = scmp.ne.s32.totalorder %s186, %s187
    %p196 = scmp.eq.s32.totalorder %s29, 0
    %p197 = por %p195, %p196
    %p198 = scmp.ne.s32.totalorder %s186, %s187
    %p199 = scmp.eq.s32.totalorder %s30, 1
    %p200 = por %p198, %p199
    %p202 = scmp.ne.s32.totalorder %s187, %s201
    %p203 = scmp.eq.s32.totalorder %s30, 0
    %p204 = por %p202, %p203
    %s206 = sadd.s32 %s205, 1
    %p209 = scmp.eq.s32.totalorder %s24, 1
    %p210 = scmp.ne.s32.totalorder %s205, %s207
    %p211 = scmp.eq.s32.totalorder %s24, 0
    %p212 = por %p210, %p211
    %p213 = scmp.ne.s32.totalorder %s205, %s207
    %p214 = scmp.eq.s32.totalorder %s29, 1
    %p215 = por %p213, %p214
    %p216 = scmp.ne.s32.totalorder %s207, %s208
    %p217 = scmp.eq.s32.totalorder %s29, 0
    %p218 = por %p216, %p217
    %p219 = scmp.ne.s32.totalorder %s207, %s208
    %p220 = scmp.eq.s32.totalorder %s30, 1
    %p221 = por %p219, %p220
    %p223 = scmp.ne.s32.totalorder %s208, %s222
    %p224 = scmp.eq.s32.totalorder %s30, 0
    %p225 = por %p223, %p224
    %s227 = sadd.s32 %s226, 1
    %p230 = scmp.eq.s32.totalorder %s24, 1
    %p231 = scmp.ne.s32.totalorder %s226, %s228
    %p232 = scmp.eq.s32.totalorder %s24, 0
    %p233 = por %p231, %p232
    %p234 = scmp.ne.s32.totalorder %s226, %s228
    %p235 = scmp.eq.s32.totalorder %s29, 1
    %p236 = por %p234, %p235
    %p237 = scmp.ne.s32.totalorder %s228, %s229
    %p238 = scmp.eq.s32.totalorder %s29, 0
    %p239 = por %p237, %p238
    %p240 = scmp.ne.s32.totalorder %s228, %s229
    %p241 = scmp.eq.s32.totalorder %s30, 1
    %p242 = por %p240, %p241
    %p244 = scmp.ne.s32.totalorder %s229, %s243
    %p245 = scmp.eq.s32.totalorder %s30, 0
    %p246 = por %p244, %p245
    %s248 = sadd.s32 %s247, 1
    %p251 = scmp.eq.s32.totalorder %s24, 1
    %p252 = scmp.ne.s32.totalorder %s247, %s249
    %p253 = scmp.eq.s32.totalorder %s24, 0
    %p254 = por %p252, %p253
    %p255 = scmp.ne.s32.totalorder %s247, %s249
    %p256 = scmp.eq.s32.totalorder %s29, 1
    %p257 = por %p255, %p256
    %p258 = scmp.ne.s32.totalorder %s249, %s250
    %p259 = scmp.eq.s32.totalorder %s29, 0
    %p260 = por %p258, %p259
    %p261 = scmp.ne.s32.totalorder %s249, %s250
    %p262 = scmp.eq.s32.totalorder %s30, 1
    %p263 = por %p261, %p262
    %p265 = scmp.ne.s32.totalorder %s250, %s264
    %p266 = scmp.eq.s32.totalorder %s30, 0
    %p267 = por %p265, %p266
    %s269 = sadd.s32 %s268, 1
    %p272 = scmp.eq.s32.totalorder %s24, 1
    %p273 = scmp.ne.s32.totalorder %s268, %s270
    %p274 = scmp.eq.s32.totalorder %s24, 0
    %p275 = por %p273, %p274
    %p276 = scmp.ne.s32.totalorder %s268, %s270
    %p277 = scmp.eq.s32.totalorder %s29, 1
    %p278 = por %p276, %p277
    %p279 = scmp.ne.s32.totalorder %s270, %s271
    %p280 = scmp.eq.s32.totalorder %s29, 0
    %p281 = por %p279, %p280
    %p282 = scmp.ne.s32.totalorder %s270, %s271
    %p283 = scmp.eq.s32.totalorder %s30, 1
    %p284 = por %p282, %p283
    %p286 = scmp.ne.s32.totalorder %s271, %s285
    %p287 = scmp.eq.s32.totalorder %s30, 0
    %p288 = por %p286, %p287
    %s290 = sadd.s32 %s289, 1
    %p293 = scmp.eq.s32.totalorder %s24, 1
    %p294 = scmp.ne.s32.totalorder %s289, %s291
    %p295 = scmp.eq.s32.totalorder %s24, 0
    %p296 = por %p294, %p295
    %p297 = scmp.ne.s32.totalorder %s289, %s291
    %p298 = scmp.eq.s32.totalorder %s29, 1
    %p299 = por %p297, %p298
    %p300 = scmp.ne.s32.totalorder %s291, %s292
    %p301 = scmp.eq.s32.totalorder %s29, 0
    %p302 = por %p300, %p301
    %p303 = scmp.ne.s32.totalorder %s291, %s292
    %p304 = scmp.eq.s32.totalorder %s30, 1
    %p305 = por %p303, %p304
    %p307 = scmp.ne.s32.totalorder %s292, %s306
    %p308 = scmp.eq.s32.totalorder %s30, 0
    %p309 = por %p307, %p308
    %s311 = sadd.s32 %s310, 1
    %p314 = scmp.eq.s32.totalorder %s24, 1
    %p315 = scmp.ne.s32.totalorder %s310, %s312
    %p316 = scmp.eq.s32.totalorder %s24, 0
    %p317 = por %p315, %p316
    %p318 = scmp.ne.s32.totalorder %s310, %s312
    %p319 = scmp.eq.s32.totalorder %s29, 1
    %p320 = por %p318, %p319
    %p321 = scmp.ne.s32.totalorder %s312, %s313
    %p322 = scmp.eq.s32.totalorder %s29, 0
    %p323 = por %p321, %p322
    %p324 = scmp.ne.s32.totalorder %s312, %s313
    %p325 = scmp.eq.s32.totalorder %s30, 1
    %p326 = por %p324, %p325
    %p328 = scmp.ne.s32.totalorder %s313, %s327
    %p329 = scmp.eq.s32.totalorder %s30, 0
    %p330 = por %p328, %p329
    %s332 = sadd.s32 %s331, 1
    %p335 = scmp.eq.s32.totalorder %s24, 1
    %p336 = scmp.ne.s32.totalorder %s331, %s333
    %p337 = scmp.eq.s32.totalorder %s24, 0
    %p338 = por %p336, %p337
    %p339 = scmp.ne.s32.totalorder %s331, %s333
    %p340 = scmp.eq.s32.totalorder %s29, 1
    %p341 = por %p339, %p340
    %p342 = scmp.ne.s32.totalorder %s333, %s334
    %p343 = scmp.eq.s32.totalorder %s29, 0
    %p344 = por %p342, %p343
    %p345 = scmp.ne.s32.totalorder %s333, %s334
    %p346 = scmp.eq.s32.totalorder %s30, 1
    %p347 = por %p345, %p346
    %p349 = scmp.ne.s32.totalorder %s334, %s348
    %p350 = scmp.eq.s32.totalorder %s30, 0
    %p351 = por %p349, %p350
    %s353 = sadd.s32 %s352, 1
    %p356 = scmp.eq.s32.totalorder %s24, 1
    %p357 = scmp.ne.s32.totalorder %s352, %s354
    %p358 = scmp.eq.s32.totalorder %s24, 0
    %p359 = por %p357, %p358
    %p360 = scmp.ne.s32.totalorder %s352, %s354
    %p361 = scmp.eq.s32.totalorder %s29, 1
    %p362 = por %p360, %p361
    %p363 = scmp.ne.s32.totalorder %s354, %s355
    %p364 = scmp.eq.s32.totalorder %s29, 0
    %p365 = por %p363, %p364
    %p366 = scmp.ne.s32.totalorder %s354, %s355
    %p367 = scmp.eq.s32.totalorder %s30, 1
    %p368 = por %p366, %p367
    %p370 = scmp.ne.s32.totalorder %s355, %s369
    %p371 = scmp.eq.s32.totalorder %s30, 0
    %p372 = por %p370, %p371
    %s374 = sadd.s32 %s373, 1
    %p377 = scmp.eq.s32.totalorder %s24, 1
    %p378 = scmp.ne.s32.totalorder %s373, %s375
    %p379 = scmp.eq.s32.totalorder %s24, 0
    %p380 = por %p378, %p379
    %p381 = scmp.ne.s32.totalorder %s373, %s375
    %p382 = scmp.eq.s32.totalorder %s29, 1
    %p383 = por %p381, %p382
    %p384 = scmp.ne.s32.totalorder %s375, %s376
    %p385 = scmp.eq.s32.totalorder %s29, 0
    %p386 = por %p384, %p385
    %p387 = scmp.ne.s32.totalorder %s375, %s376
    %p388 = scmp.eq.s32.totalorder %s30, 1
    %p389 = por %p387, %p388
    %p391 = scmp.ne.s32.totalorder %s376, %s390
    %p392 = scmp.eq.s32.totalorder %s30, 0
    %p393 = por %p391, %p392
    %s395 = sadd.s32 %s394, 1
    %p398 = scmp.eq.s32.totalorder %s24, 1
    %p399 = scmp.ne.s32.totalorder %s394, %s396
    %p400 = scmp.eq.s32.totalorder %s24, 0
    %p401 = por %p399, %p400
    %p402 = scmp.ne.s32.totalorder %s394, %s396
    %p403 = scmp.eq.s32.totalorder %s29, 1
    %p404 = por %p402, %p403
    %p405 = scmp.ne.s32.totalorder %s396, %s397
    %p406 = scmp.eq.s32.totalorder %s29, 0
    %p407 = por %p405, %p406
    %p408 = scmp.ne.s32.totalorder %s396, %s397
    %p409 = scmp.eq.s32.totalorder %s30, 1
    %p410 = por %p408, %p409
    %p412 = scmp.ne.s32.totalorder %s397, %s411
    %p413 = scmp.eq.s32.totalorder %s30, 0
    %p414 = por %p412, %p413
    %s415 = ssub.s32 %s24, %s31
    %p416 = scmp.eq.s32.totalorder %s415, 0
    %s418 = sadd.s32 %s417, 1
    %s419 = scalar_select %p416, %s417, %s418
    %p422 = pneg %p416
    %p423 = scmp.eq.s32.totalorder %s24, 1
    %p424 = por %p422, %p423
    %p425 = scmp.ne.s32.totalorder %s417, %s420
    %p426 = scmp.eq.s32.totalorder %s24, 0
    %p427 = por %p425, %p426
    %p428 = scmp.ne.s32.totalorder %s417, %s420
    %p429 = scmp.eq.s32.totalorder %s29, 1
    %p430 = por %p428, %p429
    %p431 = scmp.ne.s32.totalorder %s420, %s421
    %p432 = scmp.eq.s32.totalorder %s29, 0
    %p433 = por %p431, %p432
    %p434 = scmp.ne.s32.totalorder %s420, %s421
    %p435 = scmp.eq.s32.totalorder %s30, 1
    %p436 = por %p434, %p435
    %p438 = scmp.ne.s32.totalorder %s421, %s437
    %p439 = scmp.eq.s32.totalorder %s30, 0
    %p440 = por %p438, %p439
    %p441 = scmp.le.s32.totalorder 1, %s24
    %p442 = scmp.lt.s32.totalorder %s24, 3
    %p443 = pnand %p441, %p442
    %p444 = pneg %p443
    // Predicated region
    $region9: #{vision_detr_forward.7} parent=5 // pred_check
      _
    $region10: #{vision_detr_forward.7} parent=5 // pred_check_branch
      %446 = sbr.rel (%p443) target = $region12
    $region11: #{vision_detr_forward.7} parent=5 // pred_region
      %s447 = ssub.s32 %s24, 1
      // Predicated region
      $region13: #{vision_detr_forward.7} parent=11 // pred_check
        %p448 = pneg %p71
      $region14: #{vision_detr_forward.7} parent=11 // pred_check_branch
        %450 = sbr.rel (%p448) target = $region16
      $region15: #{vision_detr_forward.7} parent=11 // pred_region
        _
      $region16: #{vision_detr_forward.7} parent=11 // pred_fallthru
        _
      // Predicated region
      $region17: #{vision_detr_forward.7} parent=11 // pred_check
        %p451 = pneg %p92
      $region18: #{vision_detr_forward.7} parent=11 // pred_check_branch
        %453 = sbr.rel (%p451) target = $region20
      $region19: #{vision_detr_forward.7} parent=11 // pred_region
        _
      $region20: #{vision_detr_forward.7} parent=11 // pred_fallthru
        _
      // Predicated region
      $region21: #{vision_detr_forward.7} parent=11 // pred_check
        %p454 = pneg %p113
      $region22: #{vision_detr_forward.7} parent=11 // pred_check_branch
        %456 = sbr.rel (%p454) target = $region24
      $region23: #{vision_detr_forward.7} parent=11 // pred_region
        _
      $region24: #{vision_detr_forward.7} parent=11 // pred_fallthru
        _
      // Predicated region
      $region25: #{vision_detr_forward.7} parent=11 // pred_check
        %p457 = pneg %p134
      $region26: #{vision_detr_forward.7} parent=11 // pred_check_branch
        %459 = sbr.rel (%p457) target = $region28
      $region27: #{vision_detr_forward.7} parent=11 // pred_region
        _
      $region28: #{vision_detr_forward.7} parent=11 // pred_fallthru
        _
      // Predicated region
      $region29: #{vision_detr_forward.7} parent=11 // pred_check
        %p460 = pneg %p155
      $region30: #{vision_detr_forward.7} parent=11 // pred_check_branch
        %462 = sbr.rel (%p460) target = $region32
      $region31: #{vision_detr_forward.7} parent=11 // pred_region
        _
      $region32: #{vision_detr_forward.7} parent=11 // pred_fallthru
        _
      // Predicated region
      $region33: #{vision_detr_forward.7} parent=11 // pred_check
        %p463 = pneg %p176
      $region34: #{vision_detr_forward.7} parent=11 // pred_check_branch
        %465 = sbr.rel (%p463) target = $region36
      $region35: #{vision_detr_forward.7} parent=11 // pred_region
        _
      $region36: #{vision_detr_forward.7} parent=11 // pred_fallthru
        _
      // Predicated region
      $region37: #{vision_detr_forward.7} parent=11 // pred_check
        %p466 = pneg %p197
      $region38: #{vision_detr_forward.7} parent=11 // pred_check_branch
        %468 = sbr.rel (%p466) target = $region40
      $region39: #{vision_detr_forward.7} parent=11 // pred_region
        _
      $region40: #{vision_detr_forward.7} parent=11 // pred_fallthru
        _
      // Predicated region
      $region41: #{vision_detr_forward.7} parent=11 // pred_check
        %p469 = pneg %p218
      $region42: #{vision_detr_forward.7} parent=11 // pred_check_branch
        %471 = sbr.rel (%p469) target = $region44
      $region43: #{vision_detr_forward.7} parent=11 // pred_region
        _
      $region44: #{vision_detr_forward.7} parent=11 // pred_fallthru
        _
      // Predicated region
      $region45: #{vision_detr_forward.7} parent=11 // pred_check
        %p472 = pneg %p239
      $region46: #{vision_detr_forward.7} parent=11 // pred_check_branch
        %474 = sbr.rel (%p472) target = $region48
      $region47: #{vision_detr_forward.7} parent=11 // pred_region
        _
      $region48: #{vision_detr_forward.7} parent=11 // pred_fallthru
        _
      // Predicated region
      $region49: #{vision_detr_forward.7} parent=11 // pred_check
        %p475 = pneg %p260
      $region50: #{vision_detr_forward.7} parent=11 // pred_check_branch
        %477 = sbr.rel (%p475) target = $region52
      $region51: #{vision_detr_forward.7} parent=11 // pred_region
        _
      $region52: #{vision_detr_forward.7} parent=11 // pred_fallthru
        _
      // Predicated region
      $region53: #{vision_detr_forward.7} parent=11 // pred_check
        %p478 = pneg %p281
      $region54: #{vision_detr_forward.7} parent=11 // pred_check_branch
        %480 = sbr.rel (%p478) target = $region56
      $region55: #{vision_detr_forward.7} parent=11 // pred_region
        _
      $region56: #{vision_detr_forward.7} parent=11 // pred_fallthru
        _
      // Predicated region
      $region57: #{vision_detr_forward.7} parent=11 // pred_check
        %p481 = pneg %p302
      $region58: #{vision_detr_forward.7} parent=11 // pred_check_branch
        %483 = sbr.rel (%p481) target = $region60
      $region59: #{vision_detr_forward.7} parent=11 // pred_region
        _
      $region60: #{vision_detr_forward.7} parent=11 // pred_fallthru
        _
      // Predicated region
      $region61: #{vision_detr_forward.7} parent=11 // pred_check
        %p484 = pneg %p323
      $region62: #{vision_detr_forward.7} parent=11 // pred_check_branch
        %486 = sbr.rel (%p484) target = $region64
      $region63: #{vision_detr_forward.7} parent=11 // pred_region
        _
      $region64: #{vision_detr_forward.7} parent=11 // pred_fallthru
        _
      // Predicated region
      $region65: #{vision_detr_forward.7} parent=11 // pred_check
        %p487 = pneg %p344
      $region66: #{vision_detr_forward.7} parent=11 // pred_check_branch
        %489 = sbr.rel (%p487) target = $region68
      $region67: #{vision_detr_forward.7} parent=11 // pred_region
        _
      $region68: #{vision_detr_forward.7} parent=11 // pred_fallthru
        _
      // Predicated region
      $region69: #{vision_detr_forward.7} parent=11 // pred_check
        %p490 = pneg %p365
      $region70: #{vision_detr_forward.7} parent=11 // pred_check_branch
        %492 = sbr.rel (%p490) target = $region72
      $region71: #{vision_detr_forward.7} parent=11 // pred_region
        _
      $region72: #{vision_detr_forward.7} parent=11 // pred_fallthru
        _
      // Predicated region
      $region73: #{vision_detr_forward.7} parent=11 // pred_check
        %p493 = pneg %p386
      $region74: #{vision_detr_forward.7} parent=11 // pred_check_branch
        %495 = sbr.rel (%p493) target = $region76
      $region75: #{vision_detr_forward.7} parent=11 // pred_region
        _
      $region76: #{vision_detr_forward.7} parent=11 // pred_fallthru
        _
      // Predicated region
      $region77: #{vision_detr_forward.7} parent=11 // pred_check
        %p496 = pneg %p407
      $region78: #{vision_detr_forward.7} parent=11 // pred_check_branch
        %498 = sbr.rel (%p496) target = $region80
      $region79: #{vision_detr_forward.7} parent=11 // pred_region
        _
      $region80: #{vision_detr_forward.7} parent=11 // pred_fallthru
        _
    $region12: #{vision_detr_forward.7} parent=5 // pred_fallthru
      _
    %p499 = scmp.lt.s32.totalorder %s24, 2
    // Predicated region
    $region81: #{vision_detr_forward.7} parent=5 // pred_check
      %p500 = pneg %p499
    $region82: #{vision_detr_forward.7} parent=5 // pred_check_branch
      %502 = sbr.rel (%p500) target = $region84
    $region83: #{vision_detr_forward.7} parent=5 // pred_region
      // Predicated region
      $region85: #{vision_detr_forward.7} parent=83 // pred_check
        %p503 = pneg %p44
      $region86: #{vision_detr_forward.7} parent=83 // pred_check_branch
        %505 = sbr.rel (%p503) target = $region88
      $region87: #{vision_detr_forward.7} parent=83 // pred_region
        %p506 = scmp.lt.s32.totalorder %s24, 1
        %s507 = scalar_select %p506, %s24, 1
        %s508 = smul.addr %s507, 2
        %s509 = smul.addr %s508, 8
        %s510 = scalar_lea.vmem %s0, %s509
      $region88: #{vision_detr_forward.7} parent=83 // pred_fallthru
        _
    $region84: #{vision_detr_forward.7} parent=5 // pred_fallthru
      _
    %p511 = scmp.le.s32.totalorder 1, %s24
    %p512 = scmp.lt.s32.totalorder %s24, 3
    %p513 = pnand %p511, %p512
    %p514 = pneg %p513
    // Predicated region
    $region89: #{vision_detr_forward.7} parent=5 // pred_check
      _
    $region90: #{vision_detr_forward.7} parent=5 // pred_check_branch
      %516 = sbr.rel (%p513) target = $region92
    $region91: #{vision_detr_forward.7} parent=5 // pred_region
      %s517 = ssub.s32 %s24, 1
      %p518 = scmp.lt.s32.totalorder %s29, 1
      %s519 = scalar_select %p518, %s29, 1
      %s520 = smul.addr %s519, 2
      %s521 = smul.addr %s520, 8
      %s522 = scalar_lea.vmem %s0, %s521
      %p523 = pneg %p50
      %p524 = pneg %p47
      %p525 = pneg %p71
      %p526 = pneg %p68
      %p527 = pneg %p92
      %p528 = pneg %p89
      %p529 = pneg %p113
      %p530 = pneg %p110
      %p531 = pneg %p134
      %p532 = pneg %p131
      %p533 = pneg %p155
      %p534 = pneg %p152
      %p535 = pneg %p176
      %p536 = pneg %p173
      %p537 = pneg %p197
      %p538 = pneg %p194
      %p539 = pneg %p218
      %p540 = pneg %p215
      %p541 = pneg %p239
      %p542 = pneg %p236
      %p543 = pneg %p260
      %p544 = pneg %p257
      %p545 = pneg %p281
      %p546 = pneg %p278
      %p547 = pneg %p302
      %p548 = pneg %p299
      %p549 = pneg %p323
      %p550 = pneg %p320
      %p551 = pneg %p344
      %p552 = pneg %p341
      %p553 = pneg %p365
      %p554 = pneg %p362
      %p555 = pneg %p386
      %p556 = pneg %p383
      %p557 = pneg %p407
      %p558 = pneg %p404
      %p559 = pneg %p433
      %p560 = pneg %p430
      %p561 = scmp.lt.s32.totalorder %s29, 1
      %s562 = scalar_select %p561, %s29, 1
      %s563 = smul.addr %s562, 2
      %s564 = smul.addr %s563, 8
      %s565 = scalar_lea.vmem %s18, %s564
      %p566 = scmp.lt.s32.totalorder %s29, 1
      %s567 = scalar_select %p566, %s29, 1
      %s568 = smul.addr %s567, 2
      %s569 = smul.addr %s568, 8
      %s570 = scalar_lea.vmem %s0, %s569
      %p571 = scmp.lt.s32.totalorder %s29, 1
      %s572 = scalar_select %p571, %s29, 1
      %s573 = smul.addr %s572, 2
      %s574 = smul.addr %s573, 8
      %s575 = scalar_lea.vmem %s18, %s574
      %v577 = vld [vmem:[%s570] sm:$0xff]
      %v578 = vld [vmem:[%s570 + $0x8] sm:$0xff]
      %v579 = vld [vmem:[%s1] sm:$0xff]
      %v580 = vld [vmem:[%s1 + $0x8] sm:$0xff]
      %v581 = vadd.f32 %v577, %v579
      %v582 = vadd.f32 %v578, %v580
      %v583 = vpack.c.bf16 %v582, %v581
      %v584 = vpack.c.bf16 %v578, %v577
      %v585 = vld [vmem:[%s2] sm:$0xf]
      %v586 = vld [vmem:[%s2 + $0x4] sm:$0xf]
      %v587 = vld [vmem:[%s2 + $0x8] sm:$0xf]
      %v588 = vld [vmem:[%s2 + $0xc] sm:$0xf]
      %v589 = vld [vmem:[%s3] sm:$0x1]
      %v591 = vlaneseq
      %v592 = vshrl.u32 %v591, 7
      %v593 = vsub.s32 0, %v592
      %v594 = vrot.slane %v589, %v593
      %v600 = vunpack.c.l.b16 %v585
      %v601 = vunpack.c.l.b16 %v586
      %v602 = vunpack.c.l.b16 %v587
      %v603 = vunpack.c.l.b16 %v588
      %v604 = vpack.c.b16 %v601, %v600
      %v605 = vpack.c.b16 %v603, %v602
      %vm608 = vcmask 261120
      %v610 = vsel %vm608, %v583, 0
      %612 = vmatprep.subr.bf16.mxu0 0
      %613 = vmatpush1.bf16.msra.mxu0 %v604
      %614 = vmatprep.subr.bf16.mxu0 0
      %615 = vmatpush1.bf16.msra.mxu0 %v605
      %616 = vmatprep.subr.bf16.mxu0 0
      %617 = vmatpush1.bf16.msra.mxu0 0
      %618 = vmatprep.subr.bf16.mxu0 0
      %619 = vmatpush1.bf16.msra.mxu0 0
      %620 = vmatprep.subr.bf16.mxu0 0
      %621 = vmatpush1.bf16.msra.mxu0 0
      %622 = vmatprep.subr.bf16.mxu0 0
      %623 = vmatpush1.bf16.msra.mxu0 0
      %624 = vmatprep.subr.bf16.mxu0 0
      %625 = vmatpush1.bf16.msra.mxu0 0
      %626 = vmatprep.subr.bf16.mxu0 0
      %627 = vmatpush1.bf16.msra.mxu0 0
      %628 = vmatprep.subr.bf16.mxu0 0
      %629 = vmatpush1.bf16.msra.mxu0 0
      %630 = vmatprep.subr.bf16.mxu0 0
      %631 = vmatpush1.bf16.msra.mxu0 0
      %632 = vmatprep.subr.bf16.mxu0 0
      %633 = vmatpush1.bf16.msra.mxu0 0
      %634 = vmatprep.subr.bf16.mxu0 0
      %635 = vmatpush1.bf16.msra.mxu0 0
      %636 = vmatprep.subr.bf16.mxu0 0
      %637 = vmatpush1.bf16.msra.mxu0 0
      %638 = vmatprep.subr.bf16.mxu0 0
      %639 = vmatpush1.bf16.msra.mxu0 0
      %640 = vmatprep.subr.bf16.mxu0 0
      %641 = vmatpush1.bf16.msra.mxu0 0
      %642 = vmatprep.subr.bf16.mxu0 0
      %643 = vmatpush1.bf16.msra.mxu0 0
      %644 = vmatprep.mubr.bf16.mxu0 0
      %645 = vmatmul.mubr.bf16.gmra.mrb[0].mxu0 %v610
      %v646 = vpop.f32.mrb[0].mxu0
      %v647 = vadd.f32 %v594, %v646
      %v648 = vpop.f32.mrb[0].mxu0
      %v649 = vpop.f32.mrb[0].mxu0
      %v650 = vadd.f32 %v594, %v649
      %v651 = vpop.f32.mrb[0].mxu0
      %652 = vdwg.mxu0
      %v653 = vld [vmem:[%s4] sm:$0xf]
      %v654 = vld [vmem:[%s4 + $0x4] sm:$0xf]
      %v655 = vld [vmem:[%s4 + $0x8] sm:$0xf]
      %v656 = vld [vmem:[%s4 + $0xc] sm:$0xf]
      %v657 = vld [vmem:[%s5] sm:$0x1]
      %v659 = vlaneseq
      %v660 = vshrl.u32 %v659, 7
      %v661 = vsub.s32 0, %v660
      %v662 = vrot.slane %v657, %v661
      %v668 = vunpack.c.l.b16 %v653
      %v669 = vunpack.c.l.b16 %v654
      %v670 = vunpack.c.l.b16 %v655
      %v671 = vunpack.c.l.b16 %v656
      %v672 = vpack.c.b16 %v669, %v668
      %v673 = vpack.c.b16 %v671, %v670
      %676 = vmatprep.subr.bf16.mxu0 0
      %677 = vmatpush1.bf16.msra.mxu0 %v672
      %678 = vmatprep.subr.bf16.mxu0 0
      %679 = vmatpush1.bf16.msra.mxu0 %v673
      %680 = vmatprep.subr.bf16.mxu0 0
      %681 = vmatpush1.bf16.msra.mxu0 0
      %682 = vmatprep.subr.bf16.mxu0 0
      %683 = vmatpush1.bf16.msra.mxu0 0
      %684 = vmatprep.subr.bf16.mxu0 0
      %685 = vmatpush1.bf16.msra.mxu0 0
      %686 = vmatprep.subr.bf16.mxu0 0
      %687 = vmatpush1.bf16.msra.mxu0 0
      %688 = vmatprep.subr.bf16.mxu0 0
      %689 = vmatpush1.bf16.msra.mxu0 0
      %690 = vmatprep.subr.bf16.mxu0 0
      %691 = vmatpush1.bf16.msra.mxu0 0
      %692 = vmatprep.subr.bf16.mxu0 0
      %693 = vmatpush1.bf16.msra.mxu0 0
      %694 = vmatprep.subr.bf16.mxu0 0
      %695 = vmatpush1.bf16.msra.mxu0 0
      %696 = vmatprep.subr.bf16.mxu0 0
      %697 = vmatpush1.bf16.msra.mxu0 0
      %698 = vmatprep.subr.bf16.mxu0 0
      %699 = vmatpush1.bf16.msra.mxu0 0
      %700 = vmatprep.subr.bf16.mxu0 0
      %701 = vmatpush1.bf16.msra.mxu0 0
      %702 = vmatprep.subr.bf16.mxu0 0
      %703 = vmatpush1.bf16.msra.mxu0 0
      %704 = vmatprep.subr.bf16.mxu0 0
      %705 = vmatpush1.bf16.msra.mxu0 0
      %706 = vmatprep.subr.bf16.mxu0 0
      %707 = vmatpush1.bf16.msra.mxu0 0
      %708 = vmatprep.mubr.bf16.mxu0 0
      %709 = vmatmul.mubr.bf16.gmra.mrb[0].mxu0 %v610
      %v710 = vpop.f32.mrb[0].mxu0
      %v711 = vadd.f32 %v662, %v710
      %v712 = vpop.f32.mrb[0].mxu0
      %v713 = vpop.f32.mrb[0].mxu0
      %v714 = vadd.f32 %v662, %v713
      %v715 = vpop.f32.mrb[0].mxu0
      %716 = vdwg.mxu0
      %v717 = vld [vmem:[%s6] sm:$0xf]
      %v718 = vld [vmem:[%s6 + $0x4] sm:$0xf]
      %v719 = vld [vmem:[%s6 + $0x8] sm:$0xf]
      %v720 = vld [vmem:[%s6 + $0xc] sm:$0xf]
      %v721 = vld [vmem:[%s7] sm:$0x1]
      %v723 = vlaneseq
      %v724 = vshrl.u32 %v723, 7
      %v725 = vsub.s32 0, %v724
      %v726 = vrot.slane %v721, %v725
      %v732 = vunpack.c.l.b16 %v717
      %v733 = vunpack.c.l.b16 %v718
      %v734 = vunpack.c.l.b16 %v719
      %v735 = vunpack.c.l.b16 %v720
      %v736 = vpack.c.b16 %v733, %v732
      %v737 = vpack.c.b16 %v735, %v734
      %v741 = vsel %vm608, %v584, 0
      %743 = vmatprep.subr.bf16.mxu0 0
      %744 = vmatpush1.bf16.msra.mxu0 %v736
      %745 = vmatprep.subr.bf16.mxu0 0
      %746 = vmatpush1.bf16.msra.mxu0 %v737
      %747 = vmatprep.subr.bf16.mxu0 0
      %748 = vmatpush1.bf16.msra.mxu0 0
      %749 = vmatprep.subr.bf16.mxu0 0
      %750 = vmatpush1.bf16.msra.mxu0 0
      %751 = vmatprep.subr.bf16.mxu0 0
      %752 = vmatpush1.bf16.msra.mxu0 0
      %753 = vmatprep.subr.bf16.mxu0 0
      %754 = vmatpush1.bf16.msra.mxu0 0
      %755 = vmatprep.subr.bf16.mxu0 0
      %756 = vmatpush1.bf16.msra.mxu0 0
      %757 = vmatprep.subr.bf16.mxu0 0
      %758 = vmatpush1.bf16.msra.mxu0 0
      %759 = vmatprep.subr.bf16.mxu0 0
      %760 = vmatpush1.bf16.msra.mxu0 0
      %761 = vmatprep.subr.bf16.mxu0 0
      %762 = vmatpush1.bf16.msra.mxu0 0
      %763 = vmatprep.subr.bf16.mxu0 0
      %764 = vmatpush1.bf16.msra.mxu0 0
      %765 = vmatprep.subr.bf16.mxu0 0
      %766 = vmatpush1.bf16.msra.mxu0 0
      %767 = vmatprep.subr.bf16.mxu0 0
      %768 = vmatpush1.bf16.msra.mxu0 0
      %769 = vmatprep.subr.bf16.mxu0 0
      %770 = vmatpush1.bf16.msra.mxu0 0
      %771 = vmatprep.subr.bf16.mxu0 0
      %772 = vmatpush1.bf16.msra.mxu0 0
      %773 = vmatprep.subr.bf16.mxu0 0
      %774 = vmatpush1.bf16.msra.mxu0 0
      %775 = vmatprep.mubr.bf16.mxu0 0
      %776 = vmatmul.mubr.bf16.gmra.mrb[0].mxu0 %v741
      %v777 = vpop.f32.mrb[0].mxu0
      %v778 = vadd.f32 %v726, %v777
      %v779 = vpop.f32.mrb[0].mxu0
      %v780 = vpop.f32.mrb[0].mxu0
      %v781 = vadd.f32 %v726, %v780
      %v782 = vpop.f32.mrb[0].mxu0
      %783 = vdwg.mxu0
      %v784 = vpack.c.bf16 %v650, %v647
      %v785 = vpack.c.bf16 %v714, %v711
      %vm786 = vcmask 64512
      %v788 = vsel %vm786, %v784, 0
      %v791 = vsel %vm786, %v785, 0
      %793 = vmatprep.subr.bf16.mxu0 0
      %794 = vmatpush1.bf16.xpose.msra.mxu0 %v791
      %795 = vmatprep.subr.bf16.mxu0 0
      %796 = vmatpush1.bf16.xpose.msra.mxu0 0
      %797 = vmatprep.subr.bf16.mxu0 0
      %798 = vmatpush1.bf16.xpose.msra.mxu0 0
      %799 = vmatprep.subr.bf16.mxu0 0
      %800 = vmatpush1.bf16.xpose.msra.mxu0 0
      %801 = vmatprep.subr.bf16.mxu0 0
      %802 = vmatpush1.bf16.xpose.msra.mxu0 0
      %803 = vmatprep.subr.bf16.mxu0 0
      %804 = vmatpush1.bf16.xpose.msra.mxu0 0
      %805 = vmatprep.subr.bf16.mxu0 0
      %806 = vmatpush1.bf16.xpose.msra.mxu0 0
      %807 = vmatprep.subr.bf16.mxu0 0
      %808 = vmatpush1.bf16.xpose.msra.mxu0 0
      %809 = vmatprep.subr.bf16.mxu0 0
      %810 = vmatpush1.bf16.xpose.msra.mxu0 0
      %811 = vmatprep.subr.bf16.mxu0 0
      %812 = vmatpush1.bf16.xpose.msra.mxu0 0
      %813 = vmatprep.subr.bf16.mxu0 0
      %814 = vmatpush1.bf16.xpose.msra.mxu0 0
      %815 = vmatprep.subr.bf16.mxu0 0
      %816 = vmatpush1.bf16.xpose.msra.mxu0 0
      %817 = vmatprep.subr.bf16.mxu0 0
      %818 = vmatpush1.bf16.xpose.msra.mxu0 0
      %819 = vmatprep.subr.bf16.mxu0 0
      %820 = vmatpush1.bf16.xpose.msra.mxu0 0
      %821 = vmatprep.subr.bf16.mxu0 0
      %822 = vmatpush1.bf16.xpose.msra.mxu0 0
      %823 = vmatprep.subr.bf16.mxu0 0
      %824 = vmatpush1.bf16.xpose.msra.mxu0 0
      %825 = vmatprep.mubr.bf16.mxu0 0
      %826 = vmatmul.mubr.bf16.gmra.mrb[0].mxu0 %v788
      %v827 = vpop.f32.mrb[0].mxu0
      %v828 = vadd.f32 0.0, %v827
      %v829 = vpop.f32.mrb[0].mxu0
      %v830 = vpop.f32.mrb[0].mxu0
      %v831 = vadd.f32 0.0, %v830
      %v832 = vpop.f32.mrb[0].mxu0
      %833 = vdwg.mxu0
      %v834 = vmul.f32 %v828, 0.35355338
      %v835 = vmul.f32 %v831, 0.35355338
      %vm836 = vcmask 130048
      %v837 = vsel %vm836, %v834, -inf
      %838 = vmax.xlane.f32.xlu0 %v837
      %v839 = vpop.xlane.xlu0 %838
      %v840 = vsel %vm836, %v835, -inf
      %841 = vmax.xlane.f32.xlu0 %v840
      %v842 = vpop.xlane.xlu0 %841
      %v843 = vsub.f32 %v834, %v839
      %v844 = vsub.f32 %v835, %v842
      %v845 = vmul.f32 %v843, 1.442695
      %v846 = vpow.pop %v845
      %v847 = vmul.f32 %v844, 1.442695
      %v848 = vpow.pop %v847
      %v849 = vsel %vm836, %v846, 0.0
      %850 = vadd.xlane.f32.xlu0 %v849
      %v851 = vpop.xlane.xlu0 %850
      %v852 = vsel %vm836, %v848, 0.0
      %853 = vadd.xlane.f32.xlu0 %v852
      %v854 = vpop.xlane.xlu0 %853
      %v855 = vrcp.pop %v851
      %v856 = vmul.f32 %v846, %v855
      %v857 = vrcp.pop %v854
      %v858 = vmul.f32 %v848, %v857
      %v859 = vpack.c.bf16 %v858, %v856
      %v860 = vpack.c.bf16 %v781, %v778
      %v862 = vsel %vm836, %v859, 0
      %864 = vmatprep.subr.bf16.mxu0 0
      %865 = vmatpush1.bf16.msra.mxu0 %v860
      %866 = vmatprep.subr.bf16.mxu0 0
      %867 = vmatpush1.bf16.msra.mxu0 0
      %868 = vmatprep.subr.bf16.mxu0 0
      %869 = vmatpush1.bf16.msra.mxu0 0
      %870 = vmatprep.subr.bf16.mxu0 0
      %871 = vmatpush1.bf16.msra.mxu0 0
      %872 = vmatprep.subr.bf16.mxu0 0
      %873 = vmatpush1.bf16.msra.mxu0 0
      %874 = vmatprep.subr.bf16.mxu0 0
      %875 = vmatpush1.bf16.msra.mxu0 0
      %876 = vmatprep.subr.bf16.mxu0 0
      %877 = vmatpush1.bf16.msra.mxu0 0
      %878 = vmatprep.subr.bf16.mxu0 0
      %879 = vmatpush1.bf16.msra.mxu0 0
      %880 = vmatprep.subr.bf16.mxu0 0
      %881 = vmatpush1.bf16.msra.mxu0 0
      %882 = vmatprep.subr.bf16.mxu0 0
      %883 = vmatpush1.bf16.msra.mxu0 0
      %884 = vmatprep.subr.bf16.mxu0 0
      %885 = vmatpush1.bf16.msra.mxu0 0
      %886 = vmatprep.subr.bf16.mxu0 0
      %887 = vmatpush1.bf16.msra.mxu0 0
      %888 = vmatprep.subr.bf16.mxu0 0
      %889 = vmatpush1.bf16.msra.mxu0 0
      %890 = vmatprep.subr.bf16.mxu0 0
      %891 = vmatpush1.bf16.msra.mxu0 0
      %892 = vmatprep.subr.bf16.mxu0 0
      %893 = vmatpush1.bf16.msra.mxu0 0
      %894 = vmatprep.subr.bf16.mxu0 0
      %895 = vmatpush1.bf16.msra.mxu0 0
      %896 = vmatprep.mubr.bf16.mxu0 0
      %897 = vmatmul.mubr.bf16.gmra.mrb[0].mxu0 %v862
      %v898 = vpop.f32.mrb[0].mxu0
      %v899 = vadd.f32 0.0, %v898
      %v900 = vpop.f32.mrb[0].mxu0
      %v901 = vpop.f32.mrb[0].mxu0
      %v902 = vadd.f32 0.0, %v901
      %v903 = vpop.f32.mrb[0].mxu0
      %904 = vdwg.mxu0
      %v905 = vpack.c.bf16 %v902, %v899
      %v906 = vld [vmem:[%s8] sm:$0xf]
      %s907 = scalar_lea.vmem %s2, 16
      %v908 = vld [vmem:[%s907] sm:$0xf]
      %v909 = vld [vmem:[%s907 + $0x4] sm:$0xf]
      %v910 = vld [vmem:[%s907 + $0x8] sm:$0xf]
      %v911 = vld [vmem:[%s907 + $0xc] sm:$0xf]
      %s912 = scalar_lea.vmem %s3, 1
      %v913 = vld [vmem:[%s912] sm:$0x1]
      %v915 = vlaneseq
      %v916 = vshrl.u32 %v915, 7
      %v917 = vsub.s32 0, %v916
      %v918 = vrot.slane %v913, %v917
      %v924 = vunpack.c.l.b16 %v908
      %v925 = vunpack.c.l.b16 %v909
      %v926 = vunpack.c.l.b16 %v910
      %v927 = vunpack.c.l.b16 %v911
      %v928 = vpack.c.b16 %v925, %v924
      %v929 = vpack.c.b16 %v927, %v926
      %932 = vmatprep.subr.bf16.mxu0 0
      %933 = vmatpush1.bf16.msra.mxu0 %v928
      %934 = vmatprep.subr.bf16.mxu0 0
      %935 = vmatpush1.bf16.msra.mxu0 %v929
      %936 = vmatprep.subr.bf16.mxu0 0
      %937 = vmatpush1.bf16.msra.mxu0 0
      %938 = vmatprep.subr.bf16.mxu0 0
      %939 = vmatpush1.bf16.msra.mxu0 0
      %940 = vmatprep.subr.bf16.mxu0 0
      %941 = vmatpush1.bf16.msra.mxu0 0
      %942 = vmatprep.subr.bf16.mxu0 0
      %943 = vmatpush1.bf16.msra.mxu0 0
      %944 = vmatprep.subr.bf16.mxu0 0
      %945 = vmatpush1.bf16.msra.mxu0 0
      %946 = vmatprep.subr.bf16.mxu0 0
      %947 = vmatpush1.bf16.msra.mxu0 0
      %948 = vmatprep.subr.bf16.mxu0 0
      %949 = vmatpush1.bf16.msra.mxu0 0
      %950 = vmatprep.subr.bf16.mxu0 0
      %951 = vmatpush1.bf16.msra.mxu0 0
      %952 = vmatprep.subr.bf16.mxu0 0
      %953 = vmatpush1.bf16.msra.mxu0 0
      %954 = vmatprep.subr.bf16.mxu0 0
      %955 = vmatpush1.bf16.msra.mxu0 0
      %956 = vmatprep.subr.bf16.mxu0 0
      %957 = vmatpush1.bf16.msra.mxu0 0
      %958 = vmatprep.subr.bf16.mxu0 0
      %959 = vmatpush1.bf16.msra.mxu0 0
      %960 = vmatprep.subr.bf16.mxu0 0
      %961 = vmatpush1.bf16.msra.mxu0 0
      %962 = vmatprep.subr.bf16.mxu0 0
      %963 = vmatpush1.bf16.msra.mxu0 0
      %964 = vmatprep.mubr.bf16.mxu0 0
      %965 = vmatmul.mubr.bf16.gmra.mrb[0].mxu0 %v610
      %v966 = vpop.f32.mrb[0].mxu0
      %v967 = vadd.f32 %v918, %v966
      %v968 = vpop.f32.mrb[0].mxu0
      %v969 = vpop.f32.mrb[0].mxu0
      %v970 = vadd.f32 %v918, %v969
      %v971 = vpop.f32.mrb[0].mxu0
      %972 = vdwg.mxu0
      %s973 = scalar_lea.vmem %s4, 16
      %v974 = vld [vmem:[%s973] sm:$0xf]
      %v975 = vld [vmem:[%s973 + $0x4] sm:$0xf]
      %v976 = vld [vmem:[%s973 + $0x8] sm:$0xf]
      %v977 = vld [vmem:[%s973 + $0xc] sm:$0xf]
      %s978 = scalar_lea.vmem %s5, 1
      %v979 = vld [vmem:[%s978] sm:$0x1]
      %v981 = vlaneseq
      %v982 = vshrl.u32 %v981, 7
      %v983 = vsub.s32 0, %v982
      %v984 = vrot.slane %v979, %v983
      %v990 = vunpack.c.l.b16 %v974
      %v991 = vunpack.c.l.b16 %v975
      %v992 = vunpack.c.l.b16 %v976
      %v993 = vunpack.c.l.b16 %v977
      %v994 = vpack.c.b16 %v991, %v990
      %v995 = vpack.c.b16 %v993, %v992
      %998 = vmatprep.subr.bf16.mxu0 0
      %999 = vmatpush1.bf16.msra.mxu0 %v994
      %1000 = vmatprep.subr.bf16.mxu0 0
      %1001 = vmatpush1.bf16.msra.mxu0 %v995
      %1002 = vmatprep.subr.bf16.mxu0 0
      %1003 = vmatpush1.bf16.msra.mxu0 0
      %1004 = vmatprep.subr.bf16.mxu0 0
      %1005 = vmatpush1.bf16.msra.mxu0 0
      %1006 = vmatprep.subr.bf16.mxu0 0
      %1007 = vmatpush1.bf16.msra.mxu0 0
      %1008 = vmatprep.subr.bf16.mxu0 0
      %1009 = vmatpush1.bf16.msra.mxu0 0
      %1010 = vmatprep.subr.bf16.mxu0 0
      %1011 = vmatpush1.bf16.msra.mxu0 0
      %1012 = vmatprep.subr.bf16.mxu0 0
      %1013 = vmatpush1.bf16.msra.mxu0 0
      %1014 = vmatprep.subr.bf16.mxu0 0
      %1015 = vmatpush1.bf16.msra.mxu0 0
      %1016 = vmatprep.subr.bf16.mxu0 0
      %1017 = vmatpush1.bf16.msra.mxu0 0
      %1018 = vmatprep.subr.bf16.mxu0 0
      %1019 = vmatpush1.bf16.msra.mxu0 0
      %1020 = vmatprep.subr.bf16.mxu0 0
      %1021 = vmatpush1.bf16.msra.mxu0 0
      %1022 = vmatprep.subr.bf16.mxu0 0
      %1023 = vmatpush1.bf16.msra.mxu0 0
      %1024 = vmatprep.subr.bf16.mxu0 0
      %1025 = vmatpush1.bf16.msra.mxu0 0
      %1026 = vmatprep.subr.bf16.mxu0 0
      %1027 = vmatpush1.bf16.msra.mxu0 0
      %1028 = vmatprep.subr.bf16.mxu0 0
      %1029 = vmatpush1.bf16.msra.mxu0 0
      %1030 = vmatprep.mubr.bf16.mxu0 0
      %1031 = vmatmul.mubr.bf16.gmra.mrb[0].mxu0 %v610
      %v1032 = vpop.f32.mrb[0].mxu0
      %v1033 = vadd.f32 %v984, %v1032
      %v1034 = vpop.f32.mrb[0].mxu0
      %v1035 = vpop.f32.mrb[0].mxu0
      %v1036 = vadd.f32 %v984, %v1035
      %v1037 = vpop.f32.mrb[0].mxu0
      %1038 = vdwg.mxu0
      %s1039 = scalar_lea.vmem %s6, 16
      %v1040 = vld [vmem:[%s1039] sm:$0xf]
      %v1041 = vld [vmem:[%s1039 + $0x4] sm:$0xf]
      %v1042 = vld [vmem:[%s1039 + $0x8] sm:$0xf]
      %v1043 = vld [vmem:[%s1039 + $0xc] sm:$0xf]
      %s1044 = scalar_lea.vmem %s7, 1
      %v1045 = vld [vmem:[%s1044] sm:$0x1]
      %v1047 = vlaneseq
      %v1048 = vshrl.u32 %v1047, 7
      %v1049 = vsub.s32 0, %v1048
      %v1050 = vrot.slane %v1045, %v1049
      %v1056 = vunpack.c.l.b16 %v1040
      %v1057 = vunpack.c.l.b16 %v1041
      %v1058 = vunpack.c.l.b16 %v1042
      %v1059 = vunpack.c.l.b16 %v1043
      %v1060 = vpack.c.b16 %v1057, %v1056
      %v1061 = vpack.c.b16 %v1059, %v1058
      %1064 = vmatprep.subr.bf16.mxu0 0
      %1065 = vmatpush1.bf16.msra.mxu0 %v1060
      %1066 = vmatprep.subr.bf16.mxu0 0
      %1067 = vmatpush1.bf16.msra.mxu0 %v1061
      %1068 = vmatprep.subr.bf16.mxu0 0
      %1069 = vmatpush1.bf16.msra.mxu0 0
      %1070 = vmatprep.subr.bf16.mxu0 0
      %1071 = vmatpush1.bf16.msra.mxu0 0
      %1072 = vmatprep.subr.bf16.mxu0 0
      %1073 = vmatpush1.bf16.msra.mxu0 0
      %1074 = vmatprep.subr.bf16.mxu0 0
      %1075 = vmatpush1.bf16.msra.mxu0 0
      %1076 = vmatprep.subr.bf16.mxu0 0
      %1077 = vmatpush1.bf16.msra.mxu0 0
      %1078 = vmatprep.subr.bf16.mxu0 0
      %1079 = vmatpush1.bf16.msra.mxu0 0
      %1080 = vmatprep.subr.bf16.mxu0 0
      %1081 = vmatpush1.bf16.msra.mxu0 0
      %1082 = vmatprep.subr.bf16.mxu0 0
      %1083 = vmatpush1.bf16.msra.mxu0 0
      %1084 = vmatprep.subr.bf16.mxu0 0
      %1085 = vmatpush1.bf16.msra.mxu0 0
      %1086 = vmatprep.subr.bf16.mxu0 0
      %1087 = vmatpush1.bf16.msra.mxu0 0
      %1088 = vmatprep.subr.bf16.mxu0 0
      %1089 = vmatpush1.bf16.msra.mxu0 0
      %1090 = vmatprep.subr.bf16.mxu0 0
      %1091 = vmatpush1.bf16.msra.mxu0 0
      %1092 = vmatprep.subr.bf16.mxu0 0
      %1093 = vmatpush1.bf16.msra.mxu0 0
      %1094 = vmatprep.subr.bf16.mxu0 0
      %1095 = vmatpush1.bf16.msra.mxu0 0
      %1096 = vmatprep.mubr.bf16.mxu0 0
      %1097 = vmatmul.mubr.bf16.gmra.mrb[0].mxu0 %v741
      %v1098 = vpop.f32.mrb[0].mxu0
      %v1099 = vadd.f32 %v1050, %v1098
      %v1100 = vpop.f32.mrb[0].mxu0
      %v1101 = vpop.f32.mrb[0].mxu0
      %v1102 = vadd.f32 %v1050, %v1101
      %v1103 = vpop.f32.mrb[0].mxu0
      %1104 = vdwg.mxu0
      %v1105 = vpack.c.bf16 %v970, %v967
      %v1106 = vpack.c.bf16 %v1036, %v1033
      %v1108 = vsel %vm786, %v1105, 0
      %v1111 = vsel %vm786, %v1106, 0
      %1113 = vmatprep.subr.bf16.mxu0 0
      %1114 = vmatpush1.bf16.xpose.msra.mxu0 %v1111
      %1115 = vmatprep.subr.bf16.mxu0 0
      %1116 = vmatpush1.bf16.xpose.msra.mxu0 0
      %1117 = vmatprep.subr.bf16.mxu0 0
      %1118 = vmatpush1.bf16.xpose.msra.mxu0 0
      %1119 = vmatprep.subr.bf16.mxu0 0
      %1120 = vmatpush1.bf16.xpose.msra.mxu0 0
      %1121 = vmatprep.subr.bf16.mxu0 0
      %1122 = vmatpush1.bf16.xpose.msra.mxu0 0
      %1123 = vmatprep.subr.bf16.mxu0 0
      %1124 = vmatpush1.bf16.xpose.msra.mxu0 0
      %1125 = vmatprep.subr.bf16.mxu0 0
      %1126 = vmatpush1.bf16.xpose.msra.mxu0 0
      %1127 = vmatprep.subr.bf16.mxu0 0
      %1128 = vmatpush1.bf16.xpose.msra.mxu0 0
      %1129 = vmatprep.subr.bf16.mxu0 0
      %1130 = vmatpush1.bf16.xpose.msra.mxu0 0
      %1131 = vmatprep.subr.bf16.mxu0 0
      %1132 = vmatpush1.bf16.xpose.msra.mxu0 0
      %1133 = vmatprep.subr.bf16.mxu0 0
      %1134 = vmatpush1.bf16.xpose.msra.mxu0 0
      %1135 = vmatprep.subr.bf16.mxu0 0
      %1136 = vmatpush1.bf16.xpose.msra.mxu0 0
      %1137 = vmatprep.subr.bf16.mxu0 0
      %1138 = vmatpush1.bf16.xpose.msra.mxu0 0
      %1139 = vmatprep.subr.bf16.mxu0 0
      %1140 = vmatpush1.bf16.xpose.msra.mxu0 0
      %1141 = vmatprep.subr.bf16.mxu0 0
      %1142 = vmatpush1.bf16.xpose.msra.mxu0 0
      %1143 = vmatprep.subr.bf16.mxu0 0
      %1144 = vmatpush1.bf16.xpose.msra.mxu0 0
      %1145 = vmatprep.mubr.bf16.mxu0 0
      %1146 = vmatmul.mubr.bf16.gmra.mrb[0].mxu0 %v1108
      %v1147 = vpop.f32.mrb[0].mxu0
      %v1148 = vadd.f32 0.0, %v1147
      %v1149 = vpop.f32.mrb[0].mxu0
      %v1150 = vpop.f32.mrb[0].mxu0
      %v1151 = vadd.f32 0.0, %v1150
      %v1152 = vpop.f32.mrb[0].mxu0
      %1153 = vdwg.mxu0
      %v1154 = vmul.f32 %v1148, 0.35355338
      %v1155 = vmul.f32 %v1151, 0.35355338
      %v1156 = vsel %vm836, %v1154, -inf
      %1157 = vmax.xlane.f32.xlu0 %v1156
      %v1158 = vpop.xlane.xlu0 %1157
      %v1159 = vsel %vm836, %v1155, -inf
      %1160 = vmax.xlane.f32.xlu0 %v1159
      %v1161 = vpop.xlane.xlu0 %1160
      %v1162 = vsub.f32 %v1154, %v1158
      %v1163 = vsub.f32 %v1155, %v1161
      %v1164 = vmul.f32 %v1162, 1.442695
      %v1165 = vpow.pop %v1164
      %v1166 = vmul.f32 %v1163, 1.442695
      %v1167 = vpow.pop %v1166
      %v1168 = vsel %vm836, %v1165, 0.0
      %1169 = vadd.xlane.f32.xlu0 %v1168
      %v1170 = vpop.xlane.xlu0 %1169
      %v1171 = vsel %vm836, %v1167, 0.0
      %1172 = vadd.xlane.f32.xlu0 %v1171
      %v1173 = vpop.xlane.xlu0 %1172
      %v1174 = vrcp.pop %v1170
      %v1175 = vmul.f32 %v1165, %v1174
      %v1176 = vrcp.pop %v1173
      %v1177 = vmul.f32 %v1167, %v1176
      %v1178 = vpack.c.bf16 %v1177, %v1175
      %v1179 = vpack.c.bf16 %v1102, %v1099
      %v1181 = vsel %vm836, %v1178, 0
      %1183 = vmatprep.subr.bf16.mxu0 0
      %1184 = vmatpush1.bf16.msra.mxu0 %v1179
      %1185 = vmatprep.subr.bf16.mxu0 0
      %1186 = vmatpush1.bf16.msra.mxu0 0
      %1187 = vmatprep.subr.bf16.mxu0 0
      %1188 = vmatpush1.bf16.msra.mxu0 0
      %1189 = vmatprep.subr.bf16.mxu0 0
      %1190 = vmatpush1.bf16.msra.mxu0 0
      %1191 = vmatprep.subr.bf16.mxu0 0
      %1192 = vmatpush1.bf16.msra.mxu0 0
      %1193 = vmatprep.subr.bf16.mxu0 0
      %1194 = vmatpush1.bf16.msra.mxu0 0
      %1195 = vmatprep.subr.bf16.mxu0 0
      %1196 = vmatpush1.bf16.msra.mxu0 0
      %1197 = vmatprep.subr.bf16.mxu0 0
      %1198 = vmatpush1.bf16.msra.mxu0 0
      %1199 = vmatprep.subr.bf16.mxu0 0
      %1200 = vmatpush1.bf16.msra.mxu0 0
      %1201 = vmatprep.subr.bf16.mxu0 0
      %1202 = vmatpush1.bf16.msra.mxu0 0
      %1203 = vmatprep.subr.bf16.mxu0 0
      %1204 = vmatpush1.bf16.msra.mxu0 0
      %1205 = vmatprep.subr.bf16.mxu0 0
      %1206 = vmatpush1.bf16.msra.mxu0 0
      %1207 = vmatprep.subr.bf16.mxu0 0
      %1208 = vmatpush1.bf16.msra.mxu0 0
      %1209 = vmatprep.subr.bf16.mxu0 0
      %1210 = vmatpush1.bf16.msra.mxu0 0
      %1211 = vmatprep.subr.bf16.mxu0 0
      %1212 = vmatpush1.bf16.msra.mxu0 0
      %1213 = vmatprep.subr.bf16.mxu0 0
      %1214 = vmatpush1.bf16.msra.mxu0 0
      %1215 = vmatprep.mubr.bf16.mxu0 0
      %1216 = vmatmul.mubr.bf16.gmra.mrb[0].mxu0 %v1181
      %v1217 = vpop.f32.mrb[0].mxu0
      %v1218 = vadd.f32 0.0, %v1217
      %v1219 = vpop.f32.mrb[0].mxu0
      %v1220 = vpop.f32.mrb[0].mxu0
      %v1221 = vadd.f32 0.0, %v1220
      %v1222 = vpop.f32.mrb[0].mxu0
      %1223 = vdwg.mxu0
      %v1224 = vpack.c.bf16 %v1221, %v1218
      %s1225 = scalar_lea.vmem %s8, 4
      %v1226 = vld [vmem:[%s1225] sm:$0xf]
      %v1228 = vsel %vm786, %v1224, 0
      %vm1230 = vcmask 1043456
      %v1232 = vsel %vm1230, %v1226, 0
      %1234 = vmatprep.subr.bf16.mxu0 0
      %1235 = vmatpush1.bf16.msra.mxu0 %v1232
      %1236 = vmatprep.subr.bf16.mxu0 0
      %1237 = vmatpush1.bf16.msra.mxu0 0
      %1238 = vmatprep.subr.bf16.mxu0 0
      %1239 = vmatpush1.bf16.msra.mxu0 0
      %1240 = vmatprep.subr.bf16.mxu0 0
      %1241 = vmatpush1.bf16.msra.mxu0 0
      %1242 = vmatprep.subr.bf16.mxu0 0
      %1243 = vmatpush1.bf16.msra.mxu0 0
      %1244 = vmatprep.subr.bf16.mxu0 0
      %1245 = vmatpush1.bf16.msra.mxu0 0
      %1246 = vmatprep.subr.bf16.mxu0 0
      %1247 = vmatpush1.bf16.msra.mxu0 0
      %1248 = vmatprep.subr.bf16.mxu0 0
      %1249 = vmatpush1.bf16.msra.mxu0 0
      %1250 = vmatprep.subr.bf16.mxu0 0
      %1251 = vmatpush1.bf16.msra.mxu0 0
      %1252 = vmatprep.subr.bf16.mxu0 0
      %1253 = vmatpush1.bf16.msra.mxu0 0
      %1254 = vmatprep.subr.bf16.mxu0 0
      %1255 = vmatpush1.bf16.msra.mxu0 0
      %1256 = vmatprep.subr.bf16.mxu0 0
      %1257 = vmatpush1.bf16.msra.mxu0 0
      %1258 = vmatprep.subr.bf16.mxu0 0
      %1259 = vmatpush1.bf16.msra.mxu0 0
      %1260 = vmatprep.subr.bf16.mxu0 0
      %1261 = vmatpush1.bf16.msra.mxu0 0
      %1262 = vmatprep.subr.bf16.mxu0 0
      %1263 = vmatpush1.bf16.msra.mxu0 0
      %1264 = vmatprep.subr.bf16.mxu0 0
      %1265 = vmatpush1.bf16.msra.mxu0 0
      %1266 = vmatprep.mubr.bf16.mxu0 0
      %1267 = vmatmul.mubr.bf16.gmra.mrb[0].mxu0 %v1228
      %v1268 = vpop.f32.mrb[0].mxu0
      %v1269 = vadd.f32 0.0, %v1268
      %v1270 = vpop.f32.mrb[0].mxu0
      %v1271 = vpop.f32.mrb[0].mxu0
      %v1272 = vadd.f32 0.0, %v1271
      %v1273 = vpop.f32.mrb[0].mxu0
      %1274 = vdwg.mxu0
      %v1276 = vsel %vm786, %v905, 0
      %v1279 = vsel %vm1230, %v906, 0
      %1281 = vmatprep.subr.bf16.mxu0 0
      %1282 = vmatpush1.bf16.msra.mxu0 %v1279
      %1283 = vmatprep.subr.bf16.mxu0 0
      %1284 = vmatpush1.bf16.msra.mxu0 0
      %1285 = vmatprep.subr.bf16.mxu0 0
      %1286 = vmatpush1.bf16.msra.mxu0 0
      %1287 = vmatprep.subr.bf16.mxu0 0
      %1288 = vmatpush1.bf16.msra.mxu0 0
      %1289 = vmatprep.subr.bf16.mxu0 0
      %1290 = vmatpush1.bf16.msra.mxu0 0
      %1291 = vmatprep.subr.bf16.mxu0 0
      %1292 = vmatpush1.bf16.msra.mxu0 0
      %1293 = vmatprep.subr.bf16.mxu0 0
      %1294 = vmatpush1.bf16.msra.mxu0 0
      %1295 = vmatprep.subr.bf16.mxu0 0
      %1296 = vmatpush1.bf16.msra.mxu0 0
      %1297 = vmatprep.subr.bf16.mxu0 0
      %1298 = vmatpush1.bf16.msra.mxu0 0
      %1299 = vmatprep.subr.bf16.mxu0 0
      %1300 = vmatpush1.bf16.msra.mxu0 0
      %1301 = vmatprep.subr.bf16.mxu0 0
      %1302 = vmatpush1.bf16.msra.mxu0 0
      %1303 = vmatprep.subr.bf16.mxu0 0
      %1304 = vmatpush1.bf16.msra.mxu0 0
      %1305 = vmatprep.subr.bf16.mxu0 0
      %1306 = vmatpush1.bf16.msra.mxu0 0
      %1307 = vmatprep.subr.bf16.mxu0 0
      %1308 = vmatpush1.bf16.msra.mxu0 0
      %1309 = vmatprep.subr.bf16.mxu0 0
      %1310 = vmatpush1.bf16.msra.mxu0 0
      %1311 = vmatprep.subr.bf16.mxu0 0
      %1312 = vmatpush1.bf16.msra.mxu0 0
      %1313 = vmatprep.mubr.bf16.mxu0 0
      %1314 = vmatmul.mubr.bf16.gmra.mrb[0].mxu0 %v1276
      %v1315 = vpop.f32.mrb[0].mxu0
      %v1316 = vadd.f32 %v1269, %v1315
      %v1317 = vpop.f32.mrb[0].mxu0
      %v1318 = vpop.f32.mrb[0].mxu0
      %v1319 = vadd.f32 %v1272, %v1318
      %v1320 = vpop.f32.mrb[0].mxu0
      %1321 = vdwg.mxu0
      %s1322 = scalar_lea.vmem %s2, 32
      %v1323 = vld [vmem:[%s1322] sm:$0xf]
      %v1324 = vld [vmem:[%s1322 + $0x4] sm:$0xf]
      %v1325 = vld [vmem:[%s1322 + $0x8] sm:$0xf]
      %v1326 = vld [vmem:[%s1322 + $0xc] sm:$0xf]
      %s1327 = scalar_lea.vmem %s3, 2
      %v1328 = vld [vmem:[%s1327] sm:$0x1]
      %v1330 = vlaneseq
      %v1331 = vshrl.u32 %v1330, 7
      %v1332 = vsub.s32 0, %v1331
      %v1333 = vrot.slane %v1328, %v1332
      %v1339 = vunpack.c.l.b16 %v1323
      %v1340 = vunpack.c.l.b16 %v1324
      %v1341 = vunpack.c.l.b16 %v1325
      %v1342 = vunpack.c.l.b16 %v1326
      %v1343 = vpack.c.b16 %v1340, %v1339
      %v1344 = vpack.c.b16 %v1342, %v1341
      %1347 = vmatprep.subr.bf16.mxu0 0
      %1348 = vmatpush1.bf16.msra.mxu0 %v1343
      %1349 = vmatprep.subr.bf16.mxu0 0
      %1350 = vmatpush1.bf16.msra.mxu0 %v1344
      %1351 = vmatprep.subr.bf16.mxu0 0
      %1352 = vmatpush1.bf16.msra.mxu0 0
      %1353 = vmatprep.subr.bf16.mxu0 0
      %1354 = vmatpush1.bf16.msra.mxu0 0
      %1355 = vmatprep.subr.bf16.mxu0 0
      %1356 = vmatpush1.bf16.msra.mxu0 0
      %1357 = vmatprep.subr.bf16.mxu0 0
      %1358 = vmatpush1.bf16.msra.mxu0 0
      %1359 = vmatprep.subr.bf16.mxu0 0
      %1360 = vmatpush1.bf16.msra.mxu0 0
      %1361 = vmatprep.subr.bf16.mxu0 0
      %1362 = vmatpush1.bf16.msra.mxu0 0
      %1363 = vmatprep.subr.bf16.mxu0 0
      %1364 = vmatpush1.bf16.msra.mxu0 0
      %1365 = vmatprep.subr.bf16.mxu0 0
      %1366 = vmatpush1.bf16.msra.mxu0 0
      %1367 = vmatprep.subr.bf16.mxu0 0
      %1368 = vmatpush1.bf16.msra.mxu0 0
      %1369 = vmatprep.subr.bf16.mxu0 0
      %1370 = vmatpush1.bf16.msra.mxu0 0
      %1371 = vmatprep.subr.bf16.mxu0 0
      %1372 = vmatpush1.bf16.msra.mxu0 0
      %1373 = vmatprep.subr.bf16.mxu0 0
      %1374 = vmatpush1.bf16.msra.mxu0 0
      %1375 = vmatprep.subr.bf16.mxu0 0
      %1376 = vmatpush1.bf16.msra.mxu0 0
      %1377 = vmatprep.subr.bf16.mxu0 0
      %1378 = vmatpush1.bf16.msra.mxu0 0
      %1379 = vmatprep.mubr.bf16.mxu0 0
      %1380 = vmatmul.mubr.bf16.gmra.mrb[0].mxu0 %v610
      %v1381 = vpop.f32.mrb[0].mxu0
      %v1382 = vadd.f32 %v1333, %v1381
      %v1383 = vpop.f32.mrb[0].mxu0
      %v1384 = vpop.f32.mrb[0].mxu0
      %v1385 = vadd.f32 %v1333, %v1384
      %v1386 = vpop.f32.mrb[0].mxu0
      %1387 = vdwg.mxu0
      %s1388 = scalar_lea.vmem %s4, 32
      %v1389 = vld [vmem:[%s1388] sm:$0xf]
      %v1390 = vld [vmem:[%s1388 + $0x4] sm:$0xf]
      %v1391 = vld [vmem:[%s1388 + $0x8] sm:$0xf]
      %v1392 = vld [vmem:[%s1388 + $0xc] sm:$0xf]
      %s1393 = scalar_lea.vmem %s5, 2
      %v1394 = vld [vmem:[%s1393] sm:$0x1]
      %v1396 = vlaneseq
      %v1397 = vshrl.u32 %v1396, 7
      %v1398 = vsub.s32 0, %v1397
      %v1399 = vrot.slane %v1394, %v1398
      %v1405 = vunpack.c.l.b16 %v1389
      %v1406 = vunpack.c.l.b16 %v1390
      %v1407 = vunpack.c.l.b16 %v1391
      %v1408 = vunpack.c.l.b16 %v1392
      %v1409 = vpack.c.b16 %v1406, %v1405
      %v1410 = vpack.c.b16 %v1408, %v1407
      %1413 = vmatprep.subr.bf16.mxu0 0
      %1414 = vmatpush1.bf16.msra.mxu0 %v1409
      %1415 = vmatprep.subr.bf16.mxu0 0
      %1416 = vmatpush1.bf16.msra.mxu0 %v1410
      %1417 = vmatprep.subr.bf16.mxu0 0
      %1418 = vmatpush1.bf16.msra.mxu0 0
      %1419 = vmatprep.subr.bf16.mxu0 0
      %1420 = vmatpush1.bf16.msra.mxu0 0
      %1421 = vmatprep.subr.bf16.mxu0 0
      %1422 = vmatpush1.bf16.msra.mxu0 0
      %1423 = vmatprep.subr.bf16.mxu0 0
      %1424 = vmatpush1.bf16.msra.mxu0 0
      %1425 = vmatprep.subr.bf16.mxu0 0
      %1426 = vmatpush1.bf16.msra.mxu0 0
      %1427 = vmatprep.subr.bf16.mxu0 0
      %1428 = vmatpush1.bf16.msra.mxu0 0
      %1429 = vmatprep.subr.bf16.mxu0 0
      %1430 = vmatpush1.bf16.msra.mxu0 0
      %1431 = vmatprep.subr.bf16.mxu0 0
      %1432 = vmatpush1.bf16.msra.mxu0 0
      %1433 = vmatprep.subr.bf16.mxu0 0
      %1434 = vmatpush1.bf16.msra.mxu0 0
      %1435 = vmatprep.subr.bf16.mxu0 0
      %1436 = vmatpush1.bf16.msra.mxu0 0
      %1437 = vmatprep.subr.bf16.mxu0 0
      %1438 = vmatpush1.bf16.msra.mxu0 0
      %1439 = vmatprep.subr.bf16.mxu0 0
      %1440 = vmatpush1.bf16.msra.mxu0 0
      %1441 = vmatprep.subr.bf16.mxu0 0
      %1442 = vmatpush1.bf16.msra.mxu0 0
      %1443 = vmatprep.subr.bf16.mxu0 0
      %1444 = vmatpush1.bf16.msra.mxu0 0
      %1445 = vmatprep.mubr.bf16.mxu0 0
      %1446 = vmatmul.mubr.bf16.gmra.mrb[0].mxu0 %v610
      %v1447 = vpop.f32.mrb[0].mxu0
      %v1448 = vadd.f32 %v1399, %v1447
      %v1449 = vpop.f32.mrb[0].mxu0
      %v1450 = vpop.f32.mrb[0].mxu0
      %v1451 = vadd.f32 %v1399, %v1450
      %v1452 = vpop.f32.mrb[0].mxu0
      %1453 = vdwg.mxu0
      %s1454 = scalar_lea.vmem %s6, 32
      %v1455 = vld [vmem:[%s1454] sm:$0xf]
      %v1456 = vld [vmem:[%s1454 + $0x4] sm:$0xf]
      %v1457 = vld [vmem:[%s1454 + $0x8] sm:$0xf]
      %v1458 = vld [vmem:[%s1454 + $0xc] sm:$0xf]
      %s1459 = scalar_lea.vmem %s7, 2
      %v1460 = vld [vmem:[%s1459] sm:$0x1]
      %v1462 = vlaneseq
      %v1463 = vshrl.u32 %v1462, 7
      %v1464 = vsub.s32 0, %v1463
      %v1465 = vrot.slane %v1460, %v1464
      %v1471 = vunpack.c.l.b16 %v1455
      %v1472 = vunpack.c.l.b16 %v1456
      %v1473 = vunpack.c.l.b16 %v1457
      %v1474 = vunpack.c.l.b16 %v1458
      %v1475 = vpack.c.b16 %v1472, %v1471
      %v1476 = vpack.c.b16 %v1474, %v1473
      %1479 = vmatprep.subr.bf16.mxu0 0
      %1480 = vmatpush1.bf16.msra.mxu0 %v1475
      %1481 = vmatprep.subr.bf16.mxu0 0
      %1482 = vmatpush1.bf16.msra.mxu0 %v1476
      %1483 = vmatprep.subr.bf16.mxu0 0
      %1484 = vmatpush1.bf16.msra.mxu0 0
      %1485 = vmatprep.subr.bf16.mxu0 0
      %1486 = vmatpush1.bf16.msra.mxu0 0
      %1487 = vmatprep.subr.bf16.mxu0 0
      %1488 = vmatpush1.bf16.msra.mxu0 0
      %1489 = vmatprep.subr.bf16.mxu0 0
      %1490 = vmatpush1.bf16.msra.mxu0 0
      %1491 = vmatprep.subr.bf16.mxu0 0
      %1492 = vmatpush1.bf16.msra.mxu0 0
      %1493 = vmatprep.subr.bf16.mxu0 0
      %1494 = vmatpush1.bf16.msra.mxu0 0
      %1495 = vmatprep.subr.bf16.mxu0 0
      %1496 = vmatpush1.bf16.msra.mxu0 0
      %1497 = vmatprep.subr.bf16.mxu0 0
      %1498 = vmatpush1.bf16.msra.mxu0 0
      %1499 = vmatprep.subr.bf16.mxu0 0
      %1500 = vmatpush1.bf16.msra.mxu0 0
      %1501 = vmatprep.subr.bf16.mxu0 0
      %1502 = vmatpush1.bf16.msra.mxu0 0
      %1503 = vmatprep.subr.bf16.mxu0 0
      %1504 = vmatpush1.bf16.msra.mxu0 0
      %1505 = vmatprep.subr.bf16.mxu0 0
      %1506 = vmatpush1.bf16.msra.mxu0 0
      %1507 = vmatprep.subr.bf16.mxu0 0
      %1508 = vmatpush1.bf16.msra.mxu0 0
      %1509 = vmatprep.subr.bf16.mxu0 0
      %1510 = vmatpush1.bf16.msra.mxu0 0
      %1511 = vmatprep.mubr.bf16.mxu0 0
      %1512 = vmatmul.mubr.bf16.gmra.mrb[0].mxu0 %v741
      %v1513 = vpop.f32.mrb[0].mxu0
      %v1514 = vadd.f32 %v1465, %v1513
      %v1515 = vpop.f32.mrb[0].mxu0
      %v1516 = vpop.f32.mrb[0].mxu0
      %v1517 = vadd.f32 %v1465, %v1516
      %v1518 = vpop.f32.mrb[0].mxu0
      %1519 = vdwg.mxu0
      %v1520 = vpack.c.bf16 %v1385, %v1382
      %v1521 = vpack.c.bf16 %v1451, %v1448
      %v1523 = vsel %vm786, %v1520, 0
      %v1526 = vsel %vm786, %v1521, 0
      %1528 = vmatprep.subr.bf16.mxu0 0
      %1529 = vmatpush1.bf16.xpose.msra.mxu0 %v1526
      %1530 = vmatprep.subr.bf16.mxu0 0
      %1531 = vmatpush1.bf16.xpose.msra.mxu0 0
      %1532 = vmatprep.subr.bf16.mxu0 0
      %1533 = vmatpush1.bf16.xpose.msra.mxu0 0
      %1534 = vmatprep.subr.bf16.mxu0 0
      %1535 = vmatpush1.bf16.xpose.msra.mxu0 0
      %1536 = vmatprep.subr.bf16.mxu0 0
      %1537 = vmatpush1.bf16.xpose.msra.mxu0 0
      %1538 = vmatprep.subr.bf16.mxu0 0
      %1539 = vmatpush1.bf16.xpose.msra.mxu0 0
      %1540 = vmatprep.subr.bf16.mxu0 0
      %1541 = vmatpush1.bf16.xpose.msra.mxu0 0
      %1542 = vmatprep.subr.bf16.mxu0 0
      %1543 = vmatpush1.bf16.xpose.msra.mxu0 0
      %1544 = vmatprep.subr.bf16.mxu0 0
      %1545 = vmatpush1.bf16.xpose.msra.mxu0 0
      %1546 = vmatprep.subr.bf16.mxu0 0
      %1547 = vmatpush1.bf16.xpose.msra.mxu0 0
      %1548 = vmatprep.subr.bf16.mxu0 0
      %1549 = vmatpush1.bf16.xpose.msra.mxu0 0
      %1550 = vmatprep.subr.bf16.mxu0 0
      %1551 = vmatpush1.bf16.xpose.msra.mxu0 0
      %1552 = vmatprep.subr.bf16.mxu0 0
      %1553 = vmatpush1.bf16.xpose.msra.mxu0 0
      %1554 = vmatprep.subr.bf16.mxu0 0
      %1555 = vmatpush1.bf16.xpose.msra.mxu0 0
      %1556 = vmatprep.subr.bf16.mxu0 0
      %1557 = vmatpush1.bf16.xpose.msra.mxu0 0
      %1558 = vmatprep.subr.bf16.mxu0 0
      %1559 = vmatpush1.bf16.xpose.msra.mxu0 0
      %1560 = vmatprep.mubr.bf16.mxu0 0
      %1561 = vmatmul.mubr.bf16.gmra.mrb[0].mxu0 %v1523
      %v1562 = vpop.f32.mrb[0].mxu0
      %v1563 = vadd.f32 0.0, %v1562
      %v1564 = vpop.f32.mrb[0].mxu0
      %v1565 = vpop.f32.mrb[0].mxu0
      %v1566 = vadd.f32 0.0, %v1565
      %v1567 = vpop.f32.mrb[0].mxu0
      %1568 = vdwg.mxu0
      %v1569 = vmul.f32 %v1563, 0.35355338
      %v1570 = vmul.f32 %v1566, 0.35355338
      %v1571 = vsel %vm836, %v1569, -inf
      %1572 = vmax.xlane.f32.xlu0 %v1571
      %v1573 = vpop.xlane.xlu0 %1572
      %v1574 = vsel %vm836, %v1570, -inf
      %1575 = vmax.xlane.f32.xlu0 %v1574
      %v1576 = vpop.xlane.xlu0 %1575
      %v1577 = vsub.f32 %v1569, %v1573
      %v1578 = vsub.f32 %v1570, %v1576
      %v1579 = vmul.f32 %v1577, 1.442695
      %v1580 = vpow.pop %v1579
      %v1581 = vmul.f32 %v1578, 1.442695
      %v1582 = vpow.pop %v1581
      %v1583 = vsel %vm836, %v1580, 0.0
      %1584 = vadd.xlane.f32.xlu0 %v1583
      %v1585 = vpop.xlane.xlu0 %1584
      %v1586 = vsel %vm836, %v1582, 0.0
      %1587 = vadd.xlane.f32.xlu0 %v1586
      %v1588 = vpop.xlane.xlu0 %1587
      %v1589 = vrcp.pop %v1585
      %v1590 = vmul.f32 %v1580, %v1589
      %v1591 = vrcp.pop %v1588
      %v1592 = vmul.f32 %v1582, %v1591
      %v1593 = vpack.c.bf16 %v1592, %v1590
      %v1594 = vpack.c.bf16 %v1517, %v1514
      %v1596 = vsel %vm836, %v1593, 0
      %1598 = vmatprep.subr.bf16.mxu0 0
      %1599 = vmatpush1.bf16.msra.mxu0 %v1594
      %1600 = vmatprep.subr.bf16.mxu0 0
      %1601 = vmatpush1.bf16.msra.mxu0 0
      %1602 = vmatprep.subr.bf16.mxu0 0
      %1603 = vmatpush1.bf16.msra.mxu0 0
      %1604 = vmatprep.subr.bf16.mxu0 0
      %1605 = vmatpush1.bf16.msra.mxu0 0
      %1606 = vmatprep.subr.bf16.mxu0 0
      %1607 = vmatpush1.bf16.msra.mxu0 0
      %1608 = vmatprep.subr.bf16.mxu0 0
      %1609 = vmatpush1.bf16.msra.mxu0 0
      %1610 = vmatprep.subr.bf16.mxu0 0
      %1611 = vmatpush1.bf16.msra.mxu0 0
      %1612 = vmatprep.subr.bf16.mxu0 0
      %1613 = vmatpush1.bf16.msra.mxu0 0
      %1614 = vmatprep.subr.bf16.mxu0 0
      %1615 = vmatpush1.bf16.msra.mxu0 0
      %1616 = vmatprep.subr.bf16.mxu0 0
      %1617 = vmatpush1.bf16.msra.mxu0 0
      %1618 = vmatprep.subr.bf16.mxu0 0
      %1619 = vmatpush1.bf16.msra.mxu0 0
      %1620 = vmatprep.subr.bf16.mxu0 0
      %1621 = vmatpush1.bf16.msra.mxu0 0
      %1622 = vmatprep.subr.bf16.mxu0 0
      %1623 = vmatpush1.bf16.msra.mxu0 0
      %1624 = vmatprep.subr.bf16.mxu0 0
      %1625 = vmatpush1.bf16.msra.mxu0 0
      %1626 = vmatprep.subr.bf16.mxu0 0
      %1627 = vmatpush1.bf16.msra.mxu0 0
      %1628 = vmatprep.subr.bf16.mxu0 0
      %1629 = vmatpush1.bf16.msra.mxu0 0
      %1630 = vmatprep.mubr.bf16.mxu0 0
      %1631 = vmatmul.mubr.bf16.gmra.mrb[0].mxu0 %v1596
      %v1632 = vpop.f32.mrb[0].mxu0
      %v1633 = vadd.f32 0.0, %v1632
      %v1634 = vpop.f32.mrb[0].mxu0
      %v1635 = vpop.f32.mrb[0].mxu0
      %v1636 = vadd.f32 0.0, %v1635
      %v1637 = vpop.f32.mrb[0].mxu0
      %1638 = vdwg.mxu0
      %v1639 = vpack.c.bf16 %v1636, %v1633
      %s1640 = scalar_lea.vmem %s8, 8
      %v1641 = vld [vmem:[%s1640] sm:$0xf]
      %v1643 = vsel %vm786, %v1639, 0
      %v1646 = vsel %vm1230, %v1641, 0
      %1648 = vmatprep.subr.bf16.mxu0 0
      %1649 = vmatpush1.bf16.msra.mxu0 %v1646
      %1650 = vmatprep.subr.bf16.mxu0 0
      %1651 = vmatpush1.bf16.msra.mxu0 0
      %1652 = vmatprep.subr.bf16.mxu0 0
      %1653 = vmatpush1.bf16.msra.mxu0 0
      %1654 = vmatprep.subr.bf16.mxu0 0
      %1655 = vmatpush1.bf16.msra.mxu0 0
      %1656 = vmatprep.subr.bf16.mxu0 0
      %1657 = vmatpush1.bf16.msra.mxu0 0
      %1658 = vmatprep.subr.bf16.mxu0 0
      %1659 = vmatpush1.bf16.msra.mxu0 0
      %1660 = vmatprep.subr.bf16.mxu0 0
      %1661 = vmatpush1.bf16.msra.mxu0 0
      %1662 = vmatprep.subr.bf16.mxu0 0
      %1663 = vmatpush1.bf16.msra.mxu0 0
      %1664 = vmatprep.subr.bf16.mxu0 0
      %1665 = vmatpush1.bf16.msra.mxu0 0
      %1666 = vmatprep.subr.bf16.mxu0 0
      %1667 = vmatpush1.bf16.msra.mxu0 0
      %1668 = vmatprep.subr.bf16.mxu0 0
      %1669 = vmatpush1.bf16.msra.mxu0 0
      %1670 = vmatprep.subr.bf16.mxu0 0
      %1671 = vmatpush1.bf16.msra.mxu0 0
      %1672 = vmatprep.subr.bf16.mxu0 0
      %1673 = vmatpush1.bf16.msra.mxu0 0
      %1674 = vmatprep.subr.bf16.mxu0 0
      %1675 = vmatpush1.bf16.msra.mxu0 0
      %1676 = vmatprep.subr.bf16.mxu0 0
      %1677 = vmatpush1.bf16.msra.mxu0 0
      %1678 = vmatprep.subr.bf16.mxu0 0
      %1679 = vmatpush1.bf16.msra.mxu0 0
      %1680 = vmatprep.mubr.bf16.mxu0 0
      %1681 = vmatmul.mubr.bf16.gmra.mrb[0].mxu0 %v1643
      %v1682 = vpop.f32.mrb[0].mxu0
      %v1683 = vadd.f32 0.0, %v1682
      %v1684 = vpop.f32.mrb[0].mxu0
      %v1685 = vpop.f32.mrb[0].mxu0
      %v1686 = vadd.f32 0.0, %v1685
      %v1687 = vpop.f32.mrb[0].mxu0
      %1688 = vdwg.mxu0
      %v1689 = vadd.f32 %v1316, %v1683
      %v1690 = vadd.f32 %v1319, %v1686
      %s1691 = scalar_lea.vmem %s2, 48
      %v1692 = vld [vmem:[%s1691] sm:$0xf]
      %v1693 = vld [vmem:[%s1691 + $0x4] sm:$0xf]
      %v1694 = vld [vmem:[%s1691 + $0x8] sm:$0xf]
      %v1695 = vld [vmem:[%s1691 + $0xc] sm:$0xf]
      %s1696 = scalar_lea.vmem %s3, 3
      %v1697 = vld [vmem:[%s1696] sm:$0x1]
      %v1699 = vlaneseq
      %v1700 = vshrl.u32 %v1699, 7
      %v1701 = vsub.s32 0, %v1700
      %v1702 = vrot.slane %v1697, %v1701
      %v1708 = vunpack.c.l.b16 %v1692
      %v1709 = vunpack.c.l.b16 %v1693
      %v1710 = vunpack.c.l.b16 %v1694
      %v1711 = vunpack.c.l.b16 %v1695
      %v1712 = vpack.c.b16 %v1709, %v1708
      %v1713 = vpack.c.b16 %v1711, %v1710
      %1716 = vmatprep.subr.bf16.mxu0 0
      %1717 = vmatpush1.bf16.msra.mxu0 %v1712
      %1718 = vmatprep.subr.bf16.mxu0 0
      %1719 = vmatpush1.bf16.msra.mxu0 %v1713
      %1720 = vmatprep.subr.bf16.mxu0 0
      %1721 = vmatpush1.bf16.msra.mxu0 0
      %1722 = vmatprep.subr.bf16.mxu0 0
      %1723 = vmatpush1.bf16.msra.mxu0 0
      %1724 = vmatprep.subr.bf16.mxu0 0
      %1725 = vmatpush1.bf16.msra.mxu0 0
      %1726 = vmatprep.subr.bf16.mxu0 0
      %1727 = vmatpush1.bf16.msra.mxu0 0
      %1728 = vmatprep.subr.bf16.mxu0 0
      %1729 = vmatpush1.bf16.msra.mxu0 0
      %1730 = vmatprep.subr.bf16.mxu0 0
      %1731 = vmatpush1.bf16.msra.mxu0 0
      %1732 = vmatprep.subr.bf16.mxu0 0
      %1733 = vmatpush1.bf16.msra.mxu0 0
      %1734 = vmatprep.subr.bf16.mxu0 0
      %1735 = vmatpush1.bf16.msra.mxu0 0
      %1736 = vmatprep.subr.bf16.mxu0 0
      %1737 = vmatpush1.bf16.msra.mxu0 0
      %1738 = vmatprep.subr.bf16.mxu0 0
      %1739 = vmatpush1.bf16.msra.mxu0 0
      %1740 = vmatprep.subr.bf16.mxu0 0
      %1741 = vmatpush1.bf16.msra.mxu0 0
      %1742 = vmatprep.subr.bf16.mxu0 0
      %1743 = vmatpush1.bf16.msra.mxu0 0
      %1744 = vmatprep.subr.bf16.mxu0 0
      %1745 = vmatpush1.bf16.msra.mxu0 0
      %1746 = vmatprep.subr.bf16.mxu0 0
      %1747 = vmatpush1.bf16.msra.mxu0 0
      %1748 = vmatprep.mubr.bf16.mxu0 0
      %1749 = vmatmul.mubr.bf16.gmra.mrb[0].mxu0 %v610
      %v1750 = vpop.f32.mrb[0].mxu0
      %v1751 = vadd.f32 %v1702, %v1750
      %v1752 = vpop.f32.mrb[0].mxu0
      %v1753 = vpop.f32.mrb[0].mxu0
      %v1754 = vadd.f32 %v1702, %v1753
      %v1755 = vpop.f32.mrb[0].mxu0
      %1756 = vdwg.mxu0
      %s1757 = scalar_lea.vmem %s4, 48
      %v1758 = vld [vmem:[%s1757] sm:$0xf]
      %v1759 = vld [vmem:[%s1757 + $0x4] sm:$0xf]
      %v1760 = vld [vmem:[%s1757 + $0x8] sm:$0xf]
      %v1761 = vld [vmem:[%s1757 + $0xc] sm:$0xf]
      %s1762 = scalar_lea.vmem %s5, 3
      %v1763 = vld [vmem:[%s1762] sm:$0x1]
      %v1765 = vlaneseq
      %v1766 = vshrl.u32 %v1765, 7
      %v1767 = vsub.s32 0, %v1766
      %v1768 = vrot.slane %v1763, %v1767
      %v1774 = vunpack.c.l.b16 %v1758
      %v1775 = vunpack.c.l.b16 %v1759
      %v1776 = vunpack.c.l.b16 %v1760
      %v1777 = vunpack.c.l.b16 %v1761
      %v1778 = vpack.c.b16 %v1775, %v1774
      %v1779 = vpack.c.b16 %v1777, %v1776
      %1782 = vmatprep.subr.bf16.mxu0 0
      %1783 = vmatpush1.bf16.msra.mxu0 %v1778
      %1784 = vmatprep.subr.bf16.mxu0 0
      %1785 = vmatpush1.bf16.msra.mxu0 %v1779
      %1786 = vmatprep.subr.bf16.mxu0 0
      %1787 = vmatpush1.bf16.msra.mxu0 0
      %1788 = vmatprep.subr.bf16.mxu0 0
      %1789 = vmatpush1.bf16.msra.mxu0 0
      %1790 = vmatprep.subr.bf16.mxu0 0
      %1791 = vmatpush1.bf16.msra.mxu0 0
      %1792 = vmatprep.subr.bf16.mxu0 0
      %1793 = vmatpush1.bf16.msra.mxu0 0
      %1794 = vmatprep.subr.bf16.mxu0 0
      %1795 = vmatpush1.bf16.msra.mxu0 0
      %1796 = vmatprep.subr.bf16.mxu0 0
      %1797 = vmatpush1.bf16.msra.mxu0 0
      %1798 = vmatprep.subr.bf16.mxu0 0
      %1799 = vmatpush1.bf16.msra.mxu0 0
      %1800 = vmatprep.subr.bf16.mxu0 0
      %1801 = vmatpush1.bf16.msra.mxu0 0
      %1802 = vmatprep.subr.bf16.mxu0 0
      %1803 = vmatpush1.bf16.msra.mxu0 0
      %1804 = vmatprep.subr.bf16.mxu0 0
      %1805 = vmatpush1.bf16.msra.mxu0 0
      %1806 = vmatprep.subr.bf16.mxu0 0
      %1807 = vmatpush1.bf16.msra.mxu0 0
      %1808 = vmatprep.subr.bf16.mxu0 0
      %1809 = vmatpush1.bf16.msra.mxu0 0
      %1810 = vmatprep.subr.bf16.mxu0 0
      %1811 = vmatpush1.bf16.msra.mxu0 0
      %1812 = vmatprep.subr.bf16.mxu0 0
      %1813 = vmatpush1.bf16.msra.mxu0 0
      %1814 = vmatprep.mubr.bf16.mxu0 0
      %1815 = vmatmul.mubr.bf16.gmra.mrb[0].mxu0 %v610
      %v1816 = vpop.f32.mrb[0].mxu0
      %v1817 = vadd.f32 %v1768, %v1816
      %v1818 = vpop.f32.mrb[0].mxu0
      %v1819 = vpop.f32.mrb[0].mxu0
      %v1820 = vadd.f32 %v1768, %v1819
      %v1821 = vpop.f32.mrb[0].mxu0
      %1822 = vdwg.mxu0
      %s1823 = scalar_lea.vmem %s6, 48
      %v1824 = vld [vmem:[%s1823] sm:$0xf]
      %v1825 = vld [vmem:[%s1823 + $0x4] sm:$0xf]
      %v1826 = vld [vmem:[%s1823 + $0x8] sm:$0xf]
      %v1827 = vld [vmem:[%s1823 + $0xc] sm:$0xf]
      %s1828 = scalar_lea.vmem %s7, 3
      %v1829 = vld [vmem:[%s1828] sm:$0x1]
      %v1831 = vlaneseq
      %v1832 = vshrl.u32 %v1831, 7
      %v1833 = vsub.s32 0, %v1832
      %v1834 = vrot.slane %v1829, %v1833
      %v1840 = vunpack.c.l.b16 %v1824
      %v1841 = vunpack.c.l.b16 %v1825
      %v1842 = vunpack.c.l.b16 %v1826
      %v1843 = vunpack.c.l.b16 %v1827
      %v1844 = vpack.c.b16 %v1841, %v1840
      %v1845 = vpack.c.b16 %v1843, %v1842
      %1848 = vmatprep.subr.bf16.mxu0 0
      %1849 = vmatpush1.bf16.msra.mxu0 %v1844
      %1850 = vmatprep.subr.bf16.mxu0 0
      %1851 = vmatpush1.bf16.msra.mxu0 %v1845
      %1852 = vmatprep.subr.bf16.mxu0 0
      %1853 = vmatpush1.bf16.msra.mxu0 0
      %1854 = vmatprep.subr.bf16.mxu0 0
      %1855 = vmatpush1.bf16.msra.mxu0 0
      %1856 = vmatprep.subr.bf16.mxu0 0
      %1857 = vmatpush1.bf16.msra.mxu0 0
      %1858 = vmatprep.subr.bf16.mxu0 0
      %1859 = vmatpush1.bf16.msra.mxu0 0
      %1860 = vmatprep.subr.bf16.mxu0 0
      %1861 = vmatpush1.bf16.msra.mxu0 0
      %1862 = vmatprep.subr.bf16.mxu0 0
      %1863 = vmatpush1.bf16.msra.mxu0 0
      %1864 = vmatprep.subr.bf16.mxu0 0
      %1865 = vmatpush1.bf16.msra.mxu0 0
      %1866 = vmatprep.subr.bf16.mxu0 0
      %1867 = vmatpush1.bf16.msra.mxu0 0
      %1868 = vmatprep.subr.bf16.mxu0 0
      %1869 = vmatpush1.bf16.msra.mxu0 0
      %1870 = vmatprep.subr.bf16.mxu0 0
      %1871 = vmatpush1.bf16.msra.mxu0 0
      %1872 = vmatprep.subr.bf16.mxu0 0
      %1873 = vmatpush1.bf16.msra.mxu0 0
      %1874 = vmatprep.subr.bf16.mxu0 0
      %1875 = vmatpush1.bf16.msra.mxu0 0
      %1876 = vmatprep.subr.bf16.mxu0 0
      %1877 = vmatpush1.bf16.msra.mxu0 0
      %1878 = vmatprep.subr.bf16.mxu0 0
      %1879 = vmatpush1.bf16.msra.mxu0 0
      %1880 = vmatprep.mubr.bf16.mxu0 0
      %1881 = vmatmul.mubr.bf16.gmra.mrb[0].mxu0 %v741
      %v1882 = vpop.f32.mrb[0].mxu0
      %v1883 = vadd.f32 %v1834, %v1882
      %v1884 = vpop.f32.mrb[0].mxu0
      %v1885 = vpop.f32.mrb[0].mxu0
      %v1886 = vadd.f32 %v1834, %v1885
      %v1887 = vpop.f32.mrb[0].mxu0
      %1888 = vdwg.mxu0
      %v1889 = vpack.c.bf16 %v1754, %v1751
      %v1890 = vpack.c.bf16 %v1820, %v1817
      %v1892 = vsel %vm786, %v1889, 0
      %v1895 = vsel %vm786, %v1890, 0
      %1897 = vmatprep.subr.bf16.mxu0 0
      %1898 = vmatpush1.bf16.xpose.msra.mxu0 %v1895
      %1899 = vmatprep.subr.bf16.mxu0 0
      %1900 = vmatpush1.bf16.xpose.msra.mxu0 0
      %1901 = vmatprep.subr.bf16.mxu0 0
      %1902 = vmatpush1.bf16.xpose.msra.mxu0 0
      %1903 = vmatprep.subr.bf16.mxu0 0
      %1904 = vmatpush1.bf16.xpose.msra.mxu0 0
      %1905 = vmatprep.subr.bf16.mxu0 0
      %1906 = vmatpush1.bf16.xpose.msra.mxu0 0
      %1907 = vmatprep.subr.bf16.mxu0 0
      %1908 = vmatpush1.bf16.xpose.msra.mxu0 0
      %1909 = vmatprep.subr.bf16.mxu0 0
      %1910 = vmatpush1.bf16.xpose.msra.mxu0 0
      %1911 = vmatprep.subr.bf16.mxu0 0
      %1912 = vmatpush1.bf16.xpose.msra.mxu0 0
      %1913 = vmatprep.subr.bf16.mxu0 0
      %1914 = vmatpush1.bf16.xpose.msra.mxu0 0
      %1915 = vmatprep.subr.bf16.mxu0 0
      %1916 = vmatpush1.bf16.xpose.msra.mxu0 0
      %1917 = vmatprep.subr.bf16.mxu0 0
      %1918 = vmatpush1.bf16.xpose.msra.mxu0 0
      %1919 = vmatprep.subr.bf16.mxu0 0
      %1920 = vmatpush1.bf16.xpose.msra.mxu0 0
      %1921 = vmatprep.subr.bf16.mxu0 0
      %1922 = vmatpush1.bf16.xpose.msra.mxu0 0
      %1923 = vmatprep.subr.bf16.mxu0 0
      %1924 = vmatpush1.bf16.xpose.msra.mxu0 0
      %1925 = vmatprep.subr.bf16.mxu0 0
      %1926 = vmatpush1.bf16.xpose.msra.mxu0 0
      %1927 = vmatprep.subr.bf16.mxu0 0
      %1928 = vmatpush1.bf16.xpose.msra.mxu0 0
      %1929 = vmatprep.mubr.bf16.mxu0 0
      %1930 = vmatmul.mubr.bf16.gmra.mrb[0].mxu0 %v1892
      %v1931 = vpop.f32.mrb[0].mxu0
      %v1932 = vadd.f32 0.0, %v1931
      %v1933 = vpop.f32.mrb[0].mxu0
      %v1934 = vpop.f32.mrb[0].mxu0
      %v1935 = vadd.f32 0.0, %v1934
      %v1936 = vpop.f32.mrb[0].mxu0
      %1937 = vdwg.mxu0
      %v1938 = vmul.f32 %v1932, 0.35355338
      %v1939 = vmul.f32 %v1935, 0.35355338
      %v1940 = vsel %vm836, %v1938, -inf
      %1941 = vmax.xlane.f32.xlu0 %v1940
      %v1942 = vpop.xlane.xlu0 %1941
      %v1943 = vsel %vm836, %v1939, -inf
      %1944 = vmax.xlane.f32.xlu0 %v1943
      %v1945 = vpop.xlane.xlu0 %1944
      %v1946 = vsub.f32 %v1938, %v1942
      %v1947 = vsub.f32 %v1939, %v1945
      %v1948 = vmul.f32 %v1946, 1.442695
      %v1949 = vpow.pop %v1948
      %v1950 = vmul.f32 %v1947, 1.442695
      %v1951 = vpow.pop %v1950
      %v1952 = vsel %vm836, %v1949, 0.0
      %1953 = vadd.xlane.f32.xlu0 %v1952
      %v1954 = vpop.xlane.xlu0 %1953
      %v1955 = vsel %vm836, %v1951, 0.0
      %1956 = vadd.xlane.f32.xlu0 %v1955
      %v1957 = vpop.xlane.xlu0 %1956
      %v1958 = vrcp.pop %v1954
      %v1959 = vmul.f32 %v1949, %v1958
      %v1960 = vrcp.pop %v1957
      %v1961 = vmul.f32 %v1951, %v1960
      %v1962 = vpack.c.bf16 %v1961, %v1959
      %v1963 = vpack.c.bf16 %v1886, %v1883
      %v1965 = vsel %vm836, %v1962, 0
      %1967 = vmatprep.subr.bf16.mxu0 0
      %1968 = vmatpush1.bf16.msra.mxu0 %v1963
      %1969 = vmatprep.subr.bf16.mxu0 0
      %1970 = vmatpush1.bf16.msra.mxu0 0
      %1971 = vmatprep.subr.bf16.mxu0 0
      %1972 = vmatpush1.bf16.msra.mxu0 0
      %1973 = vmatprep.subr.bf16.mxu0 0
      %1974 = vmatpush1.bf16.msra.mxu0 0
      %1975 = vmatprep.subr.bf16.mxu0 0
      %1976 = vmatpush1.bf16.msra.mxu0 0
      %1977 = vmatprep.subr.bf16.mxu0 0
      %1978 = vmatpush1.bf16.msra.mxu0 0
      %1979 = vmatprep.subr.bf16.mxu0 0
      %1980 = vmatpush1.bf16.msra.mxu0 0
      %1981 = vmatprep.subr.bf16.mxu0 0
      %1982 = vmatpush1.bf16.msra.mxu0 0
      %1983 = vmatprep.subr.bf16.mxu0 0
      %1984 = vmatpush1.bf16.msra.mxu0 0
      %1985 = vmatprep.subr.bf16.mxu0 0
      %1986 = vmatpush1.bf16.msra.mxu0 0
      %1987 = vmatprep.subr.bf16.mxu0 0
      %1988 = vmatpush1.bf16.msra.mxu0 0
      %1989 = vmatprep.subr.bf16.mxu0 0
      %1990 = vmatpush1.bf16.msra.mxu0 0
      %1991 = vmatprep.subr.bf16.mxu0 0
      %1992 = vmatpush1.bf16.msra.mxu0 0
      %1993 = vmatprep.subr.bf16.mxu0 0
      %1994 = vmatpush1.bf16.msra.mxu0 0
      %1995 = vmatprep.subr.bf16.mxu0 0
      %1996 = vmatpush1.bf16.msra.mxu0 0
      %1997 = vmatprep.subr.bf16.mxu0 0
      %1998 = vmatpush1.bf16.msra.mxu0 0
      %1999 = vmatprep.mubr.bf16.mxu0 0
      %2000 = vmatmul.mubr.bf16.gmra.mrb[0].mxu0 %v1965
      %v2001 = vpop.f32.mrb[0].mxu0
      %v2002 = vadd.f32 0.0, %v2001
      %v2003 = vpop.f32.mrb[0].mxu0
      %v2004 = vpop.f32.mrb[0].mxu0
      %v2005 = vadd.f32 0.0, %v2004
      %v2006 = vpop.f32.mrb[0].mxu0
      %2007 = vdwg.mxu0
      %v2008 = vpack.c.bf16 %v2005, %v2002
      %s2009 = scalar_lea.vmem %s8, 12
      %v2010 = vld [vmem:[%s2009] sm:$0xf]
      %v2012 = vsel %vm786, %v2008, 0
      %v2015 = vsel %vm1230, %v2010, 0
      %2017 = vmatprep.subr.bf16.mxu0 0
      %2018 = vmatpush1.bf16.msra.mxu0 %v2015
      %2019 = vmatprep.subr.bf16.mxu0 0
      %2020 = vmatpush1.bf16.msra.mxu0 0
      %2021 = vmatprep.subr.bf16.mxu0 0
      %2022 = vmatpush1.bf16.msra.mxu0 0
      %2023 = vmatprep.subr.bf16.mxu0 0
      %2024 = vmatpush1.bf16.msra.mxu0 0
      %2025 = vmatprep.subr.bf16.mxu0 0
      %2026 = vmatpush1.bf16.msra.mxu0 0
      %2027 = vmatprep.subr.bf16.mxu0 0
      %2028 = vmatpush1.bf16.msra.mxu0 0
      %2029 = vmatprep.subr.bf16.mxu0 0
      %2030 = vmatpush1.bf16.msra.mxu0 0
      %2031 = vmatprep.subr.bf16.mxu0 0
      %2032 = vmatpush1.bf16.msra.mxu0 0
      %2033 = vmatprep.subr.bf16.mxu0 0
      %2034 = vmatpush1.bf16.msra.mxu0 0
      %2035 = vmatprep.subr.bf16.mxu0 0
      %2036 = vmatpush1.bf16.msra.mxu0 0
      %2037 = vmatprep.subr.bf16.mxu0 0
      %2038 = vmatpush1.bf16.msra.mxu0 0
      %2039 = vmatprep.subr.bf16.mxu0 0
      %2040 = vmatpush1.bf16.msra.mxu0 0
      %2041 = vmatprep.subr.bf16.mxu0 0
      %2042 = vmatpush1.bf16.msra.mxu0 0
      %2043 = vmatprep.subr.bf16.mxu0 0
      %2044 = vmatpush1.bf16.msra.mxu0 0
      %2045 = vmatprep.subr.bf16.mxu0 0
      %2046 = vmatpush1.bf16.msra.mxu0 0
      %2047 = vmatprep.subr.bf16.mxu0 0
      %2048 = vmatpush1.bf16.msra.mxu0 0
      %2049 = vmatprep.mubr.bf16.mxu0 0
      %2050 = vmatmul.mubr.bf16.gmra.mrb[0].mxu0 %v2012
      %v2051 = vpop.f32.mrb[0].mxu0
      %v2052 = vadd.f32 0.0, %v2051
      %v2053 = vpop.f32.mrb[0].mxu0
      %v2054 = vpop.f32.mrb[0].mxu0
      %v2055 = vadd.f32 0.0, %v2054
      %v2056 = vpop.f32.mrb[0].mxu0
      %2057 = vdwg.mxu0
      %v2058 = vadd.f32 %v1689, %v2052
      %v2059 = vadd.f32 %v1690, %v2055
      %v2060 = vld [vmem:[%s9] sm:$0x1]
      %v2062 = vlaneseq
      %v2063 = vshrl.u32 %v2062, 7
      %v2064 = vsub.s32 0, %v2063
      %v2065 = vrot.slane %v2060, %v2064
      %v2067 = vadd.f32 %v2058, %v2065
      %v2068 = vadd.f32 %v2059, %v2065
      %v2069 = vadd.f32 %v577, %v2067
      %v2070 = vadd.f32 %v578, %v2068
      %v2071 = vld [vmem:[%s10] sm:$0x1]
      %v2072 = vld [vmem:[%s11] sm:$0x1]
      %v2073 = vsel %vm608, %v2069, 0.0
      %2074 = vadd.xlane.f32.xlu0 %v2073
      %v2075 = vpop.xlane.xlu0 %2074
      %v2076 = vsel %vm608, %v2070, 0.0
      %2077 = vadd.xlane.f32.xlu0 %v2076
      %v2078 = vpop.xlane.xlu0 %2077
      %v2079 = vrcp.pop 32.0
      %v2080 = vmul.f32 %v2075, %v2079
      %v2081 = vmul.f32 %v2078, %v2079
      %v2082 = vsub.f32 %v2069, %v2080
      %v2083 = vsub.f32 %v2070, %v2081
      %v2084 = vmul.f32 %v2082, %v2082
      %v2085 = vmul.f32 %v2083, %v2083
      %v2086 = vsel %vm608, %v2084, 0.0
      %2087 = vadd.xlane.f32.xlu0 %v2086
      %v2088 = vpop.xlane.xlu0 %2087
      %v2089 = vsel %vm608, %v2085, 0.0
      %2090 = vadd.xlane.f32.xlu0 %v2089
      %v2091 = vpop.xlane.xlu0 %2090
      %v2092 = vmul.f32 %v2088, %v2079
      %v2093 = vmul.f32 %v2091, %v2079
      %v2094 = vadd.f32 %v2092, 1e-05
      %v2095 = vadd.f32 %v2093, 1e-05
      %v2096 = vrsqrt.pop %v2094
      %v2097 = vrsqrt.pop %v2095
      %v2098 = vmul.f32 %v2082, %v2096
      %v2099 = vmul.f32 %v2083, %v2097
      %v2101 = vlaneseq
      %v2102 = vshrl.u32 %v2101, 7
      %v2103 = vsub.s32 0, %v2102
      %v2104 = vrot.slane %v2071, %v2103
      %v2106 = vmul.f32 %v2098, %v2104
      %v2107 = vmul.f32 %v2099, %v2104
      %v2109 = vlaneseq
      %v2110 = vshrl.u32 %v2109, 7
      %v2111 = vsub.s32 0, %v2110
      %v2112 = vrot.slane %v2072, %v2111
      %v2114 = vadd.f32 %v2106, %v2112
      %v2115 = vadd.f32 %v2107, %v2112
      %v2116 = vpack.c.bf16 %v2115, %v2114
      %v2117 = vld [vmem:[%s12] sm:$0xf]
      %v2118 = vld [vmem:[%s12 + $0x4] sm:$0xf]
      %v2119 = vld [vmem:[%s12 + $0x8] sm:$0xf]
      %v2120 = vld [vmem:[%s12 + $0xc] sm:$0xf]
      %v2121 = vld [vmem:[%s13] sm:$0x1]
      %v2123 = vlaneseq
      %v2124 = vshrl.u32 %v2123, 7
      %v2125 = vsub.s32 0, %v2124
      %v2126 = vrot.slane %v2121, %v2125
      %v2132 = vunpack.c.l.b16 %v2117
      %v2133 = vunpack.c.l.b16 %v2118
      %v2134 = vunpack.c.l.b16 %v2119
      %v2135 = vunpack.c.l.b16 %v2120
      %v2136 = vpack.c.b16 %v2133, %v2132
      %v2137 = vpack.c.b16 %v2135, %v2134
      %v2141 = vsel %vm608, %v2116, 0
      %2143 = vmatprep.subr.bf16.mxu0 0
      %2144 = vmatpush1.bf16.msra.mxu0 %v2136
      %2145 = vmatprep.subr.bf16.mxu0 0
      %2146 = vmatpush1.bf16.msra.mxu0 %v2137
      %2147 = vmatprep.subr.bf16.mxu0 0
      %2148 = vmatpush1.bf16.msra.mxu0 0
      %2149 = vmatprep.subr.bf16.mxu0 0
      %2150 = vmatpush1.bf16.msra.mxu0 0
      %2151 = vmatprep.subr.bf16.mxu0 0
      %2152 = vmatpush1.bf16.msra.mxu0 0
      %2153 = vmatprep.subr.bf16.mxu0 0
      %2154 = vmatpush1.bf16.msra.mxu0 0
      %2155 = vmatprep.subr.bf16.mxu0 0
      %2156 = vmatpush1.bf16.msra.mxu0 0
      %2157 = vmatprep.subr.bf16.mxu0 0
      %2158 = vmatpush1.bf16.msra.mxu0 0
      %2159 = vmatprep.subr.bf16.mxu0 0
      %2160 = vmatpush1.bf16.msra.mxu0 0
      %2161 = vmatprep.subr.bf16.mxu0 0
      %2162 = vmatpush1.bf16.msra.mxu0 0
      %2163 = vmatprep.subr.bf16.mxu0 0
      %2164 = vmatpush1.bf16.msra.mxu0 0
      %2165 = vmatprep.subr.bf16.mxu0 0
      %2166 = vmatpush1.bf16.msra.mxu0 0
      %2167 = vmatprep.subr.bf16.mxu0 0
      %2168 = vmatpush1.bf16.msra.mxu0 0
      %2169 = vmatprep.subr.bf16.mxu0 0
      %2170 = vmatpush1.bf16.msra.mxu0 0
      %2171 = vmatprep.subr.bf16.mxu0 0
      %2172 = vmatpush1.bf16.msra.mxu0 0
      %2173 = vmatprep.subr.bf16.mxu0 0
      %2174 = vmatpush1.bf16.msra.mxu0 0
      %2175 = vmatprep.mubr.bf16.mxu0 0
      %2176 = vmatmul.mubr.bf16.gmra.mrb[0].mxu0 %v2141
      %v2177 = vpop.f32.mrb[0].mxu0
      %v2178 = vadd.f32 %v2126, %v2177
      %v2179 = vpop.f32.mrb[0].mxu0
      %v2180 = vpop.f32.mrb[0].mxu0
      %v2181 = vadd.f32 %v2126, %v2180
      %v2182 = vpop.f32.mrb[0].mxu0
      %2183 = vdwg.mxu0
      %v2184 = vmax.f32 %v2178, 0.0
      %v2185 = vmax.f32 %v2181, 0.0
      %v2186 = vpack.c.bf16 %v2185, %v2184
      %v2187 = vld [vmem:[%s14] sm:$0xf]
      %v2188 = vld [vmem:[%s14 + $0x4] sm:$0xf]
      %v2189 = vld [vmem:[%s14 + $0x8] sm:$0xf]
      %v2190 = vld [vmem:[%s14 + $0xc] sm:$0xf]
      %v2191 = vld [vmem:[%s14 + $0x10] sm:$0xf]
      %v2192 = vld [vmem:[%s14 + $0x14] sm:$0xf]
      %v2193 = vld [vmem:[%s14 + $0x18] sm:$0xf]
      %v2194 = vld [vmem:[%s14 + $0x1c] sm:$0xf]
      %v2195 = vld [vmem:[%s15] sm:$0x1]
      %v2197 = vlaneseq
      %v2198 = vshrl.u32 %v2197, 7
      %v2199 = vsub.s32 0, %v2198
      %v2200 = vrot.slane %v2195, %v2199
      %v2210 = vunpack.c.l.b16 %v2187
      %v2211 = vunpack.c.l.b16 %v2188
      %v2212 = vunpack.c.l.b16 %v2189
      %v2213 = vunpack.c.l.b16 %v2190
      %v2214 = vunpack.c.l.b16 %v2191
      %v2215 = vunpack.c.l.b16 %v2192
      %v2216 = vunpack.c.l.b16 %v2193
      %v2217 = vunpack.c.l.b16 %v2194
      %v2218 = vpack.c.b16 %v2211, %v2210
      %v2219 = vpack.c.b16 %v2213, %v2212
      %v2220 = vpack.c.b16 %v2215, %v2214
      %v2221 = vpack.c.b16 %v2217, %v2216
      %vm2226 = vcmask 523264
      %v2228 = vsel %vm2226, %v2186, 0
      %2230 = vmatprep.subr.bf16.mxu0 0
      %2231 = vmatpush1.bf16.msra.mxu0 %v2218
      %2232 = vmatprep.subr.bf16.mxu0 0
      %2233 = vmatpush1.bf16.msra.mxu0 %v2219
      %2234 = vmatprep.subr.bf16.mxu0 0
      %2235 = vmatpush1.bf16.msra.mxu0 %v2220
      %2236 = vmatprep.subr.bf16.mxu0 0
      %2237 = vmatpush1.bf16.msra.mxu0 %v2221
      %2238 = vmatprep.subr.bf16.mxu0 0
      %2239 = vmatpush1.bf16.msra.mxu0 0
      %2240 = vmatprep.subr.bf16.mxu0 0
      %2241 = vmatpush1.bf16.msra.mxu0 0
      %2242 = vmatprep.subr.bf16.mxu0 0
      %2243 = vmatpush1.bf16.msra.mxu0 0
      %2244 = vmatprep.subr.bf16.mxu0 0
      %2245 = vmatpush1.bf16.msra.mxu0 0
      %2246 = vmatprep.subr.bf16.mxu0 0
      %2247 = vmatpush1.bf16.msra.mxu0 0
      %2248 = vmatprep.subr.bf16.mxu0 0
      %2249 = vmatpush1.bf16.msra.mxu0 0
      %2250 = vmatprep.subr.bf16.mxu0 0
      %2251 = vmatpush1.bf16.msra.mxu0 0
      %2252 = vmatprep.subr.bf16.mxu0 0
      %2253 = vmatpush1.bf16.msra.mxu0 0
      %2254 = vmatprep.subr.bf16.mxu0 0
      %2255 = vmatpush1.bf16.msra.mxu0 0
      %2256 = vmatprep.subr.bf16.mxu0 0
      %2257 = vmatpush1.bf16.msra.mxu0 0
      %2258 = vmatprep.subr.bf16.mxu0 0
      %2259 = vmatpush1.bf16.msra.mxu0 0
      %2260 = vmatprep.subr.bf16.mxu0 0
      %2261 = vmatpush1.bf16.msra.mxu0 0
      %2262 = vmatprep.mubr.bf16.mxu0 0
      %2263 = vmatmul.mubr.bf16.gmra.mrb[0].mxu0 %v2228
      %v2264 = vpop.f32.mrb[0].mxu0
      %v2265 = vadd.f32 %v2200, %v2264
      %v2266 = vpop.f32.mrb[0].mxu0
      %v2267 = vpop.f32.mrb[0].mxu0
      %v2268 = vadd.f32 %v2200, %v2267
      %v2269 = vpop.f32.mrb[0].mxu0
      %2270 = vdwg.mxu0
      %v2271 = vadd.f32 %v2114, %v2265
      %v2272 = vadd.f32 %v2115, %v2268
      %v2273 = vld [vmem:[%s16] sm:$0x1]
      %v2274 = vld [vmem:[%s17] sm:$0x1]
      %v2275 = vsel %vm608, %v2271, 0.0
      %2276 = vadd.xlane.f32.xlu0 %v2275
      %v2277 = vpop.xlane.xlu0 %2276
      %v2278 = vsel %vm608, %v2272, 0.0
      %2279 = vadd.xlane.f32.xlu0 %v2278
      %v2280 = vpop.xlane.xlu0 %2279
      %v2281 = vmul.f32 %v2277, %v2079
      %v2282 = vmul.f32 %v2280, %v2079
      %v2283 = vsub.f32 %v2271, %v2281
      %v2284 = vsub.f32 %v2272, %v2282
      %v2285 = vmul.f32 %v2283, %v2283
      %v2286 = vmul.f32 %v2284, %v2284
      %v2287 = vsel %vm608, %v2285, 0.0
      %2288 = vadd.xlane.f32.xlu0 %v2287
      %v2289 = vpop.xlane.xlu0 %2288
      %v2290 = vsel %vm608, %v2286, 0.0
      %2291 = vadd.xlane.f32.xlu0 %v2290
      %v2292 = vpop.xlane.xlu0 %2291
      %v2293 = vmul.f32 %v2289, %v2079
      %v2294 = vmul.f32 %v2292, %v2079
      %v2295 = vadd.f32 %v2293, 1e-05
      %v2296 = vadd.f32 %v2294, 1e-05
      %v2297 = vrsqrt.pop %v2295
      %v2298 = vrsqrt.pop %v2296
      %v2299 = vmul.f32 %v2283, %v2297
      %v2300 = vmul.f32 %v2284, %v2298
      %v2302 = vlaneseq
      %v2303 = vshrl.u32 %v2302, 7
      %v2304 = vsub.s32 0, %v2303
      %v2305 = vrot.slane %v2273, %v2304
      %v2307 = vmul.f32 %v2299, %v2305
      %v2308 = vmul.f32 %v2300, %v2305
      %v2310 = vlaneseq
      %v2311 = vshrl.u32 %v2310, 7
      %v2312 = vsub.s32 0, %v2311
      %v2313 = vrot.slane %v2274, %v2312
      %v2315 = vadd.f32 %v2307, %v2313
      %v2316 = vadd.f32 %v2308, %v2313
      %2317 = vst.msk [vmem:[%s575] sm:$0xff] %vm608, %v2315
      %2318 = vst.msk [vmem:[%s575 + $0x8] sm:$0xff] %vm608, %v2316
      %p2319 = scmp.lt.s32.totalorder %s29, 1
      %s2320 = scalar_select %p2319, %s29, 1
      %s2321 = smul.addr %s2320, 2
      %s2322 = smul.addr %s2321, 8
      %s2323 = scalar_lea.vmem %s18, %s2322
      // Predicated region
      $region93: #{vision_detr_forward.7} parent=91 // pred_check
        %p2324 = pneg %p430
      $region94: #{vision_detr_forward.7} parent=91 // pred_check_branch
        %2326 = sbr.rel (%p2324) target = $region96
      $region95: #{vision_detr_forward.7} parent=91 // pred_region
        _
      $region96: #{vision_detr_forward.7} parent=91 // pred_fallthru
        _
    $region92: #{vision_detr_forward.7} parent=5 // pred_fallthru
      _
    %p2327 = scmp.le.s32.totalorder 2, %s24
    // Predicated region
    $region97: #{vision_detr_forward.7} parent=5 // pred_check
      %p2328 = pneg %p2327
    $region98: #{vision_detr_forward.7} parent=5 // pred_check_branch
      %2330 = sbr.rel (%p2328) target = $region100
    $region99: #{vision_detr_forward.7} parent=5 // pred_region
      %s2331 = ssub.s32 %s24, 2
      // Predicated region
      $region101: #{vision_detr_forward.7} parent=99 // pred_check
        %p2332 = pneg %p436
      $region102: #{vision_detr_forward.7} parent=99 // pred_check_branch
        %2334 = sbr.rel (%p2332) target = $region104
      $region103: #{vision_detr_forward.7} parent=99 // pred_region
        %p2335 = scmp.lt.s32.totalorder %s30, 1
        %s2336 = scalar_select %p2335, %s30, 1
        %s2337 = smul.addr %s2336, 2
        %s2338 = smul.addr %s2337, 8
        %s2339 = scalar_lea.vmem %s18, %s2338
      $region104: #{vision_detr_forward.7} parent=99 // pred_fallthru
        _
    $region100: #{vision_detr_forward.7} parent=5 // pred_fallthru
      _
  $region6: #{vision_detr_forward.7} parent=0 // loop_footer
    %s28 = sadd.s32 1, %s24
  $region7: #{vision_detr_forward.7} parent=0 // loop_footer_branch
    %23 = sbr.rel target = $region3
  $region8: #{vision_detr_forward.7} parent=0 // loop_exit
    _

// kernel: vision_detr_forward.9
$region0: #{vision_detr_forward.9}
  #allocation0 [shape = 'u32[]', space=smem, size = 0x4, offset = 0x4, fixed_abs, tag = 'smem constant byte address 0x4 - core index']
  #allocation1 [shape = 'u32[144,128]{1,0:T(1,128)}', space=vmem, size = 0x12000, scoped, tag = 'internal scratch']
  %s0 = inlined_call_operand.smem [shape: u32[31], index: -1, kind: input, shape index: {}]
  %s1 = sld [smem:[%s0]]
  %s2 = scalar_lea.smem %s0, 1
  %s3 = sld [smem:[%s2]]
  %s4 = scalar_lea.smem %s0, 2
  %s5 = sld [smem:[%s4]]
  %s6 = scalar_lea.smem %s0, 3
  %s7 = sld [smem:[%s6]]
  %s8 = scalar_lea.smem %s0, 4
  %s9 = sld [smem:[%s8]]
  %s10 = scalar_lea.smem %s0, 5
  %s11 = sld [smem:[%s10]]
  %s12 = scalar_lea.smem %s0, 6
  %s13 = sld [smem:[%s12]]
  %s14 = scalar_lea.smem %s0, 7
  %s15 = sld [smem:[%s14]]
  %s16 = scalar_lea.smem %s0, 8
  %s17 = sld [smem:[%s16]]
  %s18 = scalar_lea.smem %s0, 9
  %s19 = sld [smem:[%s18]]
  %s20 = scalar_lea.smem %s0, 10
  %s21 = sld [smem:[%s20]]
  %s22 = scalar_lea.smem %s0, 11
  %s23 = sld [smem:[%s22]]
  %s24 = scalar_lea.smem %s0, 12
  %s25 = sld [smem:[%s24]]
  %s26 = scalar_lea.smem %s0, 13
  %s27 = sld [smem:[%s26]]
  %s28 = scalar_lea.smem %s0, 14
  %s29 = sld [smem:[%s28]]
  %s30 = scalar_lea.smem %s0, 15
  %s31 = sld [smem:[%s30]]
  %s32 = scalar_lea.smem %s0, 16
  %s33 = sld [smem:[%s32]]
  %s34 = scalar_lea.smem %s0, 17
  %s35 = sld [smem:[%s34]]
  %s36 = scalar_lea.smem %s0, 18
  %s37 = sld [smem:[%s36]]
  %s38 = scalar_lea.smem %s0, 19
  %s39 = sld [smem:[%s38]]
  %s40 = scalar_lea.smem %s0, 20
  %s41 = sld [smem:[%s40]]
  %s42 = scalar_lea.smem %s0, 21
  %s43 = sld [smem:[%s42]]
  %s44 = scalar_lea.smem %s0, 22
  %s45 = sld [smem:[%s44]]
  %s46 = scalar_lea.smem %s0, 23
  %s47 = sld [smem:[%s46]]
  %s48 = scalar_lea.smem %s0, 24
  %s49 = sld [smem:[%s48]]
  %s50 = scalar_lea.smem %s0, 25
  %s51 = sld [smem:[%s50]]
  %s52 = scalar_lea.smem %s0, 26
  %s53 = sld [smem:[%s52]]
  %s54 = scalar_lea.smem %s0, 27
  %s55 = sld [smem:[%s54]]
  %s56 = scalar_lea.smem %s0, 28
  %s57 = sld [smem:[%s56]]
  %s58 = scalar_lea.smem %s0, 29
  %s59 = sld [smem:[%s58]]
  %s60 = scalar_lea.smem %s0, 30
  %s61 = sld [smem:[%s60]]
  %s62 = sld [smem:[#allocation0]]
  $region153: #{vision_detr_forward.9} parent=0
    _
  %s64 = ssub.s32 1, %s62
  %s65 = scalar_select 0, %s64, %s62
  loop: start=0, step=1, limit=4
  $region2: #{vision_detr_forward.9} parent=0 // loop_pre_header
    _
  $region3: #{vision_detr_forward.9} parent=0 // loop_header
    %s67 = sphi 0, %s71
    %p68 = scmp.ge.s32.totalorder %s67, 4
    %s77 = sphi 0, %s79
    %s80 = sphi 0, %s77
    %s81 = sphi 0, %s80
    %s97 = sphi 0, %s81
    %s101 = sphi 0, %s101
    %s103 = sphi 0, %s101
    %s104 = sphi 0, %s103
    %s118 = sphi 0, %s104
    %s124 = sphi 0, %s126
    %s127 = sphi 0, %s124
    %s128 = sphi 0, %s127
    %s144 = sphi 0, %s128
    %s148 = sphi 0, %s148
    %s150 = sphi 0, %s148
    %s151 = sphi 0, %s150
    %s165 = sphi 0, %s151
    %s169 = sphi 0, %s169
    %s171 = sphi 0, %s169
    %s172 = sphi 0, %s171
    %s186 = sphi 0, %s172
    %s190 = sphi 0, %s190
    %s192 = sphi 0, %s190
    %s193 = sphi 0, %s192
    %s207 = sphi 0, %s193
    %s211 = sphi 0, %s211
    %s213 = sphi 0, %s211
    %s214 = sphi 0, %s213
    %s228 = sphi 0, %s214
    %s232 = sphi 0, %s232
    %s234 = sphi 0, %s232
    %s235 = sphi 0, %s234
    %s249 = sphi 0, %s235
    %s253 = sphi 0, %s253
    %s255 = sphi 0, %s253
    %s256 = sphi 0, %s255
    %s270 = sphi 0, %s256
    %s274 = sphi 0, %s274
    %s276 = sphi 0, %s274
    %s277 = sphi 0, %s276
    %s291 = sphi 0, %s277
    %s295 = sphi 0, %s295
    %s297 = sphi 0, %s295
    %s298 = sphi 0, %s297
    %s312 = sphi 0, %s298
    %s316 = sphi 0, %s316
    %s318 = sphi 0, %s316
    %s319 = sphi 0, %s318
    %s333 = sphi 0, %s319
    %s337 = sphi 0, %s337
    %s339 = sphi 0, %s337
    %s340 = sphi 0, %s339
    %s354 = sphi 0, %s340
    %s358 = sphi 0, %s358
    %s360 = sphi 0, %s358
    %s361 = sphi 0, %s360
    %s375 = sphi 0, %s361
    %s379 = sphi 0, %s379
    %s381 = sphi 0, %s379
    %s382 = sphi 0, %s381
    %s396 = sphi 0, %s382
    %s400 = sphi 0, %s400
    %s402 = sphi 0, %s400
    %s403 = sphi 0, %s402
    %s417 = sphi 0, %s403
    %s421 = sphi 0, %s421
    %s423 = sphi 0, %s421
    %s424 = sphi 0, %s423
    %s438 = sphi 0, %s424
    %s442 = sphi 0, %s442
    %s444 = sphi 0, %s442
    %s445 = sphi 0, %s444
    %s459 = sphi 0, %s445
    %s463 = sphi 0, %s463
    %s465 = sphi 0, %s463
    %s466 = sphi 0, %s465
    %s480 = sphi 0, %s466
    %s484 = sphi 0, %s484
    %s486 = sphi 0, %s484
    %s487 = sphi 0, %s486
    %s501 = sphi 0, %s487
    %s505 = sphi 0, %s505
    %s507 = sphi 0, %s505
    %s508 = sphi 0, %s507
    %s522 = sphi 0, %s508
    %s526 = sphi 0, %s526
    %s528 = sphi 0, %s526
    %s529 = sphi 0, %s528
    %s543 = sphi 0, %s529
    %s547 = sphi 0, %s547
    %s549 = sphi 0, %s547
    %s550 = sphi 0, %s549
    %s564 = sphi 0, %s550
    %s568 = sphi 0, %s568
    %s570 = sphi 0, %s568
    %s571 = sphi 0, %s570
    %s585 = sphi 0, %s571
    %s589 = sphi 0, %s589
    %s591 = sphi 0, %s589
    %s592 = sphi 0, %s591
    %s606 = sphi 0, %s592
    %s610 = sphi 0, %s610
    %s612 = sphi 0, %s610
    %s613 = sphi 0, %s612
    %s627 = sphi 0, %s613
    %s631 = sphi 0, %s631
    %s633 = sphi 0, %s631
    %s634 = sphi 0, %s633
    %s648 = sphi 0, %s634
    %s652 = sphi 0, %s652
    %s654 = sphi 0, %s652
    %s655 = sphi 0, %s654
    %s669 = sphi 0, %s655
    %s673 = sphi 0, %s673
    %s675 = sphi 0, %s673
    %s676 = sphi 0, %s675
    %s690 = sphi 0, %s676
    %s694 = sphi 0, %s694
    %s696 = sphi 0, %s694
    %s697 = sphi 0, %s696
    %s711 = sphi 0, %s697
    %s717 = sphi 0, %s719
    %s720 = sphi 0, %s717
    %s721 = sphi 0, %s720
    %s737 = sphi 0, %s721
  $region4: #{vision_detr_forward.9} parent=0 // loop_header_branch
    %70 = sbr.rel (%p68) target = $region8
  $region5: #{vision_detr_forward.9} parent=0 // loop_body
    %s72 = ssub.s32 %s67, 1
    %s73 = ssub.s32 %s67, 2
    %s74 = sadd.s32 %s67, 1
    %s75 = ssub.s32 %s67, %s74
    %p76 = scmp.eq.s32.totalorder %s75, 0
    %s78 = sadd.s32 %s77, 1
    %s79 = scalar_select %p76, %s77, %s78
    %p82 = pneg %p76
    %p83 = scmp.eq.s32.totalorder %s67, 1
    %p84 = por %p82, %p83
    %p85 = scmp.ne.s32.totalorder %s77, %s80
    %p86 = scmp.eq.s32.totalorder %s67, 0
    %p87 = por %p85, %p86
    %p88 = scmp.ne.s32.totalorder %s77, %s80
    %p89 = scmp.eq.s32.totalorder %s72, 1
    %p90 = por %p88, %p89
    %p91 = scmp.ne.s32.totalorder %s80, %s81
    %p92 = scmp.eq.s32.totalorder %s72, 0
    %p93 = por %p91, %p92
    %p94 = scmp.ne.s32.totalorder %s80, %s81
    %p95 = scmp.eq.s32.totalorder %s73, 1
    %p96 = por %p94, %p95
    %p98 = scmp.ne.s32.totalorder %s81, %s97
    %p99 = scmp.eq.s32.totalorder %s73, 0
    %p100 = por %p98, %p99
    %s102 = sadd.s32 %s101, 1
    %p105 = scmp.eq.s32.totalorder %s67, 1
    %p106 = scmp.ne.s32.totalorder %s101, %s103
    %p107 = scmp.eq.s32.totalorder %s67, 0
    %p108 = por %p106, %p107
    %p109 = scmp.ne.s32.totalorder %s101, %s103
    %p110 = scmp.eq.s32.totalorder %s72, 1
    %p111 = por %p109, %p110
    %p112 = scmp.ne.s32.totalorder %s103, %s104
    %p113 = scmp.eq.s32.totalorder %s72, 0
    %p114 = por %p112, %p113
    %p115 = scmp.ne.s32.totalorder %s103, %s104
    %p116 = scmp.eq.s32.totalorder %s73, 1
    %p117 = por %p115, %p116
    %p119 = scmp.ne.s32.totalorder %s104, %s118
    %p120 = scmp.eq.s32.totalorder %s73, 0
    %p121 = por %p119, %p120
    %s122 = ssub.s32 %s67, %s74
    %p123 = scmp.eq.s32.totalorder %s122, 0
    %s125 = sadd.s32 %s124, 1
    %s126 = scalar_select %p123, %s124, %s125
    %p129 = pneg %p123
    %p130 = scmp.eq.s32.totalorder %s67, 1
    %p131 = por %p129, %p130
    %p132 = scmp.ne.s32.totalorder %s124, %s127
    %p133 = scmp.eq.s32.totalorder %s67, 0
    %p134 = por %p132, %p133
    %p135 = scmp.ne.s32.totalorder %s124, %s127
    %p136 = scmp.eq.s32.totalorder %s72, 1
    %p137 = por %p135, %p136
    %p138 = scmp.ne.s32.totalorder %s127, %s128
    %p139 = scmp.eq.s32.totalorder %s72, 0
    %p140 = por %p138, %p139
    %p141 = scmp.ne.s32.totalorder %s127, %s128
    %p142 = scmp.eq.s32.totalorder %s73, 1
    %p143 = por %p141, %p142
    %p145 = scmp.ne.s32.totalorder %s128, %s144
    %p146 = scmp.eq.s32.totalorder %s73, 0
    %p147 = por %p145, %p146
    %s149 = sadd.s32 %s148, 1
    %p152 = scmp.eq.s32.totalorder %s67, 1
    %p153 = scmp.ne.s32.totalorder %s148, %s150
    %p154 = scmp.eq.s32.totalorder %s67, 0
    %p155 = por %p153, %p154
    %p156 = scmp.ne.s32.totalorder %s148, %s150
    %p157 = scmp.eq.s32.totalorder %s72, 1
    %p158 = por %p156, %p157
    %p159 = scmp.ne.s32.totalorder %s150, %s151
    %p160 = scmp.eq.s32.totalorder %s72, 0
    %p161 = por %p159, %p160
    %p162 = scmp.ne.s32.totalorder %s150, %s151
    %p163 = scmp.eq.s32.totalorder %s73, 1
    %p164 = por %p162, %p163
    %p166 = scmp.ne.s32.totalorder %s151, %s165
    %p167 = scmp.eq.s32.totalorder %s73, 0
    %p168 = por %p166, %p167
    %s170 = sadd.s32 %s169, 1
    %p173 = scmp.eq.s32.totalorder %s67, 1
    %p174 = scmp.ne.s32.totalorder %s169, %s171
    %p175 = scmp.eq.s32.totalorder %s67, 0
    %p176 = por %p174, %p175
    %p177 = scmp.ne.s32.totalorder %s169, %s171
    %p178 = scmp.eq.s32.totalorder %s72, 1
    %p179 = por %p177, %p178
    %p180 = scmp.ne.s32.totalorder %s171, %s172
    %p181 = scmp.eq.s32.totalorder %s72, 0
    %p182 = por %p180, %p181
    %p183 = scmp.ne.s32.totalorder %s171, %s172
    %p184 = scmp.eq.s32.totalorder %s73, 1
    %p185 = por %p183, %p184
    %p187 = scmp.ne.s32.totalorder %s172, %s186
    %p188 = scmp.eq.s32.totalorder %s73, 0
    %p189 = por %p187, %p188
    %s191 = sadd.s32 %s190, 1
    %p194 = scmp.eq.s32.totalorder %s67, 1
    %p195 = scmp.ne.s32.totalorder %s190, %s192
    %p196 = scmp.eq.s32.totalorder %s67, 0
    %p197 = por %p195, %p196
    %p198 = scmp.ne.s32.totalorder %s190, %s192
    %p199 = scmp.eq.s32.totalorder %s72, 1
    %p200 = por %p198, %p199
    %p201 = scmp.ne.s32.totalorder %s192, %s193
    %p202 = scmp.eq.s32.totalorder %s72, 0
    %p203 = por %p201, %p202
    %p204 = scmp.ne.s32.totalorder %s192, %s193
    %p205 = scmp.eq.s32.totalorder %s73, 1
    %p206 = por %p204, %p205
    %p208 = scmp.ne.s32.totalorder %s193, %s207
    %p209 = scmp.eq.s32.totalorder %s73, 0
    %p210 = por %p208, %p209
    %s212 = sadd.s32 %s211, 1
    %p215 = scmp.eq.s32.totalorder %s67, 1
    %p216 = scmp.ne.s32.totalorder %s211, %s213
    %p217 = scmp.eq.s32.totalorder %s67, 0
    %p218 = por %p216, %p217
    %p219 = scmp.ne.s32.totalorder %s211, %s213
    %p220 = scmp.eq.s32.totalorder %s72, 1
    %p221 = por %p219, %p220
    %p222 = scmp.ne.s32.totalorder %s213, %s214
    %p223 = scmp.eq.s32.totalorder %s72, 0
    %p224 = por %p222, %p223
    %p225 = scmp.ne.s32.totalorder %s213, %s214
    %p226 = scmp.eq.s32.totalorder %s73, 1
    %p227 = por %p225, %p226
    %p229 = scmp.ne.s32.totalorder %s214, %s228
    %p230 = scmp.eq.s32.totalorder %s73, 0
    %p231 = por %p229, %p230
    %s233 = sadd.s32 %s232, 1
    %p236 = scmp.eq.s32.totalorder %s67, 1
    %p237 = scmp.ne.s32.totalorder %s232, %s234
    %p238 = scmp.eq.s32.totalorder %s67, 0
    %p239 = por %p237, %p238
    %p240 = scmp.ne.s32.totalorder %s232, %s234
    %p241 = scmp.eq.s32.totalorder %s72, 1
    %p242 = por %p240, %p241
    %p243 = scmp.ne.s32.totalorder %s234, %s235
    %p244 = scmp.eq.s32.totalorder %s72, 0
    %p245 = por %p243, %p244
    %p246 = scmp.ne.s32.totalorder %s234, %s235
    %p247 = scmp.eq.s32.totalorder %s73, 1
    %p248 = por %p246, %p247
    %p250 = scmp.ne.s32.totalorder %s235, %s249
    %p251 = scmp.eq.s32.totalorder %s73, 0
    %p252 = por %p250, %p251
    %s254 = sadd.s32 %s253, 1
    %p257 = scmp.eq.s32.totalorder %s67, 1
    %p258 = scmp.ne.s32.totalorder %s253, %s255
    %p259 = scmp.eq.s32.totalorder %s67, 0
    %p260 = por %p258, %p259
    %p261 = scmp.ne.s32.totalorder %s253, %s255
    %p262 = scmp.eq.s32.totalorder %s72, 1
    %p263 = por %p261, %p262
    %p264 = scmp.ne.s32.totalorder %s255, %s256
    %p265 = scmp.eq.s32.totalorder %s72, 0
    %p266 = por %p264, %p265
    %p267 = scmp.ne.s32.totalorder %s255, %s256
    %p268 = scmp.eq.s32.totalorder %s73, 1
    %p269 = por %p267, %p268
    %p271 = scmp.ne.s32.totalorder %s256, %s270
    %p272 = scmp.eq.s32.totalorder %s73, 0
    %p273 = por %p271, %p272
    %s275 = sadd.s32 %s274, 1
    %p278 = scmp.eq.s32.totalorder %s67, 1
    %p279 = scmp.ne.s32.totalorder %s274, %s276
    %p280 = scmp.eq.s32.totalorder %s67, 0
    %p281 = por %p279, %p280
    %p282 = scmp.ne.s32.totalorder %s274, %s276
    %p283 = scmp.eq.s32.totalorder %s72, 1
    %p284 = por %p282, %p283
    %p285 = scmp.ne.s32.totalorder %s276, %s277
    %p286 = scmp.eq.s32.totalorder %s72, 0
    %p287 = por %p285, %p286
    %p288 = scmp.ne.s32.totalorder %s276, %s277
    %p289 = scmp.eq.s32.totalorder %s73, 1
    %p290 = por %p288, %p289
    %p292 = scmp.ne.s32.totalorder %s277, %s291
    %p293 = scmp.eq.s32.totalorder %s73, 0
    %p294 = por %p292, %p293
    %s296 = sadd.s32 %s295, 1
    %p299 = scmp.eq.s32.totalorder %s67, 1
    %p300 = scmp.ne.s32.totalorder %s295, %s297
    %p301 = scmp.eq.s32.totalorder %s67, 0
    %p302 = por %p300, %p301
    %p303 = scmp.ne.s32.totalorder %s295, %s297
    %p304 = scmp.eq.s32.totalorder %s72, 1
    %p305 = por %p303, %p304
    %p306 = scmp.ne.s32.totalorder %s297, %s298
    %p307 = scmp.eq.s32.totalorder %s72, 0
    %p308 = por %p306, %p307
    %p309 = scmp.ne.s32.totalorder %s297, %s298
    %p310 = scmp.eq.s32.totalorder %s73, 1
    %p311 = por %p309, %p310
    %p313 = scmp.ne.s32.totalorder %s298, %s312
    %p314 = scmp.eq.s32.totalorder %s73, 0
    %p315 = por %p313, %p314
    %s317 = sadd.s32 %s316, 1
    %p320 = scmp.eq.s32.totalorder %s67, 1
    %p321 = scmp.ne.s32.totalorder %s316, %s318
    %p322 = scmp.eq.s32.totalorder %s67, 0
    %p323 = por %p321, %p322
    %p324 = scmp.ne.s32.totalorder %s316, %s318
    %p325 = scmp.eq.s32.totalorder %s72, 1
    %p326 = por %p324, %p325
    %p327 = scmp.ne.s32.totalorder %s318, %s319
    %p328 = scmp.eq.s32.totalorder %s72, 0
    %p329 = por %p327, %p328
    %p330 = scmp.ne.s32.totalorder %s318, %s319
    %p331 = scmp.eq.s32.totalorder %s73, 1
    %p332 = por %p330, %p331
    %p334 = scmp.ne.s32.totalorder %s319, %s333
    %p335 = scmp.eq.s32.totalorder %s73, 0
    %p336 = por %p334, %p335
    %s338 = sadd.s32 %s337, 1
    %p341 = scmp.eq.s32.totalorder %s67, 1
    %p342 = scmp.ne.s32.totalorder %s337, %s339
    %p343 = scmp.eq.s32.totalorder %s67, 0
    %p344 = por %p342, %p343
    %p345 = scmp.ne.s32.totalorder %s337, %s339
    %p346 = scmp.eq.s32.totalorder %s72, 1
    %p347 = por %p345, %p346
    %p348 = scmp.ne.s32.totalorder %s339, %s340
    %p349 = scmp.eq.s32.totalorder %s72, 0
    %p350 = por %p348, %p349
    %p351 = scmp.ne.s32.totalorder %s339, %s340
    %p352 = scmp.eq.s32.totalorder %s73, 1
    %p353 = por %p351, %p352
    %p355 = scmp.ne.s32.totalorder %s340, %s354
    %p356 = scmp.eq.s32.totalorder %s73, 0
    %p357 = por %p355, %p356
    %s359 = sadd.s32 %s358, 1
    %p362 = scmp.eq.s32.totalorder %s67, 1
    %p363 = scmp.ne.s32.totalorder %s358, %s360
    %p364 = scmp.eq.s32.totalorder %s67, 0
    %p365 = por %p363, %p364
    %p366 = scmp.ne.s32.totalorder %s358, %s360
    %p367 = scmp.eq.s32.totalorder %s72, 1
    %p368 = por %p366, %p367
    %p369 = scmp.ne.s32.totalorder %s360, %s361
    %p370 = scmp.eq.s32.totalorder %s72, 0
    %p371 = por %p369, %p370
    %p372 = scmp.ne.s32.totalorder %s360, %s361
    %p373 = scmp.eq.s32.totalorder %s73, 1
    %p374 = por %p372, %p373
    %p376 = scmp.ne.s32.totalorder %s361, %s375
    %p377 = scmp.eq.s32.totalorder %s73, 0
    %p378 = por %p376, %p377
    %s380 = sadd.s32 %s379, 1
    %p383 = scmp.eq.s32.totalorder %s67, 1
    %p384 = scmp.ne.s32.totalorder %s379, %s381
    %p385 = scmp.eq.s32.totalorder %s67, 0
    %p386 = por %p384, %p385
    %p387 = scmp.ne.s32.totalorder %s379, %s381
    %p388 = scmp.eq.s32.totalorder %s72, 1
    %p389 = por %p387, %p388
    %p390 = scmp.ne.s32.totalorder %s381, %s382
    %p391 = scmp.eq.s32.totalorder %s72, 0
    %p392 = por %p390, %p391
    %p393 = scmp.ne.s32.totalorder %s381, %s382
    %p394 = scmp.eq.s32.totalorder %s73, 1
    %p395 = por %p393, %p394
    %p397 = scmp.ne.s32.totalorder %s382, %s396
    %p398 = scmp.eq.s32.totalorder %s73, 0
    %p399 = por %p397, %p398
    %s401 = sadd.s32 %s400, 1
    %p404 = scmp.eq.s32.totalorder %s67, 1
    %p405 = scmp.ne.s32.totalorder %s400, %s402
    %p406 = scmp.eq.s32.totalorder %s67, 0
    %p407 = por %p405, %p406
    %p408 = scmp.ne.s32.totalorder %s400, %s402
    %p409 = scmp.eq.s32.totalorder %s72, 1
    %p410 = por %p408, %p409
    %p411 = scmp.ne.s32.totalorder %s402, %s403
    %p412 = scmp.eq.s32.totalorder %s72, 0
    %p413 = por %p411, %p412
    %p414 = scmp.ne.s32.totalorder %s402, %s403
    %p415 = scmp.eq.s32.totalorder %s73, 1
    %p416 = por %p414, %p415
    %p418 = scmp.ne.s32.totalorder %s403, %s417
    %p419 = scmp.eq.s32.totalorder %s73, 0
    %p420 = por %p418, %p419
    %s422 = sadd.s32 %s421, 1
    %p425 = scmp.eq.s32.totalorder %s67, 1
    %p426 = scmp.ne.s32.totalorder %s421, %s423
    %p427 = scmp.eq.s32.totalorder %s67, 0
    %p428 = por %p426, %p427
    %p429 = scmp.ne.s32.totalorder %s421, %s423
    %p430 = scmp.eq.s32.totalorder %s72, 1
    %p431 = por %p429, %p430
    %p432 = scmp.ne.s32.totalorder %s423, %s424
    %p433 = scmp.eq.s32.totalorder %s72, 0
    %p434 = por %p432, %p433
    %p435 = scmp.ne.s32.totalorder %s423, %s424
    %p436 = scmp.eq.s32.totalorder %s73, 1
    %p437 = por %p435, %p436
    %p439 = scmp.ne.s32.totalorder %s424, %s438
    %p440 = scmp.eq.s32.totalorder %s73, 0
    %p441 = por %p439, %p440
    %s443 = sadd.s32 %s442, 1
    %p446 = scmp.eq.s32.totalorder %s67, 1
    %p447 = scmp.ne.s32.totalorder %s442, %s444
    %p448 = scmp.eq.s32.totalorder %s67, 0
    %p449 = por %p447, %p448
    %p450 = scmp.ne.s32.totalorder %s442, %s444
    %p451 = scmp.eq.s32.totalorder %s72, 1
    %p452 = por %p450, %p451
    %p453 = scmp.ne.s32.totalorder %s444, %s445
    %p454 = scmp.eq.s32.totalorder %s72, 0
    %p455 = por %p453, %p454
    %p456 = scmp.ne.s32.totalorder %s444, %s445
    %p457 = scmp.eq.s32.totalorder %s73, 1
    %p458 = por %p456, %p457
    %p460 = scmp.ne.s32.totalorder %s445, %s459
    %p461 = scmp.eq.s32.totalorder %s73, 0
    %p462 = por %p460, %p461
    %s464 = sadd.s32 %s463, 1
    %p467 = scmp.eq.s32.totalorder %s67, 1
    %p468 = scmp.ne.s32.totalorder %s463, %s465
    %p469 = scmp.eq.s32.totalorder %s67, 0
    %p470 = por %p468, %p469
    %p471 = scmp.ne.s32.totalorder %s463, %s465
    %p472 = scmp.eq.s32.totalorder %s72, 1
    %p473 = por %p471, %p472
    %p474 = scmp.ne.s32.totalorder %s465, %s466
    %p475 = scmp.eq.s32.totalorder %s72, 0
    %p476 = por %p474, %p475
    %p477 = scmp.ne.s32.totalorder %s465, %s466
    %p478 = scmp.eq.s32.totalorder %s73, 1
    %p479 = por %p477, %p478
    %p481 = scmp.ne.s32.totalorder %s466, %s480
    %p482 = scmp.eq.s32.totalorder %s73, 0
    %p483 = por %p481, %p482
    %s485 = sadd.s32 %s484, 1
    %p488 = scmp.eq.s32.totalorder %s67, 1
    %p489 = scmp.ne.s32.totalorder %s484, %s486
    %p490 = scmp.eq.s32.totalorder %s67, 0
    %p491 = por %p489, %p490
    %p492 = scmp.ne.s32.totalorder %s484, %s486
    %p493 = scmp.eq.s32.totalorder %s72, 1
    %p494 = por %p492, %p493
    %p495 = scmp.ne.s32.totalorder %s486, %s487
    %p496 = scmp.eq.s32.totalorder %s72, 0
    %p497 = por %p495, %p496
    %p498 = scmp.ne.s32.totalorder %s486, %s487
    %p499 = scmp.eq.s32.totalorder %s73, 1
    %p500 = por %p498, %p499
    %p502 = scmp.ne.s32.totalorder %s487, %s501
    %p503 = scmp.eq.s32.totalorder %s73, 0
    %p504 = por %p502, %p503
    %s506 = sadd.s32 %s505, 1
    %p509 = scmp.eq.s32.totalorder %s67, 1
    %p510 = scmp.ne.s32.totalorder %s505, %s507
    %p511 = scmp.eq.s32.totalorder %s67, 0
    %p512 = por %p510, %p511
    %p513 = scmp.ne.s32.totalorder %s505, %s507
    %p514 = scmp.eq.s32.totalorder %s72, 1
    %p515 = por %p513, %p514
    %p516 = scmp.ne.s32.totalorder %s507, %s508
    %p517 = scmp.eq.s32.totalorder %s72, 0
    %p518 = por %p516, %p517
    %p519 = scmp.ne.s32.totalorder %s507, %s508
    %p520 = scmp.eq.s32.totalorder %s73, 1
    %p521 = por %p519, %p520
    %p523 = scmp.ne.s32.totalorder %s508, %s522
    %p524 = scmp.eq.s32.totalorder %s73, 0
    %p525 = por %p523, %p524
    %s527 = sadd.s32 %s526, 1
    %p530 = scmp.eq.s32.totalorder %s67, 1
    %p531 = scmp.ne.s32.totalorder %s526, %s528
    %p532 = scmp.eq.s32.totalorder %s67, 0
    %p533 = por %p531, %p532
    %p534 = scmp.ne.s32.totalorder %s526, %s528
    %p535 = scmp.eq.s32.totalorder %s72, 1
    %p536 = por %p534, %p535
    %p537 = scmp.ne.s32.totalorder %s528, %s529
    %p538 = scmp.eq.s32.totalorder %s72, 0
    %p539 = por %p537, %p538
    %p540 = scmp.ne.s32.totalorder %s528, %s529
    %p541 = scmp.eq.s32.totalorder %s73, 1
    %p542 = por %p540, %p541
    %p544 = scmp.ne.s32.totalorder %s529, %s543
    %p545 = scmp.eq.s32.totalorder %s73, 0
    %p546 = por %p544, %p545
    %s548 = sadd.s32 %s547, 1
    %p551 = scmp.eq.s32.totalorder %s67, 1
    %p552 = scmp.ne.s32.totalorder %s547, %s549
    %p553 = scmp.eq.s32.totalorder %s67, 0
    %p554 = por %p552, %p553
    %p555 = scmp.ne.s32.totalorder %s547, %s549
    %p556 = scmp.eq.s32.totalorder %s72, 1
    %p557 = por %p555, %p556
    %p558 = scmp.ne.s32.totalorder %s549, %s550
    %p559 = scmp.eq.s32.totalorder %s72, 0
    %p560 = por %p558, %p559
    %p561 = scmp.ne.s32.totalorder %s549, %s550
    %p562 = scmp.eq.s32.totalorder %s73, 1
    %p563 = por %p561, %p562
    %p565 = scmp.ne.s32.totalorder %s550, %s564
    %p566 = scmp.eq.s32.totalorder %s73, 0
    %p567 = por %p565, %p566
    %s569 = sadd.s32 %s568, 1
    %p572 = scmp.eq.s32.totalorder %s67, 1
    %p573 = scmp.ne.s32.totalorder %s568, %s570
    %p574 = scmp.eq.s32.totalorder %s67, 0
    %p575 = por %p573, %p574
    %p576 = scmp.ne.s32.totalorder %s568, %s570
    %p577 = scmp.eq.s32.totalorder %s72, 1
    %p578 = por %p576, %p577
    %p579 = scmp.ne.s32.totalorder %s570, %s571
    %p580 = scmp.eq.s32.totalorder %s72, 0
    %p581 = por %p579, %p580
    %p582 = scmp.ne.s32.totalorder %s570, %s571
    %p583 = scmp.eq.s32.totalorder %s73, 1
    %p584 = por %p582, %p583
    %p586 = scmp.ne.s32.totalorder %s571, %s585
    %p587 = scmp.eq.s32.totalorder %s73, 0
    %p588 = por %p586, %p587
    %s590 = sadd.s32 %s589, 1
    %p593 = scmp.eq.s32.totalorder %s67, 1
    %p594 = scmp.ne.s32.totalorder %s589, %s591
    %p595 = scmp.eq.s32.totalorder %s67, 0
    %p596 = por %p594, %p595
    %p597 = scmp.ne.s32.totalorder %s589, %s591
    %p598 = scmp.eq.s32.totalorder %s72, 1
    %p599 = por %p597, %p598
    %p600 = scmp.ne.s32.totalorder %s591, %s592
    %p601 = scmp.eq.s32.totalorder %s72, 0
    %p602 = por %p600, %p601
    %p603 = scmp.ne.s32.totalorder %s591, %s592
    %p604 = scmp.eq.s32.totalorder %s73, 1
    %p605 = por %p603, %p604
    %p607 = scmp.ne.s32.totalorder %s592, %s606
    %p608 = scmp.eq.s32.totalorder %s73, 0
    %p609 = por %p607, %p608
    %s611 = sadd.s32 %s610, 1
    %p614 = scmp.eq.s32.totalorder %s67, 1
    %p615 = scmp.ne.s32.totalorder %s610, %s612
    %p616 = scmp.eq.s32.totalorder %s67, 0
    %p617 = por %p615, %p616
    %p618 = scmp.ne.s32.totalorder %s610, %s612
    %p619 = scmp.eq.s32.totalorder %s72, 1
    %p620 = por %p618, %p619
    %p621 = scmp.ne.s32.totalorder %s612, %s613
    %p622 = scmp.eq.s32.totalorder %s72, 0
    %p623 = por %p621, %p622
    %p624 = scmp.ne.s32.totalorder %s612, %s613
    %p625 = scmp.eq.s32.totalorder %s73, 1
    %p626 = por %p624, %p625
    %p628 = scmp.ne.s32.totalorder %s613, %s627
    %p629 = scmp.eq.s32.totalorder %s73, 0
    %p630 = por %p628, %p629
    %s632 = sadd.s32 %s631, 1
    %p635 = scmp.eq.s32.totalorder %s67, 1
    %p636 = scmp.ne.s32.totalorder %s631, %s633
    %p637 = scmp.eq.s32.totalorder %s67, 0
    %p638 = por %p636, %p637
    %p639 = scmp.ne.s32.totalorder %s631, %s633
    %p640 = scmp.eq.s32.totalorder %s72, 1
    %p641 = por %p639, %p640
    %p642 = scmp.ne.s32.totalorder %s633, %s634
    %p643 = scmp.eq.s32.totalorder %s72, 0
    %p644 = por %p642, %p643
    %p645 = scmp.ne.s32.totalorder %s633, %s634
    %p646 = scmp.eq.s32.totalorder %s73, 1
    %p647 = por %p645, %p646
    %p649 = scmp.ne.s32.totalorder %s634, %s648
    %p650 = scmp.eq.s32.totalorder %s73, 0
    %p651 = por %p649, %p650
    %s653 = sadd.s32 %s652, 1
    %p656 = scmp.eq.s32.totalorder %s67, 1
    %p657 = scmp.ne.s32.totalorder %s652, %s654
    %p658 = scmp.eq.s32.totalorder %s67, 0
    %p659 = por %p657, %p658
    %p660 = scmp.ne.s32.totalorder %s652, %s654
    %p661 = scmp.eq.s32.totalorder %s72, 1
    %p662 = por %p660, %p661
    %p663 = scmp.ne.s32.totalorder %s654, %s655
    %p664 = scmp.eq.s32.totalorder %s72, 0
    %p665 = por %p663, %p664
    %p666 = scmp.ne.s32.totalorder %s654, %s655
    %p667 = scmp.eq.s32.totalorder %s73, 1
    %p668 = por %p666, %p667
    %p670 = scmp.ne.s32.totalorder %s655, %s669
    %p671 = scmp.eq.s32.totalorder %s73, 0
    %p672 = por %p670, %p671
    %s674 = sadd.s32 %s673, 1
    %p677 = scmp.eq.s32.totalorder %s67, 1
    %p678 = scmp.ne.s32.totalorder %s673, %s675
    %p679 = scmp.eq.s32.totalorder %s67, 0
    %p680 = por %p678, %p679
    %p681 = scmp.ne.s32.totalorder %s673, %s675
    %p682 = scmp.eq.s32.totalorder %s72, 1
    %p683 = por %p681, %p682
    %p684 = scmp.ne.s32.totalorder %s675, %s676
    %p685 = scmp.eq.s32.totalorder %s72, 0
    %p686 = por %p684, %p685
    %p687 = scmp.ne.s32.totalorder %s675, %s676
    %p688 = scmp.eq.s32.totalorder %s73, 1
    %p689 = por %p687, %p688
    %p691 = scmp.ne.s32.totalorder %s676, %s690
    %p692 = scmp.eq.s32.totalorder %s73, 0
    %p693 = por %p691, %p692
    %s695 = sadd.s32 %s694, 1
    %p698 = scmp.eq.s32.totalorder %s67, 1
    %p699 = scmp.ne.s32.totalorder %s694, %s696
    %p700 = scmp.eq.s32.totalorder %s67, 0
    %p701 = por %p699, %p700
    %p702 = scmp.ne.s32.totalorder %s694, %s696
    %p703 = scmp.eq.s32.totalorder %s72, 1
    %p704 = por %p702, %p703
    %p705 = scmp.ne.s32.totalorder %s696, %s697
    %p706 = scmp.eq.s32.totalorder %s72, 0
    %p707 = por %p705, %p706
    %p708 = scmp.ne.s32.totalorder %s696, %s697
    %p709 = scmp.eq.s32.totalorder %s73, 1
    %p710 = por %p708, %p709
    %p712 = scmp.ne.s32.totalorder %s697, %s711
    %p713 = scmp.eq.s32.totalorder %s73, 0
    %p714 = por %p712, %p713
    %s715 = ssub.s32 %s67, %s74
    %p716 = scmp.eq.s32.totalorder %s715, 0
    %s718 = sadd.s32 %s717, 1
    %s719 = scalar_select %p716, %s717, %s718
    %p722 = pneg %p716
    %p723 = scmp.eq.s32.totalorder %s67, 1
    %p724 = por %p722, %p723
    %p725 = scmp.ne.s32.totalorder %s717, %s720
    %p726 = scmp.eq.s32.totalorder %s67, 0
    %p727 = por %p725, %p726
    %p728 = scmp.ne.s32.totalorder %s717, %s720
    %p729 = scmp.eq.s32.totalorder %s72, 1
    %p730 = por %p728, %p729
    %p731 = scmp.ne.s32.totalorder %s720, %s721
    %p732 = scmp.eq.s32.totalorder %s72, 0
    %p733 = por %p731, %p732
    %p734 = scmp.ne.s32.totalorder %s720, %s721
    %p735 = scmp.eq.s32.totalorder %s73, 1
    %p736 = por %p734, %p735
    %p738 = scmp.ne.s32.totalorder %s721, %s737
    %p739 = scmp.eq.s32.totalorder %s73, 0
    %p740 = por %p738, %p739
    %p741 = scmp.le.s32.totalorder 1, %s67
    %p742 = scmp.lt.s32.totalorder %s67, 3
    %p743 = pnand %p741, %p742
    %p744 = pneg %p743
    // Predicated region
    $region9: #{vision_detr_forward.9} parent=5 // pred_check
      _
    $region10: #{vision_detr_forward.9} parent=5 // pred_check_branch
      %746 = sbr.rel (%p743) target = $region12
    $region11: #{vision_detr_forward.9} parent=5 // pred_region
      %s747 = ssub.s32 %s67, 1
      // Predicated region
      $region13: #{vision_detr_forward.9} parent=11 // pred_check
        %p748 = pneg %p114
      $region14: #{vision_detr_forward.9} parent=11 // pred_check_branch
        %750 = sbr.rel (%p748) target = $region16
      $region15: #{vision_detr_forward.9} parent=11 // pred_region
        _
      $region16: #{vision_detr_forward.9} parent=11 // pred_fallthru
        _
      // Predicated region
      $region17: #{vision_detr_forward.9} parent=11 // pred_check
        %p751 = pneg %p161
      $region18: #{vision_detr_forward.9} parent=11 // pred_check_branch
        %753 = sbr.rel (%p751) target = $region20
      $region19: #{vision_detr_forward.9} parent=11 // pred_region
        _
      $region20: #{vision_detr_forward.9} parent=11 // pred_fallthru
        _
      // Predicated region
      $region21: #{vision_detr_forward.9} parent=11 // pred_check
        %p754 = pneg %p182
      $region22: #{vision_detr_forward.9} parent=11 // pred_check_branch
        %756 = sbr.rel (%p754) target = $region24
      $region23: #{vision_detr_forward.9} parent=11 // pred_region
        _
      $region24: #{vision_detr_forward.9} parent=11 // pred_fallthru
        _
      // Predicated region
      $region25: #{vision_detr_forward.9} parent=11 // pred_check
        %p757 = pneg %p203
      $region26: #{vision_detr_forward.9} parent=11 // pred_check_branch
        %759 = sbr.rel (%p757) target = $region28
      $region27: #{vision_detr_forward.9} parent=11 // pred_region
        _
      $region28: #{vision_detr_forward.9} parent=11 // pred_fallthru
        _
      // Predicated region
      $region29: #{vision_detr_forward.9} parent=11 // pred_check
        %p760 = pneg %p224
      $region30: #{vision_detr_forward.9} parent=11 // pred_check_branch
        %762 = sbr.rel (%p760) target = $region32
      $region31: #{vision_detr_forward.9} parent=11 // pred_region
        _
      $region32: #{vision_detr_forward.9} parent=11 // pred_fallthru
        _
      // Predicated region
      $region33: #{vision_detr_forward.9} parent=11 // pred_check
        %p763 = pneg %p245
      $region34: #{vision_detr_forward.9} parent=11 // pred_check_branch
        %765 = sbr.rel (%p763) target = $region36
      $region35: #{vision_detr_forward.9} parent=11 // pred_region
        _
      $region36: #{vision_detr_forward.9} parent=11 // pred_fallthru
        _
      // Predicated region
      $region37: #{vision_detr_forward.9} parent=11 // pred_check
        %p766 = pneg %p266
      $region38: #{vision_detr_forward.9} parent=11 // pred_check_branch
        %768 = sbr.rel (%p766) target = $region40
      $region39: #{vision_detr_forward.9} parent=11 // pred_region
        _
      $region40: #{vision_detr_forward.9} parent=11 // pred_fallthru
        _
      // Predicated region
      $region41: #{vision_detr_forward.9} parent=11 // pred_check
        %p769 = pneg %p287
      $region42: #{vision_detr_forward.9} parent=11 // pred_check_branch
        %771 = sbr.rel (%p769) target = $region44
      $region43: #{vision_detr_forward.9} parent=11 // pred_region
        _
      $region44: #{vision_detr_forward.9} parent=11 // pred_fallthru
        _
      // Predicated region
      $region45: #{vision_detr_forward.9} parent=11 // pred_check
        %p772 = pneg %p308
      $region46: #{vision_detr_forward.9} parent=11 // pred_check_branch
        %774 = sbr.rel (%p772) target = $region48
      $region47: #{vision_detr_forward.9} parent=11 // pred_region
        _
      $region48: #{vision_detr_forward.9} parent=11 // pred_fallthru
        _
      // Predicated region
      $region49: #{vision_detr_forward.9} parent=11 // pred_check
        %p775 = pneg %p329
      $region50: #{vision_detr_forward.9} parent=11 // pred_check_branch
        %777 = sbr.rel (%p775) target = $region52
      $region51: #{vision_detr_forward.9} parent=11 // pred_region
        _
      $region52: #{vision_detr_forward.9} parent=11 // pred_fallthru
        _
      // Predicated region
      $region53: #{vision_detr_forward.9} parent=11 // pred_check
        %p778 = pneg %p350
      $region54: #{vision_detr_forward.9} parent=11 // pred_check_branch
        %780 = sbr.rel (%p778) target = $region56
      $region55: #{vision_detr_forward.9} parent=11 // pred_region
        _
      $region56: #{vision_detr_forward.9} parent=11 // pred_fallthru
        _
      // Predicated region
      $region57: #{vision_detr_forward.9} parent=11 // pred_check
        %p781 = pneg %p371
      $region58: #{vision_detr_forward.9} parent=11 // pred_check_branch
        %783 = sbr.rel (%p781) target = $region60
      $region59: #{vision_detr_forward.9} parent=11 // pred_region
        _
      $region60: #{vision_detr_forward.9} parent=11 // pred_fallthru
        _
      // Predicated region
      $region61: #{vision_detr_forward.9} parent=11 // pred_check
        %p784 = pneg %p392
      $region62: #{vision_detr_forward.9} parent=11 // pred_check_branch
        %786 = sbr.rel (%p784) target = $region64
      $region63: #{vision_detr_forward.9} parent=11 // pred_region
        _
      $region64: #{vision_detr_forward.9} parent=11 // pred_fallthru
        _
      // Predicated region
      $region65: #{vision_detr_forward.9} parent=11 // pred_check
        %p787 = pneg %p413
      $region66: #{vision_detr_forward.9} parent=11 // pred_check_branch
        %789 = sbr.rel (%p787) target = $region68
      $region67: #{vision_detr_forward.9} parent=11 // pred_region
        _
      $region68: #{vision_detr_forward.9} parent=11 // pred_fallthru
        _
      // Predicated region
      $region69: #{vision_detr_forward.9} parent=11 // pred_check
        %p790 = pneg %p434
      $region70: #{vision_detr_forward.9} parent=11 // pred_check_branch
        %792 = sbr.rel (%p790) target = $region72
      $region71: #{vision_detr_forward.9} parent=11 // pred_region
        _
      $region72: #{vision_detr_forward.9} parent=11 // pred_fallthru
        _
      // Predicated region
      $region73: #{vision_detr_forward.9} parent=11 // pred_check
        %p793 = pneg %p455
      $region74: #{vision_detr_forward.9} parent=11 // pred_check_branch
        %795 = sbr.rel (%p793) target = $region76
      $region75: #{vision_detr_forward.9} parent=11 // pred_region
        _
      $region76: #{vision_detr_forward.9} parent=11 // pred_fallthru
        _
      // Predicated region
      $region77: #{vision_detr_forward.9} parent=11 // pred_check
        %p796 = pneg %p476
      $region78: #{vision_detr_forward.9} parent=11 // pred_check_branch
        %798 = sbr.rel (%p796) target = $region80
      $region79: #{vision_detr_forward.9} parent=11 // pred_region
        _
      $region80: #{vision_detr_forward.9} parent=11 // pred_fallthru
        _
      // Predicated region
      $region81: #{vision_detr_forward.9} parent=11 // pred_check
        %p799 = pneg %p497
      $region82: #{vision_detr_forward.9} parent=11 // pred_check_branch
        %801 = sbr.rel (%p799) target = $region84
      $region83: #{vision_detr_forward.9} parent=11 // pred_region
        _
      $region84: #{vision_detr_forward.9} parent=11 // pred_fallthru
        _
      // Predicated region
      $region85: #{vision_detr_forward.9} parent=11 // pred_check
        %p802 = pneg %p518
      $region86: #{vision_detr_forward.9} parent=11 // pred_check_branch
        %804 = sbr.rel (%p802) target = $region88
      $region87: #{vision_detr_forward.9} parent=11 // pred_region
        _
      $region88: #{vision_detr_forward.9} parent=11 // pred_fallthru
        _
      // Predicated region
      $region89: #{vision_detr_forward.9} parent=11 // pred_check
        %p805 = pneg %p539
      $region90: #{vision_detr_forward.9} parent=11 // pred_check_branch
        %807 = sbr.rel (%p805) target = $region92
      $region91: #{vision_detr_forward.9} parent=11 // pred_region
        _
      $region92: #{vision_detr_forward.9} parent=11 // pred_fallthru
        _
      // Predicated region
      $region93: #{vision_detr_forward.9} parent=11 // pred_check
        %p808 = pneg %p560
      $region94: #{vision_detr_forward.9} parent=11 // pred_check_branch
        %810 = sbr.rel (%p808) target = $region96
      $region95: #{vision_detr_forward.9} parent=11 // pred_region
        _
      $region96: #{vision_detr_forward.9} parent=11 // pred_fallthru
        _
      // Predicated region
      $region97: #{vision_detr_forward.9} parent=11 // pred_check
        %p811 = pneg %p581
      $region98: #{vision_detr_forward.9} parent=11 // pred_check_branch
        %813 = sbr.rel (%p811) target = $region100
      $region99: #{vision_detr_forward.9} parent=11 // pred_region
        _
      $region100: #{vision_detr_forward.9} parent=11 // pred_fallthru
        _
      // Predicated region
      $region101: #{vision_detr_forward.9} parent=11 // pred_check
        %p814 = pneg %p602
      $region102: #{vision_detr_forward.9} parent=11 // pred_check_branch
        %816 = sbr.rel (%p814) target = $region104
      $region103: #{vision_detr_forward.9} parent=11 // pred_region
        _
      $region104: #{vision_detr_forward.9} parent=11 // pred_fallthru
        _
      // Predicated region
      $region105: #{vision_detr_forward.9} parent=11 // pred_check
        %p817 = pneg %p623
      $region106: #{vision_detr_forward.9} parent=11 // pred_check_branch
        %819 = sbr.rel (%p817) target = $region108
      $region107: #{vision_detr_forward.9} parent=11 // pred_region
        _
      $region108: #{vision_detr_forward.9} parent=11 // pred_fallthru
        _
      // Predicated region
      $region109: #{vision_detr_forward.9} parent=11 // pred_check
        %p820 = pneg %p644
      $region110: #{vision_detr_forward.9} parent=11 // pred_check_branch
        %822 = sbr.rel (%p820) target = $region112
      $region111: #{vision_detr_forward.9} parent=11 // pred_region
        _
      $region112: #{vision_detr_forward.9} parent=11 // pred_fallthru
        _
      // Predicated region
      $region113: #{vision_detr_forward.9} parent=11 // pred_check
        %p823 = pneg %p665
      $region114: #{vision_detr_forward.9} parent=11 // pred_check_branch
        %825 = sbr.rel (%p823) target = $region116
      $region115: #{vision_detr_forward.9} parent=11 // pred_region
        _
      $region116: #{vision_detr_forward.9} parent=11 // pred_fallthru
        _
      // Predicated region
      $region117: #{vision_detr_forward.9} parent=11 // pred_check
        %p826 = pneg %p686
      $region118: #{vision_detr_forward.9} parent=11 // pred_check_branch
        %828 = sbr.rel (%p826) target = $region120
      $region119: #{vision_detr_forward.9} parent=11 // pred_region
        _
      $region120: #{vision_detr_forward.9} parent=11 // pred_fallthru
        _
      // Predicated region
      $region121: #{vision_detr_forward.9} parent=11 // pred_check
        %p829 = pneg %p707
      $region122: #{vision_detr_forward.9} parent=11 // pred_check_branch
        %831 = sbr.rel (%p829) target = $region124
      $region123: #{vision_detr_forward.9} parent=11 // pred_region
        _
      $region124: #{vision_detr_forward.9} parent=11 // pred_fallthru
        _
    $region12: #{vision_detr_forward.9} parent=5 // pred_fallthru
      _
    %p832 = scmp.lt.s32.totalorder %s67, 2
    // Predicated region
    $region125: #{vision_detr_forward.9} parent=5 // pred_check
      %p833 = pneg %p832
    $region126: #{vision_detr_forward.9} parent=5 // pred_check_branch
      %835 = sbr.rel (%p833) target = $region128
    $region127: #{vision_detr_forward.9} parent=5 // pred_region
      // Predicated region
      $region129: #{vision_detr_forward.9} parent=127 // pred_check
        %p836 = pneg %p87
      $region130: #{vision_detr_forward.9} parent=127 // pred_check_branch
        %838 = sbr.rel (%p836) target = $region132
      $region131: #{vision_detr_forward.9} parent=127 // pred_region
        %p839 = scmp.lt.s32.totalorder %s67, 1
        %s840 = scalar_select %p839, %s67, 1
        %s841 = smul.addr %s840, 8
        %s842 = scalar_lea.vmem %s1, %s841
      $region132: #{vision_detr_forward.9} parent=127 // pred_fallthru
        _
      // Predicated region
      $region133: #{vision_detr_forward.9} parent=127 // pred_check
        %p843 = pneg %p134
      $region134: #{vision_detr_forward.9} parent=127 // pred_check_branch
        %845 = sbr.rel (%p843) target = $region136
      $region135: #{vision_detr_forward.9} parent=127 // pred_region
        %p846 = scmp.lt.s32.totalorder %s67, 1
        %s847 = scalar_select %p846, %s67, 1
        %s848 = smul.addr %s847, 2
        %s849 = smul.addr %s848, 8
        %s850 = scalar_lea.vmem %s5, %s849
      $region136: #{vision_detr_forward.9} parent=127 // pred_fallthru
        _
    $region128: #{vision_detr_forward.9} parent=5 // pred_fallthru
      _
    %p851 = scmp.le.s32.totalorder 1, %s67
    %p852 = scmp.lt.s32.totalorder %s67, 3
    %p853 = pnand %p851, %p852
    %p854 = pneg %p853
    // Predicated region
    $region137: #{vision_detr_forward.9} parent=5 // pred_check
      _
    $region138: #{vision_detr_forward.9} parent=5 // pred_check_branch
      %856 = sbr.rel (%p853) target = $region140
    $region139: #{vision_detr_forward.9} parent=5 // pred_region
      %s857 = ssub.s32 %s67, 1
      %p858 = scmp.lt.s32.totalorder %s72, 1
      %s859 = scalar_select %p858, %s72, 1
      %s860 = smul.addr %s859, 8
      %s861 = scalar_lea.vmem %s1, %s860
      %p862 = pneg %p93
      %p863 = pneg %p90
      %p864 = pneg %p114
      %p865 = pneg %p111
      %p866 = scmp.lt.s32.totalorder %s72, 1
      %s867 = scalar_select %p866, %s72, 1
      %s868 = smul.addr %s867, 2
      %s869 = smul.addr %s868, 8
      %s870 = scalar_lea.vmem %s5, %s869
      %p871 = pneg %p140
      %p872 = pneg %p137
      %p873 = pneg %p161
      %p874 = pneg %p158
      %p875 = pneg %p182
      %p876 = pneg %p179
      %p877 = pneg %p203
      %p878 = pneg %p200
      %p879 = pneg %p224
      %p880 = pneg %p221
      %p881 = pneg %p245
      %p882 = pneg %p242
      %p883 = pneg %p266
      %p884 = pneg %p263
      %p885 = pneg %p287
      %p886 = pneg %p284
      %p887 = pneg %p308
      %p888 = pneg %p305
      %p889 = pneg %p329
      %p890 = pneg %p326
      %p891 = pneg %p350
      %p892 = pneg %p347
      %p893 = pneg %p371
      %p894 = pneg %p368
      %p895 = pneg %p392
      %p896 = pneg %p389
      %p897 = pneg %p413
      %p898 = pneg %p410
      %p899 = pneg %p434
      %p900 = pneg %p431
      %p901 = pneg %p455
      %p902 = pneg %p452
      %p903 = pneg %p476
      %p904 = pneg %p473
      %p905 = pneg %p497
      %p906 = pneg %p494
      %p907 = pneg %p518
      %p908 = pneg %p515
      %p909 = pneg %p539
      %p910 = pneg %p536
      %p911 = pneg %p560
      %p912 = pneg %p557
      %p913 = pneg %p581
      %p914 = pneg %p578
      %p915 = pneg %p602
      %p916 = pneg %p599
      %p917 = pneg %p623
      %p918 = pneg %p620
      %p919 = pneg %p644
      %p920 = pneg %p641
      %p921 = pneg %p665
      %p922 = pneg %p662
      %p923 = pneg %p686
      %p924 = pneg %p683
      %p925 = pneg %p707
      %p926 = pneg %p704
      %p927 = pneg %p733
      %p928 = pneg %p730
      %p929 = scmp.lt.s32.totalorder %s72, 1
      %s930 = scalar_select %p929, %s72, 1
      %s931 = smul.addr %s930, 8
      %s932 = scalar_lea.vmem %s61, %s931
      %p933 = scmp.lt.s32.totalorder %s72, 1
      %s934 = scalar_select %p933, %s72, 1
      %s935 = smul.addr %s934, 8
      %s936 = scalar_lea.vmem %s1, %s935
      %p937 = scmp.lt.s32.totalorder %s72, 1
      %s938 = scalar_select %p937, %s72, 1
      %s939 = smul.addr %s938, 2
      %s940 = smul.addr %s939, 8
      %s941 = scalar_lea.vmem %s5, %s940
      %p942 = scmp.lt.s32.totalorder %s72, 1
      %s943 = scalar_select %p942, %s72, 1
      %s944 = smul.addr %s943, 8
      %s945 = scalar_lea.vmem %s61, %s944
      %v947 = vld [vmem:[%s936] sm:$0xff]
      %v948 = vld [vmem:[%s3] sm:$0xff]
      %v949 = vld [vmem:[%s941] sm:$0xff]
      %v950 = vld [vmem:[%s941 + $0x8] sm:$0xff]
      %v951 = vld [vmem:[%s7] sm:$0xff]
      %v952 = vld [vmem:[%s7 + $0x8] sm:$0xff]
      %v953 = vadd.f32 %v947, %v948
      %v954 = vpack.c.bf16 %v953, %v953
      %v955 = vpack.c.bf16 %v947, %v947
      %v956 = vld [vmem:[%s9] sm:$0xf]
      %v957 = vld [vmem:[%s9 + $0x4] sm:$0xf]
      %v958 = vld [vmem:[%s9 + $0x8] sm:$0xf]
      %v959 = vld [vmem:[%s9 + $0xc] sm:$0xf]
      %v960 = vld [vmem:[%s11] sm:$0x1]
      %v962 = vlaneseq
      %v963 = vshrl.u32 %v962, 7
      %v964 = vsub.s32 0, %v963
      %v965 = vrot.slane %v960, %v964
      %v971 = vunpack.c.l.b16 %v956
      %v972 = vunpack.c.l.b16 %v957
      %v973 = vunpack.c.l.b16 %v958
      %v974 = vunpack.c.l.b16 %v959
      %v975 = vpack.c.b16 %v972, %v971
      %v976 = vpack.c.b16 %v974, %v973
      %vm979 = vcmask 261120
      %v981 = vsel %vm979, %v954, 0
      %983 = vmatprep.subr.bf16.mxu0 0
      %984 = vmatpush1.bf16.msra.mxu0 %v975
      %985 = vmatprep.subr.bf16.mxu0 0
      %986 = vmatpush1.bf16.msra.mxu0 %v976
      %987 = vmatprep.subr.bf16.mxu0 0
      %988 = vmatpush1.bf16.msra.mxu0 0
      %989 = vmatprep.subr.bf16.mxu0 0
      %990 = vmatpush1.bf16.msra.mxu0 0
      %991 = vmatprep.subr.bf16.mxu0 0
      %992 = vmatpush1.bf16.msra.mxu0 0
      %993 = vmatprep.subr.bf16.mxu0 0
      %994 = vmatpush1.bf16.msra.mxu0 0
      %995 = vmatprep.subr.bf16.mxu0 0
      %996 = vmatpush1.bf16.msra.mxu0 0
      %997 = vmatprep.subr.bf16.mxu0 0
      %998 = vmatpush1.bf16.msra.mxu0 0
      %999 = vmatprep.subr.bf16.mxu0 0
      %1000 = vmatpush1.bf16.msra.mxu0 0
      %1001 = vmatprep.subr.bf16.mxu0 0
      %1002 = vmatpush1.bf16.msra.mxu0 0
      %1003 = vmatprep.subr.bf16.mxu0 0
      %1004 = vmatpush1.bf16.msra.mxu0 0
      %1005 = vmatprep.subr.bf16.mxu0 0
      %1006 = vmatpush1.bf16.msra.mxu0 0
      %1007 = vmatprep.subr.bf16.mxu0 0
      %1008 = vmatpush1.bf16.msra.mxu0 0
      %1009 = vmatprep.subr.bf16.mxu0 0
      %1010 = vmatpush1.bf16.msra.mxu0 0
      %1011 = vmatprep.subr.bf16.mxu0 0
      %1012 = vmatpush1.bf16.msra.mxu0 0
      %1013 = vmatprep.subr.bf16.mxu0 0
      %1014 = vmatpush1.bf16.msra.mxu0 0
      %1015 = vmatprep.mubr.bf16.mxu0 0
      %1016 = vmatmul.mubr.bf16.gmra.mrb[0].mxu0 %v981
      %v1017 = vpop.f32.mrb[0].mxu0
      %v1018 = vadd.f32 %v965, %v1017
      %v1019 = vpop.f32.mrb[0].mxu0
      %v1020 = vpop.f32.mrb[0].mxu0
      %v1021 = vpop.f32.mrb[0].mxu0
      %1022 = vdwg.mxu0
      %v1023 = vld [vmem:[%s13] sm:$0xf]
      %v1024 = vld [vmem:[%s13 + $0x4] sm:$0xf]
      %v1025 = vld [vmem:[%s13 + $0x8] sm:$0xf]
      %v1026 = vld [vmem:[%s13 + $0xc] sm:$0xf]
      %v1027 = vld [vmem:[%s15] sm:$0x1]
      %v1029 = vlaneseq
      %v1030 = vshrl.u32 %v1029, 7
      %v1031 = vsub.s32 0, %v1030
      %v1032 = vrot.slane %v1027, %v1031
      %v1038 = vunpack.c.l.b16 %v1023
      %v1039 = vunpack.c.l.b16 %v1024
      %v1040 = vunpack.c.l.b16 %v1025
      %v1041 = vunpack.c.l.b16 %v1026
      %v1042 = vpack.c.b16 %v1039, %v1038
      %v1043 = vpack.c.b16 %v1041, %v1040
      %1046 = vmatprep.subr.bf16.mxu0 0
      %1047 = vmatpush1.bf16.msra.mxu0 %v1042
      %1048 = vmatprep.subr.bf16.mxu0 0
      %1049 = vmatpush1.bf16.msra.mxu0 %v1043
      %1050 = vmatprep.subr.bf16.mxu0 0
      %1051 = vmatpush1.bf16.msra.mxu0 0
      %1052 = vmatprep.subr.bf16.mxu0 0
      %1053 = vmatpush1.bf16.msra.mxu0 0
      %1054 = vmatprep.subr.bf16.mxu0 0
      %1055 = vmatpush1.bf16.msra.mxu0 0
      %1056 = vmatprep.subr.bf16.mxu0 0
      %1057 = vmatpush1.bf16.msra.mxu0 0
      %1058 = vmatprep.subr.bf16.mxu0 0
      %1059 = vmatpush1.bf16.msra.mxu0 0
      %1060 = vmatprep.subr.bf16.mxu0 0
      %1061 = vmatpush1.bf16.msra.mxu0 0
      %1062 = vmatprep.subr.bf16.mxu0 0
      %1063 = vmatpush1.bf16.msra.mxu0 0
      %1064 = vmatprep.subr.bf16.mxu0 0
      %1065 = vmatpush1.bf16.msra.mxu0 0
      %1066 = vmatprep.subr.bf16.mxu0 0
      %1067 = vmatpush1.bf16.msra.mxu0 0
      %1068 = vmatprep.subr.bf16.mxu0 0
      %1069 = vmatpush1.bf16.msra.mxu0 0
      %1070 = vmatprep.subr.bf16.mxu0 0
      %1071 = vmatpush1.bf16.msra.mxu0 0
      %1072 = vmatprep.subr.bf16.mxu0 0
      %1073 = vmatpush1.bf16.msra.mxu0 0
      %1074 = vmatprep.subr.bf16.mxu0 0
      %1075 = vmatpush1.bf16.msra.mxu0 0
      %1076 = vmatprep.subr.bf16.mxu0 0
      %1077 = vmatpush1.bf16.msra.mxu0 0
      %1078 = vmatprep.mubr.bf16.mxu0 0
      %1079 = vmatmul.mubr.bf16.gmra.mrb[0].mxu0 %v981
      %v1080 = vpop.f32.mrb[0].mxu0
      %v1081 = vadd.f32 %v1032, %v1080
      %v1082 = vpop.f32.mrb[0].mxu0
      %v1083 = vpop.f32.mrb[0].mxu0
      %v1084 = vpop.f32.mrb[0].mxu0
      %1085 = vdwg.mxu0
      %v1086 = vld [vmem:[%s17] sm:$0xf]
      %v1087 = vld [vmem:[%s17 + $0x4] sm:$0xf]
      %v1088 = vld [vmem:[%s17 + $0x8] sm:$0xf]
      %v1089 = vld [vmem:[%s17 + $0xc] sm:$0xf]
      %v1090 = vld [vmem:[%s19] sm:$0x1]
      %v1092 = vlaneseq
      %v1093 = vshrl.u32 %v1092, 7
      %v1094 = vsub.s32 0, %v1093
      %v1095 = vrot.slane %v1090, %v1094
      %v1101 = vunpack.c.l.b16 %v1086
      %v1102 = vunpack.c.l.b16 %v1087
      %v1103 = vunpack.c.l.b16 %v1088
      %v1104 = vunpack.c.l.b16 %v1089
      %v1105 = vpack.c.b16 %v1102, %v1101
      %v1106 = vpack.c.b16 %v1104, %v1103
      %v1110 = vsel %vm979, %v955, 0
      %1112 = vmatprep.subr.bf16.mxu0 0
      %1113 = vmatpush1.bf16.msra.mxu0 %v1105
      %1114 = vmatprep.subr.bf16.mxu0 0
      %1115 = vmatpush1.bf16.msra.mxu0 %v1106
      %1116 = vmatprep.subr.bf16.mxu0 0
      %1117 = vmatpush1.bf16.msra.mxu0 0
      %1118 = vmatprep.subr.bf16.mxu0 0
      %1119 = vmatpush1.bf16.msra.mxu0 0
      %1120 = vmatprep.subr.bf16.mxu0 0
      %1121 = vmatpush1.bf16.msra.mxu0 0
      %1122 = vmatprep.subr.bf16.mxu0 0
      %1123 = vmatpush1.bf16.msra.mxu0 0
      %1124 = vmatprep.subr.bf16.mxu0 0
      %1125 = vmatpush1.bf16.msra.mxu0 0
      %1126 = vmatprep.subr.bf16.mxu0 0
      %1127 = vmatpush1.bf16.msra.mxu0 0
      %1128 = vmatprep.subr.bf16.mxu0 0
      %1129 = vmatpush1.bf16.msra.mxu0 0
      %1130 = vmatprep.subr.bf16.mxu0 0
      %1131 = vmatpush1.bf16.msra.mxu0 0
      %1132 = vmatprep.subr.bf16.mxu0 0
      %1133 = vmatpush1.bf16.msra.mxu0 0
      %1134 = vmatprep.subr.bf16.mxu0 0
      %1135 = vmatpush1.bf16.msra.mxu0 0
      %1136 = vmatprep.subr.bf16.mxu0 0
      %1137 = vmatpush1.bf16.msra.mxu0 0
      %1138 = vmatprep.subr.bf16.mxu0 0
      %1139 = vmatpush1.bf16.msra.mxu0 0
      %1140 = vmatprep.subr.bf16.mxu0 0
      %1141 = vmatpush1.bf16.msra.mxu0 0
      %1142 = vmatprep.subr.bf16.mxu0 0
      %1143 = vmatpush1.bf16.msra.mxu0 0
      %1144 = vmatprep.mubr.bf16.mxu0 0
      %1145 = vmatmul.mubr.bf16.gmra.mrb[0].mxu0 %v1110
      %v1146 = vpop.f32.mrb[0].mxu0
      %v1147 = vadd.f32 %v1095, %v1146
      %v1148 = vpop.f32.mrb[0].mxu0
      %v1149 = vpop.f32.mrb[0].mxu0
      %v1150 = vpop.f32.mrb[0].mxu0
      %1151 = vdwg.mxu0
      %v1152 = vpack.c.bf16 %v1018, %v1018
      %v1153 = vpack.c.bf16 %v1081, %v1081
      %vm1154 = vcmask 64512
      %v1156 = vsel %vm1154, %v1152, 0
      %v1159 = vsel %vm1154, %v1153, 0
      %1161 = vmatprep.subr.bf16.mxu0 0
      %1162 = vmatpush1.bf16.xpose.msra.mxu0 %v1159
      %1163 = vmatprep.subr.bf16.mxu0 0
      %1164 = vmatpush1.bf16.xpose.msra.mxu0 0
      %1165 = vmatprep.subr.bf16.mxu0 0
      %1166 = vmatpush1.bf16.xpose.msra.mxu0 0
      %1167 = vmatprep.subr.bf16.mxu0 0
      %1168 = vmatpush1.bf16.xpose.msra.mxu0 0
      %1169 = vmatprep.subr.bf16.mxu0 0
      %1170 = vmatpush1.bf16.xpose.msra.mxu0 0
      %1171 = vmatprep.subr.bf16.mxu0 0
      %1172 = vmatpush1.bf16.xpose.msra.mxu0 0
      %1173 = vmatprep.subr.bf16.mxu0 0
      %1174 = vmatpush1.bf16.xpose.msra.mxu0 0
      %1175 = vmatprep.subr.bf16.mxu0 0
      %1176 = vmatpush1.bf16.xpose.msra.mxu0 0
      %1177 = vmatprep.subr.bf16.mxu0 0
      %1178 = vmatpush1.bf16.xpose.msra.mxu0 0
      %1179 = vmatprep.subr.bf16.mxu0 0
      %1180 = vmatpush1.bf16.xpose.msra.mxu0 0
      %1181 = vmatprep.subr.bf16.mxu0 0
      %1182 = vmatpush1.bf16.xpose.msra.mxu0 0
      %1183 = vmatprep.subr.bf16.mxu0 0
      %1184 = vmatpush1.bf16.xpose.msra.mxu0 0
      %1185 = vmatprep.subr.bf16.mxu0 0
      %1186 = vmatpush1.bf16.xpose.msra.mxu0 0
      %1187 = vmatprep.subr.bf16.mxu0 0
      %1188 = vmatpush1.bf16.xpose.msra.mxu0 0
      %1189 = vmatprep.subr.bf16.mxu0 0
      %1190 = vmatpush1.bf16.xpose.msra.mxu0 0
      %1191 = vmatprep.subr.bf16.mxu0 0
      %1192 = vmatpush1.bf16.xpose.msra.mxu0 0
      %1193 = vmatprep.mubr.bf16.mxu0 0
      %1194 = vmatmul.mubr.bf16.gmra.mrb[0].mxu0 %v1156
      %v1195 = vpop.f32.mrb[0].mxu0
      %v1196 = vadd.f32 0.0, %v1195
      %v1197 = vpop.f32.mrb[0].mxu0
      %v1198 = vpop.f32.mrb[0].mxu0
      %v1199 = vpop.f32.mrb[0].mxu0
      %1200 = vdwg.mxu0
      %v1201 = vmul.f32 %v1196, 0.35355338
      %v1202 = vsel %vm1154, %v1201, -inf
      %1203 = vmax.xlane.f32.xlu0 %v1202
      %v1204 = vpop.xlane.xlu0 %1203
      %v1205 = vsub.f32 %v1201, %v1204
      %v1206 = vmul.f32 %v1205, 1.442695
      %v1207 = vpow.pop %v1206
      %v1208 = vsel %vm1154, %v1207, 0.0
      %1209 = vadd.xlane.f32.xlu0 %v1208
      %v1210 = vpop.xlane.xlu0 %1209
      %v1211 = vrcp.pop %v1210
      %v1212 = vmul.f32 %v1207, %v1211
      %v1213 = vpack.c.bf16 %v1212, %v1212
      %v1214 = vpack.c.bf16 %v1147, %v1147
      %v1216 = vsel %vm1154, %v1213, 0
      %vm1218 = vcmask 1043456
      %v1220 = vsel %vm1218, %v1214, 0
      %1222 = vmatprep.subr.bf16.mxu0 0
      %1223 = vmatpush1.bf16.msra.mxu0 %v1220
      %1224 = vmatprep.subr.bf16.mxu0 0
      %1225 = vmatpush1.bf16.msra.mxu0 0
      %1226 = vmatprep.subr.bf16.mxu0 0
      %1227 = vmatpush1.bf16.msra.mxu0 0
      %1228 = vmatprep.subr.bf16.mxu0 0
      %1229 = vmatpush1.bf16.msra.mxu0 0
      %1230 = vmatprep.subr.bf16.mxu0 0
      %1231 = vmatpush1.bf16.msra.mxu0 0
      %1232 = vmatprep.subr.bf16.mxu0 0
      %1233 = vmatpush1.bf16.msra.mxu0 0
      %1234 = vmatprep.subr.bf16.mxu0 0
      %1235 = vmatpush1.bf16.msra.mxu0 0
      %1236 = vmatprep.subr.bf16.mxu0 0
      %1237 = vmatpush1.bf16.msra.mxu0 0
      %1238 = vmatprep.subr.bf16.mxu0 0
      %1239 = vmatpush1.bf16.msra.mxu0 0
      %1240 = vmatprep.subr.bf16.mxu0 0
      %1241 = vmatpush1.bf16.msra.mxu0 0
      %1242 = vmatprep.subr.bf16.mxu0 0
      %1243 = vmatpush1.bf16.msra.mxu0 0
      %1244 = vmatprep.subr.bf16.mxu0 0
      %1245 = vmatpush1.bf16.msra.mxu0 0
      %1246 = vmatprep.subr.bf16.mxu0 0
      %1247 = vmatpush1.bf16.msra.mxu0 0
      %1248 = vmatprep.subr.bf16.mxu0 0
      %1249 = vmatpush1.bf16.msra.mxu0 0
      %1250 = vmatprep.subr.bf16.mxu0 0
      %1251 = vmatpush1.bf16.msra.mxu0 0
      %1252 = vmatprep.subr.bf16.mxu0 0
      %1253 = vmatpush1.bf16.msra.mxu0 0
      %1254 = vmatprep.mubr.bf16.mxu0 0
      %1255 = vmatmul.mubr.bf16.gmra.mrb[0].mxu0 %v1216
      %v1256 = vpop.f32.mrb[0].mxu0
      %v1257 = vadd.f32 0.0, %v1256
      %v1258 = vpop.f32.mrb[0].mxu0
      %v1259 = vpop.f32.mrb[0].mxu0
      %v1260 = vpop.f32.mrb[0].mxu0
      %1261 = vdwg.mxu0
      %v1262 = vpack.c.bf16 %v1257, %v1257
      %v1263 = vld [vmem:[%s21] sm:$0xf]
      %s1264 = scalar_lea.vmem %s9, 16
      %v1265 = vld [vmem:[%s1264] sm:$0xf]
      %v1266 = vld [vmem:[%s1264 + $0x4] sm:$0xf]
      %v1267 = vld [vmem:[%s1264 + $0x8] sm:$0xf]
      %v1268 = vld [vmem:[%s1264 + $0xc] sm:$0xf]
      %s1269 = scalar_lea.vmem %s11, 1
      %v1270 = vld [vmem:[%s1269] sm:$0x1]
      %v1272 = vlaneseq
      %v1273 = vshrl.u32 %v1272, 7
      %v1274 = vsub.s32 0, %v1273
      %v1275 = vrot.slane %v1270, %v1274
      %v1281 = vunpack.c.l.b16 %v1265
      %v1282 = vunpack.c.l.b16 %v1266
      %v1283 = vunpack.c.l.b16 %v1267
      %v1284 = vunpack.c.l.b16 %v1268
      %v1285 = vpack.c.b16 %v1282, %v1281
      %v1286 = vpack.c.b16 %v1284, %v1283
      %1289 = vmatprep.subr.bf16.mxu0 0
      %1290 = vmatpush1.bf16.msra.mxu0 %v1285
      %1291 = vmatprep.subr.bf16.mxu0 0
      %1292 = vmatpush1.bf16.msra.mxu0 %v1286
      %1293 = vmatprep.subr.bf16.mxu0 0
      %1294 = vmatpush1.bf16.msra.mxu0 0
      %1295 = vmatprep.subr.bf16.mxu0 0
      %1296 = vmatpush1.bf16.msra.mxu0 0
      %1297 = vmatprep.subr.bf16.mxu0 0
      %1298 = vmatpush1.bf16.msra.mxu0 0
      %1299 = vmatprep.subr.bf16.mxu0 0
      %1300 = vmatpush1.bf16.msra.mxu0 0
      %1301 = vmatprep.subr.bf16.mxu0 0
      %1302 = vmatpush1.bf16.msra.mxu0 0
      %1303 = vmatprep.subr.bf16.mxu0 0
      %1304 = vmatpush1.bf16.msra.mxu0 0
      %1305 = vmatprep.subr.bf16.mxu0 0
      %1306 = vmatpush1.bf16.msra.mxu0 0
      %1307 = vmatprep.subr.bf16.mxu0 0
      %1308 = vmatpush1.bf16.msra.mxu0 0
      %1309 = vmatprep.subr.bf16.mxu0 0
      %1310 = vmatpush1.bf16.msra.mxu0 0
      %1311 = vmatprep.subr.bf16.mxu0 0
      %1312 = vmatpush1.bf16.msra.mxu0 0
      %1313 = vmatprep.subr.bf16.mxu0 0
      %1314 = vmatpush1.bf16.msra.mxu0 0
      %1315 = vmatprep.subr.bf16.mxu0 0
      %1316 = vmatpush1.bf16.msra.mxu0 0
      %1317 = vmatprep.subr.bf16.mxu0 0
      %1318 = vmatpush1.bf16.msra.mxu0 0
      %1319 = vmatprep.subr.bf16.mxu0 0
      %1320 = vmatpush1.bf16.msra.mxu0 0
      %1321 = vmatprep.mubr.bf16.mxu0 0
      %1322 = vmatmul.mubr.bf16.gmra.mrb[0].mxu0 %v981
      %v1323 = vpop.f32.mrb[0].mxu0
      %v1324 = vadd.f32 %v1275, %v1323
      %v1325 = vpop.f32.mrb[0].mxu0
      %v1326 = vpop.f32.mrb[0].mxu0
      %v1327 = vpop.f32.mrb[0].mxu0
      %1328 = vdwg.mxu0
      %s1329 = scalar_lea.vmem %s13, 16
      %v1330 = vld [vmem:[%s1329] sm:$0xf]
      %v1331 = vld [vmem:[%s1329 + $0x4] sm:$0xf]
      %v1332 = vld [vmem:[%s1329 + $0x8] sm:$0xf]
      %v1333 = vld [vmem:[%s1329 + $0xc] sm:$0xf]
      %s1334 = scalar_lea.vmem %s15, 1
      %v1335 = vld [vmem:[%s1334] sm:$0x1]
      %v1337 = vlaneseq
      %v1338 = vshrl.u32 %v1337, 7
      %v1339 = vsub.s32 0, %v1338
      %v1340 = vrot.slane %v1335, %v1339
      %v1346 = vunpack.c.l.b16 %v1330
      %v1347 = vunpack.c.l.b16 %v1331
      %v1348 = vunpack.c.l.b16 %v1332
      %v1349 = vunpack.c.l.b16 %v1333
      %v1350 = vpack.c.b16 %v1347, %v1346
      %v1351 = vpack.c.b16 %v1349, %v1348
      %1354 = vmatprep.subr.bf16.mxu0 0
      %1355 = vmatpush1.bf16.msra.mxu0 %v1350
      %1356 = vmatprep.subr.bf16.mxu0 0
      %1357 = vmatpush1.bf16.msra.mxu0 %v1351
      %1358 = vmatprep.subr.bf16.mxu0 0
      %1359 = vmatpush1.bf16.msra.mxu0 0
      %1360 = vmatprep.subr.bf16.mxu0 0
      %1361 = vmatpush1.bf16.msra.mxu0 0
      %1362 = vmatprep.subr.bf16.mxu0 0
      %1363 = vmatpush1.bf16.msra.mxu0 0
      %1364 = vmatprep.subr.bf16.mxu0 0
      %1365 = vmatpush1.bf16.msra.mxu0 0
      %1366 = vmatprep.subr.bf16.mxu0 0
      %1367 = vmatpush1.bf16.msra.mxu0 0
      %1368 = vmatprep.subr.bf16.mxu0 0
      %1369 = vmatpush1.bf16.msra.mxu0 0
      %1370 = vmatprep.subr.bf16.mxu0 0
      %1371 = vmatpush1.bf16.msra.mxu0 0
      %1372 = vmatprep.subr.bf16.mxu0 0
      %1373 = vmatpush1.bf16.msra.mxu0 0
      %1374 = vmatprep.subr.bf16.mxu0 0
      %1375 = vmatpush1.bf16.msra.mxu0 0
      %1376 = vmatprep.subr.bf16.mxu0 0
      %1377 = vmatpush1.bf16.msra.mxu0 0
      %1378 = vmatprep.subr.bf16.mxu0 0
      %1379 = vmatpush1.bf16.msra.mxu0 0
      %1380 = vmatprep.subr.bf16.mxu0 0
      %1381 = vmatpush1.bf16.msra.mxu0 0
      %1382 = vmatprep.subr.bf16.mxu0 0
      %1383 = vmatpush1.bf16.msra.mxu0 0
      %1384 = vmatprep.subr.bf16.mxu0 0
      %1385 = vmatpush1.bf16.msra.mxu0 0
      %1386 = vmatprep.mubr.bf16.mxu0 0
      %1387 = vmatmul.mubr.bf16.gmra.mrb[0].mxu0 %v981
      %v1388 = vpop.f32.mrb[0].mxu0
      %v1389 = vadd.f32 %v1340, %v1388
      %v1390 = vpop.f32.mrb[0].mxu0
      %v1391 = vpop.f32.mrb[0].mxu0
      %v1392 = vpop.f32.mrb[0].mxu0
      %1393 = vdwg.mxu0
      %s1394 = scalar_lea.vmem %s17, 16
      %v1395 = vld [vmem:[%s1394] sm:$0xf]
      %v1396 = vld [vmem:[%s1394 + $0x4] sm:$0xf]
      %v1397 = vld [vmem:[%s1394 + $0x8] sm:$0xf]
      %v1398 = vld [vmem:[%s1394 + $0xc] sm:$0xf]
      %s1399 = scalar_lea.vmem %s19, 1
      %v1400 = vld [vmem:[%s1399] sm:$0x1]
      %v1402 = vlaneseq
      %v1403 = vshrl.u32 %v1402, 7
      %v1404 = vsub.s32 0, %v1403
      %v1405 = vrot.slane %v1400, %v1404
      %v1411 = vunpack.c.l.b16 %v1395
      %v1412 = vunpack.c.l.b16 %v1396
      %v1413 = vunpack.c.l.b16 %v1397
      %v1414 = vunpack.c.l.b16 %v1398
      %v1415 = vpack.c.b16 %v1412, %v1411
      %v1416 = vpack.c.b16 %v1414, %v1413
      %1419 = vmatprep.subr.bf16.mxu0 0
      %1420 = vmatpush1.bf16.msra.mxu0 %v1415
      %1421 = vmatprep.subr.bf16.mxu0 0
      %1422 = vmatpush1.bf16.msra.mxu0 %v1416
      %1423 = vmatprep.subr.bf16.mxu0 0
      %1424 = vmatpush1.bf16.msra.mxu0 0
      %1425 = vmatprep.subr.bf16.mxu0 0
      %1426 = vmatpush1.bf16.msra.mxu0 0
      %1427 = vmatprep.subr.bf16.mxu0 0
      %1428 = vmatpush1.bf16.msra.mxu0 0
      %1429 = vmatprep.subr.bf16.mxu0 0
      %1430 = vmatpush1.bf16.msra.mxu0 0
      %1431 = vmatprep.subr.bf16.mxu0 0
      %1432 = vmatpush1.bf16.msra.mxu0 0
      %1433 = vmatprep.subr.bf16.mxu0 0
      %1434 = vmatpush1.bf16.msra.mxu0 0
      %1435 = vmatprep.subr.bf16.mxu0 0
      %1436 = vmatpush1.bf16.msra.mxu0 0
      %1437 = vmatprep.subr.bf16.mxu0 0
      %1438 = vmatpush1.bf16.msra.mxu0 0
      %1439 = vmatprep.subr.bf16.mxu0 0
      %1440 = vmatpush1.bf16.msra.mxu0 0
      %1441 = vmatprep.subr.bf16.mxu0 0
      %1442 = vmatpush1.bf16.msra.mxu0 0
      %1443 = vmatprep.subr.bf16.mxu0 0
      %1444 = vmatpush1.bf16.msra.mxu0 0
      %1445 = vmatprep.subr.bf16.mxu0 0
      %1446 = vmatpush1.bf16.msra.mxu0 0
      %1447 = vmatprep.subr.bf16.mxu0 0
      %1448 = vmatpush1.bf16.msra.mxu0 0
      %1449 = vmatprep.subr.bf16.mxu0 0
      %1450 = vmatpush1.bf16.msra.mxu0 0
      %1451 = vmatprep.mubr.bf16.mxu0 0
      %1452 = vmatmul.mubr.bf16.gmra.mrb[0].mxu0 %v1110
      %v1453 = vpop.f32.mrb[0].mxu0
      %v1454 = vadd.f32 %v1405, %v1453
      %v1455 = vpop.f32.mrb[0].mxu0
      %v1456 = vpop.f32.mrb[0].mxu0
      %v1457 = vpop.f32.mrb[0].mxu0
      %1458 = vdwg.mxu0
      %v1459 = vpack.c.bf16 %v1324, %v1324
      %v1460 = vpack.c.bf16 %v1389, %v1389
      %v1462 = vsel %vm1154, %v1459, 0
      %v1465 = vsel %vm1154, %v1460, 0
      %1467 = vmatprep.subr.bf16.mxu0 0
      %1468 = vmatpush1.bf16.xpose.msra.mxu0 %v1465
      %1469 = vmatprep.subr.bf16.mxu0 0
      %1470 = vmatpush1.bf16.xpose.msra.mxu0 0
      %1471 = vmatprep.subr.bf16.mxu0 0
      %1472 = vmatpush1.bf16.xpose.msra.mxu0 0
      %1473 = vmatprep.subr.bf16.mxu0 0
      %1474 = vmatpush1.bf16.xpose.msra.mxu0 0
      %1475 = vmatprep.subr.bf16.mxu0 0
      %1476 = vmatpush1.bf16.xpose.msra.mxu0 0
      %1477 = vmatprep.subr.bf16.mxu0 0
      %1478 = vmatpush1.bf16.xpose.msra.mxu0 0
      %1479 = vmatprep.subr.bf16.mxu0 0
      %1480 = vmatpush1.bf16.xpose.msra.mxu0 0
      %1481 = vmatprep.subr.bf16.mxu0 0
      %1482 = vmatpush1.bf16.xpose.msra.mxu0 0
      %1483 = vmatprep.subr.bf16.mxu0 0
      %1484 = vmatpush1.bf16.xpose.msra.mxu0 0
      %1485 = vmatprep.subr.bf16.mxu0 0
      %1486 = vmatpush1.bf16.xpose.msra.mxu0 0
      %1487 = vmatprep.subr.bf16.mxu0 0
      %1488 = vmatpush1.bf16.xpose.msra.mxu0 0
      %1489 = vmatprep.subr.bf16.mxu0 0
      %1490 = vmatpush1.bf16.xpose.msra.mxu0 0
      %1491 = vmatprep.subr.bf16.mxu0 0
      %1492 = vmatpush1.bf16.xpose.msra.mxu0 0
      %1493 = vmatprep.subr.bf16.mxu0 0
      %1494 = vmatpush1.bf16.xpose.msra.mxu0 0
      %1495 = vmatprep.subr.bf16.mxu0 0
      %1496 = vmatpush1.bf16.xpose.msra.mxu0 0
      %1497 = vmatprep.subr.bf16.mxu0 0
      %1498 = vmatpush1.bf16.xpose.msra.mxu0 0
      %1499 = vmatprep.mubr.bf16.mxu0 0
      %1500 = vmatmul.mubr.bf16.gmra.mrb[0].mxu0 %v1462
      %v1501 = vpop.f32.mrb[0].mxu0
      %v1502 = vadd.f32 0.0, %v1501
      %v1503 = vpop.f32.mrb[0].mxu0
      %v1504 = vpop.f32.mrb[0].mxu0
      %v1505 = vpop.f32.mrb[0].mxu0
      %1506 = vdwg.mxu0
      %v1507 = vmul.f32 %v1502, 0.35355338
      %v1508 = vsel %vm1154, %v1507, -inf
      %1509 = vmax.xlane.f32.xlu0 %v1508
      %v1510 = vpop.xlane.xlu0 %1509
      %v1511 = vsub.f32 %v1507, %v1510
      %v1512 = vmul.f32 %v1511, 1.442695
      %v1513 = vpow.pop %v1512
      %v1514 = vsel %vm1154, %v1513, 0.0
      %1515 = vadd.xlane.f32.xlu0 %v1514
      %v1516 = vpop.xlane.xlu0 %1515
      %v1517 = vrcp.pop %v1516
      %v1518 = vmul.f32 %v1513, %v1517
      %v1519 = vpack.c.bf16 %v1518, %v1518
      %v1520 = vpack.c.bf16 %v1454, %v1454
      %v1522 = vsel %vm1154, %v1519, 0
      %v1525 = vsel %vm1218, %v1520, 0
      %1527 = vmatprep.subr.bf16.mxu0 0
      %1528 = vmatpush1.bf16.msra.mxu0 %v1525
      %1529 = vmatprep.subr.bf16.mxu0 0
      %1530 = vmatpush1.bf16.msra.mxu0 0
      %1531 = vmatprep.subr.bf16.mxu0 0
      %1532 = vmatpush1.bf16.msra.mxu0 0
      %1533 = vmatprep.subr.bf16.mxu0 0
      %1534 = vmatpush1.bf16.msra.mxu0 0
      %1535 = vmatprep.subr.bf16.mxu0 0
      %1536 = vmatpush1.bf16.msra.mxu0 0
      %1537 = vmatprep.subr.bf16.mxu0 0
      %1538 = vmatpush1.bf16.msra.mxu0 0
      %1539 = vmatprep.subr.bf16.mxu0 0
      %1540 = vmatpush1.bf16.msra.mxu0 0
      %1541 = vmatprep.subr.bf16.mxu0 0
      %1542 = vmatpush1.bf16.msra.mxu0 0
      %1543 = vmatprep.subr.bf16.mxu0 0
      %1544 = vmatpush1.bf16.msra.mxu0 0
      %1545 = vmatprep.subr.bf16.mxu0 0
      %1546 = vmatpush1.bf16.msra.mxu0 0
      %1547 = vmatprep.subr.bf16.mxu0 0
      %1548 = vmatpush1.bf16.msra.mxu0 0
      %1549 = vmatprep.subr.bf16.mxu0 0
      %1550 = vmatpush1.bf16.msra.mxu0 0
      %1551 = vmatprep.subr.bf16.mxu0 0
      %1552 = vmatpush1.bf16.msra.mxu0 0
      %1553 = vmatprep.subr.bf16.mxu0 0
      %1554 = vmatpush1.bf16.msra.mxu0 0
      %1555 = vmatprep.subr.bf16.mxu0 0
      %1556 = vmatpush1.bf16.msra.mxu0 0
      %1557 = vmatprep.subr.bf16.mxu0 0
      %1558 = vmatpush1.bf16.msra.mxu0 0
      %1559 = vmatprep.mubr.bf16.mxu0 0
      %1560 = vmatmul.mubr.bf16.gmra.mrb[0].mxu0 %v1522
      %v1561 = vpop.f32.mrb[0].mxu0
      %v1562 = vadd.f32 0.0, %v1561
      %v1563 = vpop.f32.mrb[0].mxu0
      %v1564 = vpop.f32.mrb[0].mxu0
      %v1565 = vpop.f32.mrb[0].mxu0
      %1566 = vdwg.mxu0
      %v1567 = vpack.c.bf16 %v1562, %v1562
      %s1568 = scalar_lea.vmem %s21, 4
      %v1569 = vld [vmem:[%s1568] sm:$0xf]
      %v1571 = vsel %vm1154, %v1567, 0
      %v1574 = vsel %vm1218, %v1569, 0
      %1576 = vmatprep.subr.bf16.mxu0 0
      %1577 = vmatpush1.bf16.msra.mxu0 %v1574
      %1578 = vmatprep.subr.bf16.mxu0 0
      %1579 = vmatpush1.bf16.msra.mxu0 0
      %1580 = vmatprep.subr.bf16.mxu0 0
      %1581 = vmatpush1.bf16.msra.mxu0 0
      %1582 = vmatprep.subr.bf16.mxu0 0
      %1583 = vmatpush1.bf16.msra.mxu0 0
      %1584 = vmatprep.subr.bf16.mxu0 0
      %1585 = vmatpush1.bf16.msra.mxu0 0
      %1586 = vmatprep.subr.bf16.mxu0 0
      %1587 = vmatpush1.bf16.msra.mxu0 0
      %1588 = vmatprep.subr.bf16.mxu0 0
      %1589 = vmatpush1.bf16.msra.mxu0 0
      %1590 = vmatprep.subr.bf16.mxu0 0
      %1591 = vmatpush1.bf16.msra.mxu0 0
      %1592 = vmatprep.subr.bf16.mxu0 0
      %1593 = vmatpush1.bf16.msra.mxu0 0
      %1594 = vmatprep.subr.bf16.mxu0 0
      %1595 = vmatpush1.bf16.msra.mxu0 0
      %1596 = vmatprep.subr.bf16.mxu0 0
      %1597 = vmatpush1.bf16.msra.mxu0 0
      %1598 = vmatprep.subr.bf16.mxu0 0
      %1599 = vmatpush1.bf16.msra.mxu0 0
      %1600 = vmatprep.subr.bf16.mxu0 0
      %1601 = vmatpush1.bf16.msra.mxu0 0
      %1602 = vmatprep.subr.bf16.mxu0 0
      %1603 = vmatpush1.bf16.msra.mxu0 0
      %1604 = vmatprep.subr.bf16.mxu0 0
      %1605 = vmatpush1.bf16.msra.mxu0 0
      %1606 = vmatprep.subr.bf16.mxu0 0
      %1607 = vmatpush1.bf16.msra.mxu0 0
      %1608 = vmatprep.mubr.bf16.mxu0 0
      %1609 = vmatmul.mubr.bf16.gmra.mrb[0].mxu0 %v1571
      %v1610 = vpop.f32.mrb[0].mxu0
      %v1611 = vadd.f32 0.0, %v1610
      %v1612 = vpop.f32.mrb[0].mxu0
      %v1613 = vpop.f32.mrb[0].mxu0
      %v1614 = vpop.f32.mrb[0].mxu0
      %1615 = vdwg.mxu0
      %v1617 = vsel %vm1154, %v1262, 0
      %v1620 = vsel %vm1218, %v1263, 0
      %1622 = vmatprep.subr.bf16.mxu0 0
      %1623 = vmatpush1.bf16.msra.mxu0 %v1620
      %1624 = vmatprep.subr.bf16.mxu0 0
      %1625 = vmatpush1.bf16.msra.mxu0 0
      %1626 = vmatprep.subr.bf16.mxu0 0
      %1627 = vmatpush1.bf16.msra.mxu0 0
      %1628 = vmatprep.subr.bf16.mxu0 0
      %1629 = vmatpush1.bf16.msra.mxu0 0
      %1630 = vmatprep.subr.bf16.mxu0 0
      %1631 = vmatpush1.bf16.msra.mxu0 0
      %1632 = vmatprep.subr.bf16.mxu0 0
      %1633 = vmatpush1.bf16.msra.mxu0 0
      %1634 = vmatprep.subr.bf16.mxu0 0
      %1635 = vmatpush1.bf16.msra.mxu0 0
      %1636 = vmatprep.subr.bf16.mxu0 0
      %1637 = vmatpush1.bf16.msra.mxu0 0
      %1638 = vmatprep.subr.bf16.mxu0 0
      %1639 = vmatpush1.bf16.msra.mxu0 0
      %1640 = vmatprep.subr.bf16.mxu0 0
      %1641 = vmatpush1.bf16.msra.mxu0 0
      %1642 = vmatprep.subr.bf16.mxu0 0
      %1643 = vmatpush1.bf16.msra.mxu0 0
      %1644 = vmatprep.subr.bf16.mxu0 0
      %1645 = vmatpush1.bf16.msra.mxu0 0
      %1646 = vmatprep.subr.bf16.mxu0 0
      %1647 = vmatpush1.bf16.msra.mxu0 0
      %1648 = vmatprep.subr.bf16.mxu0 0
      %1649 = vmatpush1.bf16.msra.mxu0 0
      %1650 = vmatprep.subr.bf16.mxu0 0
      %1651 = vmatpush1.bf16.msra.mxu0 0
      %1652 = vmatprep.subr.bf16.mxu0 0
      %1653 = vmatpush1.bf16.msra.mxu0 0
      %1654 = vmatprep.mubr.bf16.mxu0 0
      %1655 = vmatmul.mubr.bf16.gmra.mrb[0].mxu0 %v1617
      %v1656 = vpop.f32.mrb[0].mxu0
      %v1657 = vadd.f32 %v1611, %v1656
      %v1658 = vpop.f32.mrb[0].mxu0
      %v1659 = vpop.f32.mrb[0].mxu0
      %v1660 = vpop.f32.mrb[0].mxu0
      %1661 = vdwg.mxu0
      %s1662 = scalar_lea.vmem %s9, 32
      %v1663 = vld [vmem:[%s1662] sm:$0xf]
      %v1664 = vld [vmem:[%s1662 + $0x4] sm:$0xf]
      %v1665 = vld [vmem:[%s1662 + $0x8] sm:$0xf]
      %v1666 = vld [vmem:[%s1662 + $0xc] sm:$0xf]
      %s1667 = scalar_lea.vmem %s11, 2
      %v1668 = vld [vmem:[%s1667] sm:$0x1]
      %v1670 = vlaneseq
      %v1671 = vshrl.u32 %v1670, 7
      %v1672 = vsub.s32 0, %v1671
      %v1673 = vrot.slane %v1668, %v1672
      %v1679 = vunpack.c.l.b16 %v1663
      %v1680 = vunpack.c.l.b16 %v1664
      %v1681 = vunpack.c.l.b16 %v1665
      %v1682 = vunpack.c.l.b16 %v1666
      %v1683 = vpack.c.b16 %v1680, %v1679
      %v1684 = vpack.c.b16 %v1682, %v1681
      %1687 = vmatprep.subr.bf16.mxu0 0
      %1688 = vmatpush1.bf16.msra.mxu0 %v1683
      %1689 = vmatprep.subr.bf16.mxu0 0
      %1690 = vmatpush1.bf16.msra.mxu0 %v1684
      %1691 = vmatprep.subr.bf16.mxu0 0
      %1692 = vmatpush1.bf16.msra.mxu0 0
      %1693 = vmatprep.subr.bf16.mxu0 0
      %1694 = vmatpush1.bf16.msra.mxu0 0
      %1695 = vmatprep.subr.bf16.mxu0 0
      %1696 = vmatpush1.bf16.msra.mxu0 0
      %1697 = vmatprep.subr.bf16.mxu0 0
      %1698 = vmatpush1.bf16.msra.mxu0 0
      %1699 = vmatprep.subr.bf16.mxu0 0
      %1700 = vmatpush1.bf16.msra.mxu0 0
      %1701 = vmatprep.subr.bf16.mxu0 0
      %1702 = vmatpush1.bf16.msra.mxu0 0
      %1703 = vmatprep.subr.bf16.mxu0 0
      %1704 = vmatpush1.bf16.msra.mxu0 0
      %1705 = vmatprep.subr.bf16.mxu0 0
      %1706 = vmatpush1.bf16.msra.mxu0 0
      %1707 = vmatprep.subr.bf16.mxu0 0
      %1708 = vmatpush1.bf16.msra.mxu0 0
      %1709 = vmatprep.subr.bf16.mxu0 0
      %1710 = vmatpush1.bf16.msra.mxu0 0
      %1711 = vmatprep.subr.bf16.mxu0 0
      %1712 = vmatpush1.bf16.msra.mxu0 0
      %1713 = vmatprep.subr.bf16.mxu0 0
      %1714 = vmatpush1.bf16.msra.mxu0 0
      %1715 = vmatprep.subr.bf16.mxu0 0
      %1716 = vmatpush1.bf16.msra.mxu0 0
      %1717 = vmatprep.subr.bf16.mxu0 0
      %1718 = vmatpush1.bf16.msra.mxu0 0
      %1719 = vmatprep.mubr.bf16.mxu0 0
      %1720 = vmatmul.mubr.bf16.gmra.mrb[0].mxu0 %v981
      %v1721 = vpop.f32.mrb[0].mxu0
      %v1722 = vadd.f32 %v1673, %v1721
      %v1723 = vpop.f32.mrb[0].mxu0
      %v1724 = vpop.f32.mrb[0].mxu0
      %v1725 = vpop.f32.mrb[0].mxu0
      %1726 = vdwg.mxu0
      %s1727 = scalar_lea.vmem %s13, 32
      %v1728 = vld [vmem:[%s1727] sm:$0xf]
      %v1729 = vld [vmem:[%s1727 + $0x4] sm:$0xf]
      %v1730 = vld [vmem:[%s1727 + $0x8] sm:$0xf]
      %v1731 = vld [vmem:[%s1727 + $0xc] sm:$0xf]
      %s1732 = scalar_lea.vmem %s15, 2
      %v1733 = vld [vmem:[%s1732] sm:$0x1]
      %v1735 = vlaneseq
      %v1736 = vshrl.u32 %v1735, 7
      %v1737 = vsub.s32 0, %v1736
      %v1738 = vrot.slane %v1733, %v1737
      %v1744 = vunpack.c.l.b16 %v1728
      %v1745 = vunpack.c.l.b16 %v1729
      %v1746 = vunpack.c.l.b16 %v1730
      %v1747 = vunpack.c.l.b16 %v1731
      %v1748 = vpack.c.b16 %v1745, %v1744
      %v1749 = vpack.c.b16 %v1747, %v1746
      %1752 = vmatprep.subr.bf16.mxu0 0
      %1753 = vmatpush1.bf16.msra.mxu0 %v1748
      %1754 = vmatprep.subr.bf16.mxu0 0
      %1755 = vmatpush1.bf16.msra.mxu0 %v1749
      %1756 = vmatprep.subr.bf16.mxu0 0
      %1757 = vmatpush1.bf16.msra.mxu0 0
      %1758 = vmatprep.subr.bf16.mxu0 0
      %1759 = vmatpush1.bf16.msra.mxu0 0
      %1760 = vmatprep.subr.bf16.mxu0 0
      %1761 = vmatpush1.bf16.msra.mxu0 0
      %1762 = vmatprep.subr.bf16.mxu0 0
      %1763 = vmatpush1.bf16.msra.mxu0 0
      %1764 = vmatprep.subr.bf16.mxu0 0
      %1765 = vmatpush1.bf16.msra.mxu0 0
      %1766 = vmatprep.subr.bf16.mxu0 0
      %1767 = vmatpush1.bf16.msra.mxu0 0
      %1768 = vmatprep.subr.bf16.mxu0 0
      %1769 = vmatpush1.bf16.msra.mxu0 0
      %1770 = vmatprep.subr.bf16.mxu0 0
      %1771 = vmatpush1.bf16.msra.mxu0 0
      %1772 = vmatprep.subr.bf16.mxu0 0
      %1773 = vmatpush1.bf16.msra.mxu0 0
      %1774 = vmatprep.subr.bf16.mxu0 0
      %1775 = vmatpush1.bf16.msra.mxu0 0
      %1776 = vmatprep.subr.bf16.mxu0 0
      %1777 = vmatpush1.bf16.msra.mxu0 0
      %1778 = vmatprep.subr.bf16.mxu0 0
      %1779 = vmatpush1.bf16.msra.mxu0 0
      %1780 = vmatprep.subr.bf16.mxu0 0
      %1781 = vmatpush1.bf16.msra.mxu0 0
      %1782 = vmatprep.subr.bf16.mxu0 0
      %1783 = vmatpush1.bf16.msra.mxu0 0
      %1784 = vmatprep.mubr.bf16.mxu0 0
      %1785 = vmatmul.mubr.bf16.gmra.mrb[0].mxu0 %v981
      %v1786 = vpop.f32.mrb[0].mxu0
      %v1787 = vadd.f32 %v1738, %v1786
      %v1788 = vpop.f32.mrb[0].mxu0
      %v1789 = vpop.f32.mrb[0].mxu0
      %v1790 = vpop.f32.mrb[0].mxu0
      %1791 = vdwg.mxu0
      %s1792 = scalar_lea.vmem %s17, 32
      %v1793 = vld [vmem:[%s1792] sm:$0xf]
      %v1794 = vld [vmem:[%s1792 + $0x4] sm:$0xf]
      %v1795 = vld [vmem:[%s1792 + $0x8] sm:$0xf]
      %v1796 = vld [vmem:[%s1792 + $0xc] sm:$0xf]
      %s1797 = scalar_lea.vmem %s19, 2
      %v1798 = vld [vmem:[%s1797] sm:$0x1]
      %v1800 = vlaneseq
      %v1801 = vshrl.u32 %v1800, 7
      %v1802 = vsub.s32 0, %v1801
      %v1803 = vrot.slane %v1798, %v1802
      %v1809 = vunpack.c.l.b16 %v1793
      %v1810 = vunpack.c.l.b16 %v1794
      %v1811 = vunpack.c.l.b16 %v1795
      %v1812 = vunpack.c.l.b16 %v1796
      %v1813 = vpack.c.b16 %v1810, %v1809
      %v1814 = vpack.c.b16 %v1812, %v1811
      %1817 = vmatprep.subr.bf16.mxu0 0
      %1818 = vmatpush1.bf16.msra.mxu0 %v1813
      %1819 = vmatprep.subr.bf16.mxu0 0
      %1820 = vmatpush1.bf16.msra.mxu0 %v1814
      %1821 = vmatprep.subr.bf16.mxu0 0
      %1822 = vmatpush1.bf16.msra.mxu0 0
      %1823 = vmatprep.subr.bf16.mxu0 0
      %1824 = vmatpush1.bf16.msra.mxu0 0
      %1825 = vmatprep.subr.bf16.mxu0 0
      %1826 = vmatpush1.bf16.msra.mxu0 0
      %1827 = vmatprep.subr.bf16.mxu0 0
      %1828 = vmatpush1.bf16.msra.mxu0 0
      %1829 = vmatprep.subr.bf16.mxu0 0
      %1830 = vmatpush1.bf16.msra.mxu0 0
      %1831 = vmatprep.subr.bf16.mxu0 0
      %1832 = vmatpush1.bf16.msra.mxu0 0
      %1833 = vmatprep.subr.bf16.mxu0 0
      %1834 = vmatpush1.bf16.msra.mxu0 0
      %1835 = vmatprep.subr.bf16.mxu0 0
      %1836 = vmatpush1.bf16.msra.mxu0 0
      %1837 = vmatprep.subr.bf16.mxu0 0
      %1838 = vmatpush1.bf16.msra.mxu0 0
      %1839 = vmatprep.subr.bf16.mxu0 0
      %1840 = vmatpush1.bf16.msra.mxu0 0
      %1841 = vmatprep.subr.bf16.mxu0 0
      %1842 = vmatpush1.bf16.msra.mxu0 0
      %1843 = vmatprep.subr.bf16.mxu0 0
      %1844 = vmatpush1.bf16.msra.mxu0 0
      %1845 = vmatprep.subr.bf16.mxu0 0
      %1846 = vmatpush1.bf16.msra.mxu0 0
      %1847 = vmatprep.subr.bf16.mxu0 0
      %1848 = vmatpush1.bf16.msra.mxu0 0
      %1849 = vmatprep.mubr.bf16.mxu0 0
      %1850 = vmatmul.mubr.bf16.gmra.mrb[0].mxu0 %v1110
      %v1851 = vpop.f32.mrb[0].mxu0
      %v1852 = vadd.f32 %v1803, %v1851
      %v1853 = vpop.f32.mrb[0].mxu0
      %v1854 = vpop.f32.mrb[0].mxu0
      %v1855 = vpop.f32.mrb[0].mxu0
      %1856 = vdwg.mxu0
      %v1857 = vpack.c.bf16 %v1722, %v1722
      %v1858 = vpack.c.bf16 %v1787, %v1787
      %v1860 = vsel %vm1154, %v1857, 0
      %v1863 = vsel %vm1154, %v1858, 0
      %1865 = vmatprep.subr.bf16.mxu0 0
      %1866 = vmatpush1.bf16.xpose.msra.mxu0 %v1863
      %1867 = vmatprep.subr.bf16.mxu0 0
      %1868 = vmatpush1.bf16.xpose.msra.mxu0 0
      %1869 = vmatprep.subr.bf16.mxu0 0
      %1870 = vmatpush1.bf16.xpose.msra.mxu0 0
      %1871 = vmatprep.subr.bf16.mxu0 0
      %1872 = vmatpush1.bf16.xpose.msra.mxu0 0
      %1873 = vmatprep.subr.bf16.mxu0 0
      %1874 = vmatpush1.bf16.xpose.msra.mxu0 0
      %1875 = vmatprep.subr.bf16.mxu0 0
      %1876 = vmatpush1.bf16.xpose.msra.mxu0 0
      %1877 = vmatprep.subr.bf16.mxu0 0
      %1878 = vmatpush1.bf16.xpose.msra.mxu0 0
      %1879 = vmatprep.subr.bf16.mxu0 0
      %1880 = vmatpush1.bf16.xpose.msra.mxu0 0
      %1881 = vmatprep.subr.bf16.mxu0 0
      %1882 = vmatpush1.bf16.xpose.msra.mxu0 0
      %1883 = vmatprep.subr.bf16.mxu0 0
      %1884 = vmatpush1.bf16.xpose.msra.mxu0 0
      %1885 = vmatprep.subr.bf16.mxu0 0
      %1886 = vmatpush1.bf16.xpose.msra.mxu0 0
      %1887 = vmatprep.subr.bf16.mxu0 0
      %1888 = vmatpush1.bf16.xpose.msra.mxu0 0
      %1889 = vmatprep.subr.bf16.mxu0 0
      %1890 = vmatpush1.bf16.xpose.msra.mxu0 0
      %1891 = vmatprep.subr.bf16.mxu0 0
      %1892 = vmatpush1.bf16.xpose.msra.mxu0 0
      %1893 = vmatprep.subr.bf16.mxu0 0
      %1894 = vmatpush1.bf16.xpose.msra.mxu0 0
      %1895 = vmatprep.subr.bf16.mxu0 0
      %1896 = vmatpush1.bf16.xpose.msra.mxu0 0
      %1897 = vmatprep.mubr.bf16.mxu0 0
      %1898 = vmatmul.mubr.bf16.gmra.mrb[0].mxu0 %v1860
      %v1899 = vpop.f32.mrb[0].mxu0
      %v1900 = vadd.f32 0.0, %v1899
      %v1901 = vpop.f32.mrb[0].mxu0
      %v1902 = vpop.f32.mrb[0].mxu0
      %v1903 = vpop.f32.mrb[0].mxu0
      %1904 = vdwg.mxu0
      %v1905 = vmul.f32 %v1900, 0.35355338
      %v1906 = vsel %vm1154, %v1905, -inf
      %1907 = vmax.xlane.f32.xlu0 %v1906
      %v1908 = vpop.xlane.xlu0 %1907
      %v1909 = vsub.f32 %v1905, %v1908
      %v1910 = vmul.f32 %v1909, 1.442695
      %v1911 = vpow.pop %v1910
      %v1912 = vsel %vm1154, %v1911, 0.0
      %1913 = vadd.xlane.f32.xlu0 %v1912
      %v1914 = vpop.xlane.xlu0 %1913
      %v1915 = vrcp.pop %v1914
      %v1916 = vmul.f32 %v1911, %v1915
      %v1917 = vpack.c.bf16 %v1916, %v1916
      %v1918 = vpack.c.bf16 %v1852, %v1852
      %v1920 = vsel %vm1154, %v1917, 0
      %v1923 = vsel %vm1218, %v1918, 0
      %1925 = vmatprep.subr.bf16.mxu0 0
      %1926 = vmatpush1.bf16.msra.mxu0 %v1923
      %1927 = vmatprep.subr.bf16.mxu0 0
      %1928 = vmatpush1.bf16.msra.mxu0 0
      %1929 = vmatprep.subr.bf16.mxu0 0
      %1930 = vmatpush1.bf16.msra.mxu0 0
      %1931 = vmatprep.subr.bf16.mxu0 0
      %1932 = vmatpush1.bf16.msra.mxu0 0
      %1933 = vmatprep.subr.bf16.mxu0 0
      %1934 = vmatpush1.bf16.msra.mxu0 0
      %1935 = vmatprep.subr.bf16.mxu0 0
      %1936 = vmatpush1.bf16.msra.mxu0 0
      %1937 = vmatprep.subr.bf16.mxu0 0
      %1938 = vmatpush1.bf16.msra.mxu0 0
      %1939 = vmatprep.subr.bf16.mxu0 0
      %1940 = vmatpush1.bf16.msra.mxu0 0
      %1941 = vmatprep.subr.bf16.mxu0 0
      %1942 = vmatpush1.bf16.msra.mxu0 0
      %1943 = vmatprep.subr.bf16.mxu0 0
      %1944 = vmatpush1.bf16.msra.mxu0 0
      %1945 = vmatprep.subr.bf16.mxu0 0
      %1946 = vmatpush1.bf16.msra.mxu0 0
      %1947 = vmatprep.subr.bf16.mxu0 0
      %1948 = vmatpush1.bf16.msra.mxu0 0
      %1949 = vmatprep.subr.bf16.mxu0 0
      %1950 = vmatpush1.bf16.msra.mxu0 0
      %1951 = vmatprep.subr.bf16.mxu0 0
      %1952 = vmatpush1.bf16.msra.mxu0 0
      %1953 = vmatprep.subr.bf16.mxu0 0
      %1954 = vmatpush1.bf16.msra.mxu0 0
      %1955 = vmatprep.subr.bf16.mxu0 0
      %1956 = vmatpush1.bf16.msra.mxu0 0
      %1957 = vmatprep.mubr.bf16.mxu0 0
      %1958 = vmatmul.mubr.bf16.gmra.mrb[0].mxu0 %v1920
      %v1959 = vpop.f32.mrb[0].mxu0
      %v1960 = vadd.f32 0.0, %v1959
      %v1961 = vpop.f32.mrb[0].mxu0
      %v1962 = vpop.f32.mrb[0].mxu0
      %v1963 = vpop.f32.mrb[0].mxu0
      %1964 = vdwg.mxu0
      %v1965 = vpack.c.bf16 %v1960, %v1960
      %s1966 = scalar_lea.vmem %s21, 8
      %v1967 = vld [vmem:[%s1966] sm:$0xf]
      %v1969 = vsel %vm1154, %v1965, 0
      %v1972 = vsel %vm1218, %v1967, 0
      %1974 = vmatprep.subr.bf16.mxu0 0
      %1975 = vmatpush1.bf16.msra.mxu0 %v1972
      %1976 = vmatprep.subr.bf16.mxu0 0
      %1977 = vmatpush1.bf16.msra.mxu0 0
      %1978 = vmatprep.subr.bf16.mxu0 0
      %1979 = vmatpush1.bf16.msra.mxu0 0
      %1980 = vmatprep.subr.bf16.mxu0 0
      %1981 = vmatpush1.bf16.msra.mxu0 0
      %1982 = vmatprep.subr.bf16.mxu0 0
      %1983 = vmatpush1.bf16.msra.mxu0 0
      %1984 = vmatprep.subr.bf16.mxu0 0
      %1985 = vmatpush1.bf16.msra.mxu0 0
      %1986 = vmatprep.subr.bf16.mxu0 0
      %1987 = vmatpush1.bf16.msra.mxu0 0
      %1988 = vmatprep.subr.bf16.mxu0 0
      %1989 = vmatpush1.bf16.msra.mxu0 0
      %1990 = vmatprep.subr.bf16.mxu0 0
      %1991 = vmatpush1.bf16.msra.mxu0 0
      %1992 = vmatprep.subr.bf16.mxu0 0
      %1993 = vmatpush1.bf16.msra.mxu0 0
      %1994 = vmatprep.subr.bf16.mxu0 0
      %1995 = vmatpush1.bf16.msra.mxu0 0
      %1996 = vmatprep.subr.bf16.mxu0 0
      %1997 = vmatpush1.bf16.msra.mxu0 0
      %1998 = vmatprep.subr.bf16.mxu0 0
      %1999 = vmatpush1.bf16.msra.mxu0 0
      %2000 = vmatprep.subr.bf16.mxu0 0
      %2001 = vmatpush1.bf16.msra.mxu0 0
      %2002 = vmatprep.subr.bf16.mxu0 0
      %2003 = vmatpush1.bf16.msra.mxu0 0
      %2004 = vmatprep.subr.bf16.mxu0 0
      %2005 = vmatpush1.bf16.msra.mxu0 0
      %2006 = vmatprep.mubr.bf16.mxu0 0
      %2007 = vmatmul.mubr.bf16.gmra.mrb[0].mxu0 %v1969
      %v2008 = vpop.f32.mrb[0].mxu0
      %v2009 = vadd.f32 0.0, %v2008
      %v2010 = vpop.f32.mrb[0].mxu0
      %v2011 = vpop.f32.mrb[0].mxu0
      %v2012 = vpop.f32.mrb[0].mxu0
      %2013 = vdwg.mxu0
      %v2014 = vadd.f32 %v1657, %v2009
      %s2015 = scalar_lea.vmem %s9, 48
      %v2016 = vld [vmem:[%s2015] sm:$0xf]
      %v2017 = vld [vmem:[%s2015 + $0x4] sm:$0xf]
      %v2018 = vld [vmem:[%s2015 + $0x8] sm:$0xf]
      %v2019 = vld [vmem:[%s2015 + $0xc] sm:$0xf]
      %s2020 = scalar_lea.vmem %s11, 3
      %v2021 = vld [vmem:[%s2020] sm:$0x1]
      %v2023 = vlaneseq
      %v2024 = vshrl.u32 %v2023, 7
      %v2025 = vsub.s32 0, %v2024
      %v2026 = vrot.slane %v2021, %v2025
      %v2032 = vunpack.c.l.b16 %v2016
      %v2033 = vunpack.c.l.b16 %v2017
      %v2034 = vunpack.c.l.b16 %v2018
      %v2035 = vunpack.c.l.b16 %v2019
      %v2036 = vpack.c.b16 %v2033, %v2032
      %v2037 = vpack.c.b16 %v2035, %v2034
      %2040 = vmatprep.subr.bf16.mxu0 0
      %2041 = vmatpush1.bf16.msra.mxu0 %v2036
      %2042 = vmatprep.subr.bf16.mxu0 0
      %2043 = vmatpush1.bf16.msra.mxu0 %v2037
      %2044 = vmatprep.subr.bf16.mxu0 0
      %2045 = vmatpush1.bf16.msra.mxu0 0
      %2046 = vmatprep.subr.bf16.mxu0 0
      %2047 = vmatpush1.bf16.msra.mxu0 0
      %2048 = vmatprep.subr.bf16.mxu0 0
      %2049 = vmatpush1.bf16.msra.mxu0 0
      %2050 = vmatprep.subr.bf16.mxu0 0
      %2051 = vmatpush1.bf16.msra.mxu0 0
      %2052 = vmatprep.subr.bf16.mxu0 0
      %2053 = vmatpush1.bf16.msra.mxu0 0
      %2054 = vmatprep.subr.bf16.mxu0 0
      %2055 = vmatpush1.bf16.msra.mxu0 0
      %2056 = vmatprep.subr.bf16.mxu0 0
      %2057 = vmatpush1.bf16.msra.mxu0 0
      %2058 = vmatprep.subr.bf16.mxu0 0
      %2059 = vmatpush1.bf16.msra.mxu0 0
      %2060 = vmatprep.subr.bf16.mxu0 0
      %2061 = vmatpush1.bf16.msra.mxu0 0
      %2062 = vmatprep.subr.bf16.mxu0 0
      %2063 = vmatpush1.bf16.msra.mxu0 0
      %2064 = vmatprep.subr.bf16.mxu0 0
      %2065 = vmatpush1.bf16.msra.mxu0 0
      %2066 = vmatprep.subr.bf16.mxu0 0
      %2067 = vmatpush1.bf16.msra.mxu0 0
      %2068 = vmatprep.subr.bf16.mxu0 0
      %2069 = vmatpush1.bf16.msra.mxu0 0
      %2070 = vmatprep.subr.bf16.mxu0 0
      %2071 = vmatpush1.bf16.msra.mxu0 0
      %2072 = vmatprep.mubr.bf16.mxu0 0
      %2073 = vmatmul.mubr.bf16.gmra.mrb[0].mxu0 %v981
      %v2074 = vpop.f32.mrb[0].mxu0
      %v2075 = vadd.f32 %v2026, %v2074
      %v2076 = vpop.f32.mrb[0].mxu0
      %v2077 = vpop.f32.mrb[0].mxu0
      %v2078 = vpop.f32.mrb[0].mxu0
      %2079 = vdwg.mxu0
      %s2080 = scalar_lea.vmem %s13, 48
      %v2081 = vld [vmem:[%s2080] sm:$0xf]
      %v2082 = vld [vmem:[%s2080 + $0x4] sm:$0xf]
      %v2083 = vld [vmem:[%s2080 + $0x8] sm:$0xf]
      %v2084 = vld [vmem:[%s2080 + $0xc] sm:$0xf]
      %s2085 = scalar_lea.vmem %s15, 3
      %v2086 = vld [vmem:[%s2085] sm:$0x1]
      %v2088 = vlaneseq
      %v2089 = vshrl.u32 %v2088, 7
      %v2090 = vsub.s32 0, %v2089
      %v2091 = vrot.slane %v2086, %v2090
      %v2097 = vunpack.c.l.b16 %v2081
      %v2098 = vunpack.c.l.b16 %v2082
      %v2099 = vunpack.c.l.b16 %v2083
      %v2100 = vunpack.c.l.b16 %v2084
      %v2101 = vpack.c.b16 %v2098, %v2097
      %v2102 = vpack.c.b16 %v2100, %v2099
      %2105 = vmatprep.subr.bf16.mxu0 0
      %2106 = vmatpush1.bf16.msra.mxu0 %v2101
      %2107 = vmatprep.subr.bf16.mxu0 0
      %2108 = vmatpush1.bf16.msra.mxu0 %v2102
      %2109 = vmatprep.subr.bf16.mxu0 0
      %2110 = vmatpush1.bf16.msra.mxu0 0
      %2111 = vmatprep.subr.bf16.mxu0 0
      %2112 = vmatpush1.bf16.msra.mxu0 0
      %2113 = vmatprep.subr.bf16.mxu0 0
      %2114 = vmatpush1.bf16.msra.mxu0 0
      %2115 = vmatprep.subr.bf16.mxu0 0
      %2116 = vmatpush1.bf16.msra.mxu0 0
      %2117 = vmatprep.subr.bf16.mxu0 0
      %2118 = vmatpush1.bf16.msra.mxu0 0
      %2119 = vmatprep.subr.bf16.mxu0 0
      %2120 = vmatpush1.bf16.msra.mxu0 0
      %2121 = vmatprep.subr.bf16.mxu0 0
      %2122 = vmatpush1.bf16.msra.mxu0 0
      %2123 = vmatprep.subr.bf16.mxu0 0
      %2124 = vmatpush1.bf16.msra.mxu0 0
      %2125 = vmatprep.subr.bf16.mxu0 0
      %2126 = vmatpush1.bf16.msra.mxu0 0
      %2127 = vmatprep.subr.bf16.mxu0 0
      %2128 = vmatpush1.bf16.msra.mxu0 0
      %2129 = vmatprep.subr.bf16.mxu0 0
      %2130 = vmatpush1.bf16.msra.mxu0 0
      %2131 = vmatprep.subr.bf16.mxu0 0
      %2132 = vmatpush1.bf16.msra.mxu0 0
      %2133 = vmatprep.subr.bf16.mxu0 0
      %2134 = vmatpush1.bf16.msra.mxu0 0
      %2135 = vmatprep.subr.bf16.mxu0 0
      %2136 = vmatpush1.bf16.msra.mxu0 0
      %2137 = vmatprep.mubr.bf16.mxu0 0
      %2138 = vmatmul.mubr.bf16.gmra.mrb[0].mxu0 %v981
      %v2139 = vpop.f32.mrb[0].mxu0
      %v2140 = vadd.f32 %v2091, %v2139
      %v2141 = vpop.f32.mrb[0].mxu0
      %v2142 = vpop.f32.mrb[0].mxu0
      %v2143 = vpop.f32.mrb[0].mxu0
      %2144 = vdwg.mxu0
      %s2145 = scalar_lea.vmem %s17, 48
      %v2146 = vld [vmem:[%s2145] sm:$0xf]
      %v2147 = vld [vmem:[%s2145 + $0x4] sm:$0xf]
      %v2148 = vld [vmem:[%s2145 + $0x8] sm:$0xf]
      %v2149 = vld [vmem:[%s2145 + $0xc] sm:$0xf]
      %s2150 = scalar_lea.vmem %s19, 3
      %v2151 = vld [vmem:[%s2150] sm:$0x1]
      %v2153 = vlaneseq
      %v2154 = vshrl.u32 %v2153, 7
      %v2155 = vsub.s32 0, %v2154
      %v2156 = vrot.slane %v2151, %v2155
      %v2162 = vunpack.c.l.b16 %v2146
      %v2163 = vunpack.c.l.b16 %v2147
      %v2164 = vunpack.c.l.b16 %v2148
      %v2165 = vunpack.c.l.b16 %v2149
      %v2166 = vpack.c.b16 %v2163, %v2162
      %v2167 = vpack.c.b16 %v2165, %v2164
      %2170 = vmatprep.subr.bf16.mxu0 0
      %2171 = vmatpush1.bf16.msra.mxu0 %v2166
      %2172 = vmatprep.subr.bf16.mxu0 0
      %2173 = vmatpush1.bf16.msra.mxu0 %v2167
      %2174 = vmatprep.subr.bf16.mxu0 0
      %2175 = vmatpush1.bf16.msra.mxu0 0
      %2176 = vmatprep.subr.bf16.mxu0 0
      %2177 = vmatpush1.bf16.msra.mxu0 0
      %2178 = vmatprep.subr.bf16.mxu0 0
      %2179 = vmatpush1.bf16.msra.mxu0 0
      %2180 = vmatprep.subr.bf16.mxu0 0
      %2181 = vmatpush1.bf16.msra.mxu0 0
      %2182 = vmatprep.subr.bf16.mxu0 0
      %2183 = vmatpush1.bf16.msra.mxu0 0
      %2184 = vmatprep.subr.bf16.mxu0 0
      %2185 = vmatpush1.bf16.msra.mxu0 0
      %2186 = vmatprep.subr.bf16.mxu0 0
      %2187 = vmatpush1.bf16.msra.mxu0 0
      %2188 = vmatprep.subr.bf16.mxu0 0
      %2189 = vmatpush1.bf16.msra.mxu0 0
      %2190 = vmatprep.subr.bf16.mxu0 0
      %2191 = vmatpush1.bf16.msra.mxu0 0
      %2192 = vmatprep.subr.bf16.mxu0 0
      %2193 = vmatpush1.bf16.msra.mxu0 0
      %2194 = vmatprep.subr.bf16.mxu0 0
      %2195 = vmatpush1.bf16.msra.mxu0 0
      %2196 = vmatprep.subr.bf16.mxu0 0
      %2197 = vmatpush1.bf16.msra.mxu0 0
      %2198 = vmatprep.subr.bf16.mxu0 0
      %2199 = vmatpush1.bf16.msra.mxu0 0
      %2200 = vmatprep.subr.bf16.mxu0 0
      %2201 = vmatpush1.bf16.msra.mxu0 0
      %2202 = vmatprep.mubr.bf16.mxu0 0
      %2203 = vmatmul.mubr.bf16.gmra.mrb[0].mxu0 %v1110
      %v2204 = vpop.f32.mrb[0].mxu0
      %v2205 = vadd.f32 %v2156, %v2204
      %v2206 = vpop.f32.mrb[0].mxu0
      %v2207 = vpop.f32.mrb[0].mxu0
      %v2208 = vpop.f32.mrb[0].mxu0
      %2209 = vdwg.mxu0
      %v2210 = vpack.c.bf16 %v2075, %v2075
      %v2211 = vpack.c.bf16 %v2140, %v2140
      %v2213 = vsel %vm1154, %v2210, 0
      %v2216 = vsel %vm1154, %v2211, 0
      %2218 = vmatprep.subr.bf16.mxu0 0
      %2219 = vmatpush1.bf16.xpose.msra.mxu0 %v2216
      %2220 = vmatprep.subr.bf16.mxu0 0
      %2221 = vmatpush1.bf16.xpose.msra.mxu0 0
      %2222 = vmatprep.subr.bf16.mxu0 0
      %2223 = vmatpush1.bf16.xpose.msra.mxu0 0
      %2224 = vmatprep.subr.bf16.mxu0 0
      %2225 = vmatpush1.bf16.xpose.msra.mxu0 0
      %2226 = vmatprep.subr.bf16.mxu0 0
      %2227 = vmatpush1.bf16.xpose.msra.mxu0 0
      %2228 = vmatprep.subr.bf16.mxu0 0
      %2229 = vmatpush1.bf16.xpose.msra.mxu0 0
      %2230 = vmatprep.subr.bf16.mxu0 0
      %2231 = vmatpush1.bf16.xpose.msra.mxu0 0
      %2232 = vmatprep.subr.bf16.mxu0 0
      %2233 = vmatpush1.bf16.xpose.msra.mxu0 0
      %2234 = vmatprep.subr.bf16.mxu0 0
      %2235 = vmatpush1.bf16.xpose.msra.mxu0 0
      %2236 = vmatprep.subr.bf16.mxu0 0
      %2237 = vmatpush1.bf16.xpose.msra.mxu0 0
      %2238 = vmatprep.subr.bf16.mxu0 0
      %2239 = vmatpush1.bf16.xpose.msra.mxu0 0
      %2240 = vmatprep.subr.bf16.mxu0 0
      %2241 = vmatpush1.bf16.xpose.msra.mxu0 0
      %2242 = vmatprep.subr.bf16.mxu0 0
      %2243 = vmatpush1.bf16.xpose.msra.mxu0 0
      %2244 = vmatprep.subr.bf16.mxu0 0
      %2245 = vmatpush1.bf16.xpose.msra.mxu0 0
      %2246 = vmatprep.subr.bf16.mxu0 0
      %2247 = vmatpush1.bf16.xpose.msra.mxu0 0
      %2248 = vmatprep.subr.bf16.mxu0 0
      %2249 = vmatpush1.bf16.xpose.msra.mxu0 0
      %2250 = vmatprep.mubr.bf16.mxu0 0
      %2251 = vmatmul.mubr.bf16.gmra.mrb[0].mxu0 %v2213
      %v2252 = vpop.f32.mrb[0].mxu0
      %v2253 = vadd.f32 0.0, %v2252
      %v2254 = vpop.f32.mrb[0].mxu0
      %v2255 = vpop.f32.mrb[0].mxu0
      %v2256 = vpop.f32.mrb[0].mxu0
      %2257 = vdwg.mxu0
      %v2258 = vmul.f32 %v2253, 0.35355338
      %v2259 = vsel %vm1154, %v2258, -inf
      %2260 = vmax.xlane.f32.xlu0 %v2259
      %v2261 = vpop.xlane.xlu0 %2260
      %v2262 = vsub.f32 %v2258, %v2261
      %v2263 = vmul.f32 %v2262, 1.442695
      %v2264 = vpow.pop %v2263
      %v2265 = vsel %vm1154, %v2264, 0.0
      %2266 = vadd.xlane.f32.xlu0 %v2265
      %v2267 = vpop.xlane.xlu0 %2266
      %v2268 = vrcp.pop %v2267
      %v2269 = vmul.f32 %v2264, %v2268
      %v2270 = vpack.c.bf16 %v2269, %v2269
      %v2271 = vpack.c.bf16 %v2205, %v2205
      %v2273 = vsel %vm1154, %v2270, 0
      %v2276 = vsel %vm1218, %v2271, 0
      %2278 = vmatprep.subr.bf16.mxu0 0
      %2279 = vmatpush1.bf16.msra.mxu0 %v2276
      %2280 = vmatprep.subr.bf16.mxu0 0
      %2281 = vmatpush1.bf16.msra.mxu0 0
      %2282 = vmatprep.subr.bf16.mxu0 0
      %2283 = vmatpush1.bf16.msra.mxu0 0
      %2284 = vmatprep.subr.bf16.mxu0 0
      %2285 = vmatpush1.bf16.msra.mxu0 0
      %2286 = vmatprep.subr.bf16.mxu0 0
      %2287 = vmatpush1.bf16.msra.mxu0 0
      %2288 = vmatprep.subr.bf16.mxu0 0
      %2289 = vmatpush1.bf16.msra.mxu0 0
      %2290 = vmatprep.subr.bf16.mxu0 0
      %2291 = vmatpush1.bf16.msra.mxu0 0
      %2292 = vmatprep.subr.bf16.mxu0 0
      %2293 = vmatpush1.bf16.msra.mxu0 0
      %2294 = vmatprep.subr.bf16.mxu0 0
      %2295 = vmatpush1.bf16.msra.mxu0 0
      %2296 = vmatprep.subr.bf16.mxu0 0
      %2297 = vmatpush1.bf16.msra.mxu0 0
      %2298 = vmatprep.subr.bf16.mxu0 0
      %2299 = vmatpush1.bf16.msra.mxu0 0
      %2300 = vmatprep.subr.bf16.mxu0 0
      %2301 = vmatpush1.bf16.msra.mxu0 0
      %2302 = vmatprep.subr.bf16.mxu0 0
      %2303 = vmatpush1.bf16.msra.mxu0 0
      %2304 = vmatprep.subr.bf16.mxu0 0
      %2305 = vmatpush1.bf16.msra.mxu0 0
      %2306 = vmatprep.subr.bf16.mxu0 0
      %2307 = vmatpush1.bf16.msra.mxu0 0
      %2308 = vmatprep.subr.bf16.mxu0 0
      %2309 = vmatpush1.bf16.msra.mxu0 0
      %2310 = vmatprep.mubr.bf16.mxu0 0
      %2311 = vmatmul.mubr.bf16.gmra.mrb[0].mxu0 %v2273
      %v2312 = vpop.f32.mrb[0].mxu0
      %v2313 = vadd.f32 0.0, %v2312
      %v2314 = vpop.f32.mrb[0].mxu0
      %v2315 = vpop.f32.mrb[0].mxu0
      %v2316 = vpop.f32.mrb[0].mxu0
      %2317 = vdwg.mxu0
      %v2318 = vpack.c.bf16 %v2313, %v2313
      %s2319 = scalar_lea.vmem %s21, 12
      %v2320 = vld [vmem:[%s2319] sm:$0xf]
      %v2322 = vsel %vm1154, %v2318, 0
      %v2325 = vsel %vm1218, %v2320, 0
      %2327 = vmatprep.subr.bf16.mxu0 0
      %2328 = vmatpush1.bf16.msra.mxu0 %v2325
      %2329 = vmatprep.subr.bf16.mxu0 0
      %2330 = vmatpush1.bf16.msra.mxu0 0
      %2331 = vmatprep.subr.bf16.mxu0 0
      %2332 = vmatpush1.bf16.msra.mxu0 0
      %2333 = vmatprep.subr.bf16.mxu0 0
      %2334 = vmatpush1.bf16.msra.mxu0 0
      %2335 = vmatprep.subr.bf16.mxu0 0
      %2336 = vmatpush1.bf16.msra.mxu0 0
      %2337 = vmatprep.subr.bf16.mxu0 0
      %2338 = vmatpush1.bf16.msra.mxu0 0
      %2339 = vmatprep.subr.bf16.mxu0 0
      %2340 = vmatpush1.bf16.msra.mxu0 0
      %2341 = vmatprep.subr.bf16.mxu0 0
      %2342 = vmatpush1.bf16.msra.mxu0 0
      %2343 = vmatprep.subr.bf16.mxu0 0
      %2344 = vmatpush1.bf16.msra.mxu0 0
      %2345 = vmatprep.subr.bf16.mxu0 0
      %2346 = vmatpush1.bf16.msra.mxu0 0
      %2347 = vmatprep.subr.bf16.mxu0 0
      %2348 = vmatpush1.bf16.msra.mxu0 0
      %2349 = vmatprep.subr.bf16.mxu0 0
      %2350 = vmatpush1.bf16.msra.mxu0 0
      %2351 = vmatprep.subr.bf16.mxu0 0
      %2352 = vmatpush1.bf16.msra.mxu0 0
      %2353 = vmatprep.subr.bf16.mxu0 0
      %2354 = vmatpush1.bf16.msra.mxu0 0
      %2355 = vmatprep.subr.bf16.mxu0 0
      %2356 = vmatpush1.bf16.msra.mxu0 0
      %2357 = vmatprep.subr.bf16.mxu0 0
      %2358 = vmatpush1.bf16.msra.mxu0 0
      %2359 = vmatprep.mubr.bf16.mxu0 0
      %2360 = vmatmul.mubr.bf16.gmra.mrb[0].mxu0 %v2322
      %v2361 = vpop.f32.mrb[0].mxu0
      %v2362 = vadd.f32 0.0, %v2361
      %v2363 = vpop.f32.mrb[0].mxu0
      %v2364 = vpop.f32.mrb[0].mxu0
      %v2365 = vpop.f32.mrb[0].mxu0
      %2366 = vdwg.mxu0
      %v2367 = vadd.f32 %v2014, %v2362
      %v2368 = vld [vmem:[%s23] sm:$0x1]
      %v2370 = vlaneseq
      %v2371 = vshrl.u32 %v2370, 7
      %v2372 = vsub.s32 0, %v2371
      %v2373 = vrot.slane %v2368, %v2372
      %v2375 = vadd.f32 %v2367, %v2373
      %v2376 = vadd.f32 %v947, %v2375
      %v2377 = vld [vmem:[%s25] sm:$0x1]
      %v2378 = vld [vmem:[%s27] sm:$0x1]
      %v2379 = vsel %vm979, %v2376, 0.0
      %2380 = vadd.xlane.f32.xlu0 %v2379
      %v2381 = vpop.xlane.xlu0 %2380
      %v2382 = vrcp.pop 32.0
      %v2383 = vmul.f32 %v2381, %v2382
      %v2384 = vsub.f32 %v2376, %v2383
      %v2385 = vmul.f32 %v2384, %v2384
      %v2386 = vsel %vm979, %v2385, 0.0
      %2387 = vadd.xlane.f32.xlu0 %v2386
      %v2388 = vpop.xlane.xlu0 %2387
      %v2389 = vmul.f32 %v2388, %v2382
      %v2390 = vadd.f32 %v2389, 1e-05
      %v2391 = vrsqrt.pop %v2390
      %v2392 = vmul.f32 %v2384, %v2391
      %v2394 = vlaneseq
      %v2395 = vshrl.u32 %v2394, 7
      %v2396 = vsub.s32 0, %v2395
      %v2397 = vrot.slane %v2377, %v2396
      %v2399 = vmul.f32 %v2392, %v2397
      %v2401 = vlaneseq
      %v2402 = vshrl.u32 %v2401, 7
      %v2403 = vsub.s32 0, %v2402
      %v2404 = vrot.slane %v2378, %v2403
      %v2406 = vadd.f32 %v2399, %v2404
      %v2407 = vadd.f32 %v2406, %v948
      %v2408 = vadd.f32 %v949, %v951
      %v2409 = vadd.f32 %v950, %v952
      %v2410 = vpack.c.bf16 %v2407, %v2407
      %v2411 = vpack.c.bf16 %v2409, %v2408
      %v2412 = vpack.c.bf16 %v950, %v949
      %v2413 = vld [vmem:[%s29] sm:$0xf]
      %v2414 = vld [vmem:[%s29 + $0x4] sm:$0xf]
      %v2415 = vld [vmem:[%s29 + $0x8] sm:$0xf]
      %v2416 = vld [vmem:[%s29 + $0xc] sm:$0xf]
      %v2417 = vld [vmem:[%s31] sm:$0x1]
      %v2419 = vlaneseq
      %v2420 = vshrl.u32 %v2419, 7
      %v2421 = vsub.s32 0, %v2420
      %v2422 = vrot.slane %v2417, %v2421
      %v2428 = vunpack.c.l.b16 %v2413
      %v2429 = vunpack.c.l.b16 %v2414
      %v2430 = vunpack.c.l.b16 %v2415
      %v2431 = vunpack.c.l.b16 %v2416
      %v2432 = vpack.c.b16 %v2429, %v2428
      %v2433 = vpack.c.b16 %v2431, %v2430
      %v2437 = vsel %vm979, %v2410, 0
      %2439 = vmatprep.subr.bf16.mxu0 0
      %2440 = vmatpush1.bf16.msra.mxu0 %v2432
      %2441 = vmatprep.subr.bf16.mxu0 0
      %2442 = vmatpush1.bf16.msra.mxu0 %v2433
      %2443 = vmatprep.subr.bf16.mxu0 0
      %2444 = vmatpush1.bf16.msra.mxu0 0
      %2445 = vmatprep.subr.bf16.mxu0 0
      %2446 = vmatpush1.bf16.msra.mxu0 0
      %2447 = vmatprep.subr.bf16.mxu0 0
      %2448 = vmatpush1.bf16.msra.mxu0 0
      %2449 = vmatprep.subr.bf16.mxu0 0
      %2450 = vmatpush1.bf16.msra.mxu0 0
      %2451 = vmatprep.subr.bf16.mxu0 0
      %2452 = vmatpush1.bf16.msra.mxu0 0
      %2453 = vmatprep.subr.bf16.mxu0 0
      %2454 = vmatpush1.bf16.msra.mxu0 0
      %2455 = vmatprep.subr.bf16.mxu0 0
      %2456 = vmatpush1.bf16.msra.mxu0 0
      %2457 = vmatprep.subr.bf16.mxu0 0
      %2458 = vmatpush1.bf16.msra.mxu0 0
      %2459 = vmatprep.subr.bf16.mxu0 0
      %2460 = vmatpush1.bf16.msra.mxu0 0
      %2461 = vmatprep.subr.bf16.mxu0 0
      %2462 = vmatpush1.bf16.msra.mxu0 0
      %2463 = vmatprep.subr.bf16.mxu0 0
      %2464 = vmatpush1.bf16.msra.mxu0 0
      %2465 = vmatprep.subr.bf16.mxu0 0
      %2466 = vmatpush1.bf16.msra.mxu0 0
      %2467 = vmatprep.subr.bf16.mxu0 0
      %2468 = vmatpush1.bf16.msra.mxu0 0
      %2469 = vmatprep.subr.bf16.mxu0 0
      %2470 = vmatpush1.bf16.msra.mxu0 0
      %2471 = vmatprep.mubr.bf16.mxu0 0
      %2472 = vmatmul.mubr.bf16.gmra.mrb[0].mxu0 %v2437
      %v2473 = vpop.f32.mrb[0].mxu0
      %v2474 = vadd.f32 %v2422, %v2473
      %v2475 = vpop.f32.mrb[0].mxu0
      %v2476 = vpop.f32.mrb[0].mxu0
      %v2477 = vpop.f32.mrb[0].mxu0
      %2478 = vdwg.mxu0
      %v2479 = vld [vmem:[%s33] sm:$0xf]
      %v2480 = vld [vmem:[%s33 + $0x4] sm:$0xf]
      %v2481 = vld [vmem:[%s33 + $0x8] sm:$0xf]
      %v2482 = vld [vmem:[%s33 + $0xc] sm:$0xf]
      %v2483 = vld [vmem:[%s35] sm:$0x1]
      %v2485 = vlaneseq
      %v2486 = vshrl.u32 %v2485, 7
      %v2487 = vsub.s32 0, %v2486
      %v2488 = vrot.slane %v2483, %v2487
      %v2494 = vunpack.c.l.b16 %v2479
      %v2495 = vunpack.c.l.b16 %v2480
      %v2496 = vunpack.c.l.b16 %v2481
      %v2497 = vunpack.c.l.b16 %v2482
      %v2498 = vpack.c.b16 %v2495, %v2494
      %v2499 = vpack.c.b16 %v2497, %v2496
      %v2503 = vsel %vm979, %v2411, 0
      %2505 = vmatprep.subr.bf16.mxu0 0
      %2506 = vmatpush1.bf16.msra.mxu0 %v2498
      %2507 = vmatprep.subr.bf16.mxu0 0
      %2508 = vmatpush1.bf16.msra.mxu0 %v2499
      %2509 = vmatprep.subr.bf16.mxu0 0
      %2510 = vmatpush1.bf16.msra.mxu0 0
      %2511 = vmatprep.subr.bf16.mxu0 0
      %2512 = vmatpush1.bf16.msra.mxu0 0
      %2513 = vmatprep.subr.bf16.mxu0 0
      %2514 = vmatpush1.bf16.msra.mxu0 0
      %2515 = vmatprep.subr.bf16.mxu0 0
      %2516 = vmatpush1.bf16.msra.mxu0 0
      %2517 = vmatprep.subr.bf16.mxu0 0
      %2518 = vmatpush1.bf16.msra.mxu0 0
      %2519 = vmatprep.subr.bf16.mxu0 0
      %2520 = vmatpush1.bf16.msra.mxu0 0
      %2521 = vmatprep.subr.bf16.mxu0 0
      %2522 = vmatpush1.bf16.msra.mxu0 0
      %2523 = vmatprep.subr.bf16.mxu0 0
      %2524 = vmatpush1.bf16.msra.mxu0 0
      %2525 = vmatprep.subr.bf16.mxu0 0
      %2526 = vmatpush1.bf16.msra.mxu0 0
      %2527 = vmatprep.subr.bf16.mxu0 0
      %2528 = vmatpush1.bf16.msra.mxu0 0
      %2529 = vmatprep.subr.bf16.mxu0 0
      %2530 = vmatpush1.bf16.msra.mxu0 0
      %2531 = vmatprep.subr.bf16.mxu0 0
      %2532 = vmatpush1.bf16.msra.mxu0 0
      %2533 = vmatprep.subr.bf16.mxu0 0
      %2534 = vmatpush1.bf16.msra.mxu0 0
      %2535 = vmatprep.subr.bf16.mxu0 0
      %2536 = vmatpush1.bf16.msra.mxu0 0
      %2537 = vmatprep.mubr.bf16.mxu0 0
      %2538 = vmatmul.mubr.bf16.gmra.mrb[0].mxu0 %v2503
      %v2539 = vpop.f32.mrb[0].mxu0
      %v2540 = vadd.f32 %v2488, %v2539
      %v2541 = vpop.f32.mrb[0].mxu0
      %v2542 = vpop.f32.mrb[0].mxu0
      %v2543 = vadd.f32 %v2488, %v2542
      %v2544 = vpop.f32.mrb[0].mxu0
      %2545 = vdwg.mxu0
      %v2546 = vld [vmem:[%s37] sm:$0xf]
      %v2547 = vld [vmem:[%s37 + $0x4] sm:$0xf]
      %v2548 = vld [vmem:[%s37 + $0x8] sm:$0xf]
      %v2549 = vld [vmem:[%s37 + $0xc] sm:$0xf]
      %v2550 = vld [vmem:[%s39] sm:$0x1]
      %v2552 = vlaneseq
      %v2553 = vshrl.u32 %v2552, 7
      %v2554 = vsub.s32 0, %v2553
      %v2555 = vrot.slane %v2550, %v2554
      %v2561 = vunpack.c.l.b16 %v2546
      %v2562 = vunpack.c.l.b16 %v2547
      %v2563 = vunpack.c.l.b16 %v2548
      %v2564 = vunpack.c.l.b16 %v2549
      %v2565 = vpack.c.b16 %v2562, %v2561
      %v2566 = vpack.c.b16 %v2564, %v2563
      %v2570 = vsel %vm979, %v2412, 0
      %2572 = vmatprep.subr.bf16.mxu0 0
      %2573 = vmatpush1.bf16.msra.mxu0 %v2565
      %2574 = vmatprep.subr.bf16.mxu0 0
      %2575 = vmatpush1.bf16.msra.mxu0 %v2566
      %2576 = vmatprep.subr.bf16.mxu0 0
      %2577 = vmatpush1.bf16.msra.mxu0 0
      %2578 = vmatprep.subr.bf16.mxu0 0
      %2579 = vmatpush1.bf16.msra.mxu0 0
      %2580 = vmatprep.subr.bf16.mxu0 0
      %2581 = vmatpush1.bf16.msra.mxu0 0
      %2582 = vmatprep.subr.bf16.mxu0 0
      %2583 = vmatpush1.bf16.msra.mxu0 0
      %2584 = vmatprep.subr.bf16.mxu0 0
      %2585 = vmatpush1.bf16.msra.mxu0 0
      %2586 = vmatprep.subr.bf16.mxu0 0
      %2587 = vmatpush1.bf16.msra.mxu0 0
      %2588 = vmatprep.subr.bf16.mxu0 0
      %2589 = vmatpush1.bf16.msra.mxu0 0
      %2590 = vmatprep.subr.bf16.mxu0 0
      %2591 = vmatpush1.bf16.msra.mxu0 0
      %2592 = vmatprep.subr.bf16.mxu0 0
      %2593 = vmatpush1.bf16.msra.mxu0 0
      %2594 = vmatprep.subr.bf16.mxu0 0
      %2595 = vmatpush1.bf16.msra.mxu0 0
      %2596 = vmatprep.subr.bf16.mxu0 0
      %2597 = vmatpush1.bf16.msra.mxu0 0
      %2598 = vmatprep.subr.bf16.mxu0 0
      %2599 = vmatpush1.bf16.msra.mxu0 0
      %2600 = vmatprep.subr.bf16.mxu0 0
      %2601 = vmatpush1.bf16.msra.mxu0 0
      %2602 = vmatprep.subr.bf16.mxu0 0
      %2603 = vmatpush1.bf16.msra.mxu0 0
      %2604 = vmatprep.mubr.bf16.mxu0 0
      %2605 = vmatmul.mubr.bf16.gmra.mrb[0].mxu0 %v2570
      %v2606 = vpop.f32.mrb[0].mxu0
      %v2607 = vadd.f32 %v2555, %v2606
      %v2608 = vpop.f32.mrb[0].mxu0
      %v2609 = vpop.f32.mrb[0].mxu0
      %v2610 = vadd.f32 %v2555, %v2609
      %v2611 = vpop.f32.mrb[0].mxu0
      %2612 = vdwg.mxu0
      %v2613 = vpack.c.bf16 %v2474, %v2474
      %v2614 = vpack.c.bf16 %v2543, %v2540
      %v2616 = vsel %vm1154, %v2613, 0
      %v2619 = vsel %vm1154, %v2614, 0
      %2621 = vmatprep.subr.bf16.mxu0 0
      %2622 = vmatpush1.bf16.xpose.msra.mxu0 %v2619
      %2623 = vmatprep.subr.bf16.mxu0 0
      %2624 = vmatpush1.bf16.xpose.msra.mxu0 0
      %2625 = vmatprep.subr.bf16.mxu0 0
      %2626 = vmatpush1.bf16.xpose.msra.mxu0 0
      %2627 = vmatprep.subr.bf16.mxu0 0
      %2628 = vmatpush1.bf16.xpose.msra.mxu0 0
      %2629 = vmatprep.subr.bf16.mxu0 0
      %2630 = vmatpush1.bf16.xpose.msra.mxu0 0
      %2631 = vmatprep.subr.bf16.mxu0 0
      %2632 = vmatpush1.bf16.xpose.msra.mxu0 0
      %2633 = vmatprep.subr.bf16.mxu0 0
      %2634 = vmatpush1.bf16.xpose.msra.mxu0 0
      %2635 = vmatprep.subr.bf16.mxu0 0
      %2636 = vmatpush1.bf16.xpose.msra.mxu0 0
      %2637 = vmatprep.subr.bf16.mxu0 0
      %2638 = vmatpush1.bf16.xpose.msra.mxu0 0
      %2639 = vmatprep.subr.bf16.mxu0 0
      %2640 = vmatpush1.bf16.xpose.msra.mxu0 0
      %2641 = vmatprep.subr.bf16.mxu0 0
      %2642 = vmatpush1.bf16.xpose.msra.mxu0 0
      %2643 = vmatprep.subr.bf16.mxu0 0
      %2644 = vmatpush1.bf16.xpose.msra.mxu0 0
      %2645 = vmatprep.subr.bf16.mxu0 0
      %2646 = vmatpush1.bf16.xpose.msra.mxu0 0
      %2647 = vmatprep.subr.bf16.mxu0 0
      %2648 = vmatpush1.bf16.xpose.msra.mxu0 0
      %2649 = vmatprep.subr.bf16.mxu0 0
      %2650 = vmatpush1.bf16.xpose.msra.mxu0 0
      %2651 = vmatprep.subr.bf16.mxu0 0
      %2652 = vmatpush1.bf16.xpose.msra.mxu0 0
      %2653 = vmatprep.mubr.bf16.mxu0 0
      %2654 = vmatmul.mubr.bf16.gmra.mrb[0].mxu0 %v2616
      %v2655 = vpop.f32.mrb[0].mxu0
      %v2656 = vadd.f32 0.0, %v2655
      %v2657 = vpop.f32.mrb[0].mxu0
      %v2658 = vpop.f32.mrb[0].mxu0
      %v2659 = vpop.f32.mrb[0].mxu0
      %2660 = vdwg.mxu0
      %v2661 = vmul.f32 %v2656, 0.35355338
      %vm2662 = vcmask 130048
      %v2663 = vsel %vm2662, %v2661, -inf
      %2664 = vmax.xlane.f32.xlu0 %v2663
      %v2665 = vpop.xlane.xlu0 %2664
      %v2666 = vsub.f32 %v2661, %v2665
      %v2667 = vmul.f32 %v2666, 1.442695
      %v2668 = vpow.pop %v2667
      %v2669 = vsel %vm2662, %v2668, 0.0
      %2670 = vadd.xlane.f32.xlu0 %v2669
      %v2671 = vpop.xlane.xlu0 %2670
      %v2672 = vrcp.pop %v2671
      %v2673 = vmul.f32 %v2668, %v2672
      %v2674 = vpack.c.bf16 %v2673, %v2673
      %v2675 = vpack.c.bf16 %v2610, %v2607
      %v2677 = vsel %vm2662, %v2674, 0
      %2679 = vmatprep.subr.bf16.mxu0 0
      %2680 = vmatpush1.bf16.msra.mxu0 %v2675
      %2681 = vmatprep.subr.bf16.mxu0 0
      %2682 = vmatpush1.bf16.msra.mxu0 0
      %2683 = vmatprep.subr.bf16.mxu0 0
      %2684 = vmatpush1.bf16.msra.mxu0 0
      %2685 = vmatprep.subr.bf16.mxu0 0
      %2686 = vmatpush1.bf16.msra.mxu0 0
      %2687 = vmatprep.subr.bf16.mxu0 0
      %2688 = vmatpush1.bf16.msra.mxu0 0
      %2689 = vmatprep.subr.bf16.mxu0 0
      %2690 = vmatpush1.bf16.msra.mxu0 0
      %2691 = vmatprep.subr.bf16.mxu0 0
      %2692 = vmatpush1.bf16.msra.mxu0 0
      %2693 = vmatprep.subr.bf16.mxu0 0
      %2694 = vmatpush1.bf16.msra.mxu0 0
      %2695 = vmatprep.subr.bf16.mxu0 0
      %2696 = vmatpush1.bf16.msra.mxu0 0
      %2697 = vmatprep.subr.bf16.mxu0 0
      %2698 = vmatpush1.bf16.msra.mxu0 0
      %2699 = vmatprep.subr.bf16.mxu0 0
      %2700 = vmatpush1.bf16.msra.mxu0 0
      %2701 = vmatprep.subr.bf16.mxu0 0
      %2702 = vmatpush1.bf16.msra.mxu0 0
      %2703 = vmatprep.subr.bf16.mxu0 0
      %2704 = vmatpush1.bf16.msra.mxu0 0
      %2705 = vmatprep.subr.bf16.mxu0 0
      %2706 = vmatpush1.bf16.msra.mxu0 0
      %2707 = vmatprep.subr.bf16.mxu0 0
      %2708 = vmatpush1.bf16.msra.mxu0 0
      %2709 = vmatprep.subr.bf16.mxu0 0
      %2710 = vmatpush1.bf16.msra.mxu0 0
      %2711 = vmatprep.mubr.bf16.mxu0 0
      %2712 = vmatmul.mubr.bf16.gmra.mrb[0].mxu0 %v2677
      %v2713 = vpop.f32.mrb[0].mxu0
      %v2714 = vadd.f32 0.0, %v2713
      %v2715 = vpop.f32.mrb[0].mxu0
      %v2716 = vpop.f32.mrb[0].mxu0
      %v2717 = vpop.f32.mrb[0].mxu0
      %2718 = vdwg.mxu0
      %v2719 = vpack.c.bf16 %v2714, %v2714
      %v2720 = vld [vmem:[%s41] sm:$0xf]
      %s2721 = scalar_lea.vmem %s29, 16
      %v2722 = vld [vmem:[%s2721] sm:$0xf]
      %v2723 = vld [vmem:[%s2721 + $0x4] sm:$0xf]
      %v2724 = vld [vmem:[%s2721 + $0x8] sm:$0xf]
      %v2725 = vld [vmem:[%s2721 + $0xc] sm:$0xf]
      %s2726 = scalar_lea.vmem %s31, 1
      %v2727 = vld [vmem:[%s2726] sm:$0x1]
      %v2729 = vlaneseq
      %v2730 = vshrl.u32 %v2729, 7
      %v2731 = vsub.s32 0, %v2730
      %v2732 = vrot.slane %v2727, %v2731
      %v2738 = vunpack.c.l.b16 %v2722
      %v2739 = vunpack.c.l.b16 %v2723
      %v2740 = vunpack.c.l.b16 %v2724
      %v2741 = vunpack.c.l.b16 %v2725
      %v2742 = vpack.c.b16 %v2739, %v2738
      %v2743 = vpack.c.b16 %v2741, %v2740
      %2746 = vmatprep.subr.bf16.mxu0 0
      %2747 = vmatpush1.bf16.msra.mxu0 %v2742
      %2748 = vmatprep.subr.bf16.mxu0 0
      %2749 = vmatpush1.bf16.msra.mxu0 %v2743
      %2750 = vmatprep.subr.bf16.mxu0 0
      %2751 = vmatpush1.bf16.msra.mxu0 0
      %2752 = vmatprep.subr.bf16.mxu0 0
      %2753 = vmatpush1.bf16.msra.mxu0 0
      %2754 = vmatprep.subr.bf16.mxu0 0
      %2755 = vmatpush1.bf16.msra.mxu0 0
      %2756 = vmatprep.subr.bf16.mxu0 0
      %2757 = vmatpush1.bf16.msra.mxu0 0
      %2758 = vmatprep.subr.bf16.mxu0 0
      %2759 = vmatpush1.bf16.msra.mxu0 0
      %2760 = vmatprep.subr.bf16.mxu0 0
      %2761 = vmatpush1.bf16.msra.mxu0 0
      %2762 = vmatprep.subr.bf16.mxu0 0
      %2763 = vmatpush1.bf16.msra.mxu0 0
      %2764 = vmatprep.subr.bf16.mxu0 0
      %2765 = vmatpush1.bf16.msra.mxu0 0
      %2766 = vmatprep.subr.bf16.mxu0 0
      %2767 = vmatpush1.bf16.msra.mxu0 0
      %2768 = vmatprep.subr.bf16.mxu0 0
      %2769 = vmatpush1.bf16.msra.mxu0 0
      %2770 = vmatprep.subr.bf16.mxu0 0
      %2771 = vmatpush1.bf16.msra.mxu0 0
      %2772 = vmatprep.subr.bf16.mxu0 0
      %2773 = vmatpush1.bf16.msra.mxu0 0
      %2774 = vmatprep.subr.bf16.mxu0 0
      %2775 = vmatpush1.bf16.msra.mxu0 0
      %2776 = vmatprep.subr.bf16.mxu0 0
      %2777 = vmatpush1.bf16.msra.mxu0 0
      %2778 = vmatprep.mubr.bf16.mxu0 0
      %2779 = vmatmul.mubr.bf16.gmra.mrb[0].mxu0 %v2437
      %v2780 = vpop.f32.mrb[0].mxu0
      %v2781 = vadd.f32 %v2732, %v2780
      %v2782 = vpop.f32.mrb[0].mxu0
      %v2783 = vpop.f32.mrb[0].mxu0
      %v2784 = vpop.f32.mrb[0].mxu0
      %2785 = vdwg.mxu0
      %s2786 = scalar_lea.vmem %s33, 16
      %v2787 = vld [vmem:[%s2786] sm:$0xf]
      %v2788 = vld [vmem:[%s2786 + $0x4] sm:$0xf]
      %v2789 = vld [vmem:[%s2786 + $0x8] sm:$0xf]
      %v2790 = vld [vmem:[%s2786 + $0xc] sm:$0xf]
      %s2791 = scalar_lea.vmem %s35, 1
      %v2792 = vld [vmem:[%s2791] sm:$0x1]
      %v2794 = vlaneseq
      %v2795 = vshrl.u32 %v2794, 7
      %v2796 = vsub.s32 0, %v2795
      %v2797 = vrot.slane %v2792, %v2796
      %v2803 = vunpack.c.l.b16 %v2787
      %v2804 = vunpack.c.l.b16 %v2788
      %v2805 = vunpack.c.l.b16 %v2789
      %v2806 = vunpack.c.l.b16 %v2790
      %v2807 = vpack.c.b16 %v2804, %v2803
      %v2808 = vpack.c.b16 %v2806, %v2805
      %2811 = vmatprep.subr.bf16.mxu0 0
      %2812 = vmatpush1.bf16.msra.mxu0 %v2807
      %2813 = vmatprep.subr.bf16.mxu0 0
      %2814 = vmatpush1.bf16.msra.mxu0 %v2808
      %2815 = vmatprep.subr.bf16.mxu0 0
      %2816 = vmatpush1.bf16.msra.mxu0 0
      %2817 = vmatprep.subr.bf16.mxu0 0
      %2818 = vmatpush1.bf16.msra.mxu0 0
      %2819 = vmatprep.subr.bf16.mxu0 0
      %2820 = vmatpush1.bf16.msra.mxu0 0
      %2821 = vmatprep.subr.bf16.mxu0 0
      %2822 = vmatpush1.bf16.msra.mxu0 0
      %2823 = vmatprep.subr.bf16.mxu0 0
      %2824 = vmatpush1.bf16.msra.mxu0 0
      %2825 = vmatprep.subr.bf16.mxu0 0
      %2826 = vmatpush1.bf16.msra.mxu0 0
      %2827 = vmatprep.subr.bf16.mxu0 0
      %2828 = vmatpush1.bf16.msra.mxu0 0
      %2829 = vmatprep.subr.bf16.mxu0 0
      %2830 = vmatpush1.bf16.msra.mxu0 0
      %2831 = vmatprep.subr.bf16.mxu0 0
      %2832 = vmatpush1.bf16.msra.mxu0 0
      %2833 = vmatprep.subr.bf16.mxu0 0
      %2834 = vmatpush1.bf16.msra.mxu0 0
      %2835 = vmatprep.subr.bf16.mxu0 0
      %2836 = vmatpush1.bf16.msra.mxu0 0
      %2837 = vmatprep.subr.bf16.mxu0 0
      %2838 = vmatpush1.bf16.msra.mxu0 0
      %2839 = vmatprep.subr.bf16.mxu0 0
      %2840 = vmatpush1.bf16.msra.mxu0 0
      %2841 = vmatprep.subr.bf16.mxu0 0
      %2842 = vmatpush1.bf16.msra.mxu0 0
      %2843 = vmatprep.mubr.bf16.mxu0 0
      %2844 = vmatmul.mubr.bf16.gmra.mrb[0].mxu0 %v2503
      %v2845 = vpop.f32.mrb[0].mxu0
      %v2846 = vadd.f32 %v2797, %v2845
      %v2847 = vpop.f32.mrb[0].mxu0
      %v2848 = vpop.f32.mrb[0].mxu0
      %v2849 = vadd.f32 %v2797, %v2848
      %v2850 = vpop.f32.mrb[0].mxu0
      %2851 = vdwg.mxu0
      %s2852 = scalar_lea.vmem %s37, 16
      %v2853 = vld [vmem:[%s2852] sm:$0xf]
      %v2854 = vld [vmem:[%s2852 + $0x4] sm:$0xf]
      %v2855 = vld [vmem:[%s2852 + $0x8] sm:$0xf]
      %v2856 = vld [vmem:[%s2852 + $0xc] sm:$0xf]
      %s2857 = scalar_lea.vmem %s39, 1
      %v2858 = vld [vmem:[%s2857] sm:$0x1]
      %v2860 = vlaneseq
      %v2861 = vshrl.u32 %v2860, 7
      %v2862 = vsub.s32 0, %v2861
      %v2863 = vrot.slane %v2858, %v2862
      %v2869 = vunpack.c.l.b16 %v2853
      %v2870 = vunpack.c.l.b16 %v2854
      %v2871 = vunpack.c.l.b16 %v2855
      %v2872 = vunpack.c.l.b16 %v2856
      %v2873 = vpack.c.b16 %v2870, %v2869
      %v2874 = vpack.c.b16 %v2872, %v2871
      %2877 = vmatprep.subr.bf16.mxu0 0
      %2878 = vmatpush1.bf16.msra.mxu0 %v2873
      %2879 = vmatprep.subr.bf16.mxu0 0
      %2880 = vmatpush1.bf16.msra.mxu0 %v2874
      %2881 = vmatprep.subr.bf16.mxu0 0
      %2882 = vmatpush1.bf16.msra.mxu0 0
      %2883 = vmatprep.subr.bf16.mxu0 0
      %2884 = vmatpush1.bf16.msra.mxu0 0
      %2885 = vmatprep.subr.bf16.mxu0 0
      %2886 = vmatpush1.bf16.msra.mxu0 0
      %2887 = vmatprep.subr.bf16.mxu0 0
      %2888 = vmatpush1.bf16.msra.mxu0 0
      %2889 = vmatprep.subr.bf16.mxu0 0
      %2890 = vmatpush1.bf16.msra.mxu0 0
      %2891 = vmatprep.subr.bf16.mxu0 0
      %2892 = vmatpush1.bf16.msra.mxu0 0
      %2893 = vmatprep.subr.bf16.mxu0 0
      %2894 = vmatpush1.bf16.msra.mxu0 0
      %2895 = vmatprep.subr.bf16.mxu0 0
      %2896 = vmatpush1.bf16.msra.mxu0 0
      %2897 = vmatprep.subr.bf16.mxu0 0
      %2898 = vmatpush1.bf16.msra.mxu0 0
      %2899 = vmatprep.subr.bf16.mxu0 0
      %2900 = vmatpush1.bf16.msra.mxu0 0
      %2901 = vmatprep.subr.bf16.mxu0 0
      %2902 = vmatpush1.bf16.msra.mxu0 0
      %2903 = vmatprep.subr.bf16.mxu0 0
      %2904 = vmatpush1.bf16.msra.mxu0 0
      %2905 = vmatprep.subr.bf16.mxu0 0
      %2906 = vmatpush1.bf16.msra.mxu0 0
      %2907 = vmatprep.subr.bf16.mxu0 0
      %2908 = vmatpush1.bf16.msra.mxu0 0
      %2909 = vmatprep.mubr.bf16.mxu0 0
      %2910 = vmatmul.mubr.bf16.gmra.mrb[0].mxu0 %v2570
      %v2911 = vpop.f32.mrb[0].mxu0
      %v2912 = vadd.f32 %v2863, %v2911
      %v2913 = vpop.f32.mrb[0].mxu0
      %v2914 = vpop.f32.mrb[0].mxu0
      %v2915 = vadd.f32 %v2863, %v2914
      %v2916 = vpop.f32.mrb[0].mxu0
      %2917 = vdwg.mxu0
      %v2918 = vpack.c.bf16 %v2781, %v2781
      %v2919 = vpack.c.bf16 %v2849, %v2846
      %v2921 = vsel %vm1154, %v2918, 0
      %v2924 = vsel %vm1154, %v2919, 0
      %2926 = vmatprep.subr.bf16.mxu0 0
      %2927 = vmatpush1.bf16.xpose.msra.mxu0 %v2924
      %2928 = vmatprep.subr.bf16.mxu0 0
      %2929 = vmatpush1.bf16.xpose.msra.mxu0 0
      %2930 = vmatprep.subr.bf16.mxu0 0
      %2931 = vmatpush1.bf16.xpose.msra.mxu0 0
      %2932 = vmatprep.subr.bf16.mxu0 0
      %2933 = vmatpush1.bf16.xpose.msra.mxu0 0
      %2934 = vmatprep.subr.bf16.mxu0 0
      %2935 = vmatpush1.bf16.xpose.msra.mxu0 0
      %2936 = vmatprep.subr.bf16.mxu0 0
      %2937 = vmatpush1.bf16.xpose.msra.mxu0 0
      %2938 = vmatprep.subr.bf16.mxu0 0
      %2939 = vmatpush1.bf16.xpose.msra.mxu0 0
      %2940 = vmatprep.subr.bf16.mxu0 0
      %2941 = vmatpush1.bf16.xpose.msra.mxu0 0
      %2942 = vmatprep.subr.bf16.mxu0 0
      %2943 = vmatpush1.bf16.xpose.msra.mxu0 0
      %2944 = vmatprep.subr.bf16.mxu0 0
      %2945 = vmatpush1.bf16.xpose.msra.mxu0 0
      %2946 = vmatprep.subr.bf16.mxu0 0
      %2947 = vmatpush1.bf16.xpose.msra.mxu0 0
      %2948 = vmatprep.subr.bf16.mxu0 0
      %2949 = vmatpush1.bf16.xpose.msra.mxu0 0
      %2950 = vmatprep.subr.bf16.mxu0 0
      %2951 = vmatpush1.bf16.xpose.msra.mxu0 0
      %2952 = vmatprep.subr.bf16.mxu0 0
      %2953 = vmatpush1.bf16.xpose.msra.mxu0 0
      %2954 = vmatprep.subr.bf16.mxu0 0
      %2955 = vmatpush1.bf16.xpose.msra.mxu0 0
      %2956 = vmatprep.subr.bf16.mxu0 0
      %2957 = vmatpush1.bf16.xpose.msra.mxu0 0
      %2958 = vmatprep.mubr.bf16.mxu0 0
      %2959 = vmatmul.mubr.bf16.gmra.mrb[0].mxu0 %v2921
      %v2960 = vpop.f32.mrb[0].mxu0
      %v2961 = vadd.f32 0.0, %v2960
      %v2962 = vpop.f32.mrb[0].mxu0
      %v2963 = vpop.f32.mrb[0].mxu0
      %v2964 = vpop.f32.mrb[0].mxu0
      %2965 = vdwg.mxu0
      %v2966 = vmul.f32 %v2961, 0.35355338
      %v2967 = vsel %vm2662, %v2966, -inf
      %2968 = vmax.xlane.f32.xlu0 %v2967
      %v2969 = vpop.xlane.xlu0 %2968
      %v2970 = vsub.f32 %v2966, %v2969
      %v2971 = vmul.f32 %v2970, 1.442695
      %v2972 = vpow.pop %v2971
      %v2973 = vsel %vm2662, %v2972, 0.0
      %2974 = vadd.xlane.f32.xlu0 %v2973
      %v2975 = vpop.xlane.xlu0 %2974
      %v2976 = vrcp.pop %v2975
      %v2977 = vmul.f32 %v2972, %v2976
      %v2978 = vpack.c.bf16 %v2977, %v2977
      %v2979 = vpack.c.bf16 %v2915, %v2912
      %v2981 = vsel %vm2662, %v2978, 0
      %2983 = vmatprep.subr.bf16.mxu0 0
      %2984 = vmatpush1.bf16.msra.mxu0 %v2979
      %2985 = vmatprep.subr.bf16.mxu0 0
      %2986 = vmatpush1.bf16.msra.mxu0 0
      %2987 = vmatprep.subr.bf16.mxu0 0
      %2988 = vmatpush1.bf16.msra.mxu0 0
      %2989 = vmatprep.subr.bf16.mxu0 0
      %2990 = vmatpush1.bf16.msra.mxu0 0
      %2991 = vmatprep.subr.bf16.mxu0 0
      %2992 = vmatpush1.bf16.msra.mxu0 0
      %2993 = vmatprep.subr.bf16.mxu0 0
      %2994 = vmatpush1.bf16.msra.mxu0 0
      %2995 = vmatprep.subr.bf16.mxu0 0
      %2996 = vmatpush1.bf16.msra.mxu0 0
      %2997 = vmatprep.subr.bf16.mxu0 0
      %2998 = vmatpush1.bf16.msra.mxu0 0
      %2999 = vmatprep.subr.bf16.mxu0 0
      %3000 = vmatpush1.bf16.msra.mxu0 0
      %3001 = vmatprep.subr.bf16.mxu0 0
      %3002 = vmatpush1.bf16.msra.mxu0 0
      %3003 = vmatprep.subr.bf16.mxu0 0
      %3004 = vmatpush1.bf16.msra.mxu0 0
      %3005 = vmatprep.subr.bf16.mxu0 0
      %3006 = vmatpush1.bf16.msra.mxu0 0
      %3007 = vmatprep.subr.bf16.mxu0 0
      %3008 = vmatpush1.bf16.msra.mxu0 0
      %3009 = vmatprep.subr.bf16.mxu0 0
      %3010 = vmatpush1.bf16.msra.mxu0 0
      %3011 = vmatprep.subr.bf16.mxu0 0
      %3012 = vmatpush1.bf16.msra.mxu0 0
      %3013 = vmatprep.subr.bf16.mxu0 0
      %3014 = vmatpush1.bf16.msra.mxu0 0
      %3015 = vmatprep.mubr.bf16.mxu0 0
      %3016 = vmatmul.mubr.bf16.gmra.mrb[0].mxu0 %v2981
      %v3017 = vpop.f32.mrb[0].mxu0
      %v3018 = vadd.f32 0.0, %v3017
      %v3019 = vpop.f32.mrb[0].mxu0
      %v3020 = vpop.f32.mrb[0].mxu0
      %v3021 = vpop.f32.mrb[0].mxu0
      %3022 = vdwg.mxu0
      %v3023 = vpack.c.bf16 %v3018, %v3018
      %s3024 = scalar_lea.vmem %s41, 4
      %v3025 = vld [vmem:[%s3024] sm:$0xf]
      %v3027 = vsel %vm1154, %v3023, 0
      %v3030 = vsel %vm1218, %v3025, 0
      %3032 = vmatprep.subr.bf16.mxu0 0
      %3033 = vmatpush1.bf16.msra.mxu0 %v3030
      %3034 = vmatprep.subr.bf16.mxu0 0
      %3035 = vmatpush1.bf16.msra.mxu0 0
      %3036 = vmatprep.subr.bf16.mxu0 0
      %3037 = vmatpush1.bf16.msra.mxu0 0
      %3038 = vmatprep.subr.bf16.mxu0 0
      %3039 = vmatpush1.bf16.msra.mxu0 0
      %3040 = vmatprep.subr.bf16.mxu0 0
      %3041 = vmatpush1.bf16.msra.mxu0 0
      %3042 = vmatprep.subr.bf16.mxu0 0
      %3043 = vmatpush1.bf16.msra.mxu0 0
      %3044 = vmatprep.subr.bf16.mxu0 0
      %3045 = vmatpush1.bf16.msra.mxu0 0
      %3046 = vmatprep.subr.bf16.mxu0 0
      %3047 = vmatpush1.bf16.msra.mxu0 0
      %3048 = vmatprep.subr.bf16.mxu0 0
      %3049 = vmatpush1.bf16.msra.mxu0 0
      %3050 = vmatprep.subr.bf16.mxu0 0
      %3051 = vmatpush1.bf16.msra.mxu0 0
      %3052 = vmatprep.subr.bf16.mxu0 0
      %3053 = vmatpush1.bf16.msra.mxu0 0
      %3054 = vmatprep.subr.bf16.mxu0 0
      %3055 = vmatpush1.bf16.msra.mxu0 0
      %3056 = vmatprep.subr.bf16.mxu0 0
      %3057 = vmatpush1.bf16.msra.mxu0 0
      %3058 = vmatprep.subr.bf16.mxu0 0
      %3059 = vmatpush1.bf16.msra.mxu0 0
      %3060 = vmatprep.subr.bf16.mxu0 0
      %3061 = vmatpush1.bf16.msra.mxu0 0
      %3062 = vmatprep.subr.bf16.mxu0 0
      %3063 = vmatpush1.bf16.msra.mxu0 0
      %3064 = vmatprep.mubr.bf16.mxu0 0
      %3065 = vmatmul.mubr.bf16.gmra.mrb[0].mxu0 %v3027
      %v3066 = vpop.f32.mrb[0].mxu0
      %v3067 = vadd.f32 0.0, %v3066
      %v3068 = vpop.f32.mrb[0].mxu0
      %v3069 = vpop.f32.mrb[0].mxu0
      %v3070 = vpop.f32.mrb[0].mxu0
      %3071 = vdwg.mxu0
      %v3073 = vsel %vm1154, %v2719, 0
      %v3076 = vsel %vm1218, %v2720, 0
      %3078 = vmatprep.subr.bf16.mxu0 0
      %3079 = vmatpush1.bf16.msra.mxu0 %v3076
      %3080 = vmatprep.subr.bf16.mxu0 0
      %3081 = vmatpush1.bf16.msra.mxu0 0
      %3082 = vmatprep.subr.bf16.mxu0 0
      %3083 = vmatpush1.bf16.msra.mxu0 0
      %3084 = vmatprep.subr.bf16.mxu0 0
      %3085 = vmatpush1.bf16.msra.mxu0 0
      %3086 = vmatprep.subr.bf16.mxu0 0
      %3087 = vmatpush1.bf16.msra.mxu0 0
      %3088 = vmatprep.subr.bf16.mxu0 0
      %3089 = vmatpush1.bf16.msra.mxu0 0
      %3090 = vmatprep.subr.bf16.mxu0 0
      %3091 = vmatpush1.bf16.msra.mxu0 0
      %3092 = vmatprep.subr.bf16.mxu0 0
      %3093 = vmatpush1.bf16.msra.mxu0 0
      %3094 = vmatprep.subr.bf16.mxu0 0
      %3095 = vmatpush1.bf16.msra.mxu0 0
      %3096 = vmatprep.subr.bf16.mxu0 0
      %3097 = vmatpush1.bf16.msra.mxu0 0
      %3098 = vmatprep.subr.bf16.mxu0 0
      %3099 = vmatpush1.bf16.msra.mxu0 0
      %3100 = vmatprep.subr.bf16.mxu0 0
      %3101 = vmatpush1.bf16.msra.mxu0 0
      %3102 = vmatprep.subr.bf16.mxu0 0
      %3103 = vmatpush1.bf16.msra.mxu0 0
      %3104 = vmatprep.subr.bf16.mxu0 0
      %3105 = vmatpush1.bf16.msra.mxu0 0
      %3106 = vmatprep.subr.bf16.mxu0 0
      %3107 = vmatpush1.bf16.msra.mxu0 0
      %3108 = vmatprep.subr.bf16.mxu0 0
      %3109 = vmatpush1.bf16.msra.mxu0 0
      %3110 = vmatprep.mubr.bf16.mxu0 0
      %3111 = vmatmul.mubr.bf16.gmra.mrb[0].mxu0 %v3073
      %v3112 = vpop.f32.mrb[0].mxu0
      %v3113 = vadd.f32 %v3067, %v3112
      %v3114 = vpop.f32.mrb[0].mxu0
      %v3115 = vpop.f32.mrb[0].mxu0
      %v3116 = vpop.f32.mrb[0].mxu0
      %3117 = vdwg.mxu0
      %s3118 = scalar_lea.vmem %s29, 32
      %v3119 = vld [vmem:[%s3118] sm:$0xf]
      %v3120 = vld [vmem:[%s3118 + $0x4] sm:$0xf]
      %v3121 = vld [vmem:[%s3118 + $0x8] sm:$0xf]
      %v3122 = vld [vmem:[%s3118 + $0xc] sm:$0xf]
      %s3123 = scalar_lea.vmem %s31, 2
      %v3124 = vld [vmem:[%s3123] sm:$0x1]
      %v3126 = vlaneseq
      %v3127 = vshrl.u32 %v3126, 7
      %v3128 = vsub.s32 0, %v3127
      %v3129 = vrot.slane %v3124, %v3128
      %v3135 = vunpack.c.l.b16 %v3119
      %v3136 = vunpack.c.l.b16 %v3120
      %v3137 = vunpack.c.l.b16 %v3121
      %v3138 = vunpack.c.l.b16 %v3122
      %v3139 = vpack.c.b16 %v3136, %v3135
      %v3140 = vpack.c.b16 %v3138, %v3137
      %3143 = vmatprep.subr.bf16.mxu0 0
      %3144 = vmatpush1.bf16.msra.mxu0 %v3139
      %3145 = vmatprep.subr.bf16.mxu0 0
      %3146 = vmatpush1.bf16.msra.mxu0 %v3140
      %3147 = vmatprep.subr.bf16.mxu0 0
      %3148 = vmatpush1.bf16.msra.mxu0 0
      %3149 = vmatprep.subr.bf16.mxu0 0
      %3150 = vmatpush1.bf16.msra.mxu0 0
      %3151 = vmatprep.subr.bf16.mxu0 0
      %3152 = vmatpush1.bf16.msra.mxu0 0
      %3153 = vmatprep.subr.bf16.mxu0 0
      %3154 = vmatpush1.bf16.msra.mxu0 0
      %3155 = vmatprep.subr.bf16.mxu0 0
      %3156 = vmatpush1.bf16.msra.mxu0 0
      %3157 = vmatprep.subr.bf16.mxu0 0
      %3158 = vmatpush1.bf16.msra.mxu0 0
      %3159 = vmatprep.subr.bf16.mxu0 0
      %3160 = vmatpush1.bf16.msra.mxu0 0
      %3161 = vmatprep.subr.bf16.mxu0 0
      %3162 = vmatpush1.bf16.msra.mxu0 0
      %3163 = vmatprep.subr.bf16.mxu0 0
      %3164 = vmatpush1.bf16.msra.mxu0 0
      %3165 = vmatprep.subr.bf16.mxu0 0
      %3166 = vmatpush1.bf16.msra.mxu0 0
      %3167 = vmatprep.subr.bf16.mxu0 0
      %3168 = vmatpush1.bf16.msra.mxu0 0
      %3169 = vmatprep.subr.bf16.mxu0 0
      %3170 = vmatpush1.bf16.msra.mxu0 0
      %3171 = vmatprep.subr.bf16.mxu0 0
      %3172 = vmatpush1.bf16.msra.mxu0 0
      %3173 = vmatprep.subr.bf16.mxu0 0
      %3174 = vmatpush1.bf16.msra.mxu0 0
      %3175 = vmatprep.mubr.bf16.mxu0 0
      %3176 = vmatmul.mubr.bf16.gmra.mrb[0].mxu0 %v2437
      %v3177 = vpop.f32.mrb[0].mxu0
      %v3178 = vadd.f32 %v3129, %v3177
      %v3179 = vpop.f32.mrb[0].mxu0
      %v3180 = vpop.f32.mrb[0].mxu0
      %v3181 = vpop.f32.mrb[0].mxu0
      %3182 = vdwg.mxu0
      %s3183 = scalar_lea.vmem %s33, 32
      %v3184 = vld [vmem:[%s3183] sm:$0xf]
      %v3185 = vld [vmem:[%s3183 + $0x4] sm:$0xf]
      %v3186 = vld [vmem:[%s3183 + $0x8] sm:$0xf]
      %v3187 = vld [vmem:[%s3183 + $0xc] sm:$0xf]
      %s3188 = scalar_lea.vmem %s35, 2
      %v3189 = vld [vmem:[%s3188] sm:$0x1]
      %v3191 = vlaneseq
      %v3192 = vshrl.u32 %v3191, 7
      %v3193 = vsub.s32 0, %v3192
      %v3194 = vrot.slane %v3189, %v3193
      %v3200 = vunpack.c.l.b16 %v3184
      %v3201 = vunpack.c.l.b16 %v3185
      %v3202 = vunpack.c.l.b16 %v3186
      %v3203 = vunpack.c.l.b16 %v3187
      %v3204 = vpack.c.b16 %v3201, %v3200
      %v3205 = vpack.c.b16 %v3203, %v3202
      %3208 = vmatprep.subr.bf16.mxu0 0
      %3209 = vmatpush1.bf16.msra.mxu0 %v3204
      %3210 = vmatprep.subr.bf16.mxu0 0
      %3211 = vmatpush1.bf16.msra.mxu0 %v3205
      %3212 = vmatprep.subr.bf16.mxu0 0
      %3213 = vmatpush1.bf16.msra.mxu0 0
      %3214 = vmatprep.subr.bf16.mxu0 0
      %3215 = vmatpush1.bf16.msra.mxu0 0
      %3216 = vmatprep.subr.bf16.mxu0 0
      %3217 = vmatpush1.bf16.msra.mxu0 0
      %3218 = vmatprep.subr.bf16.mxu0 0
      %3219 = vmatpush1.bf16.msra.mxu0 0
      %3220 = vmatprep.subr.bf16.mxu0 0
      %3221 = vmatpush1.bf16.msra.mxu0 0
      %3222 = vmatprep.subr.bf16.mxu0 0
      %3223 = vmatpush1.bf16.msra.mxu0 0
      %3224 = vmatprep.subr.bf16.mxu0 0
      %3225 = vmatpush1.bf16.msra.mxu0 0
      %3226 = vmatprep.subr.bf16.mxu0 0
      %3227 = vmatpush1.bf16.msra.mxu0 0
      %3228 = vmatprep.subr.bf16.mxu0 0
      %3229 = vmatpush1.bf16.msra.mxu0 0
      %3230 = vmatprep.subr.bf16.mxu0 0
      %3231 = vmatpush1.bf16.msra.mxu0 0
      %3232 = vmatprep.subr.bf16.mxu0 0
      %3233 = vmatpush1.bf16.msra.mxu0 0
      %3234 = vmatprep.subr.bf16.mxu0 0
      %3235 = vmatpush1.bf16.msra.mxu0 0
      %3236 = vmatprep.subr.bf16.mxu0 0
      %3237 = vmatpush1.bf16.msra.mxu0 0
      %3238 = vmatprep.subr.bf16.mxu0 0
      %3239 = vmatpush1.bf16.msra.mxu0 0
      %3240 = vmatprep.mubr.bf16.mxu0 0
      %3241 = vmatmul.mubr.bf16.gmra.mrb[0].mxu0 %v2503
      %v3242 = vpop.f32.mrb[0].mxu0
      %v3243 = vadd.f32 %v3194, %v3242
      %v3244 = vpop.f32.mrb[0].mxu0
      %v3245 = vpop.f32.mrb[0].mxu0
      %v3246 = vadd.f32 %v3194, %v3245
      %v3247 = vpop.f32.mrb[0].mxu0
      %3248 = vdwg.mxu0
      %s3249 = scalar_lea.vmem %s37, 32
      %v3250 = vld [vmem:[%s3249] sm:$0xf]
      %v3251 = vld [vmem:[%s3249 + $0x4] sm:$0xf]
      %v3252 = vld [vmem:[%s3249 + $0x8] sm:$0xf]
      %v3253 = vld [vmem:[%s3249 + $0xc] sm:$0xf]
      %s3254 = scalar_lea.vmem %s39, 2
      %v3255 = vld [vmem:[%s3254] sm:$0x1]
      %v3257 = vlaneseq
      %v3258 = vshrl.u32 %v3257, 7
      %v3259 = vsub.s32 0, %v3258
      %v3260 = vrot.slane %v3255, %v3259
      %v3266 = vunpack.c.l.b16 %v3250
      %v3267 = vunpack.c.l.b16 %v3251
      %v3268 = vunpack.c.l.b16 %v3252
      %v3269 = vunpack.c.l.b16 %v3253
      %v3270 = vpack.c.b16 %v3267, %v3266
      %v3271 = vpack.c.b16 %v3269, %v3268
      %3274 = vmatprep.subr.bf16.mxu0 0
      %3275 = vmatpush1.bf16.msra.mxu0 %v3270
      %3276 = vmatprep.subr.bf16.mxu0 0
      %3277 = vmatpush1.bf16.msra.mxu0 %v3271
      %3278 = vmatprep.subr.bf16.mxu0 0
      %3279 = vmatpush1.bf16.msra.mxu0 0
      %3280 = vmatprep.subr.bf16.mxu0 0
      %3281 = vmatpush1.bf16.msra.mxu0 0
      %3282 = vmatprep.subr.bf16.mxu0 0
      %3283 = vmatpush1.bf16.msra.mxu0 0
      %3284 = vmatprep.subr.bf16.mxu0 0
      %3285 = vmatpush1.bf16.msra.mxu0 0
      %3286 = vmatprep.subr.bf16.mxu0 0
      %3287 = vmatpush1.bf16.msra.mxu0 0
      %3288 = vmatprep.subr.bf16.mxu0 0
      %3289 = vmatpush1.bf16.msra.mxu0 0
      %3290 = vmatprep.subr.bf16.mxu0 0
      %3291 = vmatpush1.bf16.msra.mxu0 0
      %3292 = vmatprep.subr.bf16.mxu0 0
      %3293 = vmatpush1.bf16.msra.mxu0 0
      %3294 = vmatprep.subr.bf16.mxu0 0
      %3295 = vmatpush1.bf16.msra.mxu0 0
      %3296 = vmatprep.subr.bf16.mxu0 0
      %3297 = vmatpush1.bf16.msra.mxu0 0
      %3298 = vmatprep.subr.bf16.mxu0 0
      %3299 = vmatpush1.bf16.msra.mxu0 0
      %3300 = vmatprep.subr.bf16.mxu0 0
      %3301 = vmatpush1.bf16.msra.mxu0 0
      %3302 = vmatprep.subr.bf16.mxu0 0
      %3303 = vmatpush1.bf16.msra.mxu0 0
      %3304 = vmatprep.subr.bf16.mxu0 0
      %3305 = vmatpush1.bf16.msra.mxu0 0
      %3306 = vmatprep.mubr.bf16.mxu0 0
      %3307 = vmatmul.mubr.bf16.gmra.mrb[0].mxu0 %v2570
      %v3308 = vpop.f32.mrb[0].mxu0
      %v3309 = vadd.f32 %v3260, %v3308
      %v3310 = vpop.f32.mrb[0].mxu0
      %v3311 = vpop.f32.mrb[0].mxu0
      %v3312 = vadd.f32 %v3260, %v3311
      %v3313 = vpop.f32.mrb[0].mxu0
      %3314 = vdwg.mxu0
      %v3315 = vpack.c.bf16 %v3178, %v3178
      %v3316 = vpack.c.bf16 %v3246, %v3243
      %v3318 = vsel %vm1154, %v3315, 0
      %v3321 = vsel %vm1154, %v3316, 0
      %3323 = vmatprep.subr.bf16.mxu0 0
      %3324 = vmatpush1.bf16.xpose.msra.mxu0 %v3321
      %3325 = vmatprep.subr.bf16.mxu0 0
      %3326 = vmatpush1.bf16.xpose.msra.mxu0 0
      %3327 = vmatprep.subr.bf16.mxu0 0
      %3328 = vmatpush1.bf16.xpose.msra.mxu0 0
      %3329 = vmatprep.subr.bf16.mxu0 0
      %3330 = vmatpush1.bf16.xpose.msra.mxu0 0
      %3331 = vmatprep.subr.bf16.mxu0 0
      %3332 = vmatpush1.bf16.xpose.msra.mxu0 0
      %3333 = vmatprep.subr.bf16.mxu0 0
      %3334 = vmatpush1.bf16.xpose.msra.mxu0 0
      %3335 = vmatprep.subr.bf16.mxu0 0
      %3336 = vmatpush1.bf16.xpose.msra.mxu0 0
      %3337 = vmatprep.subr.bf16.mxu0 0
      %3338 = vmatpush1.bf16.xpose.msra.mxu0 0
      %3339 = vmatprep.subr.bf16.mxu0 0
      %3340 = vmatpush1.bf16.xpose.msra.mxu0 0
      %3341 = vmatprep.subr.bf16.mxu0 0
      %3342 = vmatpush1.bf16.xpose.msra.mxu0 0
      %3343 = vmatprep.subr.bf16.mxu0 0
      %3344 = vmatpush1.bf16.xpose.msra.mxu0 0
      %3345 = vmatprep.subr.bf16.mxu0 0
      %3346 = vmatpush1.bf16.xpose.msra.mxu0 0
      %3347 = vmatprep.subr.bf16.mxu0 0
      %3348 = vmatpush1.bf16.xpose.msra.mxu0 0
      %3349 = vmatprep.subr.bf16.mxu0 0
      %3350 = vmatpush1.bf16.xpose.msra.mxu0 0
      %3351 = vmatprep.subr.bf16.mxu0 0
      %3352 = vmatpush1.bf16.xpose.msra.mxu0 0
      %3353 = vmatprep.subr.bf16.mxu0 0
      %3354 = vmatpush1.bf16.xpose.msra.mxu0 0
      %3355 = vmatprep.mubr.bf16.mxu0 0
      %3356 = vmatmul.mubr.bf16.gmra.mrb[0].mxu0 %v3318
      %v3357 = vpop.f32.mrb[0].mxu0
      %v3358 = vadd.f32 0.0, %v3357
      %v3359 = vpop.f32.mrb[0].mxu0
      %v3360 = vpop.f32.mrb[0].mxu0
      %v3361 = vpop.f32.mrb[0].mxu0
      %3362 = vdwg.mxu0
      %v3363 = vmul.f32 %v3358, 0.35355338
      %v3364 = vsel %vm2662, %v3363, -inf
      %3365 = vmax.xlane.f32.xlu0 %v3364
      %v3366 = vpop.xlane.xlu0 %3365
      %v3367 = vsub.f32 %v3363, %v3366
      %v3368 = vmul.f32 %v3367, 1.442695
      %v3369 = vpow.pop %v3368
      %v3370 = vsel %vm2662, %v3369, 0.0
      %3371 = vadd.xlane.f32.xlu0 %v3370
      %v3372 = vpop.xlane.xlu0 %3371
      %v3373 = vrcp.pop %v3372
      %v3374 = vmul.f32 %v3369, %v3373
      %v3375 = vpack.c.bf16 %v3374, %v3374
      %v3376 = vpack.c.bf16 %v3312, %v3309
      %v3378 = vsel %vm2662, %v3375, 0
      %3380 = vmatprep.subr.bf16.mxu0 0
      %3381 = vmatpush1.bf16.msra.mxu0 %v3376
      %3382 = vmatprep.subr.bf16.mxu0 0
      %3383 = vmatpush1.bf16.msra.mxu0 0
      %3384 = vmatprep.subr.bf16.mxu0 0
      %3385 = vmatpush1.bf16.msra.mxu0 0
      %3386 = vmatprep.subr.bf16.mxu0 0
      %3387 = vmatpush1.bf16.msra.mxu0 0
      %3388 = vmatprep.subr.bf16.mxu0 0
      %3389 = vmatpush1.bf16.msra.mxu0 0
      %3390 = vmatprep.subr.bf16.mxu0 0
      %3391 = vmatpush1.bf16.msra.mxu0 0
      %3392 = vmatprep.subr.bf16.mxu0 0
      %3393 = vmatpush1.bf16.msra.mxu0 0
      %3394 = vmatprep.subr.bf16.mxu0 0
      %3395 = vmatpush1.bf16.msra.mxu0 0
      %3396 = vmatprep.subr.bf16.mxu0 0
      %3397 = vmatpush1.bf16.msra.mxu0 0
      %3398 = vmatprep.subr.bf16.mxu0 0
      %3399 = vmatpush1.bf16.msra.mxu0 0
      %3400 = vmatprep.subr.bf16.mxu0 0
      %3401 = vmatpush1.bf16.msra.mxu0 0
      %3402 = vmatprep.subr.bf16.mxu0 0
      %3403 = vmatpush1.bf16.msra.mxu0 0
      %3404 = vmatprep.subr.bf16.mxu0 0
      %3405 = vmatpush1.bf16.msra.mxu0 0
      %3406 = vmatprep.subr.bf16.mxu0 0
      %3407 = vmatpush1.bf16.msra.mxu0 0
      %3408 = vmatprep.subr.bf16.mxu0 0
      %3409 = vmatpush1.bf16.msra.mxu0 0
      %3410 = vmatprep.subr.bf16.mxu0 0
      %3411 = vmatpush1.bf16.msra.mxu0 0
      %3412 = vmatprep.mubr.bf16.mxu0 0
      %3413 = vmatmul.mubr.bf16.gmra.mrb[0].mxu0 %v3378
      %v3414 = vpop.f32.mrb[0].mxu0
      %v3415 = vadd.f32 0.0, %v3414
      %v3416 = vpop.f32.mrb[0].mxu0
      %v3417 = vpop.f32.mrb[0].mxu0
      %v3418 = vpop.f32.mrb[0].mxu0
      %3419 = vdwg.mxu0
      %v3420 = vpack.c.bf16 %v3415, %v3415
      %s3421 = scalar_lea.vmem %s41, 8
      %v3422 = vld [vmem:[%s3421] sm:$0xf]
      %v3424 = vsel %vm1154, %v3420, 0
      %v3427 = vsel %vm1218, %v3422, 0
      %3429 = vmatprep.subr.bf16.mxu0 0
      %3430 = vmatpush1.bf16.msra.mxu0 %v3427
      %3431 = vmatprep.subr.bf16.mxu0 0
      %3432 = vmatpush1.bf16.msra.mxu0 0
      %3433 = vmatprep.subr.bf16.mxu0 0
      %3434 = vmatpush1.bf16.msra.mxu0 0
      %3435 = vmatprep.subr.bf16.mxu0 0
      %3436 = vmatpush1.bf16.msra.mxu0 0
      %3437 = vmatprep.subr.bf16.mxu0 0
      %3438 = vmatpush1.bf16.msra.mxu0 0
      %3439 = vmatprep.subr.bf16.mxu0 0
      %3440 = vmatpush1.bf16.msra.mxu0 0
      %3441 = vmatprep.subr.bf16.mxu0 0
      %3442 = vmatpush1.bf16.msra.mxu0 0
      %3443 = vmatprep.subr.bf16.mxu0 0
      %3444 = vmatpush1.bf16.msra.mxu0 0
      %3445 = vmatprep.subr.bf16.mxu0 0
      %3446 = vmatpush1.bf16.msra.mxu0 0
      %3447 = vmatprep.subr.bf16.mxu0 0
      %3448 = vmatpush1.bf16.msra.mxu0 0
      %3449 = vmatprep.subr.bf16.mxu0 0
      %3450 = vmatpush1.bf16.msra.mxu0 0
      %3451 = vmatprep.subr.bf16.mxu0 0
      %3452 = vmatpush1.bf16.msra.mxu0 0
      %3453 = vmatprep.subr.bf16.mxu0 0
      %3454 = vmatpush1.bf16.msra.mxu0 0
      %3455 = vmatprep.subr.bf16.mxu0 0
      %3456 = vmatpush1.bf16.msra.mxu0 0
      %3457 = vmatprep.subr.bf16.mxu0 0
      %3458 = vmatpush1.bf16.msra.mxu0 0
      %3459 = vmatprep.subr.bf16.mxu0 0
      %3460 = vmatpush1.bf16.msra.mxu0 0
      %3461 = vmatprep.mubr.bf16.mxu0 0
      %3462 = vmatmul.mubr.bf16.gmra.mrb[0].mxu0 %v3424
      %v3463 = vpop.f32.mrb[0].mxu0
      %v3464 = vadd.f32 0.0, %v3463
      %v3465 = vpop.f32.mrb[0].mxu0
      %v3466 = vpop.f32.mrb[0].mxu0
      %v3467 = vpop.f32.mrb[0].mxu0
      %3468 = vdwg.mxu0
      %v3469 = vadd.f32 %v3113, %v3464
      %s3470 = scalar_lea.vmem %s29, 48
      %v3471 = vld [vmem:[%s3470] sm:$0xf]
      %v3472 = vld [vmem:[%s3470 + $0x4] sm:$0xf]
      %v3473 = vld [vmem:[%s3470 + $0x8] sm:$0xf]
      %v3474 = vld [vmem:[%s3470 + $0xc] sm:$0xf]
      %s3475 = scalar_lea.vmem %s31, 3
      %v3476 = vld [vmem:[%s3475] sm:$0x1]
      %v3478 = vlaneseq
      %v3479 = vshrl.u32 %v3478, 7
      %v3480 = vsub.s32 0, %v3479
      %v3481 = vrot.slane %v3476, %v3480
      %v3487 = vunpack.c.l.b16 %v3471
      %v3488 = vunpack.c.l.b16 %v3472
      %v3489 = vunpack.c.l.b16 %v3473
      %v3490 = vunpack.c.l.b16 %v3474
      %v3491 = vpack.c.b16 %v3488, %v3487
      %v3492 = vpack.c.b16 %v3490, %v3489
      %3495 = vmatprep.subr.bf16.mxu0 0
      %3496 = vmatpush1.bf16.msra.mxu0 %v3491
      %3497 = vmatprep.subr.bf16.mxu0 0
      %3498 = vmatpush1.bf16.msra.mxu0 %v3492
      %3499 = vmatprep.subr.bf16.mxu0 0
      %3500 = vmatpush1.bf16.msra.mxu0 0
      %3501 = vmatprep.subr.bf16.mxu0 0
      %3502 = vmatpush1.bf16.msra.mxu0 0
      %3503 = vmatprep.subr.bf16.mxu0 0
      %3504 = vmatpush1.bf16.msra.mxu0 0
      %3505 = vmatprep.subr.bf16.mxu0 0
      %3506 = vmatpush1.bf16.msra.mxu0 0
      %3507 = vmatprep.subr.bf16.mxu0 0
      %3508 = vmatpush1.bf16.msra.mxu0 0
      %3509 = vmatprep.subr.bf16.mxu0 0
      %3510 = vmatpush1.bf16.msra.mxu0 0
      %3511 = vmatprep.subr.bf16.mxu0 0
      %3512 = vmatpush1.bf16.msra.mxu0 0
      %3513 = vmatprep.subr.bf16.mxu0 0
      %3514 = vmatpush1.bf16.msra.mxu0 0
      %3515 = vmatprep.subr.bf16.mxu0 0
      %3516 = vmatpush1.bf16.msra.mxu0 0
      %3517 = vmatprep.subr.bf16.mxu0 0
      %3518 = vmatpush1.bf16.msra.mxu0 0
      %3519 = vmatprep.subr.bf16.mxu0 0
      %3520 = vmatpush1.bf16.msra.mxu0 0
      %3521 = vmatprep.subr.bf16.mxu0 0
      %3522 = vmatpush1.bf16.msra.mxu0 0
      %3523 = vmatprep.subr.bf16.mxu0 0
      %3524 = vmatpush1.bf16.msra.mxu0 0
      %3525 = vmatprep.subr.bf16.mxu0 0
      %3526 = vmatpush1.bf16.msra.mxu0 0
      %3527 = vmatprep.mubr.bf16.mxu0 0
      %3528 = vmatmul.mubr.bf16.gmra.mrb[0].mxu0 %v2437
      %v3529 = vpop.f32.mrb[0].mxu0
      %v3530 = vadd.f32 %v3481, %v3529
      %v3531 = vpop.f32.mrb[0].mxu0
      %v3532 = vpop.f32.mrb[0].mxu0
      %v3533 = vpop.f32.mrb[0].mxu0
      %3534 = vdwg.mxu0
      %s3535 = scalar_lea.vmem %s33, 48
      %v3536 = vld [vmem:[%s3535] sm:$0xf]
      %v3537 = vld [vmem:[%s3535 + $0x4] sm:$0xf]
      %v3538 = vld [vmem:[%s3535 + $0x8] sm:$0xf]
      %v3539 = vld [vmem:[%s3535 + $0xc] sm:$0xf]
      %s3540 = scalar_lea.vmem %s35, 3
      %v3541 = vld [vmem:[%s3540] sm:$0x1]
      %v3543 = vlaneseq
      %v3544 = vshrl.u32 %v3543, 7
      %v3545 = vsub.s32 0, %v3544
      %v3546 = vrot.slane %v3541, %v3545
      %v3552 = vunpack.c.l.b16 %v3536
      %v3553 = vunpack.c.l.b16 %v3537
      %v3554 = vunpack.c.l.b16 %v3538
      %v3555 = vunpack.c.l.b16 %v3539
      %v3556 = vpack.c.b16 %v3553, %v3552
      %v3557 = vpack.c.b16 %v3555, %v3554
      %3560 = vmatprep.subr.bf16.mxu0 0
      %3561 = vmatpush1.bf16.msra.mxu0 %v3556
      %3562 = vmatprep.subr.bf16.mxu0 0
      %3563 = vmatpush1.bf16.msra.mxu0 %v3557
      %3564 = vmatprep.subr.bf16.mxu0 0
      %3565 = vmatpush1.bf16.msra.mxu0 0
      %3566 = vmatprep.subr.bf16.mxu0 0
      %3567 = vmatpush1.bf16.msra.mxu0 0
      %3568 = vmatprep.subr.bf16.mxu0 0
      %3569 = vmatpush1.bf16.msra.mxu0 0
      %3570 = vmatprep.subr.bf16.mxu0 0
      %3571 = vmatpush1.bf16.msra.mxu0 0
      %3572 = vmatprep.subr.bf16.mxu0 0
      %3573 = vmatpush1.bf16.msra.mxu0 0
      %3574 = vmatprep.subr.bf16.mxu0 0
      %3575 = vmatpush1.bf16.msra.mxu0 0
      %3576 = vmatprep.subr.bf16.mxu0 0
      %3577 = vmatpush1.bf16.msra.mxu0 0
      %3578 = vmatprep.subr.bf16.mxu0 0
      %3579 = vmatpush1.bf16.msra.mxu0 0
      %3580 = vmatprep.subr.bf16.mxu0 0
      %3581 = vmatpush1.bf16.msra.mxu0 0
      %3582 = vmatprep.subr.bf16.mxu0 0
      %3583 = vmatpush1.bf16.msra.mxu0 0
      %3584 = vmatprep.subr.bf16.mxu0 0
      %3585 = vmatpush1.bf16.msra.mxu0 0
      %3586 = vmatprep.subr.bf16.mxu0 0
      %3587 = vmatpush1.bf16.msra.mxu0 0
      %3588 = vmatprep.subr.bf16.mxu0 0
      %3589 = vmatpush1.bf16.msra.mxu0 0
      %3590 = vmatprep.subr.bf16.mxu0 0
      %3591 = vmatpush1.bf16.msra.mxu0 0
      %3592 = vmatprep.mubr.bf16.mxu0 0
      %3593 = vmatmul.mubr.bf16.gmra.mrb[0].mxu0 %v2503
      %v3594 = vpop.f32.mrb[0].mxu0
      %v3595 = vadd.f32 %v3546, %v3594
      %v3596 = vpop.f32.mrb[0].mxu0
      %v3597 = vpop.f32.mrb[0].mxu0
      %v3598 = vadd.f32 %v3546, %v3597
      %v3599 = vpop.f32.mrb[0].mxu0
      %3600 = vdwg.mxu0
      %s3601 = scalar_lea.vmem %s37, 48
      %v3602 = vld [vmem:[%s3601] sm:$0xf]
      %v3603 = vld [vmem:[%s3601 + $0x4] sm:$0xf]
      %v3604 = vld [vmem:[%s3601 + $0x8] sm:$0xf]
      %v3605 = vld [vmem:[%s3601 + $0xc] sm:$0xf]
      %s3606 = scalar_lea.vmem %s39, 3
      %v3607 = vld [vmem:[%s3606] sm:$0x1]
      %v3609 = vlaneseq
      %v3610 = vshrl.u32 %v3609, 7
      %v3611 = vsub.s32 0, %v3610
      %v3612 = vrot.slane %v3607, %v3611
      %v3618 = vunpack.c.l.b16 %v3602
      %v3619 = vunpack.c.l.b16 %v3603
      %v3620 = vunpack.c.l.b16 %v3604
      %v3621 = vunpack.c.l.b16 %v3605
      %v3622 = vpack.c.b16 %v3619, %v3618
      %v3623 = vpack.c.b16 %v3621, %v3620
      %3626 = vmatprep.subr.bf16.mxu0 0
      %3627 = vmatpush1.bf16.msra.mxu0 %v3622
      %3628 = vmatprep.subr.bf16.mxu0 0
      %3629 = vmatpush1.bf16.msra.mxu0 %v3623
      %3630 = vmatprep.subr.bf16.mxu0 0
      %3631 = vmatpush1.bf16.msra.mxu0 0
      %3632 = vmatprep.subr.bf16.mxu0 0
      %3633 = vmatpush1.bf16.msra.mxu0 0
      %3634 = vmatprep.subr.bf16.mxu0 0
      %3635 = vmatpush1.bf16.msra.mxu0 0
      %3636 = vmatprep.subr.bf16.mxu0 0
      %3637 = vmatpush1.bf16.msra.mxu0 0
      %3638 = vmatprep.subr.bf16.mxu0 0
      %3639 = vmatpush1.bf16.msra.mxu0 0
      %3640 = vmatprep.subr.bf16.mxu0 0
      %3641 = vmatpush1.bf16.msra.mxu0 0
      %3642 = vmatprep.subr.bf16.mxu0 0
      %3643 = vmatpush1.bf16.msra.mxu0 0
      %3644 = vmatprep.subr.bf16.mxu0 0
      %3645 = vmatpush1.bf16.msra.mxu0 0
      %3646 = vmatprep.subr.bf16.mxu0 0
      %3647 = vmatpush1.bf16.msra.mxu0 0
      %3648 = vmatprep.subr.bf16.mxu0 0
      %3649 = vmatpush1.bf16.msra.mxu0 0
      %3650 = vmatprep.subr.bf16.mxu0 0
      %3651 = vmatpush1.bf16.msra.mxu0 0
      %3652 = vmatprep.subr.bf16.mxu0 0
      %3653 = vmatpush1.bf16.msra.mxu0 0
      %3654 = vmatprep.subr.bf16.mxu0 0
      %3655 = vmatpush1.bf16.msra.mxu0 0
      %3656 = vmatprep.subr.bf16.mxu0 0
      %3657 = vmatpush1.bf16.msra.mxu0 0
      %3658 = vmatprep.mubr.bf16.mxu0 0
      %3659 = vmatmul.mubr.bf16.gmra.mrb[0].mxu0 %v2570
      %v3660 = vpop.f32.mrb[0].mxu0
      %v3661 = vadd.f32 %v3612, %v3660
      %v3662 = vpop.f32.mrb[0].mxu0
      %v3663 = vpop.f32.mrb[0].mxu0
      %v3664 = vadd.f32 %v3612, %v3663
      %v3665 = vpop.f32.mrb[0].mxu0
      %3666 = vdwg.mxu0
      %v3667 = vpack.c.bf16 %v3530, %v3530
      %v3668 = vpack.c.bf16 %v3598, %v3595
      %v3670 = vsel %vm1154, %v3667, 0
      %v3673 = vsel %vm1154, %v3668, 0
      %3675 = vmatprep.subr.bf16.mxu0 0
      %3676 = vmatpush1.bf16.xpose.msra.mxu0 %v3673
      %3677 = vmatprep.subr.bf16.mxu0 0
      %3678 = vmatpush1.bf16.xpose.msra.mxu0 0
      %3679 = vmatprep.subr.bf16.mxu0 0
      %3680 = vmatpush1.bf16.xpose.msra.mxu0 0
      %3681 = vmatprep.subr.bf16.mxu0 0
      %3682 = vmatpush1.bf16.xpose.msra.mxu0 0
      %3683 = vmatprep.subr.bf16.mxu0 0
      %3684 = vmatpush1.bf16.xpose.msra.mxu0 0
      %3685 = vmatprep.subr.bf16.mxu0 0
      %3686 = vmatpush1.bf16.xpose.msra.mxu0 0
      %3687 = vmatprep.subr.bf16.mxu0 0
      %3688 = vmatpush1.bf16.xpose.msra.mxu0 0
      %3689 = vmatprep.subr.bf16.mxu0 0
      %3690 = vmatpush1.bf16.xpose.msra.mxu0 0
      %3691 = vmatprep.subr.bf16.mxu0 0
      %3692 = vmatpush1.bf16.xpose.msra.mxu0 0
      %3693 = vmatprep.subr.bf16.mxu0 0
      %3694 = vmatpush1.bf16.xpose.msra.mxu0 0
      %3695 = vmatprep.subr.bf16.mxu0 0
      %3696 = vmatpush1.bf16.xpose.msra.mxu0 0
      %3697 = vmatprep.subr.bf16.mxu0 0
      %3698 = vmatpush1.bf16.xpose.msra.mxu0 0
      %3699 = vmatprep.subr.bf16.mxu0 0
      %3700 = vmatpush1.bf16.xpose.msra.mxu0 0
      %3701 = vmatprep.subr.bf16.mxu0 0
      %3702 = vmatpush1.bf16.xpose.msra.mxu0 0
      %3703 = vmatprep.subr.bf16.mxu0 0
      %3704 = vmatpush1.bf16.xpose.msra.mxu0 0
      %3705 = vmatprep.subr.bf16.mxu0 0
      %3706 = vmatpush1.bf16.xpose.msra.mxu0 0
      %3707 = vmatprep.mubr.bf16.mxu0 0
      %3708 = vmatmul.mubr.bf16.gmra.mrb[0].mxu0 %v3670
      %v3709 = vpop.f32.mrb[0].mxu0
      %v3710 = vadd.f32 0.0, %v3709
      %v3711 = vpop.f32.mrb[0].mxu0
      %v3712 = vpop.f32.mrb[0].mxu0
      %v3713 = vpop.f32.mrb[0].mxu0
      %3714 = vdwg.mxu0
      %v3715 = vmul.f32 %v3710, 0.35355338
      %v3716 = vsel %vm2662, %v3715, -inf
      %3717 = vmax.xlane.f32.xlu0 %v3716
      %v3718 = vpop.xlane.xlu0 %3717
      %v3719 = vsub.f32 %v3715, %v3718
      %v3720 = vmul.f32 %v3719, 1.442695
      %v3721 = vpow.pop %v3720
      %v3722 = vsel %vm2662, %v3721, 0.0
      %3723 = vadd.xlane.f32.xlu0 %v3722
      %v3724 = vpop.xlane.xlu0 %3723
      %v3725 = vrcp.pop %v3724
      %v3726 = vmul.f32 %v3721, %v3725
      %v3727 = vpack.c.bf16 %v3726, %v3726
      %v3728 = vpack.c.bf16 %v3664, %v3661
      %v3730 = vsel %vm2662, %v3727, 0
      %3732 = vmatprep.subr.bf16.mxu0 0
      %3733 = vmatpush1.bf16.msra.mxu0 %v3728
      %3734 = vmatprep.subr.bf16.mxu0 0
      %3735 = vmatpush1.bf16.msra.mxu0 0
      %3736 = vmatprep.subr.bf16.mxu0 0
      %3737 = vmatpush1.bf16.msra.mxu0 0
      %3738 = vmatprep.subr.bf16.mxu0 0
      %3739 = vmatpush1.bf16.msra.mxu0 0
      %3740 = vmatprep.subr.bf16.mxu0 0
      %3741 = vmatpush1.bf16.msra.mxu0 0
      %3742 = vmatprep.subr.bf16.mxu0 0
      %3743 = vmatpush1.bf16.msra.mxu0 0
      %3744 = vmatprep.subr.bf16.mxu0 0
      %3745 = vmatpush1.bf16.msra.mxu0 0
      %3746 = vmatprep.subr.bf16.mxu0 0
      %3747 = vmatpush1.bf16.msra.mxu0 0
      %3748 = vmatprep.subr.bf16.mxu0 0
      %3749 = vmatpush1.bf16.msra.mxu0 0
      %3750 = vmatprep.subr.bf16.mxu0 0
      %3751 = vmatpush1.bf16.msra.mxu0 0
      %3752 = vmatprep.subr.bf16.mxu0 0
      %3753 = vmatpush1.bf16.msra.mxu0 0
      %3754 = vmatprep.subr.bf16.mxu0 0
      %3755 = vmatpush1.bf16.msra.mxu0 0
      %3756 = vmatprep.subr.bf16.mxu0 0
      %3757 = vmatpush1.bf16.msra.mxu0 0
      %3758 = vmatprep.subr.bf16.mxu0 0
      %3759 = vmatpush1.bf16.msra.mxu0 0
      %3760 = vmatprep.subr.bf16.mxu0 0
      %3761 = vmatpush1.bf16.msra.mxu0 0
      %3762 = vmatprep.subr.bf16.mxu0 0
      %3763 = vmatpush1.bf16.msra.mxu0 0
      %3764 = vmatprep.mubr.bf16.mxu0 0
      %3765 = vmatmul.mubr.bf16.gmra.mrb[0].mxu0 %v3730
      %v3766 = vpop.f32.mrb[0].mxu0
      %v3767 = vadd.f32 0.0, %v3766
      %v3768 = vpop.f32.mrb[0].mxu0
      %v3769 = vpop.f32.mrb[0].mxu0
      %v3770 = vpop.f32.mrb[0].mxu0
      %3771 = vdwg.mxu0
      %v3772 = vpack.c.bf16 %v3767, %v3767
      %s3773 = scalar_lea.vmem %s41, 12
      %v3774 = vld [vmem:[%s3773] sm:$0xf]
      %v3776 = vsel %vm1154, %v3772, 0
      %v3779 = vsel %vm1218, %v3774, 0
      %3781 = vmatprep.subr.bf16.mxu0 0
      %3782 = vmatpush1.bf16.msra.mxu0 %v3779
      %3783 = vmatprep.subr.bf16.mxu0 0
      %3784 = vmatpush1.bf16.msra.mxu0 0
      %3785 = vmatprep.subr.bf16.mxu0 0
      %3786 = vmatpush1.bf16.msra.mxu0 0
      %3787 = vmatprep.subr.bf16.mxu0 0
      %3788 = vmatpush1.bf16.msra.mxu0 0
      %3789 = vmatprep.subr.bf16.mxu0 0
      %3790 = vmatpush1.bf16.msra.mxu0 0
      %3791 = vmatprep.subr.bf16.mxu0 0
      %3792 = vmatpush1.bf16.msra.mxu0 0
      %3793 = vmatprep.subr.bf16.mxu0 0
      %3794 = vmatpush1.bf16.msra.mxu0 0
      %3795 = vmatprep.subr.bf16.mxu0 0
      %3796 = vmatpush1.bf16.msra.mxu0 0
      %3797 = vmatprep.subr.bf16.mxu0 0
      %3798 = vmatpush1.bf16.msra.mxu0 0
      %3799 = vmatprep.subr.bf16.mxu0 0
      %3800 = vmatpush1.bf16.msra.mxu0 0
      %3801 = vmatprep.subr.bf16.mxu0 0
      %3802 = vmatpush1.bf16.msra.mxu0 0
      %3803 = vmatprep.subr.bf16.mxu0 0
      %3804 = vmatpush1.bf16.msra.mxu0 0
      %3805 = vmatprep.subr.bf16.mxu0 0
      %3806 = vmatpush1.bf16.msra.mxu0 0
      %3807 = vmatprep.subr.bf16.mxu0 0
      %3808 = vmatpush1.bf16.msra.mxu0 0
      %3809 = vmatprep.subr.bf16.mxu0 0
      %3810 = vmatpush1.bf16.msra.mxu0 0
      %3811 = vmatprep.subr.bf16.mxu0 0
      %3812 = vmatpush1.bf16.msra.mxu0 0
      %3813 = vmatprep.mubr.bf16.mxu0 0
      %3814 = vmatmul.mubr.bf16.gmra.mrb[0].mxu0 %v3776
      %v3815 = vpop.f32.mrb[0].mxu0
      %v3816 = vadd.f32 0.0, %v3815
      %v3817 = vpop.f32.mrb[0].mxu0
      %v3818 = vpop.f32.mrb[0].mxu0
      %v3819 = vpop.f32.mrb[0].mxu0
      %3820 = vdwg.mxu0
      %v3821 = vadd.f32 %v3469, %v3816
      %v3822 = vld [vmem:[%s43] sm:$0x1]
      %v3824 = vlaneseq
      %v3825 = vshrl.u32 %v3824, 7
      %v3826 = vsub.s32 0, %v3825
      %v3827 = vrot.slane %v3822, %v3826
      %v3829 = vadd.f32 %v3821, %v3827
      %v3830 = vadd.f32 %v2406, %v3829
      %v3831 = vld [vmem:[%s45] sm:$0x1]
      %v3832 = vld [vmem:[%s47] sm:$0x1]
      %v3833 = vsel %vm979, %v3830, 0.0
      %3834 = vadd.xlane.f32.xlu0 %v3833
      %v3835 = vpop.xlane.xlu0 %3834
      %v3836 = vmul.f32 %v3835, %v2382
      %v3837 = vsub.f32 %v3830, %v3836
      %v3838 = vmul.f32 %v3837, %v3837
      %v3839 = vsel %vm979, %v3838, 0.0
      %3840 = vadd.xlane.f32.xlu0 %v3839
      %v3841 = vpop.xlane.xlu0 %3840
      %v3842 = vmul.f32 %v3841, %v2382
      %v3843 = vadd.f32 %v3842, 1e-05
      %v3844 = vrsqrt.pop %v3843
      %v3845 = vmul.f32 %v3837, %v3844
      %v3847 = vlaneseq
      %v3848 = vshrl.u32 %v3847, 7
      %v3849 = vsub.s32 0, %v3848
      %v3850 = vrot.slane %v3831, %v3849
      %v3852 = vmul.f32 %v3845, %v3850
      %v3854 = vlaneseq
      %v3855 = vshrl.u32 %v3854, 7
      %v3856 = vsub.s32 0, %v3855
      %v3857 = vrot.slane %v3832, %v3856
      %v3859 = vadd.f32 %v3852, %v3857
      %v3860 = vpack.c.bf16 %v3859, %v3859
      %v3861 = vld [vmem:[%s49] sm:$0xf]
      %v3862 = vld [vmem:[%s49 + $0x4] sm:$0xf]
      %v3863 = vld [vmem:[%s49 + $0x8] sm:$0xf]
      %v3864 = vld [vmem:[%s49 + $0xc] sm:$0xf]
      %v3865 = vld [vmem:[%s51] sm:$0x1]
      %v3867 = vlaneseq
      %v3868 = vshrl.u32 %v3867, 7
      %v3869 = vsub.s32 0, %v3868
      %v3870 = vrot.slane %v3865, %v3869
      %v3876 = vunpack.c.l.b16 %v3861
      %v3877 = vunpack.c.l.b16 %v3862
      %v3878 = vunpack.c.l.b16 %v3863
      %v3879 = vunpack.c.l.b16 %v3864
      %v3880 = vpack.c.b16 %v3877, %v3876
      %v3881 = vpack.c.b16 %v3879, %v3878
      %v3885 = vsel %vm979, %v3860, 0
      %3887 = vmatprep.subr.bf16.mxu0 0
      %3888 = vmatpush1.bf16.msra.mxu0 %v3880
      %3889 = vmatprep.subr.bf16.mxu0 0
      %3890 = vmatpush1.bf16.msra.mxu0 %v3881
      %3891 = vmatprep.subr.bf16.mxu0 0
      %3892 = vmatpush1.bf16.msra.mxu0 0
      %3893 = vmatprep.subr.bf16.mxu0 0
      %3894 = vmatpush1.bf16.msra.mxu0 0
      %3895 = vmatprep.subr.bf16.mxu0 0
      %3896 = vmatpush1.bf16.msra.mxu0 0
      %3897 = vmatprep.subr.bf16.mxu0 0
      %3898 = vmatpush1.bf16.msra.mxu0 0
      %3899 = vmatprep.subr.bf16.mxu0 0
      %3900 = vmatpush1.bf16.msra.mxu0 0
      %3901 = vmatprep.subr.bf16.mxu0 0
      %3902 = vmatpush1.bf16.msra.mxu0 0
      %3903 = vmatprep.subr.bf16.mxu0 0
      %3904 = vmatpush1.bf16.msra.mxu0 0
      %3905 = vmatprep.subr.bf16.mxu0 0
      %3906 = vmatpush1.bf16.msra.mxu0 0
      %3907 = vmatprep.subr.bf16.mxu0 0
      %3908 = vmatpush1.bf16.msra.mxu0 0
      %3909 = vmatprep.subr.bf16.mxu0 0
      %3910 = vmatpush1.bf16.msra.mxu0 0
      %3911 = vmatprep.subr.bf16.mxu0 0
      %3912 = vmatpush1.bf16.msra.mxu0 0
      %3913 = vmatprep.subr.bf16.mxu0 0
      %3914 = vmatpush1.bf16.msra.mxu0 0
      %3915 = vmatprep.subr.bf16.mxu0 0
      %3916 = vmatpush1.bf16.msra.mxu0 0
      %3917 = vmatprep.subr.bf16.mxu0 0
      %3918 = vmatpush1.bf16.msra.mxu0 0
      %3919 = vmatprep.mubr.bf16.mxu0 0
      %3920 = vmatmul.mubr.bf16.gmra.mrb[0].mxu0 %v3885
      %v3921 = vpop.f32.mrb[0].mxu0
      %v3922 = vadd.f32 %v3870, %v3921
      %v3923 = vpop.f32.mrb[0].mxu0
      %v3924 = vpop.f32.mrb[0].mxu0
      %v3925 = vpop.f32.mrb[0].mxu0
      %3926 = vdwg.mxu0
      %v3927 = vmax.f32 %v3922, 0.0
      %v3928 = vpack.c.bf16 %v3927, %v3927
      %v3929 = vld [vmem:[%s53] sm:$0xf]
      %v3930 = vld [vmem:[%s53 + $0x4] sm:$0xf]
      %v3931 = vld [vmem:[%s53 + $0x8] sm:$0xf]
      %v3932 = vld [vmem:[%s53 + $0xc] sm:$0xf]
      %v3933 = vld [vmem:[%s53 + $0x10] sm:$0xf]
      %v3934 = vld [vmem:[%s53 + $0x14] sm:$0xf]
      %v3935 = vld [vmem:[%s53 + $0x18] sm:$0xf]
      %v3936 = vld [vmem:[%s53 + $0x1c] sm:$0xf]
      %v3937 = vld [vmem:[%s55] sm:$0x1]
      %v3939 = vlaneseq
      %v3940 = vshrl.u32 %v3939, 7
      %v3941 = vsub.s32 0, %v3940
      %v3942 = vrot.slane %v3937, %v3941
      %v3952 = vunpack.c.l.b16 %v3929
      %v3953 = vunpack.c.l.b16 %v3930
      %v3954 = vunpack.c.l.b16 %v3931
      %v3955 = vunpack.c.l.b16 %v3932
      %v3956 = vunpack.c.l.b16 %v3933
      %v3957 = vunpack.c.l.b16 %v3934
      %v3958 = vunpack.c.l.b16 %v3935
      %v3959 = vunpack.c.l.b16 %v3936
      %v3960 = vpack.c.b16 %v3953, %v3952
      %v3961 = vpack.c.b16 %v3955, %v3954
      %v3962 = vpack.c.b16 %v3957, %v3956
      %v3963 = vpack.c.b16 %v3959, %v3958
      %vm3968 = vcmask 523264
      %v3970 = vsel %vm3968, %v3928, 0
      %3972 = vmatprep.subr.bf16.mxu0 0
      %3973 = vmatpush1.bf16.msra.mxu0 %v3960
      %3974 = vmatprep.subr.bf16.mxu0 0
      %3975 = vmatpush1.bf16.msra.mxu0 %v3961
      %3976 = vmatprep.subr.bf16.mxu0 0
      %3977 = vmatpush1.bf16.msra.mxu0 %v3962
      %3978 = vmatprep.subr.bf16.mxu0 0
      %3979 = vmatpush1.bf16.msra.mxu0 %v3963
      %3980 = vmatprep.subr.bf16.mxu0 0
      %3981 = vmatpush1.bf16.msra.mxu0 0
      %3982 = vmatprep.subr.bf16.mxu0 0
      %3983 = vmatpush1.bf16.msra.mxu0 0
      %3984 = vmatprep.subr.bf16.mxu0 0
      %3985 = vmatpush1.bf16.msra.mxu0 0
      %3986 = vmatprep.subr.bf16.mxu0 0
      %3987 = vmatpush1.bf16.msra.mxu0 0
      %3988 = vmatprep.subr.bf16.mxu0 0
      %3989 = vmatpush1.bf16.msra.mxu0 0
      %3990 = vmatprep.subr.bf16.mxu0 0
      %3991 = vmatpush1.bf16.msra.mxu0 0
      %3992 = vmatprep.subr.bf16.mxu0 0
      %3993 = vmatpush1.bf16.msra.mxu0 0
      %3994 = vmatprep.subr.bf16.mxu0 0
      %3995 = vmatpush1.bf16.msra.mxu0 0
      %3996 = vmatprep.subr.bf16.mxu0 0
      %3997 = vmatpush1.bf16.msra.mxu0 0
      %3998 = vmatprep.subr.bf16.mxu0 0
      %3999 = vmatpush1.bf16.msra.mxu0 0
      %4000 = vmatprep.subr.bf16.mxu0 0
      %4001 = vmatpush1.bf16.msra.mxu0 0
      %4002 = vmatprep.subr.bf16.mxu0 0
      %4003 = vmatpush1.bf16.msra.mxu0 0
      %4004 = vmatprep.mubr.bf16.mxu0 0
      %4005 = vmatmul.mubr.bf16.gmra.mrb[0].mxu0 %v3970
      %v4006 = vpop.f32.mrb[0].mxu0
      %v4007 = vadd.f32 %v3942, %v4006
      %v4008 = vpop.f32.mrb[0].mxu0
      %v4009 = vpop.f32.mrb[0].mxu0
      %v4010 = vpop.f32.mrb[0].mxu0
      %4011 = vdwg.mxu0
      %v4012 = vadd.f32 %v3859, %v4007
      %v4013 = vld [vmem:[%s57] sm:$0x1]
      %v4014 = vld [vmem:[%s59] sm:$0x1]
      %v4015 = vsel %vm979, %v4012, 0.0
      %4016 = vadd.xlane.f32.xlu0 %v4015
      %v4017 = vpop.xlane.xlu0 %4016
      %v4018 = vmul.f32 %v4017, %v2382
      %v4019 = vsub.f32 %v4012, %v4018
      %v4020 = vmul.f32 %v4019, %v4019
      %v4021 = vsel %vm979, %v4020, 0.0
      %4022 = vadd.xlane.f32.xlu0 %v4021
      %v4023 = vpop.xlane.xlu0 %4022
      %v4024 = vmul.f32 %v4023, %v2382
      %v4025 = vadd.f32 %v4024, 1e-05
      %v4026 = vrsqrt.pop %v4025
      %v4027 = vmul.f32 %v4019, %v4026
      %v4029 = vlaneseq
      %v4030 = vshrl.u32 %v4029, 7
      %v4031 = vsub.s32 0, %v4030
      %v4032 = vrot.slane %v4013, %v4031
      %v4034 = vmul.f32 %v4027, %v4032
      %v4036 = vlaneseq
      %v4037 = vshrl.u32 %v4036, 7
      %v4038 = vsub.s32 0, %v4037
      %v4039 = vrot.slane %v4014, %v4038
      %v4041 = vadd.f32 %v4034, %v4039
      %4042 = vst.msk [vmem:[%s945] sm:$0xff] %vm979, %v4041
      %p4043 = scmp.lt.s32.totalorder %s72, 1
      %s4044 = scalar_select %p4043, %s72, 1
      %s4045 = smul.addr %s4044, 8
      %s4046 = scalar_lea.vmem %s61, %s4045
      // Predicated region
      $region141: #{vision_detr_forward.9} parent=139 // pred_check
        %p4047 = pneg %p730
      $region142: #{vision_detr_forward.9} parent=139 // pred_check_branch
        %4049 = sbr.rel (%p4047) target = $region144
      $region143: #{vision_detr_forward.9} parent=139 // pred_region
        _
      $region144: #{vision_detr_forward.9} parent=139 // pred_fallthru
        _
    $region140: #{vision_detr_forward.9} parent=5 // pred_fallthru
      _
    %p4050 = scmp.le.s32.totalorder 2, %s67
    // Predicated region
    $region145: #{vision_detr_forward.9} parent=5 // pred_check
      %p4051 = pneg %p4050
    $region146: #{vision_detr_forward.9} parent=5 // pred_check_branch
      %4053 = sbr.rel (%p4051) target = $region148
    $region147: #{vision_detr_forward.9} parent=5 // pred_region
      %s4054 = ssub.s32 %s67, 2
      // Predicated region
      $region149: #{vision_detr_forward.9} parent=147 // pred_check
        %p4055 = pneg %p736
      $region150: #{vision_detr_forward.9} parent=147 // pred_check_branch
        %4057 = sbr.rel (%p4055) target = $region152
      $region151: #{vision_detr_forward.9} parent=147 // pred_region
        %p4058 = scmp.lt.s32.totalorder %s73, 1
        %s4059 = scalar_select %p4058, %s73, 1
        %s4060 = smul.addr %s4059, 8
        %s4061 = scalar_lea.vmem %s61, %s4060
      $region152: #{vision_detr_forward.9} parent=147 // pred_fallthru
        _
    $region148: #{vision_detr_forward.9} parent=5 // pred_fallthru
      _
  $region6: #{vision_detr_forward.9} parent=0 // loop_footer
    %s71 = sadd.s32 1, %s67
  $region7: #{vision_detr_forward.9} parent=0 // loop_footer_branch
    %66 = sbr.rel target = $region3
  $region8: #{vision_detr_forward.9} parent=0 // loop_exit
    _

</llo_original>
